<compile_context>
chip_gen: v7x
topology: tpu7x:2x2x1
jax: 0.10.0
libtpu: 0.0.40
codegen_flags: <defaults>
</compile_context>

<pallas_src>
import numpy as np
import jax
import jax.numpy as jnp
from jax import lax
from jax.experimental import pallas as pl
from jax.experimental.pallas import tpu as pltpu


# Fixed depthwise filters (cross-correlation convention, same as F.conv2d).
SOBEL_X = ((1.0, 0.0, -1.0), (2.0, 0.0, -2.0), (1.0, 0.0, -1.0))
SOBEL_Y = ((1.0, 2.0, 1.0), (0.0, 0.0, 0.0), (-1.0, -2.0, -1.0))
LAPLACE = ((0.0, 1.0, 0.0), (1.0, -4.0, 1.0), (0.0, 1.0, 0.0))


def _rup(x, m):
    return ((x + m - 1) // m) * m


# --------------------------- fused Pallas kernel ----------------------------
def make_ecbsr_kernel(P, WP, cfgs):
    """P = lane-padded flat spatial size (multiple of 128), WP = W+2,
    cfgs = per-block static config (padded cout/mid, prelu flag)."""
    nb = len(cfgs)
    all_shifts = [(dy - 1) * WP + (dx - 1) for dy in range(3) for dx in range(3)]

    def kernel(*refs):
        mask_ref, x_ref = refs[0], refs[1]
        wrefs = refs[2:2 + 3 * nb]
        o_ref = refs[2 + 3 * nb]

        # interior mask, computed once and reused for every select below
        interior = mask_ref[...] > 0.5                       # (1, P) bool

        def tap(v, s):
            # tap(v, s)[:, p] == v[:, p + s]  — in-register XLU lane rotation.
            # Wrap garbage only reaches halo/pad output lanes (masked later).
            if s == 0:
                return v
            return pltpu.roll(v, shift=(-s) % P, axis=1)

        a = x_ref[...]                                       # (cin_p, P), zero halo
        for bi, cfg in enumerate(cfgs):
            w33_ref, w0_ref, c_ref = wrefs[3 * bi:3 * bi + 3]
            cout, mid = cfg['cout'], cfg['mid']
            y0rows = mid + 3 * cout

            b0 = c_ref[0:y0rows, :]                          # 1x1 biases (packed)
            bsum = c_ref[y0rows:y0rows + cout, :]            # pre-summed out biases

            # fused 1x1 projections of all four seq-conv branches (one matmul)
            y0 = jnp.dot(w0_ref[...], a, preferred_element_type=jnp.float32) + b0
            y0 = jnp.where(interior, y0, 0.0)                # zero-padded intermediate

            # branch 1 (regular 3x3 on a) + branch 2 (3x3 on y0a), fused as
            # 9 small per-tap dots with K = cin_p + mid_p — no im2col concat.
            ay = jnp.concatenate([a, y0[:mid]], axis=0)      # (cin_p+mid_p, P)
            acc = None
            for t, s in enumerate(all_shifts):
                d = jnp.dot(w33_ref[t], tap(ay, s),
                            preferred_element_type=jnp.float32)
                acc = d if acc is None else acc + d

            # branches 3/4/5: fixed depthwise filters on the 1x1 projections.
            # Separable Sobel; the +-1 lane taps are shared across all three.
            ydw = y0[mid:]                                   # (3*cout, P)
            left = tap(ydw, -1)                              # y0[..., j-1]
            right = tap(ydw, +1)                             # y0[..., j+1]
            # sobel-x = [1,2,1]^T (outer) [1,0,-1]
            h = left[:cout] - right[:cout]
            acc = acc + tap(h, -WP) + 2.0 * h + tap(h, +WP)
            # sobel-y = [1,0,-1]^T (outer) [1,2,1]
            g = (left[cout:2 * cout] + 2.0 * ydw[cout:2 * cout]
                 + right[cout:2 * cout])
            acc = acc + tap(g, -WP) - tap(g, +WP)
            # laplacian
            yl = ydw[2 * cout:]
            acc = (acc + left[2 * cout:] + right[2 * cout:]
                   + tap(yl, -WP) + tap(yl, +WP) - 4.0 * yl)

            acc = acc + bsum
            if cfg['prelu']:
                alpha = c_ref[y0rows + cout:y0rows + 2 * cout, :]
                acc = jnp.where(acc >= 0.0, acc, acc * alpha)
            # re-zero halo/pad lanes so the next block sees proper zero padding
            a = jnp.where(interior, acc, 0.0)

        o_ref[...] = a

    return kernel


# ------------------------- parameter pre-processing -------------------------
def _prep_block(p, cin_p):
    """Pad channels to multiples of 8, fuse weights into the formats the
    kernel consumes (per-tap fused 3x3 weights, fused 1x1 weights, packed
    per-block constants)."""
    cout = int(p['w3'].shape[-1])
    mid = int(p['w0a'].shape[-1])
    cout_p = _rup(cout, 8)
    mid_p = _rup(mid, 8)

    def pad_to(a, shape):
        return jnp.pad(a, [(0, t - s) for s, t in zip(a.shape, shape)])

    # per-tap fused 3x3 weights: w33[t] = [w3_tap.T | w1a_tap.T], t = dy*3+dx
    w3 = pad_to(p['w3'], (3, 3, cin_p, cout_p))              # HWIO
    w1a = pad_to(p['w1a'], (3, 3, mid_p, cout_p))
    w3t = jnp.transpose(w3, (0, 1, 3, 2)).reshape(9, cout_p, cin_p)
    w1t = jnp.transpose(w1a, (0, 1, 3, 2)).reshape(9, cout_p, mid_p)
    w33 = jnp.concatenate([w3t, w1t], axis=2)                # (9, cout_p, cin_p+mid_p)

    # fused 1x1 projections (mid | sobelx | sobely | laplacian)
    w0all = jnp.concatenate([pad_to(p['w0a'], (cin_p, mid_p)),
                             pad_to(p['w0b'], (cin_p, cout_p)),
                             pad_to(p['w0c'], (cin_p, cout_p)),
                             pad_to(p['w0d'], (cin_p, cout_p))], axis=1).T

    # packed tiny constants: [b0all | bsum | alpha] along sublanes
    b0all = jnp.concatenate([pad_to(p['b0a'], (mid_p,)),
                             pad_to(p['b0b'], (cout_p,)),
                             pad_to(p['b0c'], (cout_p,)),
                             pad_to(p['b0d'], (cout_p,))])
    bsum = pad_to(p['b3'] + p['b1a'] + p['bsx'] + p['bsy'] + p['blp'], (cout_p,))
    alpha = pad_to(p['alpha'], (cout_p,))
    consts = jnp.concatenate([b0all, bsum, alpha]).reshape(-1, 1)

    arrays = [w33, w0all, consts]
    cfg = {'cout': cout_p, 'mid': mid_p, 'cout_real': cout}
    return arrays, cfg


# ------------------------------ fused backbone ------------------------------
def ecbsr_backbone_pallas(x_nchw, blocks):
    N, Cin, H, W = (int(d) for d in x_nchw.shape)
    HP, WP = H + 2, W + 2
    Pv = HP * WP
    P = _rup(Pv, 128)                                        # lane-dense flat size
    cin_p = _rup(Cin, 8)

    # zero spatial halo + zero channel padding, flattened, lane-padded to P
    xpad = jnp.pad(x_nchw, ((0, 0), (0, cin_p - Cin), (1, 1), (1, 1)))
    xf = jnp.pad(xpad.reshape(N, cin_p, Pv), ((0, 0), (0, 0), (0, P - Pv)))

    rr = jnp.arange(HP)
    cc = jnp.arange(WP)
    m2 = ((rr >= 1) & (rr <= H))[:, None] & ((cc >= 1) & (cc <= W))[None, :]
    mask = jnp.pad(m2.astype(jnp.float32).reshape(1, Pv),
                   ((0, 0), (0, P - Pv)))                    # (1, P)

    arrays, cfgs = [], []
    cprev = cin_p
    for i, p in enumerate(blocks):
        arrs, cfg = _prep_block(p, cprev)
        cfg['prelu'] = (i < len(blocks) - 1)                 # last ECB is 'linear'
        arrays += arrs
        cfgs.append(cfg)
        cprev = cfg['cout']
    c_last_p = cprev
    c_last = cfgs[-1]['cout_real']

    kernel = make_ecbsr_kernel(P, WP, cfgs)

    def _const_spec(a):
        nd = a.ndim
        return pl.BlockSpec(tuple(int(s) for s in a.shape),
                            lambda n, _nd=nd: (0,) * _nd)

    in_specs = [_const_spec(mask),
                pl.BlockSpec((None, cin_p, P), lambda n: (n, 0, 0))]
    in_specs += [_const_spec(w) for w in arrays]

    out = pl.pallas_call(
        kernel,
        out_shape=jax.ShapeDtypeStruct((N, c_last_p, P), jnp.float32),
        grid=(N,),
        in_specs=in_specs,
        out_specs=pl.BlockSpec((None, c_last_p, P), lambda n: (n, 0, 0)),
        compiler_params=pltpu.CompilerParams(
            dimension_semantics=("parallel",)),
    )(mask, xf, *arrays)

    # slice the valid lanes first (P was padded to a multiple of 128)
    out = out[:, :, :Pv].reshape(N, c_last_p, HP, WP)
    return out[:, :c_last, 1:1 + H, 1:1 + W]


# ------------------------------ full ECBSR ----------------------------------
def pixel_shuffle(y, r):
    N, C, H, W = y.shape
    co = C // (r * r)
    y = y.reshape(N, co, r, r, H, W)
    y = jnp.transpose(y, (0, 1, 4, 2, 5, 3))
    return y.reshape(N, co, H * r, W * r)


def ecbsr_forward_pallas(x_nchw, blocks, num_in_ch, scale):
    y = ecbsr_backbone_pallas(x_nchw, blocks)
    if num_in_ch > 1:
        shortcut = jnp.repeat(x_nchw, scale * scale, axis=1)
    else:
        shortcut = x_nchw
    return pixel_shuffle(y + shortcut, scale)


# ----------------------------- pure-JAX reference ---------------------------
def ecb_block_ref(x, p, apply_prelu):
    dn = ('NCHW', 'HWIO', 'NCHW')
    cout = p['w3'].shape[-1]

    def conv(v, w, groups=1):
        return lax.conv_general_dilated(v, w, (1, 1), 'SAME',
                                        dimension_numbers=dn,
                                        feature_group_count=groups)

    def b_(b):
        return b.reshape(1, -1, 1, 1)

    y = conv(x, p['w3']) + b_(p['b3'])
    y0a = conv(x, p['w0a'].reshape(1, 1, *p['w0a'].shape)) + b_(p['b0a'])
    y = y + conv(y0a, p['w1a']) + b_(p['b1a'])
    for w0, b0, bdw, filt in ((p['w0b'], p['b0b'], p['bsx'], SOBEL_X),
                              (p['w0c'], p['b0c'], p['bsy'], SOBEL_Y),
                              (p['w0d'], p['b0d'], p['blp'], LAPLACE)):
        y0 = conv(x, w0.reshape(1, 1, *w0.shape)) + b_(b0)
        f = jnp.asarray(filt, jnp.float32)[:, :, None, None]
        dwf = jnp.broadcast_to(f, (3, 3, 1, cout))
        y = y + conv(y0, dwf, groups=cout) + b_(bdw)
    if apply_prelu:
        y = jnp.where(y >= 0.0, y, y * b_(p['alpha']))
    return y


def ecbsr_forward_ref(x_nchw, blocks, num_in_ch, scale):
    y = x_nchw
    for i, p in enumerate(blocks):
        y = ecb_block_ref(y, p, i < len(blocks) - 1)
    if num_in_ch > 1:
        shortcut = jnp.repeat(x_nchw, scale * scale, axis=1)
    else:
        shortcut = x_nchw
    return pixel_shuffle(y + shortcut, scale)


# --------------------------- parameter construction -------------------------
def init_ecb_params(key, cin, cout, depth_multiplier=2.0):
    mid = int(cout * depth_multiplier)
    ks = jax.random.split(key, 14)

    def u(k, shape, fan_in):
        bound = 1.0 / np.sqrt(fan_in)
        return jax.random.uniform(k, shape, jnp.float32, -bound, bound)

    p = {
        'w3':  u(ks[0], (3, 3, cin, cout), cin * 9),
        'b3':  u(ks[1], (cout,), cin * 9),
        'w0a': u(ks[2], (cin, mid), cin),
        'b0a': u(ks[3], (mid,), cin),
        'w1a': u(ks[4], (3, 3, mid, cout), mid * 9),
        'b1a': u(ks[5], (cout,), mid * 9),
        'w0b': u(ks[6], (cin, cout), cin),
        'b0b': u(ks[7], (cout,), cin),
        'bsx': u(ks[8], (cout,), 9),
        'w0c': u(ks[9], (cin, cout), cin),
        'b0c': u(ks[10], (cout,), cin),
        'bsy': u(ks[11], (cout,), 9),
        'w0d': u(ks[12], (cin, cout), cin),
        'b0d': u(ks[13], (cout,), cin),
        'blp': jnp.zeros((cout,), jnp.float32),
        'alpha': jnp.full((cout,), 0.25, jnp.float32),   # nn.PReLU default
    }
    return p


if __name__ == "__main__":
    # ECBSR config (small): num_in_ch=3, num_out_ch=3, num_block=1,
    # num_channel=8, with_idt=False, act_type='prelu', scale=2.
    num_in_ch, num_out_ch = 3, 3
    num_block, num_channel = 1, 8
    scale = 2
    N, H, W = 2, 16, 16

    key = jax.random.PRNGKey(0)
    kx, kp = jax.random.split(key)
    x = jax.random.normal(kx, (N, num_in_ch, H, W), jnp.float32)  # NCHW input

    chans = ([(num_in_ch, num_channel)]
             + [(num_channel, num_channel)] * num_block
             + [(num_channel, num_out_ch * scale * scale)])
    keys = jax.random.split(kp, len(chans))
    blocks = [init_ecb_params(k, ci, co) for k, (ci, co) in zip(keys, chans)]

    run_pallas = jax.jit(
        lambda xx: ecbsr_forward_pallas(xx, blocks, num_in_ch, scale))
    run_ref = jax.jit(
        lambda xx: ecbsr_forward_ref(xx, blocks, num_in_ch, scale))

    out = jax.block_until_ready(run_pallas(x))
    ref = jax.block_until_ready(run_ref(x))

    assert out.shape == (N, num_out_ch, H * scale, W * scale), out.shape
    np.testing.assert_allclose(np.asarray(out), np.asarray(ref),
                               rtol=1e-3, atol=1e-3)
    print("KERNEL_OK")
</pallas_src>

<mosaic_0001>
module attributes {stable_mosaic.version = 11 : i64} {
  func.func @kernel(%arg0: i32, %arg1: memref<1x384xf32, #tpu.memory_space<vmem>>, %arg2: memref<1x8x384xf32, #tpu.memory_space<vmem>>, %arg3: memref<9x8x24xf32, #tpu.memory_space<vmem>>, %arg4: memref<40x8xf32, #tpu.memory_space<vmem>>, %arg5: memref<56x1xf32, #tpu.memory_space<vmem>>, %arg6: memref<9x8x24xf32, #tpu.memory_space<vmem>>, %arg7: memref<40x8xf32, #tpu.memory_space<vmem>>, %arg8: memref<56x1xf32, #tpu.memory_space<vmem>>, %arg9: memref<9x16x32xf32, #tpu.memory_space<vmem>>, %arg10: memref<72x8xf32, #tpu.memory_space<vmem>>, %arg11: memref<104x1xf32, #tpu.memory_space<vmem>>, %arg12: memref<1x16x384xf32, #tpu.memory_space<vmem>>) attributes {dimension_semantics = [#tpu.dimension_semantics<parallel>], iteration_bounds = array<i64: 2>, scalar_prefetch = 0 : i64, scratch_operands = 0 : i64, tpu.core_type = #tpu.core_type<tc>, window_params = [{pipeline_mode = #tpu.pipeline_mode<synchronous>, transform_indices = @transform_0, window_bounds = array<i64: 1, 384>}, {transform_indices = @transform_1, window_bounds = array<i64: 1, 8, 384>}, {pipeline_mode = #tpu.pipeline_mode<synchronous>, transform_indices = @transform_2, window_bounds = array<i64: 9, 8, 24>}, {pipeline_mode = #tpu.pipeline_mode<synchronous>, transform_indices = @transform_3, window_bounds = array<i64: 40, 8>}, {pipeline_mode = #tpu.pipeline_mode<synchronous>, transform_indices = @transform_4, window_bounds = array<i64: 56, 1>}, {pipeline_mode = #tpu.pipeline_mode<synchronous>, transform_indices = @transform_5, window_bounds = array<i64: 9, 8, 24>}, {pipeline_mode = #tpu.pipeline_mode<synchronous>, transform_indices = @transform_6, window_bounds = array<i64: 40, 8>}, {pipeline_mode = #tpu.pipeline_mode<synchronous>, transform_indices = @transform_7, window_bounds = array<i64: 56, 1>}, {pipeline_mode = #tpu.pipeline_mode<synchronous>, transform_indices = @transform_8, window_bounds = array<i64: 9, 16, 32>}, {pipeline_mode = #tpu.pipeline_mode<synchronous>, transform_indices = @transform_9, window_bounds = array<i64: 72, 8>}, {pipeline_mode = #tpu.pipeline_mode<synchronous>, transform_indices = @transform_10, window_bounds = array<i64: 104, 1>}, {transform_indices = @transform_11, window_bounds = array<i64: 1, 16, 384>}]} {
    %c0 = arith.constant 0 : index
    %c0_0 = arith.constant 0 : index
    %0 = vector.load %arg1[%c0, %c0_0] : memref<1x384xf32, #tpu.memory_space<vmem>>, vector<1x384xf32>
    %cst = arith.constant 5.000000e-01 : f32
    %1 = vector.broadcast %cst : f32 to vector<1x384xf32>
    %2 = arith.cmpf ogt, %0, %1 : vector<1x384xf32>
    %c0_1 = arith.constant 0 : index
    %c0_2 = arith.constant 0 : index
    %c0_3 = arith.constant 0 : index
    %3 = vector.load %arg2[%c0_1, %c0_2, %c0_3] : memref<1x8x384xf32, #tpu.memory_space<vmem>>, vector<1x8x384xf32>
    %4 = vector.shape_cast %3 : vector<1x8x384xf32> to vector<8x384xf32>
    %c0_4 = arith.constant 0 : index
    %c0_5 = arith.constant 0 : index
    %5 = vector.load %arg5[%c0_4, %c0_5] : memref<56x1xf32, #tpu.memory_space<vmem>>, vector<40x1xf32>
    %c40 = arith.constant 40 : index
    %c0_6 = arith.constant 0 : index
    %6 = vector.load %arg5[%c40, %c0_6] : memref<56x1xf32, #tpu.memory_space<vmem>>, vector<8x1xf32>
    %c0_7 = arith.constant 0 : index
    %c0_8 = arith.constant 0 : index
    %7 = vector.load %arg4[%c0_7, %c0_8] : memref<40x8xf32, #tpu.memory_space<vmem>>, vector<40x8xf32>
    %cst_9 = arith.constant dense<0.000000e+00> : vector<40x384xf32>
    %8 = tpu.matmul %7, %4, %cst_9 {dimension_numbers = #tpu.dot_dimension_numbers<[1], [0], [0], [1], [0, 0, 1, 1], [], []>} : vector<40x8xf32>, vector<8x384xf32>, vector<40x384xf32> -> vector<40x384xf32>
    %9 = vector.broadcast %5 : vector<40x1xf32> to vector<40x384xf32>
    %10 = arith.addf %8, %9 : vector<40x384xf32>
    %cst_10 = arith.constant 0.000000e+00 : f32
    %11 = vector.shape_cast %2 : vector<1x384xi1> to vector<1x384xi1>
    %12 = vector.broadcast %11 : vector<1x384xi1> to vector<40x384xi1>
    %13 = vector.broadcast %cst_10 : f32 to vector<40x384xf32>
    %14 = arith.select %12, %10, %13 : vector<40x384xi1>, vector<40x384xf32>
    %15 = vector.extract_strided_slice %14 {offsets = [0, 0], sizes = [16, 384], strides = [1, 1]} : vector<40x384xf32> to vector<16x384xf32>
    %16 = tpu.concatenate %4, %15 in 0 : vector<8x384xf32>, vector<16x384xf32> -> vector<24x384xf32>
    %c0_11 = arith.constant 0 : index
    %c0_12 = arith.constant 0 : index
    %c0_13 = arith.constant 0 : index
    %17 = vector.load %arg3[%c0_11, %c0_12, %c0_13] : memref<9x8x24xf32, #tpu.memory_space<vmem>>, vector<1x8x24xf32>
    %18 = vector.shape_cast %17 : vector<1x8x24xf32> to vector<8x24xf32>
    %c19_i32 = arith.constant 19 : i32
    %19 = tpu.dynamic_rotate %16 by %c19_i32 dim 1 : vector<24x384xf32>, i32 -> vector<24x384xf32>
    %cst_14 = arith.constant dense<0.000000e+00> : vector<8x384xf32>
    %20 = tpu.matmul %18, %19, %cst_14 {dimension_numbers = #tpu.dot_dimension_numbers<[1], [0], [0], [1], [0, 0, 1, 1], [], []>} : vector<8x24xf32>, vector<24x384xf32>, vector<8x384xf32> -> vector<8x384xf32>
    %c1 = arith.constant 1 : index
    %c0_15 = arith.constant 0 : index
    %c0_16 = arith.constant 0 : index
    %21 = vector.load %arg3[%c1, %c0_15, %c0_16] : memref<9x8x24xf32, #tpu.memory_space<vmem>>, vector<1x8x24xf32>
    %22 = vector.shape_cast %21 : vector<1x8x24xf32> to vector<8x24xf32>
    %c18_i32 = arith.constant 18 : i32
    %23 = tpu.dynamic_rotate %16 by %c18_i32 dim 1 : vector<24x384xf32>, i32 -> vector<24x384xf32>
    %cst_17 = arith.constant dense<0.000000e+00> : vector<8x384xf32>
    %24 = tpu.matmul %22, %23, %cst_17 {dimension_numbers = #tpu.dot_dimension_numbers<[1], [0], [0], [1], [0, 0, 1, 1], [], []>} : vector<8x24xf32>, vector<24x384xf32>, vector<8x384xf32> -> vector<8x384xf32>
    %25 = arith.addf %20, %24 : vector<8x384xf32>
    %c2 = arith.constant 2 : index
    %c0_18 = arith.constant 0 : index
    %c0_19 = arith.constant 0 : index
    %26 = vector.load %arg3[%c2, %c0_18, %c0_19] : memref<9x8x24xf32, #tpu.memory_space<vmem>>, vector<1x8x24xf32>
    %27 = vector.shape_cast %26 : vector<1x8x24xf32> to vector<8x24xf32>
    %c17_i32 = arith.constant 17 : i32
    %28 = tpu.dynamic_rotate %16 by %c17_i32 dim 1 : vector<24x384xf32>, i32 -> vector<24x384xf32>
    %cst_20 = arith.constant dense<0.000000e+00> : vector<8x384xf32>
    %29 = tpu.matmul %27, %28, %cst_20 {dimension_numbers = #tpu.dot_dimension_numbers<[1], [0], [0], [1], [0, 0, 1, 1], [], []>} : vector<8x24xf32>, vector<24x384xf32>, vector<8x384xf32> -> vector<8x384xf32>
    %30 = arith.addf %25, %29 : vector<8x384xf32>
    %c3 = arith.constant 3 : index
    %c0_21 = arith.constant 0 : index
    %c0_22 = arith.constant 0 : index
    %31 = vector.load %arg3[%c3, %c0_21, %c0_22] : memref<9x8x24xf32, #tpu.memory_space<vmem>>, vector<1x8x24xf32>
    %32 = vector.shape_cast %31 : vector<1x8x24xf32> to vector<8x24xf32>
    %c1_i32 = arith.constant 1 : i32
    %33 = tpu.dynamic_rotate %16 by %c1_i32 dim 1 : vector<24x384xf32>, i32 -> vector<24x384xf32>
    %cst_23 = arith.constant dense<0.000000e+00> : vector<8x384xf32>
    %34 = tpu.matmul %32, %33, %cst_23 {dimension_numbers = #tpu.dot_dimension_numbers<[1], [0], [0], [1], [0, 0, 1, 1], [], []>} : vector<8x24xf32>, vector<24x384xf32>, vector<8x384xf32> -> vector<8x384xf32>
    %35 = arith.addf %30, %34 : vector<8x384xf32>
    %c4 = arith.constant 4 : index
    %c0_24 = arith.constant 0 : index
    %c0_25 = arith.constant 0 : index
    %36 = vector.load %arg3[%c4, %c0_24, %c0_25] : memref<9x8x24xf32, #tpu.memory_space<vmem>>, vector<1x8x24xf32>
    %37 = vector.shape_cast %36 : vector<1x8x24xf32> to vector<8x24xf32>
    %cst_26 = arith.constant dense<0.000000e+00> : vector<8x384xf32>
    %38 = tpu.matmul %37, %16, %cst_26 {dimension_numbers = #tpu.dot_dimension_numbers<[1], [0], [0], [1], [0, 0, 1, 1], [], []>} : vector<8x24xf32>, vector<24x384xf32>, vector<8x384xf32> -> vector<8x384xf32>
    %39 = arith.addf %35, %38 : vector<8x384xf32>
    %c5 = arith.constant 5 : index
    %c0_27 = arith.constant 0 : index
    %c0_28 = arith.constant 0 : index
    %40 = vector.load %arg3[%c5, %c0_27, %c0_28] : memref<9x8x24xf32, #tpu.memory_space<vmem>>, vector<1x8x24xf32>
    %41 = vector.shape_cast %40 : vector<1x8x24xf32> to vector<8x24xf32>
    %c383_i32 = arith.constant 383 : i32
    %42 = tpu.dynamic_rotate %16 by %c383_i32 dim 1 : vector<24x384xf32>, i32 -> vector<24x384xf32>
    %cst_29 = arith.constant dense<0.000000e+00> : vector<8x384xf32>
    %43 = tpu.matmul %41, %42, %cst_29 {dimension_numbers = #tpu.dot_dimension_numbers<[1], [0], [0], [1], [0, 0, 1, 1], [], []>} : vector<8x24xf32>, vector<24x384xf32>, vector<8x384xf32> -> vector<8x384xf32>
    %44 = arith.addf %39, %43 : vector<8x384xf32>
    %c6 = arith.constant 6 : index
    %c0_30 = arith.constant 0 : index
    %c0_31 = arith.constant 0 : index
    %45 = vector.load %arg3[%c6, %c0_30, %c0_31] : memref<9x8x24xf32, #tpu.memory_space<vmem>>, vector<1x8x24xf32>
    %46 = vector.shape_cast %45 : vector<1x8x24xf32> to vector<8x24xf32>
    %c367_i32 = arith.constant 367 : i32
    %47 = tpu.dynamic_rotate %16 by %c367_i32 dim 1 : vector<24x384xf32>, i32 -> vector<24x384xf32>
    %cst_32 = arith.constant dense<0.000000e+00> : vector<8x384xf32>
    %48 = tpu.matmul %46, %47, %cst_32 {dimension_numbers = #tpu.dot_dimension_numbers<[1], [0], [0], [1], [0, 0, 1, 1], [], []>} : vector<8x24xf32>, vector<24x384xf32>, vector<8x384xf32> -> vector<8x384xf32>
    %49 = arith.addf %44, %48 : vector<8x384xf32>
    %c7 = arith.constant 7 : index
    %c0_33 = arith.constant 0 : index
    %c0_34 = arith.constant 0 : index
    %50 = vector.load %arg3[%c7, %c0_33, %c0_34] : memref<9x8x24xf32, #tpu.memory_space<vmem>>, vector<1x8x24xf32>
    %51 = vector.shape_cast %50 : vector<1x8x24xf32> to vector<8x24xf32>
    %c366_i32 = arith.constant 366 : i32
    %52 = tpu.dynamic_rotate %16 by %c366_i32 dim 1 : vector<24x384xf32>, i32 -> vector<24x384xf32>
    %cst_35 = arith.constant dense<0.000000e+00> : vector<8x384xf32>
    %53 = tpu.matmul %51, %52, %cst_35 {dimension_numbers = #tpu.dot_dimension_numbers<[1], [0], [0], [1], [0, 0, 1, 1], [], []>} : vector<8x24xf32>, vector<24x384xf32>, vector<8x384xf32> -> vector<8x384xf32>
    %54 = arith.addf %49, %53 : vector<8x384xf32>
    %c8 = arith.constant 8 : index
    %c0_36 = arith.constant 0 : index
    %c0_37 = arith.constant 0 : index
    %55 = vector.load %arg3[%c8, %c0_36, %c0_37] : memref<9x8x24xf32, #tpu.memory_space<vmem>>, vector<1x8x24xf32>
    %56 = vector.shape_cast %55 : vector<1x8x24xf32> to vector<8x24xf32>
    %c365_i32 = arith.constant 365 : i32
    %57 = tpu.dynamic_rotate %16 by %c365_i32 dim 1 : vector<24x384xf32>, i32 -> vector<24x384xf32>
    %cst_38 = arith.constant dense<0.000000e+00> : vector<8x384xf32>
    %58 = tpu.matmul %56, %57, %cst_38 {dimension_numbers = #tpu.dot_dimension_numbers<[1], [0], [0], [1], [0, 0, 1, 1], [], []>} : vector<8x24xf32>, vector<24x384xf32>, vector<8x384xf32> -> vector<8x384xf32>
    %59 = arith.addf %54, %58 : vector<8x384xf32>
    %60 = vector.extract_strided_slice %14 {offsets = [16, 0], sizes = [24, 384], strides = [1, 1]} : vector<40x384xf32> to vector<24x384xf32>
    %c1_i32_39 = arith.constant 1 : i32
    %61 = tpu.dynamic_rotate %60 by %c1_i32_39 dim 1 : vector<24x384xf32>, i32 -> vector<24x384xf32>
    %c383_i32_40 = arith.constant 383 : i32
    %62 = tpu.dynamic_rotate %60 by %c383_i32_40 dim 1 : vector<24x384xf32>, i32 -> vector<24x384xf32>
    %63 = vector.extract_strided_slice %61 {offsets = [0, 0], sizes = [8, 384], strides = [1, 1]} : vector<24x384xf32> to vector<8x384xf32>
    %64 = vector.extract_strided_slice %62 {offsets = [0, 0], sizes = [8, 384], strides = [1, 1]} : vector<24x384xf32> to vector<8x384xf32>
    %65 = arith.subf %63, %64 : vector<8x384xf32>
    %c18_i32_41 = arith.constant 18 : i32
    %66 = tpu.dynamic_rotate %65 by %c18_i32_41 dim 1 : vector<8x384xf32>, i32 -> vector<8x384xf32>
    %67 = arith.addf %59, %66 : vector<8x384xf32>
    %cst_42 = arith.constant 2.000000e+00 : f32
    %68 = vector.broadcast %cst_42 : f32 to vector<8x384xf32>
    %69 = arith.mulf %68, %65 : vector<8x384xf32>
    %70 = arith.addf %67, %69 : vector<8x384xf32>
    %c366_i32_43 = arith.constant 366 : i32
    %71 = tpu.dynamic_rotate %65 by %c366_i32_43 dim 1 : vector<8x384xf32>, i32 -> vector<8x384xf32>
    %72 = arith.addf %70, %71 : vector<8x384xf32>
    %73 = vector.extract_strided_slice %61 {offsets = [8, 0], sizes = [8, 384], strides = [1, 1]} : vector<24x384xf32> to vector<8x384xf32>
    %74 = vector.extract_strided_slice %60 {offsets = [8, 0], sizes = [8, 384], strides = [1, 1]} : vector<24x384xf32> to vector<8x384xf32>
    %cst_44 = arith.constant 2.000000e+00 : f32
    %75 = vector.broadcast %cst_44 : f32 to vector<8x384xf32>
    %76 = arith.mulf %75, %74 : vector<8x384xf32>
    %77 = arith.addf %73, %76 : vector<8x384xf32>
    %78 = vector.extract_strided_slice %62 {offsets = [8, 0], sizes = [8, 384], strides = [1, 1]} : vector<24x384xf32> to vector<8x384xf32>
    %79 = arith.addf %77, %78 : vector<8x384xf32>
    %c18_i32_45 = arith.constant 18 : i32
    %80 = tpu.dynamic_rotate %79 by %c18_i32_45 dim 1 : vector<8x384xf32>, i32 -> vector<8x384xf32>
    %81 = arith.addf %72, %80 : vector<8x384xf32>
    %c366_i32_46 = arith.constant 366 : i32
    %82 = tpu.dynamic_rotate %79 by %c366_i32_46 dim 1 : vector<8x384xf32>, i32 -> vector<8x384xf32>
    %83 = arith.subf %81, %82 : vector<8x384xf32>
    %84 = vector.extract_strided_slice %60 {offsets = [16, 0], sizes = [8, 384], strides = [1, 1]} : vector<24x384xf32> to vector<8x384xf32>
    %85 = vector.extract_strided_slice %61 {offsets = [16, 0], sizes = [8, 384], strides = [1, 1]} : vector<24x384xf32> to vector<8x384xf32>
    %86 = arith.addf %83, %85 : vector<8x384xf32>
    %87 = vector.extract_strided_slice %62 {offsets = [16, 0], sizes = [8, 384], strides = [1, 1]} : vector<24x384xf32> to vector<8x384xf32>
    %88 = arith.addf %86, %87 : vector<8x384xf32>
    %c18_i32_47 = arith.constant 18 : i32
    %89 = tpu.dynamic_rotate %84 by %c18_i32_47 dim 1 : vector<8x384xf32>, i32 -> vector<8x384xf32>
    %90 = arith.addf %88, %89 : vector<8x384xf32>
    %c366_i32_48 = arith.constant 366 : i32
    %91 = tpu.dynamic_rotate %84 by %c366_i32_48 dim 1 : vector<8x384xf32>, i32 -> vector<8x384xf32>
    %92 = arith.addf %90, %91 : vector<8x384xf32>
    %cst_49 = arith.constant 4.000000e+00 : f32
    %93 = vector.broadcast %cst_49 : f32 to vector<8x384xf32>
    %94 = arith.mulf %93, %84 : vector<8x384xf32>
    %95 = arith.subf %92, %94 : vector<8x384xf32>
    %96 = vector.broadcast %6 : vector<8x1xf32> to vector<8x384xf32>
    %97 = arith.addf %95, %96 : vector<8x384xf32>
    %c48 = arith.constant 48 : index
    %c0_50 = arith.constant 0 : index
    %98 = vector.load %arg5[%c48, %c0_50] : memref<56x1xf32, #tpu.memory_space<vmem>>, vector<8x1xf32>
    %cst_51 = arith.constant 0.000000e+00 : f32
    %99 = vector.broadcast %cst_51 : f32 to vector<8x384xf32>
    %100 = arith.cmpf oge, %97, %99 : vector<8x384xf32>
    %101 = vector.broadcast %98 : vector<8x1xf32> to vector<8x384xf32>
    %102 = arith.mulf %97, %101 : vector<8x384xf32>
    %103 = arith.select %100, %97, %102 : vector<8x384xi1>, vector<8x384xf32>
    %cst_52 = arith.constant 0.000000e+00 : f32
    %104 = vector.shape_cast %2 : vector<1x384xi1> to vector<1x384xi1>
    %105 = vector.broadcast %104 : vector<1x384xi1> to vector<8x384xi1>
    %106 = vector.broadcast %cst_52 : f32 to vector<8x384xf32>
    %107 = arith.select %105, %103, %106 : vector<8x384xi1>, vector<8x384xf32>
    %c0_53 = arith.constant 0 : index
    %c0_54 = arith.constant 0 : index
    %108 = vector.load %arg8[%c0_53, %c0_54] : memref<56x1xf32, #tpu.memory_space<vmem>>, vector<40x1xf32>
    %c40_55 = arith.constant 40 : index
    %c0_56 = arith.constant 0 : index
    %109 = vector.load %arg8[%c40_55, %c0_56] : memref<56x1xf32, #tpu.memory_space<vmem>>, vector<8x1xf32>
    %c0_57 = arith.constant 0 : index
    %c0_58 = arith.constant 0 : index
    %110 = vector.load %arg7[%c0_57, %c0_58] : memref<40x8xf32, #tpu.memory_space<vmem>>, vector<40x8xf32>
    %cst_59 = arith.constant dense<0.000000e+00> : vector<40x384xf32>
    %111 = tpu.matmul %110, %107, %cst_59 {dimension_numbers = #tpu.dot_dimension_numbers<[1], [0], [0], [1], [0, 0, 1, 1], [], []>} : vector<40x8xf32>, vector<8x384xf32>, vector<40x384xf32> -> vector<40x384xf32>
    %112 = vector.broadcast %108 : vector<40x1xf32> to vector<40x384xf32>
    %113 = arith.addf %111, %112 : vector<40x384xf32>
    %cst_60 = arith.constant 0.000000e+00 : f32
    %114 = vector.shape_cast %2 : vector<1x384xi1> to vector<1x384xi1>
    %115 = vector.broadcast %114 : vector<1x384xi1> to vector<40x384xi1>
    %116 = vector.broadcast %cst_60 : f32 to vector<40x384xf32>
    %117 = arith.select %115, %113, %116 : vector<40x384xi1>, vector<40x384xf32>
    %118 = vector.extract_strided_slice %117 {offsets = [0, 0], sizes = [16, 384], strides = [1, 1]} : vector<40x384xf32> to vector<16x384xf32>
    %119 = tpu.concatenate %107, %118 in 0 : vector<8x384xf32>, vector<16x384xf32> -> vector<24x384xf32>
    %c0_61 = arith.constant 0 : index
    %c0_62 = arith.constant 0 : index
    %c0_63 = arith.constant 0 : index
    %120 = vector.load %arg6[%c0_61, %c0_62, %c0_63] : memref<9x8x24xf32, #tpu.memory_space<vmem>>, vector<1x8x24xf32>
    %121 = vector.shape_cast %120 : vector<1x8x24xf32> to vector<8x24xf32>
    %c19_i32_64 = arith.constant 19 : i32
    %122 = tpu.dynamic_rotate %119 by %c19_i32_64 dim 1 : vector<24x384xf32>, i32 -> vector<24x384xf32>
    %cst_65 = arith.constant dense<0.000000e+00> : vector<8x384xf32>
    %123 = tpu.matmul %121, %122, %cst_65 {dimension_numbers = #tpu.dot_dimension_numbers<[1], [0], [0], [1], [0, 0, 1, 1], [], []>} : vector<8x24xf32>, vector<24x384xf32>, vector<8x384xf32> -> vector<8x384xf32>
    %c1_66 = arith.constant 1 : index
    %c0_67 = arith.constant 0 : index
    %c0_68 = arith.constant 0 : index
    %124 = vector.load %arg6[%c1_66, %c0_67, %c0_68] : memref<9x8x24xf32, #tpu.memory_space<vmem>>, vector<1x8x24xf32>
    %125 = vector.shape_cast %124 : vector<1x8x24xf32> to vector<8x24xf32>
    %c18_i32_69 = arith.constant 18 : i32
    %126 = tpu.dynamic_rotate %119 by %c18_i32_69 dim 1 : vector<24x384xf32>, i32 -> vector<24x384xf32>
    %cst_70 = arith.constant dense<0.000000e+00> : vector<8x384xf32>
    %127 = tpu.matmul %125, %126, %cst_70 {dimension_numbers = #tpu.dot_dimension_numbers<[1], [0], [0], [1], [0, 0, 1, 1], [], []>} : vector<8x24xf32>, vector<24x384xf32>, vector<8x384xf32> -> vector<8x384xf32>
    %128 = arith.addf %123, %127 : vector<8x384xf32>
    %c2_71 = arith.constant 2 : index
    %c0_72 = arith.constant 0 : index
    %c0_73 = arith.constant 0 : index
    %129 = vector.load %arg6[%c2_71, %c0_72, %c0_73] : memref<9x8x24xf32, #tpu.memory_space<vmem>>, vector<1x8x24xf32>
    %130 = vector.shape_cast %129 : vector<1x8x24xf32> to vector<8x24xf32>
    %c17_i32_74 = arith.constant 17 : i32
    %131 = tpu.dynamic_rotate %119 by %c17_i32_74 dim 1 : vector<24x384xf32>, i32 -> vector<24x384xf32>
    %cst_75 = arith.constant dense<0.000000e+00> : vector<8x384xf32>
    %132 = tpu.matmul %130, %131, %cst_75 {dimension_numbers = #tpu.dot_dimension_numbers<[1], [0], [0], [1], [0, 0, 1, 1], [], []>} : vector<8x24xf32>, vector<24x384xf32>, vector<8x384xf32> -> vector<8x384xf32>
    %133 = arith.addf %128, %132 : vector<8x384xf32>
    %c3_76 = arith.constant 3 : index
    %c0_77 = arith.constant 0 : index
    %c0_78 = arith.constant 0 : index
    %134 = vector.load %arg6[%c3_76, %c0_77, %c0_78] : memref<9x8x24xf32, #tpu.memory_space<vmem>>, vector<1x8x24xf32>
    %135 = vector.shape_cast %134 : vector<1x8x24xf32> to vector<8x24xf32>
    %c1_i32_79 = arith.constant 1 : i32
    %136 = tpu.dynamic_rotate %119 by %c1_i32_79 dim 1 : vector<24x384xf32>, i32 -> vector<24x384xf32>
    %cst_80 = arith.constant dense<0.000000e+00> : vector<8x384xf32>
    %137 = tpu.matmul %135, %136, %cst_80 {dimension_numbers = #tpu.dot_dimension_numbers<[1], [0], [0], [1], [0, 0, 1, 1], [], []>} : vector<8x24xf32>, vector<24x384xf32>, vector<8x384xf32> -> vector<8x384xf32>
    %138 = arith.addf %133, %137 : vector<8x384xf32>
    %c4_81 = arith.constant 4 : index
    %c0_82 = arith.constant 0 : index
    %c0_83 = arith.constant 0 : index
    %139 = vector.load %arg6[%c4_81, %c0_82, %c0_83] : memref<9x8x24xf32, #tpu.memory_space<vmem>>, vector<1x8x24xf32>
    %140 = vector.shape_cast %139 : vector<1x8x24xf32> to vector<8x24xf32>
    %cst_84 = arith.constant dense<0.000000e+00> : vector<8x384xf32>
    %141 = tpu.matmul %140, %119, %cst_84 {dimension_numbers = #tpu.dot_dimension_numbers<[1], [0], [0], [1], [0, 0, 1, 1], [], []>} : vector<8x24xf32>, vector<24x384xf32>, vector<8x384xf32> -> vector<8x384xf32>
    %142 = arith.addf %138, %141 : vector<8x384xf32>
    %c5_85 = arith.constant 5 : index
    %c0_86 = arith.constant 0 : index
    %c0_87 = arith.constant 0 : index
    %143 = vector.load %arg6[%c5_85, %c0_86, %c0_87] : memref<9x8x24xf32, #tpu.memory_space<vmem>>, vector<1x8x24xf32>
    %144 = vector.shape_cast %143 : vector<1x8x24xf32> to vector<8x24xf32>
    %c383_i32_88 = arith.constant 383 : i32
    %145 = tpu.dynamic_rotate %119 by %c383_i32_88 dim 1 : vector<24x384xf32>, i32 -> vector<24x384xf32>
    %cst_89 = arith.constant dense<0.000000e+00> : vector<8x384xf32>
    %146 = tpu.matmul %144, %145, %cst_89 {dimension_numbers = #tpu.dot_dimension_numbers<[1], [0], [0], [1], [0, 0, 1, 1], [], []>} : vector<8x24xf32>, vector<24x384xf32>, vector<8x384xf32> -> vector<8x384xf32>
    %147 = arith.addf %142, %146 : vector<8x384xf32>
    %c6_90 = arith.constant 6 : index
    %c0_91 = arith.constant 0 : index
    %c0_92 = arith.constant 0 : index
    %148 = vector.load %arg6[%c6_90, %c0_91, %c0_92] : memref<9x8x24xf32, #tpu.memory_space<vmem>>, vector<1x8x24xf32>
    %149 = vector.shape_cast %148 : vector<1x8x24xf32> to vector<8x24xf32>
    %c367_i32_93 = arith.constant 367 : i32
    %150 = tpu.dynamic_rotate %119 by %c367_i32_93 dim 1 : vector<24x384xf32>, i32 -> vector<24x384xf32>
    %cst_94 = arith.constant dense<0.000000e+00> : vector<8x384xf32>
    %151 = tpu.matmul %149, %150, %cst_94 {dimension_numbers = #tpu.dot_dimension_numbers<[1], [0], [0], [1], [0, 0, 1, 1], [], []>} : vector<8x24xf32>, vector<24x384xf32>, vector<8x384xf32> -> vector<8x384xf32>
    %152 = arith.addf %147, %151 : vector<8x384xf32>
    %c7_95 = arith.constant 7 : index
    %c0_96 = arith.constant 0 : index
    %c0_97 = arith.constant 0 : index
    %153 = vector.load %arg6[%c7_95, %c0_96, %c0_97] : memref<9x8x24xf32, #tpu.memory_space<vmem>>, vector<1x8x24xf32>
    %154 = vector.shape_cast %153 : vector<1x8x24xf32> to vector<8x24xf32>
    %c366_i32_98 = arith.constant 366 : i32
    %155 = tpu.dynamic_rotate %119 by %c366_i32_98 dim 1 : vector<24x384xf32>, i32 -> vector<24x384xf32>
    %cst_99 = arith.constant dense<0.000000e+00> : vector<8x384xf32>
    %156 = tpu.matmul %154, %155, %cst_99 {dimension_numbers = #tpu.dot_dimension_numbers<[1], [0], [0], [1], [0, 0, 1, 1], [], []>} : vector<8x24xf32>, vector<24x384xf32>, vector<8x384xf32> -> vector<8x384xf32>
    %157 = arith.addf %152, %156 : vector<8x384xf32>
    %c8_100 = arith.constant 8 : index
    %c0_101 = arith.constant 0 : index
    %c0_102 = arith.constant 0 : index
    %158 = vector.load %arg6[%c8_100, %c0_101, %c0_102] : memref<9x8x24xf32, #tpu.memory_space<vmem>>, vector<1x8x24xf32>
    %159 = vector.shape_cast %158 : vector<1x8x24xf32> to vector<8x24xf32>
    %c365_i32_103 = arith.constant 365 : i32
    %160 = tpu.dynamic_rotate %119 by %c365_i32_103 dim 1 : vector<24x384xf32>, i32 -> vector<24x384xf32>
    %cst_104 = arith.constant dense<0.000000e+00> : vector<8x384xf32>
    %161 = tpu.matmul %159, %160, %cst_104 {dimension_numbers = #tpu.dot_dimension_numbers<[1], [0], [0], [1], [0, 0, 1, 1], [], []>} : vector<8x24xf32>, vector<24x384xf32>, vector<8x384xf32> -> vector<8x384xf32>
    %162 = arith.addf %157, %161 : vector<8x384xf32>
    %163 = vector.extract_strided_slice %117 {offsets = [16, 0], sizes = [24, 384], strides = [1, 1]} : vector<40x384xf32> to vector<24x384xf32>
    %c1_i32_105 = arith.constant 1 : i32
    %164 = tpu.dynamic_rotate %163 by %c1_i32_105 dim 1 : vector<24x384xf32>, i32 -> vector<24x384xf32>
    %c383_i32_106 = arith.constant 383 : i32
    %165 = tpu.dynamic_rotate %163 by %c383_i32_106 dim 1 : vector<24x384xf32>, i32 -> vector<24x384xf32>
    %166 = vector.extract_strided_slice %164 {offsets = [0, 0], sizes = [8, 384], strides = [1, 1]} : vector<24x384xf32> to vector<8x384xf32>
    %167 = vector.extract_strided_slice %165 {offsets = [0, 0], sizes = [8, 384], strides = [1, 1]} : vector<24x384xf32> to vector<8x384xf32>
    %168 = arith.subf %166, %167 : vector<8x384xf32>
    %c18_i32_107 = arith.constant 18 : i32
    %169 = tpu.dynamic_rotate %168 by %c18_i32_107 dim 1 : vector<8x384xf32>, i32 -> vector<8x384xf32>
    %170 = arith.addf %162, %169 : vector<8x384xf32>
    %cst_108 = arith.constant 2.000000e+00 : f32
    %171 = vector.broadcast %cst_108 : f32 to vector<8x384xf32>
    %172 = arith.mulf %171, %168 : vector<8x384xf32>
    %173 = arith.addf %170, %172 : vector<8x384xf32>
    %c366_i32_109 = arith.constant 366 : i32
    %174 = tpu.dynamic_rotate %168 by %c366_i32_109 dim 1 : vector<8x384xf32>, i32 -> vector<8x384xf32>
    %175 = arith.addf %173, %174 : vector<8x384xf32>
    %176 = vector.extract_strided_slice %164 {offsets = [8, 0], sizes = [8, 384], strides = [1, 1]} : vector<24x384xf32> to vector<8x384xf32>
    %177 = vector.extract_strided_slice %163 {offsets = [8, 0], sizes = [8, 384], strides = [1, 1]} : vector<24x384xf32> to vector<8x384xf32>
    %cst_110 = arith.constant 2.000000e+00 : f32
    %178 = vector.broadcast %cst_110 : f32 to vector<8x384xf32>
    %179 = arith.mulf %178, %177 : vector<8x384xf32>
    %180 = arith.addf %176, %179 : vector<8x384xf32>
    %181 = vector.extract_strided_slice %165 {offsets = [8, 0], sizes = [8, 384], strides = [1, 1]} : vector<24x384xf32> to vector<8x384xf32>
    %182 = arith.addf %180, %181 : vector<8x384xf32>
    %c18_i32_111 = arith.constant 18 : i32
    %183 = tpu.dynamic_rotate %182 by %c18_i32_111 dim 1 : vector<8x384xf32>, i32 -> vector<8x384xf32>
    %184 = arith.addf %175, %183 : vector<8x384xf32>
    %c366_i32_112 = arith.constant 366 : i32
    %185 = tpu.dynamic_rotate %182 by %c366_i32_112 dim 1 : vector<8x384xf32>, i32 -> vector<8x384xf32>
    %186 = arith.subf %184, %185 : vector<8x384xf32>
    %187 = vector.extract_strided_slice %163 {offsets = [16, 0], sizes = [8, 384], strides = [1, 1]} : vector<24x384xf32> to vector<8x384xf32>
    %188 = vector.extract_strided_slice %164 {offsets = [16, 0], sizes = [8, 384], strides = [1, 1]} : vector<24x384xf32> to vector<8x384xf32>
    %189 = arith.addf %186, %188 : vector<8x384xf32>
    %190 = vector.extract_strided_slice %165 {offsets = [16, 0], sizes = [8, 384], strides = [1, 1]} : vector<24x384xf32> to vector<8x384xf32>
    %191 = arith.addf %189, %190 : vector<8x384xf32>
    %c18_i32_113 = arith.constant 18 : i32
    %192 = tpu.dynamic_rotate %187 by %c18_i32_113 dim 1 : vector<8x384xf32>, i32 -> vector<8x384xf32>
    %193 = arith.addf %191, %192 : vector<8x384xf32>
    %c366_i32_114 = arith.constant 366 : i32
    %194 = tpu.dynamic_rotate %187 by %c366_i32_114 dim 1 : vector<8x384xf32>, i32 -> vector<8x384xf32>
    %195 = arith.addf %193, %194 : vector<8x384xf32>
    %cst_115 = arith.constant 4.000000e+00 : f32
    %196 = vector.broadcast %cst_115 : f32 to vector<8x384xf32>
    %197 = arith.mulf %196, %187 : vector<8x384xf32>
    %198 = arith.subf %195, %197 : vector<8x384xf32>
    %199 = vector.broadcast %109 : vector<8x1xf32> to vector<8x384xf32>
    %200 = arith.addf %198, %199 : vector<8x384xf32>
    %c48_116 = arith.constant 48 : index
    %c0_117 = arith.constant 0 : index
    %201 = vector.load %arg8[%c48_116, %c0_117] : memref<56x1xf32, #tpu.memory_space<vmem>>, vector<8x1xf32>
    %cst_118 = arith.constant 0.000000e+00 : f32
    %202 = vector.broadcast %cst_118 : f32 to vector<8x384xf32>
    %203 = arith.cmpf oge, %200, %202 : vector<8x384xf32>
    %204 = vector.broadcast %201 : vector<8x1xf32> to vector<8x384xf32>
    %205 = arith.mulf %200, %204 : vector<8x384xf32>
    %206 = arith.select %203, %200, %205 : vector<8x384xi1>, vector<8x384xf32>
    %cst_119 = arith.constant 0.000000e+00 : f32
    %207 = vector.shape_cast %2 : vector<1x384xi1> to vector<1x384xi1>
    %208 = vector.broadcast %207 : vector<1x384xi1> to vector<8x384xi1>
    %209 = vector.broadcast %cst_119 : f32 to vector<8x384xf32>
    %210 = arith.select %208, %206, %209 : vector<8x384xi1>, vector<8x384xf32>
    %c0_120 = arith.constant 0 : index
    %c0_121 = arith.constant 0 : index
    %211 = vector.load %arg11[%c0_120, %c0_121] : memref<104x1xf32, #tpu.memory_space<vmem>>, vector<72x1xf32>
    %c72 = arith.constant 72 : index
    %c0_122 = arith.constant 0 : index
    %212 = vector.load %arg11[%c72, %c0_122] : memref<104x1xf32, #tpu.memory_space<vmem>>, vector<16x1xf32>
    %c0_123 = arith.constant 0 : index
    %c0_124 = arith.constant 0 : index
    %213 = vector.load %arg10[%c0_123, %c0_124] : memref<72x8xf32, #tpu.memory_space<vmem>>, vector<72x8xf32>
    %cst_125 = arith.constant dense<0.000000e+00> : vector<72x384xf32>
    %214 = tpu.matmul %213, %210, %cst_125 {dimension_numbers = #tpu.dot_dimension_numbers<[1], [0], [0], [1], [0, 0, 1, 1], [], []>} : vector<72x8xf32>, vector<8x384xf32>, vector<72x384xf32> -> vector<72x384xf32>
    %215 = vector.broadcast %211 : vector<72x1xf32> to vector<72x384xf32>
    %216 = arith.addf %214, %215 : vector<72x384xf32>
    %cst_126 = arith.constant 0.000000e+00 : f32
    %217 = vector.shape_cast %2 : vector<1x384xi1> to vector<1x384xi1>
    %218 = vector.broadcast %217 : vector<1x384xi1> to vector<72x384xi1>
    %219 = vector.broadcast %cst_126 : f32 to vector<72x384xf32>
    %220 = arith.select %218, %216, %219 : vector<72x384xi1>, vector<72x384xf32>
    %221 = vector.extract_strided_slice %220 {offsets = [0, 0], sizes = [24, 384], strides = [1, 1]} : vector<72x384xf32> to vector<24x384xf32>
    %222 = tpu.concatenate %210, %221 in 0 : vector<8x384xf32>, vector<24x384xf32> -> vector<32x384xf32>
    %c0_127 = arith.constant 0 : index
    %c0_128 = arith.constant 0 : index
    %c0_129 = arith.constant 0 : index
    %223 = vector.load %arg9[%c0_127, %c0_128, %c0_129] : memref<9x16x32xf32, #tpu.memory_space<vmem>>, vector<1x16x32xf32>
    %224 = vector.shape_cast %223 : vector<1x16x32xf32> to vector<16x32xf32>
    %c19_i32_130 = arith.constant 19 : i32
    %225 = tpu.dynamic_rotate %222 by %c19_i32_130 dim 1 : vector<32x384xf32>, i32 -> vector<32x384xf32>
    %cst_131 = arith.constant dense<0.000000e+00> : vector<16x384xf32>
    %226 = tpu.matmul %224, %225, %cst_131 {dimension_numbers = #tpu.dot_dimension_numbers<[1], [0], [0], [1], [0, 0, 1, 1], [], []>} : vector<16x32xf32>, vector<32x384xf32>, vector<16x384xf32> -> vector<16x384xf32>
    %c1_132 = arith.constant 1 : index
    %c0_133 = arith.constant 0 : index
    %c0_134 = arith.constant 0 : index
    %227 = vector.load %arg9[%c1_132, %c0_133, %c0_134] : memref<9x16x32xf32, #tpu.memory_space<vmem>>, vector<1x16x32xf32>
    %228 = vector.shape_cast %227 : vector<1x16x32xf32> to vector<16x32xf32>
    %c18_i32_135 = arith.constant 18 : i32
    %229 = tpu.dynamic_rotate %222 by %c18_i32_135 dim 1 : vector<32x384xf32>, i32 -> vector<32x384xf32>
    %cst_136 = arith.constant dense<0.000000e+00> : vector<16x384xf32>
    %230 = tpu.matmul %228, %229, %cst_136 {dimension_numbers = #tpu.dot_dimension_numbers<[1], [0], [0], [1], [0, 0, 1, 1], [], []>} : vector<16x32xf32>, vector<32x384xf32>, vector<16x384xf32> -> vector<16x384xf32>
    %231 = arith.addf %226, %230 : vector<16x384xf32>
    %c2_137 = arith.constant 2 : index
    %c0_138 = arith.constant 0 : index
    %c0_139 = arith.constant 0 : index
    %232 = vector.load %arg9[%c2_137, %c0_138, %c0_139] : memref<9x16x32xf32, #tpu.memory_space<vmem>>, vector<1x16x32xf32>
    %233 = vector.shape_cast %232 : vector<1x16x32xf32> to vector<16x32xf32>
    %c17_i32_140 = arith.constant 17 : i32
    %234 = tpu.dynamic_rotate %222 by %c17_i32_140 dim 1 : vector<32x384xf32>, i32 -> vector<32x384xf32>
    %cst_141 = arith.constant dense<0.000000e+00> : vector<16x384xf32>
    %235 = tpu.matmul %233, %234, %cst_141 {dimension_numbers = #tpu.dot_dimension_numbers<[1], [0], [0], [1], [0, 0, 1, 1], [], []>} : vector<16x32xf32>, vector<32x384xf32>, vector<16x384xf32> -> vector<16x384xf32>
    %236 = arith.addf %231, %235 : vector<16x384xf32>
    %c3_142 = arith.constant 3 : index
    %c0_143 = arith.constant 0 : index
    %c0_144 = arith.constant 0 : index
    %237 = vector.load %arg9[%c3_142, %c0_143, %c0_144] : memref<9x16x32xf32, #tpu.memory_space<vmem>>, vector<1x16x32xf32>
    %238 = vector.shape_cast %237 : vector<1x16x32xf32> to vector<16x32xf32>
    %c1_i32_145 = arith.constant 1 : i32
    %239 = tpu.dynamic_rotate %222 by %c1_i32_145 dim 1 : vector<32x384xf32>, i32 -> vector<32x384xf32>
    %cst_146 = arith.constant dense<0.000000e+00> : vector<16x384xf32>
    %240 = tpu.matmul %238, %239, %cst_146 {dimension_numbers = #tpu.dot_dimension_numbers<[1], [0], [0], [1], [0, 0, 1, 1], [], []>} : vector<16x32xf32>, vector<32x384xf32>, vector<16x384xf32> -> vector<16x384xf32>
    %241 = arith.addf %236, %240 : vector<16x384xf32>
    %c4_147 = arith.constant 4 : index
    %c0_148 = arith.constant 0 : index
    %c0_149 = arith.constant 0 : index
    %242 = vector.load %arg9[%c4_147, %c0_148, %c0_149] : memref<9x16x32xf32, #tpu.memory_space<vmem>>, vector<1x16x32xf32>
    %243 = vector.shape_cast %242 : vector<1x16x32xf32> to vector<16x32xf32>
    %cst_150 = arith.constant dense<0.000000e+00> : vector<16x384xf32>
    %244 = tpu.matmul %243, %222, %cst_150 {dimension_numbers = #tpu.dot_dimension_numbers<[1], [0], [0], [1], [0, 0, 1, 1], [], []>} : vector<16x32xf32>, vector<32x384xf32>, vector<16x384xf32> -> vector<16x384xf32>
    %245 = arith.addf %241, %244 : vector<16x384xf32>
    %c5_151 = arith.constant 5 : index
    %c0_152 = arith.constant 0 : index
    %c0_153 = arith.constant 0 : index
    %246 = vector.load %arg9[%c5_151, %c0_152, %c0_153] : memref<9x16x32xf32, #tpu.memory_space<vmem>>, vector<1x16x32xf32>
    %247 = vector.shape_cast %246 : vector<1x16x32xf32> to vector<16x32xf32>
    %c383_i32_154 = arith.constant 383 : i32
    %248 = tpu.dynamic_rotate %222 by %c383_i32_154 dim 1 : vector<32x384xf32>, i32 -> vector<32x384xf32>
    %cst_155 = arith.constant dense<0.000000e+00> : vector<16x384xf32>
    %249 = tpu.matmul %247, %248, %cst_155 {dimension_numbers = #tpu.dot_dimension_numbers<[1], [0], [0], [1], [0, 0, 1, 1], [], []>} : vector<16x32xf32>, vector<32x384xf32>, vector<16x384xf32> -> vector<16x384xf32>
    %250 = arith.addf %245, %249 : vector<16x384xf32>
    %c6_156 = arith.constant 6 : index
    %c0_157 = arith.constant 0 : index
    %c0_158 = arith.constant 0 : index
    %251 = vector.load %arg9[%c6_156, %c0_157, %c0_158] : memref<9x16x32xf32, #tpu.memory_space<vmem>>, vector<1x16x32xf32>
    %252 = vector.shape_cast %251 : vector<1x16x32xf32> to vector<16x32xf32>
    %c367_i32_159 = arith.constant 367 : i32
    %253 = tpu.dynamic_rotate %222 by %c367_i32_159 dim 1 : vector<32x384xf32>, i32 -> vector<32x384xf32>
    %cst_160 = arith.constant dense<0.000000e+00> : vector<16x384xf32>
    %254 = tpu.matmul %252, %253, %cst_160 {dimension_numbers = #tpu.dot_dimension_numbers<[1], [0], [0], [1], [0, 0, 1, 1], [], []>} : vector<16x32xf32>, vector<32x384xf32>, vector<16x384xf32> -> vector<16x384xf32>
    %255 = arith.addf %250, %254 : vector<16x384xf32>
    %c7_161 = arith.constant 7 : index
    %c0_162 = arith.constant 0 : index
    %c0_163 = arith.constant 0 : index
    %256 = vector.load %arg9[%c7_161, %c0_162, %c0_163] : memref<9x16x32xf32, #tpu.memory_space<vmem>>, vector<1x16x32xf32>
    %257 = vector.shape_cast %256 : vector<1x16x32xf32> to vector<16x32xf32>
    %c366_i32_164 = arith.constant 366 : i32
    %258 = tpu.dynamic_rotate %222 by %c366_i32_164 dim 1 : vector<32x384xf32>, i32 -> vector<32x384xf32>
    %cst_165 = arith.constant dense<0.000000e+00> : vector<16x384xf32>
    %259 = tpu.matmul %257, %258, %cst_165 {dimension_numbers = #tpu.dot_dimension_numbers<[1], [0], [0], [1], [0, 0, 1, 1], [], []>} : vector<16x32xf32>, vector<32x384xf32>, vector<16x384xf32> -> vector<16x384xf32>
    %260 = arith.addf %255, %259 : vector<16x384xf32>
    %c8_166 = arith.constant 8 : index
    %c0_167 = arith.constant 0 : index
    %c0_168 = arith.constant 0 : index
    %261 = vector.load %arg9[%c8_166, %c0_167, %c0_168] : memref<9x16x32xf32, #tpu.memory_space<vmem>>, vector<1x16x32xf32>
    %262 = vector.shape_cast %261 : vector<1x16x32xf32> to vector<16x32xf32>
    %c365_i32_169 = arith.constant 365 : i32
    %263 = tpu.dynamic_rotate %222 by %c365_i32_169 dim 1 : vector<32x384xf32>, i32 -> vector<32x384xf32>
    %cst_170 = arith.constant dense<0.000000e+00> : vector<16x384xf32>
    %264 = tpu.matmul %262, %263, %cst_170 {dimension_numbers = #tpu.dot_dimension_numbers<[1], [0], [0], [1], [0, 0, 1, 1], [], []>} : vector<16x32xf32>, vector<32x384xf32>, vector<16x384xf32> -> vector<16x384xf32>
    %265 = arith.addf %260, %264 : vector<16x384xf32>
    %266 = vector.extract_strided_slice %220 {offsets = [24, 0], sizes = [48, 384], strides = [1, 1]} : vector<72x384xf32> to vector<48x384xf32>
    %c1_i32_171 = arith.constant 1 : i32
    %267 = tpu.dynamic_rotate %266 by %c1_i32_171 dim 1 : vector<48x384xf32>, i32 -> vector<48x384xf32>
    %c383_i32_172 = arith.constant 383 : i32
    %268 = tpu.dynamic_rotate %266 by %c383_i32_172 dim 1 : vector<48x384xf32>, i32 -> vector<48x384xf32>
    %269 = vector.extract_strided_slice %267 {offsets = [0, 0], sizes = [16, 384], strides = [1, 1]} : vector<48x384xf32> to vector<16x384xf32>
    %270 = vector.extract_strided_slice %268 {offsets = [0, 0], sizes = [16, 384], strides = [1, 1]} : vector<48x384xf32> to vector<16x384xf32>
    %271 = arith.subf %269, %270 : vector<16x384xf32>
    %c18_i32_173 = arith.constant 18 : i32
    %272 = tpu.dynamic_rotate %271 by %c18_i32_173 dim 1 : vector<16x384xf32>, i32 -> vector<16x384xf32>
    %273 = arith.addf %265, %272 : vector<16x384xf32>
    %cst_174 = arith.constant 2.000000e+00 : f32
    %274 = vector.broadcast %cst_174 : f32 to vector<16x384xf32>
    %275 = arith.mulf %274, %271 : vector<16x384xf32>
    %276 = arith.addf %273, %275 : vector<16x384xf32>
    %c366_i32_175 = arith.constant 366 : i32
    %277 = tpu.dynamic_rotate %271 by %c366_i32_175 dim 1 : vector<16x384xf32>, i32 -> vector<16x384xf32>
    %278 = arith.addf %276, %277 : vector<16x384xf32>
    %279 = vector.extract_strided_slice %267 {offsets = [16, 0], sizes = [16, 384], strides = [1, 1]} : vector<48x384xf32> to vector<16x384xf32>
    %280 = vector.extract_strided_slice %266 {offsets = [16, 0], sizes = [16, 384], strides = [1, 1]} : vector<48x384xf32> to vector<16x384xf32>
    %cst_176 = arith.constant 2.000000e+00 : f32
    %281 = vector.broadcast %cst_176 : f32 to vector<16x384xf32>
    %282 = arith.mulf %281, %280 : vector<16x384xf32>
    %283 = arith.addf %279, %282 : vector<16x384xf32>
    %284 = vector.extract_strided_slice %268 {offsets = [16, 0], sizes = [16, 384], strides = [1, 1]} : vector<48x384xf32> to vector<16x384xf32>
    %285 = arith.addf %283, %284 : vector<16x384xf32>
    %c18_i32_177 = arith.constant 18 : i32
    %286 = tpu.dynamic_rotate %285 by %c18_i32_177 dim 1 : vector<16x384xf32>, i32 -> vector<16x384xf32>
    %287 = arith.addf %278, %286 : vector<16x384xf32>
    %c366_i32_178 = arith.constant 366 : i32
    %288 = tpu.dynamic_rotate %285 by %c366_i32_178 dim 1 : vector<16x384xf32>, i32 -> vector<16x384xf32>
    %289 = arith.subf %287, %288 : vector<16x384xf32>
    %290 = vector.extract_strided_slice %266 {offsets = [32, 0], sizes = [16, 384], strides = [1, 1]} : vector<48x384xf32> to vector<16x384xf32>
    %291 = vector.extract_strided_slice %267 {offsets = [32, 0], sizes = [16, 384], strides = [1, 1]} : vector<48x384xf32> to vector<16x384xf32>
    %292 = arith.addf %289, %291 : vector<16x384xf32>
    %293 = vector.extract_strided_slice %268 {offsets = [32, 0], sizes = [16, 384], strides = [1, 1]} : vector<48x384xf32> to vector<16x384xf32>
    %294 = arith.addf %292, %293 : vector<16x384xf32>
    %c18_i32_179 = arith.constant 18 : i32
    %295 = tpu.dynamic_rotate %290 by %c18_i32_179 dim 1 : vector<16x384xf32>, i32 -> vector<16x384xf32>
    %296 = arith.addf %294, %295 : vector<16x384xf32>
    %c366_i32_180 = arith.constant 366 : i32
    %297 = tpu.dynamic_rotate %290 by %c366_i32_180 dim 1 : vector<16x384xf32>, i32 -> vector<16x384xf32>
    %298 = arith.addf %296, %297 : vector<16x384xf32>
    %cst_181 = arith.constant 4.000000e+00 : f32
    %299 = vector.broadcast %cst_181 : f32 to vector<16x384xf32>
    %300 = arith.mulf %299, %290 : vector<16x384xf32>
    %301 = arith.subf %298, %300 : vector<16x384xf32>
    %302 = vector.broadcast %212 : vector<16x1xf32> to vector<16x384xf32>
    %303 = arith.addf %301, %302 : vector<16x384xf32>
    %cst_182 = arith.constant 0.000000e+00 : f32
    %304 = vector.shape_cast %2 : vector<1x384xi1> to vector<1x384xi1>
    %305 = vector.broadcast %304 : vector<1x384xi1> to vector<16x384xi1>
    %306 = vector.broadcast %cst_182 : f32 to vector<16x384xf32>
    %307 = arith.select %305, %303, %306 : vector<16x384xi1>, vector<16x384xf32>
    %c0_183 = arith.constant 0 : index
    %c0_184 = arith.constant 0 : index
    %c0_185 = arith.constant 0 : index
    %308 = vector.load %arg12[%c0_183, %c0_184, %c0_185] : memref<1x16x384xf32, #tpu.memory_space<vmem>>, vector<1x16x384xf32>
    %309 = vector.shape_cast %308 : vector<1x16x384xf32> to vector<16x384xf32>
    %310 = vector.shape_cast %307 : vector<16x384xf32> to vector<1x16x384xf32>
    tpu.vector_store %arg12[%c0_183, %c0_184, %c0_185], %310 {strides = array<i32>} : memref<1x16x384xf32, #tpu.memory_space<vmem>>, vector<1x16x384xf32>,
    return
  }
  func.func @transform_0(%arg0: i32) -> (i32, i32) {
    %c0_i32 = arith.constant 0 : i32
    %c0_i32_0 = arith.constant 0 : i32
    %c0_i32_1 = arith.constant 0 : i32
    return %c0_i32, %c0_i32_0 : i32, i32
  }
  func.func @transform_1(%arg0: i32) -> (i32, i32, i32) {
    %c0_i32 = arith.constant 0 : i32
    %c0_i32_0 = arith.constant 0 : i32
    %c0_i32_1 = arith.constant 0 : i32
    return %arg0, %c0_i32, %c0_i32_0 : i32, i32, i32
  }
  func.func @transform_2(%arg0: i32) -> (i32, i32, i32) {
    %c0_i32 = arith.constant 0 : i32
    %c0_i32_0 = arith.constant 0 : i32
    %c0_i32_1 = arith.constant 0 : i32
    %c0_i32_2 = arith.constant 0 : i32
    return %c0_i32, %c0_i32_0, %c0_i32_1 : i32, i32, i32
  }
  func.func @transform_3(%arg0: i32) -> (i32, i32) {
    %c0_i32 = arith.constant 0 : i32
    %c0_i32_0 = arith.constant 0 : i32
    %c0_i32_1 = arith.constant 0 : i32
    return %c0_i32, %c0_i32_0 : i32, i32
  }
  func.func @transform_4(%arg0: i32) -> (i32, i32) {
    %c0_i32 = arith.constant 0 : i32
    %c0_i32_0 = arith.constant 0 : i32
    %c0_i32_1 = arith.constant 0 : i32
    return %c0_i32, %c0_i32_0 : i32, i32
  }
  func.func @transform_5(%arg0: i32) -> (i32, i32, i32) {
    %c0_i32 = arith.constant 0 : i32
    %c0_i32_0 = arith.constant 0 : i32
    %c0_i32_1 = arith.constant 0 : i32
    %c0_i32_2 = arith.constant 0 : i32
    return %c0_i32, %c0_i32_0, %c0_i32_1 : i32, i32, i32
  }
  func.func @transform_6(%arg0: i32) -> (i32, i32) {
    %c0_i32 = arith.constant 0 : i32
    %c0_i32_0 = arith.constant 0 : i32
    %c0_i32_1 = arith.constant 0 : i32
    return %c0_i32, %c0_i32_0 : i32, i32
  }
  func.func @transform_7(%arg0: i32) -> (i32, i32) {
    %c0_i32 = arith.constant 0 : i32
    %c0_i32_0 = arith.constant 0 : i32
    %c0_i32_1 = arith.constant 0 : i32
    return %c0_i32, %c0_i32_0 : i32, i32
  }
  func.func @transform_8(%arg0: i32) -> (i32, i32, i32) {
    %c0_i32 = arith.constant 0 : i32
    %c0_i32_0 = arith.constant 0 : i32
    %c0_i32_1 = arith.constant 0 : i32
    %c0_i32_2 = arith.constant 0 : i32
    return %c0_i32, %c0_i32_0, %c0_i32_1 : i32, i32, i32
  }
  func.func @transform_9(%arg0: i32) -> (i32, i32) {
    %c0_i32 = arith.constant 0 : i32
    %c0_i32_0 = arith.constant 0 : i32
    %c0_i32_1 = arith.constant 0 : i32
    return %c0_i32, %c0_i32_0 : i32, i32
  }
  func.func @transform_10(%arg0: i32) -> (i32, i32) {
    %c0_i32 = arith.constant 0 : i32
    %c0_i32_0 = arith.constant 0 : i32
    %c0_i32_1 = arith.constant 0 : i32
    return %c0_i32, %c0_i32_0 : i32, i32
  }
  func.func @transform_11(%arg0: i32) -> (i32, i32, i32) {
    %c0_i32 = arith.constant 0 : i32
    %c0_i32_0 = arith.constant 0 : i32
    %c0_i32_1 = arith.constant 0 : i32
    return %arg0, %c0_i32, %c0_i32_0 : i32, i32, i32
  }
}

</mosaic_0001>

<llo_original>
// kernel: _lambda_.1
$region0: #{_lambda_.1}
  #allocation0 [shape = 'u32[]', space=smem, size = 0x4, offset = 0x4, fixed_abs, tag = 'smem constant byte address 0x4 - core index']
  #allocation1 [shape = 'u32[144,128]{1,0:T(1,128)}', space=vmem, size = 0x12000, scoped, tag = 'internal scratch']
  %s0 = inlined_call_operand.vmem [shape: f32[1,384], index: 0, kind: input, shape index: {}]
  %s1 = inlined_call_operand.vmem [shape: f32[2,8,384], index: 1, kind: input, shape index: {}]
  %s2 = inlined_call_operand.hbm [shape: f32[9,8,24], index: 2, kind: input, shape index: {}]
  %s3 = inlined_call_operand.hbm [shape: f32[40,8], index: 3, kind: input, shape index: {}]
  %s4 = inlined_call_operand.hbm [shape: f32[56,1], index: 4, kind: input, shape index: {}]
  %s5 = inlined_call_operand.hbm [shape: f32[9,8,24], index: 5, kind: input, shape index: {}]
  %s6 = inlined_call_operand.hbm [shape: f32[40,8], index: 6, kind: input, shape index: {}]
  %s7 = inlined_call_operand.hbm [shape: f32[56,1], index: 7, kind: input, shape index: {}]
  %s8 = inlined_call_operand.hbm [shape: f32[9,16,32], index: 8, kind: input, shape index: {}]
  %s9 = inlined_call_operand.hbm [shape: f32[72,8], index: 9, kind: input, shape index: {}]
  %s10 = inlined_call_operand.vmem [shape: f32[104,1], index: 10, kind: input, shape index: {}]
  %s11 = inlined_call_operand.vmem [shape: f32[2,16,384], index: 11, kind: output, shape index: {}]
  %s12 = sld [smem:[#allocation0]]
  $region109: #{_lambda_.1} parent=0
    _
  %s14 = ssub.s32 1, %s12
  %s15 = scalar_select 0, %s14, %s12
  $region1: #{_lambda_.1} parent=0
    #allocation2 [shape = 'u8[36864]{0}', space=vmem, size = 0x9000, scoped, tag = 'input window, operand 2, single buffered']
    #allocation3 [shape = 's32[2]{0}', space=sflag, size = 0x8, scoped, tag = 'scoped memory for _lambda_.1']
    #allocation4 [shape = 'u8[20480]{0}', space=vmem, size = 0x5000, scoped, tag = 'input window, operand 3, single buffered']
    #allocation5 [shape = 's32[1]{0}', space=sflag, size = 0x4, scoped, tag = 'scoped memory for _lambda_.1']
    #allocation6 [shape = 'u8[28672]{0}', space=vmem, size = 0x7000, scoped, tag = 'input window, operand 4, single buffered']
    #allocation7 [shape = 'u8[36864]{0}', space=vmem, size = 0x9000, scoped, tag = 'input window, operand 5, single buffered']
    #allocation8 [shape = 's32[1]{0}', space=sflag, size = 0x4, scoped, tag = 'scoped memory for _lambda_.1']
    #allocation9 [shape = 'u8[20480]{0}', space=vmem, size = 0x5000, scoped, tag = 'input window, operand 6, single buffered']
    #allocation10 [shape = 'u8[28672]{0}', space=vmem, size = 0x7000, scoped, tag = 'input window, operand 7, single buffered']
    #allocation11 [shape = 's32[1]{0}', space=sflag, size = 0x4, scoped, tag = 'scoped memory for _lambda_.1']
    #allocation12 [shape = 'u8[73728]{0}', space=vmem, size = 0x12000, scoped, tag = 'input window, operand 8, single buffered']
    #allocation13 [shape = 'u8[36864]{0}', space=vmem, size = 0x9000, scoped, tag = 'input window, operand 9, single buffered']
    #allocation14 [shape = 's32[1]{0}', space=sflag, size = 0x4, scoped, tag = 'scoped memory for _lambda_.1']
    %16 = vsyncpa [#allocation3], 0
    %17 = vsyncpa [#allocation5], 0
    %18 = vsyncpa [#allocation8], 0
    %19 = vsyncpa [#allocation11], 0
    %20 = vsyncpa [#allocation14], 0
    loop: start=0, step=1, limit=4
    $region2: #{_lambda_.1} parent=1 // loop_pre_header
      _
    $region3: #{_lambda_.1} parent=1 // loop_header
      %s22 = sphi 0, %s26
      %p23 = scmp.ge.s32.totalorder %s22, 4
      %s30 = sphi 0, %s30
      %s32 = sphi 0, %s30
      %s33 = sphi 0, %s32
      %s47 = sphi 0, %s33
      %s53 = sphi 0, %s55
      %s56 = sphi 0, %s53
      %s57 = sphi 0, %s56
      %s73 = sphi 0, %s57
      %s77 = sphi 0, %s77
      %s79 = sphi 0, %s77
      %s80 = sphi 0, %s79
      %s94 = sphi 0, %s80
      %s98 = sphi 0, %s98
      %s100 = sphi 0, %s98
      %s101 = sphi 0, %s100
      %s115 = sphi 0, %s101
      %s119 = sphi 0, %s119
      %s121 = sphi 0, %s119
      %s122 = sphi 0, %s121
      %s136 = sphi 0, %s122
      %s140 = sphi 0, %s140
      %s142 = sphi 0, %s140
      %s143 = sphi 0, %s142
      %s157 = sphi 0, %s143
      %s161 = sphi 0, %s161
      %s163 = sphi 0, %s161
      %s164 = sphi 0, %s163
      %s178 = sphi 0, %s164
      %s182 = sphi 0, %s182
      %s184 = sphi 0, %s182
      %s185 = sphi 0, %s184
      %s199 = sphi 0, %s185
      %s203 = sphi 0, %s203
      %s205 = sphi 0, %s203
      %s206 = sphi 0, %s205
      %s220 = sphi 0, %s206
      %s224 = sphi 0, %s224
      %s226 = sphi 0, %s224
      %s227 = sphi 0, %s226
      %s241 = sphi 0, %s227
      %s245 = sphi 0, %s245
      %s247 = sphi 0, %s245
      %s248 = sphi 0, %s247
      %s262 = sphi 0, %s248
      %s268 = sphi 0, %s270
      %s271 = sphi 0, %s268
      %s272 = sphi 0, %s271
      %s288 = sphi 0, %s272
    $region4: #{_lambda_.1} parent=1 // loop_header_branch
      %25 = sbr.rel (%p23) target = $region8
    $region5: #{_lambda_.1} parent=1 // loop_body
      %s27 = ssub.s32 %s22, 1
      %s28 = ssub.s32 %s22, 2
      %s29 = sadd.s32 %s22, 1
      %s31 = sadd.s32 %s30, 1
      %p34 = scmp.eq.s32.totalorder %s22, 1
      %p35 = scmp.ne.s32.totalorder %s30, %s32
      %p36 = scmp.eq.s32.totalorder %s22, 0
      %p37 = por %p35, %p36
      %p38 = scmp.ne.s32.totalorder %s30, %s32
      %p39 = scmp.eq.s32.totalorder %s27, 1
      %p40 = por %p38, %p39
      %p41 = scmp.ne.s32.totalorder %s32, %s33
      %p42 = scmp.eq.s32.totalorder %s27, 0
      %p43 = por %p41, %p42
      %p44 = scmp.ne.s32.totalorder %s32, %s33
      %p45 = scmp.eq.s32.totalorder %s28, 1
      %p46 = por %p44, %p45
      %p48 = scmp.ne.s32.totalorder %s33, %s47
      %p49 = scmp.eq.s32.totalorder %s28, 0
      %p50 = por %p48, %p49
      %s51 = ssub.s32 %s22, %s29
      %p52 = scmp.eq.s32.totalorder %s51, 0
      %s54 = sadd.s32 %s53, 1
      %s55 = scalar_select %p52, %s53, %s54
      %p58 = pneg %p52
      %p59 = scmp.eq.s32.totalorder %s22, 1
      %p60 = por %p58, %p59
      %p61 = scmp.ne.s32.totalorder %s53, %s56
      %p62 = scmp.eq.s32.totalorder %s22, 0
      %p63 = por %p61, %p62
      %p64 = scmp.ne.s32.totalorder %s53, %s56
      %p65 = scmp.eq.s32.totalorder %s27, 1
      %p66 = por %p64, %p65
      %p67 = scmp.ne.s32.totalorder %s56, %s57
      %p68 = scmp.eq.s32.totalorder %s27, 0
      %p69 = por %p67, %p68
      %p70 = scmp.ne.s32.totalorder %s56, %s57
      %p71 = scmp.eq.s32.totalorder %s28, 1
      %p72 = por %p70, %p71
      %p74 = scmp.ne.s32.totalorder %s57, %s73
      %p75 = scmp.eq.s32.totalorder %s28, 0
      %p76 = por %p74, %p75
      %s78 = sadd.s32 %s77, 1
      %p81 = scmp.eq.s32.totalorder %s22, 1
      %p82 = scmp.ne.s32.totalorder %s77, %s79
      %p83 = scmp.eq.s32.totalorder %s22, 0
      %p84 = por %p82, %p83
      %p85 = scmp.ne.s32.totalorder %s77, %s79
      %p86 = scmp.eq.s32.totalorder %s27, 1
      %p87 = por %p85, %p86
      %p88 = scmp.ne.s32.totalorder %s79, %s80
      %p89 = scmp.eq.s32.totalorder %s27, 0
      %p90 = por %p88, %p89
      %p91 = scmp.ne.s32.totalorder %s79, %s80
      %p92 = scmp.eq.s32.totalorder %s28, 1
      %p93 = por %p91, %p92
      %p95 = scmp.ne.s32.totalorder %s80, %s94
      %p96 = scmp.eq.s32.totalorder %s28, 0
      %p97 = por %p95, %p96
      %s99 = sadd.s32 %s98, 1
      %p102 = scmp.eq.s32.totalorder %s22, 1
      %p103 = scmp.ne.s32.totalorder %s98, %s100
      %p104 = scmp.eq.s32.totalorder %s22, 0
      %p105 = por %p103, %p104
      %p106 = scmp.ne.s32.totalorder %s98, %s100
      %p107 = scmp.eq.s32.totalorder %s27, 1
      %p108 = por %p106, %p107
      %p109 = scmp.ne.s32.totalorder %s100, %s101
      %p110 = scmp.eq.s32.totalorder %s27, 0
      %p111 = por %p109, %p110
      %p112 = scmp.ne.s32.totalorder %s100, %s101
      %p113 = scmp.eq.s32.totalorder %s28, 1
      %p114 = por %p112, %p113
      %p116 = scmp.ne.s32.totalorder %s101, %s115
      %p117 = scmp.eq.s32.totalorder %s28, 0
      %p118 = por %p116, %p117
      %s120 = sadd.s32 %s119, 1
      %p123 = scmp.eq.s32.totalorder %s22, 1
      %p124 = scmp.ne.s32.totalorder %s119, %s121
      %p125 = scmp.eq.s32.totalorder %s22, 0
      %p126 = por %p124, %p125
      %p127 = scmp.ne.s32.totalorder %s119, %s121
      %p128 = scmp.eq.s32.totalorder %s27, 1
      %p129 = por %p127, %p128
      %p130 = scmp.ne.s32.totalorder %s121, %s122
      %p131 = scmp.eq.s32.totalorder %s27, 0
      %p132 = por %p130, %p131
      %p133 = scmp.ne.s32.totalorder %s121, %s122
      %p134 = scmp.eq.s32.totalorder %s28, 1
      %p135 = por %p133, %p134
      %p137 = scmp.ne.s32.totalorder %s122, %s136
      %p138 = scmp.eq.s32.totalorder %s28, 0
      %p139 = por %p137, %p138
      %s141 = sadd.s32 %s140, 1
      %p144 = scmp.eq.s32.totalorder %s22, 1
      %p145 = scmp.ne.s32.totalorder %s140, %s142
      %p146 = scmp.eq.s32.totalorder %s22, 0
      %p147 = por %p145, %p146
      %p148 = scmp.ne.s32.totalorder %s140, %s142
      %p149 = scmp.eq.s32.totalorder %s27, 1
      %p150 = por %p148, %p149
      %p151 = scmp.ne.s32.totalorder %s142, %s143
      %p152 = scmp.eq.s32.totalorder %s27, 0
      %p153 = por %p151, %p152
      %p154 = scmp.ne.s32.totalorder %s142, %s143
      %p155 = scmp.eq.s32.totalorder %s28, 1
      %p156 = por %p154, %p155
      %p158 = scmp.ne.s32.totalorder %s143, %s157
      %p159 = scmp.eq.s32.totalorder %s28, 0
      %p160 = por %p158, %p159
      %s162 = sadd.s32 %s161, 1
      %p165 = scmp.eq.s32.totalorder %s22, 1
      %p166 = scmp.ne.s32.totalorder %s161, %s163
      %p167 = scmp.eq.s32.totalorder %s22, 0
      %p168 = por %p166, %p167
      %p169 = scmp.ne.s32.totalorder %s161, %s163
      %p170 = scmp.eq.s32.totalorder %s27, 1
      %p171 = por %p169, %p170
      %p172 = scmp.ne.s32.totalorder %s163, %s164
      %p173 = scmp.eq.s32.totalorder %s27, 0
      %p174 = por %p172, %p173
      %p175 = scmp.ne.s32.totalorder %s163, %s164
      %p176 = scmp.eq.s32.totalorder %s28, 1
      %p177 = por %p175, %p176
      %p179 = scmp.ne.s32.totalorder %s164, %s178
      %p180 = scmp.eq.s32.totalorder %s28, 0
      %p181 = por %p179, %p180
      %s183 = sadd.s32 %s182, 1
      %p186 = scmp.eq.s32.totalorder %s22, 1
      %p187 = scmp.ne.s32.totalorder %s182, %s184
      %p188 = scmp.eq.s32.totalorder %s22, 0
      %p189 = por %p187, %p188
      %p190 = scmp.ne.s32.totalorder %s182, %s184
      %p191 = scmp.eq.s32.totalorder %s27, 1
      %p192 = por %p190, %p191
      %p193 = scmp.ne.s32.totalorder %s184, %s185
      %p194 = scmp.eq.s32.totalorder %s27, 0
      %p195 = por %p193, %p194
      %p196 = scmp.ne.s32.totalorder %s184, %s185
      %p197 = scmp.eq.s32.totalorder %s28, 1
      %p198 = por %p196, %p197
      %p200 = scmp.ne.s32.totalorder %s185, %s199
      %p201 = scmp.eq.s32.totalorder %s28, 0
      %p202 = por %p200, %p201
      %s204 = sadd.s32 %s203, 1
      %p207 = scmp.eq.s32.totalorder %s22, 1
      %p208 = scmp.ne.s32.totalorder %s203, %s205
      %p209 = scmp.eq.s32.totalorder %s22, 0
      %p210 = por %p208, %p209
      %p211 = scmp.ne.s32.totalorder %s203, %s205
      %p212 = scmp.eq.s32.totalorder %s27, 1
      %p213 = por %p211, %p212
      %p214 = scmp.ne.s32.totalorder %s205, %s206
      %p215 = scmp.eq.s32.totalorder %s27, 0
      %p216 = por %p214, %p215
      %p217 = scmp.ne.s32.totalorder %s205, %s206
      %p218 = scmp.eq.s32.totalorder %s28, 1
      %p219 = por %p217, %p218
      %p221 = scmp.ne.s32.totalorder %s206, %s220
      %p222 = scmp.eq.s32.totalorder %s28, 0
      %p223 = por %p221, %p222
      %s225 = sadd.s32 %s224, 1
      %p228 = scmp.eq.s32.totalorder %s22, 1
      %p229 = scmp.ne.s32.totalorder %s224, %s226
      %p230 = scmp.eq.s32.totalorder %s22, 0
      %p231 = por %p229, %p230
      %p232 = scmp.ne.s32.totalorder %s224, %s226
      %p233 = scmp.eq.s32.totalorder %s27, 1
      %p234 = por %p232, %p233
      %p235 = scmp.ne.s32.totalorder %s226, %s227
      %p236 = scmp.eq.s32.totalorder %s27, 0
      %p237 = por %p235, %p236
      %p238 = scmp.ne.s32.totalorder %s226, %s227
      %p239 = scmp.eq.s32.totalorder %s28, 1
      %p240 = por %p238, %p239
      %p242 = scmp.ne.s32.totalorder %s227, %s241
      %p243 = scmp.eq.s32.totalorder %s28, 0
      %p244 = por %p242, %p243
      %s246 = sadd.s32 %s245, 1
      %p249 = scmp.eq.s32.totalorder %s22, 1
      %p250 = scmp.ne.s32.totalorder %s245, %s247
      %p251 = scmp.eq.s32.totalorder %s22, 0
      %p252 = por %p250, %p251
      %p253 = scmp.ne.s32.totalorder %s245, %s247
      %p254 = scmp.eq.s32.totalorder %s27, 1
      %p255 = por %p253, %p254
      %p256 = scmp.ne.s32.totalorder %s247, %s248
      %p257 = scmp.eq.s32.totalorder %s27, 0
      %p258 = por %p256, %p257
      %p259 = scmp.ne.s32.totalorder %s247, %s248
      %p260 = scmp.eq.s32.totalorder %s28, 1
      %p261 = por %p259, %p260
      %p263 = scmp.ne.s32.totalorder %s248, %s262
      %p264 = scmp.eq.s32.totalorder %s28, 0
      %p265 = por %p263, %p264
      %s266 = ssub.s32 %s22, %s29
      %p267 = scmp.eq.s32.totalorder %s266, 0
      %s269 = sadd.s32 %s268, 1
      %s270 = scalar_select %p267, %s268, %s269
      %p273 = pneg %p267
      %p274 = scmp.eq.s32.totalorder %s22, 1
      %p275 = por %p273, %p274
      %p276 = scmp.ne.s32.totalorder %s268, %s271
      %p277 = scmp.eq.s32.totalorder %s22, 0
      %p278 = por %p276, %p277
      %p279 = scmp.ne.s32.totalorder %s268, %s271
      %p280 = scmp.eq.s32.totalorder %s27, 1
      %p281 = por %p279, %p280
      %p282 = scmp.ne.s32.totalorder %s271, %s272
      %p283 = scmp.eq.s32.totalorder %s27, 0
      %p284 = por %p282, %p283
      %p285 = scmp.ne.s32.totalorder %s271, %s272
      %p286 = scmp.eq.s32.totalorder %s28, 1
      %p287 = por %p285, %p286
      %p289 = scmp.ne.s32.totalorder %s272, %s288
      %p290 = scmp.eq.s32.totalorder %s28, 0
      %p291 = por %p289, %p290
      %p292 = scmp.le.s32.totalorder 1, %s22
      %p293 = scmp.lt.s32.totalorder %s22, 3
      %p294 = pnand %p292, %p293
      %p295 = pneg %p294
      // Predicated region
      $region9: #{_lambda_.1} parent=5 // pred_check
        _
      $region10: #{_lambda_.1} parent=5 // pred_check_branch
        %297 = sbr.rel (%p294) target = $region12
      $region11: #{_lambda_.1} parent=5 // pred_region
        %s298 = ssub.s32 %s22, 1
        // Predicated region
        $region13: #{_lambda_.1} parent=11 // pred_check
          %p299 = pneg %p43
        $region14: #{_lambda_.1} parent=11 // pred_check_branch
          %301 = sbr.rel (%p299) target = $region16
        $region15: #{_lambda_.1} parent=11 // pred_region
          _
        $region16: #{_lambda_.1} parent=11 // pred_fallthru
          _
        // Predicated region
        $region17: #{_lambda_.1} parent=11 // pred_check
          %p302 = pneg %p90
        $region18: #{_lambda_.1} parent=11 // pred_check_branch
          %304 = sbr.rel (%p302) target = $region20
        $region19: #{_lambda_.1} parent=11 // pred_region
          %s306 = ssub.s32 1152, 1152
          %307 = vsyncadd [#allocation3], %s306
          %s308 = sshll.u32 [#allocation2], 4
          %s309 = int_to_ptr.vmem [resolvable:$true] %s308
          %314 = dma.hbm_to_vmem [thread:$0]  %s2, 1152, %s309, [#allocation3], 128, 128, 8
        $region20: #{_lambda_.1} parent=11 // pred_fallthru
          _
        // Predicated region
        $region21: #{_lambda_.1} parent=11 // pred_check
          %p315 = pneg %p111
        $region22: #{_lambda_.1} parent=11 // pred_check_branch
          %317 = sbr.rel (%p315) target = $region24
        $region23: #{_lambda_.1} parent=11 // pred_region
          %s319 = ssub.s32 640, 640
          %320 = vsyncadd [#allocation5], %s319
          %s321 = sshll.u32 [#allocation4], 4
          %s322 = int_to_ptr.vmem [resolvable:$true] %s321
          %327 = dma.hbm_to_vmem [thread:$0]  %s3, 640, %s322, [#allocation5], 128, 128, 8
        $region24: #{_lambda_.1} parent=11 // pred_fallthru
          _
        // Predicated region
        $region25: #{_lambda_.1} parent=11 // pred_check
          %p328 = pneg %p132
        $region26: #{_lambda_.1} parent=11 // pred_check_branch
          %330 = sbr.rel (%p328) target = $region28
        $region27: #{_lambda_.1} parent=11 // pred_region
          %s332 = ssub.s32 896, 896
          %333 = vsyncadd [#allocation5], %s332
          %s334 = sshll.u32 [#allocation6], 4
          %s335 = int_to_ptr.vmem [resolvable:$true] %s334
          %340 = dma.hbm_to_vmem [thread:$0]  %s4, 896, %s335, [#allocation5], 128, 128, 8
        $region28: #{_lambda_.1} parent=11 // pred_fallthru
          _
        // Predicated region
        $region29: #{_lambda_.1} parent=11 // pred_check
          %p341 = pneg %p153
        $region30: #{_lambda_.1} parent=11 // pred_check_branch
          %343 = sbr.rel (%p341) target = $region32
        $region31: #{_lambda_.1} parent=11 // pred_region
          %s345 = ssub.s32 1152, 1152
          %346 = vsyncadd [#allocation8], %s345
          %s347 = sshll.u32 [#allocation7], 4
          %s348 = int_to_ptr.vmem [resolvable:$true] %s347
          %353 = dma.hbm_to_vmem [thread:$0]  %s5, 1152, %s348, [#allocation8], 128, 128, 8
        $region32: #{_lambda_.1} parent=11 // pred_fallthru
          _
        // Predicated region
        $region33: #{_lambda_.1} parent=11 // pred_check
          %p354 = pneg %p174
        $region34: #{_lambda_.1} parent=11 // pred_check_branch
          %356 = sbr.rel (%p354) target = $region36
        $region35: #{_lambda_.1} parent=11 // pred_region
          %s358 = ssub.s32 640, 640
          %359 = vsyncadd [#allocation8], %s358
          %s360 = sshll.u32 [#allocation9], 4
          %s361 = int_to_ptr.vmem [resolvable:$true] %s360
          %366 = dma.hbm_to_vmem [thread:$0]  %s6, 640, %s361, [#allocation8], 128, 128, 8
        $region36: #{_lambda_.1} parent=11 // pred_fallthru
          _
        // Predicated region
        $region37: #{_lambda_.1} parent=11 // pred_check
          %p367 = pneg %p195
        $region38: #{_lambda_.1} parent=11 // pred_check_branch
          %369 = sbr.rel (%p367) target = $region40
        $region39: #{_lambda_.1} parent=11 // pred_region
          %s371 = ssub.s32 896, 896
          %372 = vsyncadd [#allocation11], %s371
          %s373 = sshll.u32 [#allocation10], 4
          %s374 = int_to_ptr.vmem [resolvable:$true] %s373
          %379 = dma.hbm_to_vmem [thread:$0]  %s7, 896, %s374, [#allocation11], 128, 128, 8
        $region40: #{_lambda_.1} parent=11 // pred_fallthru
          _
        // Predicated region
        $region41: #{_lambda_.1} parent=11 // pred_check
          %p380 = pneg %p216
        $region42: #{_lambda_.1} parent=11 // pred_check_branch
          %382 = sbr.rel (%p380) target = $region44
        $region43: #{_lambda_.1} parent=11 // pred_region
          %s384 = ssub.s32 2304, 2304
          %385 = vsyncadd [#allocation11], %s384
          %s386 = sshll.u32 [#allocation12], 4
          %s387 = int_to_ptr.vmem [resolvable:$true] %s386
          %392 = dma.hbm_to_vmem [thread:$0]  %s8, 2304, %s387, [#allocation11], 128, 128, 8
        $region44: #{_lambda_.1} parent=11 // pred_fallthru
          _
        // Predicated region
        $region45: #{_lambda_.1} parent=11 // pred_check
          %p393 = pneg %p237
        $region46: #{_lambda_.1} parent=11 // pred_check_branch
          %395 = sbr.rel (%p393) target = $region48
        $region47: #{_lambda_.1} parent=11 // pred_region
          %s397 = ssub.s32 1152, 1152
          %398 = vsyncadd [#allocation14], %s397
          %s399 = sshll.u32 [#allocation13], 4
          %s400 = int_to_ptr.vmem [resolvable:$true] %s399
          %405 = dma.hbm_to_vmem [thread:$0]  %s9, 1152, %s400, [#allocation14], 128, 128, 8
        $region48: #{_lambda_.1} parent=11 // pred_fallthru
          _
        // Predicated region
        $region49: #{_lambda_.1} parent=11 // pred_check
          %p406 = pneg %p258
        $region50: #{_lambda_.1} parent=11 // pred_check_branch
          %408 = sbr.rel (%p406) target = $region52
        $region51: #{_lambda_.1} parent=11 // pred_region
          _
        $region52: #{_lambda_.1} parent=11 // pred_fallthru
          _
      $region12: #{_lambda_.1} parent=5 // pred_fallthru
        _
      %p409 = scmp.lt.s32.totalorder %s22, 2
      // Predicated region
      $region53: #{_lambda_.1} parent=5 // pred_check
        %p410 = pneg %p409
      $region54: #{_lambda_.1} parent=5 // pred_check_branch
        %412 = sbr.rel (%p410) target = $region56
      $region55: #{_lambda_.1} parent=5 // pred_region
        // Predicated region
        $region57: #{_lambda_.1} parent=55 // pred_check
          %p413 = pneg %p63
        $region58: #{_lambda_.1} parent=55 // pred_check_branch
          %415 = sbr.rel (%p413) target = $region60
        $region59: #{_lambda_.1} parent=55 // pred_region
          %p416 = scmp.lt.s32.totalorder %s22, 1
          %s417 = scalar_select %p416, %s22, 1
          %s418 = smul.addr %s417, 3
          %s419 = smul.addr %s418, 8
          %s420 = scalar_lea.vmem %s1, %s419
        $region60: #{_lambda_.1} parent=55 // pred_fallthru
          _
      $region56: #{_lambda_.1} parent=5 // pred_fallthru
        _
      %p421 = scmp.le.s32.totalorder 1, %s22
      %p422 = scmp.lt.s32.totalorder %s22, 3
      %p423 = pnand %p421, %p422
      %p424 = pneg %p423
      // Predicated region
      $region61: #{_lambda_.1} parent=5 // pred_check
        _
      $region62: #{_lambda_.1} parent=5 // pred_check_branch
        %426 = sbr.rel (%p423) target = $region64
      $region63: #{_lambda_.1} parent=5 // pred_region
        %s427 = ssub.s32 %s22, 1
        // Predicated region
        $region65: #{_lambda_.1} parent=63 // pred_check
          %p428 = pneg %p90
        $region66: #{_lambda_.1} parent=63 // pred_check_branch
          %430 = sbr.rel (%p428) target = $region68
        $region67: #{_lambda_.1} parent=63 // pred_region
          %431 = dma.done [#allocation3], 1152
        $region68: #{_lambda_.1} parent=63 // pred_fallthru
          _
        // Predicated region
        $region69: #{_lambda_.1} parent=63 // pred_check
          %p432 = pneg %p111
        $region70: #{_lambda_.1} parent=63 // pred_check_branch
          %434 = sbr.rel (%p432) target = $region72
        $region71: #{_lambda_.1} parent=63 // pred_region
          %435 = dma.done [#allocation5], 640
        $region72: #{_lambda_.1} parent=63 // pred_fallthru
          _
        // Predicated region
        $region73: #{_lambda_.1} parent=63 // pred_check
          %p436 = pneg %p132
        $region74: #{_lambda_.1} parent=63 // pred_check_branch
          %438 = sbr.rel (%p436) target = $region76
        $region75: #{_lambda_.1} parent=63 // pred_region
          %439 = dma.done [#allocation5], 896
        $region76: #{_lambda_.1} parent=63 // pred_fallthru
          _
        // Predicated region
        $region77: #{_lambda_.1} parent=63 // pred_check
          %p440 = pneg %p153
        $region78: #{_lambda_.1} parent=63 // pred_check_branch
          %442 = sbr.rel (%p440) target = $region80
        $region79: #{_lambda_.1} parent=63 // pred_region
          %443 = dma.done [#allocation8], 1152
        $region80: #{_lambda_.1} parent=63 // pred_fallthru
          _
        // Predicated region
        $region81: #{_lambda_.1} parent=63 // pred_check
          %p444 = pneg %p174
        $region82: #{_lambda_.1} parent=63 // pred_check_branch
          %446 = sbr.rel (%p444) target = $region84
        $region83: #{_lambda_.1} parent=63 // pred_region
          %447 = dma.done [#allocation8], 640
        $region84: #{_lambda_.1} parent=63 // pred_fallthru
          _
        // Predicated region
        $region85: #{_lambda_.1} parent=63 // pred_check
          %p448 = pneg %p195
        $region86: #{_lambda_.1} parent=63 // pred_check_branch
          %450 = sbr.rel (%p448) target = $region88
        $region87: #{_lambda_.1} parent=63 // pred_region
          %451 = dma.done [#allocation11], 896
        $region88: #{_lambda_.1} parent=63 // pred_fallthru
          _
        // Predicated region
        $region89: #{_lambda_.1} parent=63 // pred_check
          %p452 = pneg %p216
        $region90: #{_lambda_.1} parent=63 // pred_check_branch
          %454 = sbr.rel (%p452) target = $region92
        $region91: #{_lambda_.1} parent=63 // pred_region
          %455 = dma.done [#allocation11], 2304
        $region92: #{_lambda_.1} parent=63 // pred_fallthru
          _
        // Predicated region
        $region93: #{_lambda_.1} parent=63 // pred_check
          %p456 = pneg %p237
        $region94: #{_lambda_.1} parent=63 // pred_check_branch
          %458 = sbr.rel (%p456) target = $region96
        $region95: #{_lambda_.1} parent=63 // pred_region
          %459 = dma.done [#allocation14], 1152
        $region96: #{_lambda_.1} parent=63 // pred_fallthru
          _
        %p460 = pneg %p43
        %p461 = pneg %p40
        %p462 = scmp.lt.s32.totalorder %s27, 1
        %s463 = scalar_select %p462, %s27, 1
        %s464 = smul.addr %s463, 3
        %s465 = smul.addr %s464, 8
        %s466 = scalar_lea.vmem %s1, %s465
        %p467 = pneg %p69
        %p468 = pneg %p66
        %p469 = pneg %p90
        %p470 = pneg %p87
        %p471 = pneg %p111
        %p472 = pneg %p108
        %p473 = pneg %p132
        %p474 = pneg %p129
        %p475 = pneg %p153
        %p476 = pneg %p150
        %p477 = pneg %p174
        %p478 = pneg %p171
        %p479 = pneg %p195
        %p480 = pneg %p192
        %p481 = pneg %p216
        %p482 = pneg %p213
        %p483 = pneg %p237
        %p484 = pneg %p234
        %p485 = pneg %p258
        %p486 = pneg %p255
        %p487 = pneg %p284
        %p488 = pneg %p281
        %p489 = scmp.lt.s32.totalorder %s27, 1
        %s490 = scalar_select %p489, %s27, 1
        %s491 = smul.addr %s490, 6
        %s492 = smul.addr %s491, 8
        %s493 = scalar_lea.vmem %s11, %s492
        %p494 = scmp.lt.s32.totalorder %s27, 1
        %s495 = scalar_select %p494, %s27, 1
        %s496 = smul.addr %s495, 3
        %s497 = smul.addr %s496, 8
        %s498 = scalar_lea.vmem %s1, %s497
        %p499 = scmp.lt.s32.totalorder %s27, 1
        %s500 = scalar_select %p499, %s27, 1
        %s501 = smul.addr %s500, 6
        %s502 = smul.addr %s501, 8
        %s503 = scalar_lea.vmem %s11, %s502
        %v504 = vld [vmem:[%s0] sm:$0x7]
        %vm505 = vcmp.gt.f32.partialorder %v504, 0.5
        %v506 = vld [vmem:[%s498] sm:$0xff]
        %v507 = vld [vmem:[%s498 + $0x8] sm:$0xff]
        %v508 = vld [vmem:[%s498 + $0x10] sm:$0xff]
        %v509 = vld [vmem:[#allocation6] sm:$0xff]
        %v510 = vld [vmem:[#allocation6 + $0x8] sm:$0xff]
        %v511 = vld [vmem:[#allocation6 + $0x10] sm:$0xff]
        %v512 = vld [vmem:[#allocation6 + $0x18] sm:$0xff]
        %v513 = vld [vmem:[#allocation6 + $0x20] sm:$0xff]
        %v514 = vld [vmem:[#allocation6 + $0x28] sm:$0xff]
        %v515 = vld [vmem:[#allocation4] sm:$0xff]
        %v516 = vld [vmem:[#allocation4 + $0x8] sm:$0xff]
        %v517 = vld [vmem:[#allocation4 + $0x10] sm:$0xff]
        %v518 = vld [vmem:[#allocation4 + $0x18] sm:$0xff]
        %v519 = vld [vmem:[#allocation4 + $0x20] sm:$0xff]
        %521 = vset.pattern.permute.xlu0 0
        %522 = vperm.xlu0 %521, %v509
        %v523 = vpop.permute.xlu0 %522
        %526 = vset.pattern.permute.xlu0 0
        %527 = vperm.xlu0 %526, %v510
        %v528 = vpop.permute.xlu0 %527
        %531 = vset.pattern.permute.xlu0 0
        %532 = vperm.xlu0 %531, %v511
        %v533 = vpop.permute.xlu0 %532
        %536 = vset.pattern.permute.xlu0 0
        %537 = vperm.xlu0 %536, %v512
        %v538 = vpop.permute.xlu0 %537
        %541 = vset.pattern.permute.xlu0 0
        %542 = vperm.xlu0 %541, %v513
        %v543 = vpop.permute.xlu0 %542
        %vm545 = vcmask 64512
        %v547 = vsel %vm545, %v515, 0
        %v550 = vsel %vm545, %v516, 0
        %v553 = vsel %vm545, %v517, 0
        %v556 = vsel %vm545, %v518, 0
        %v559 = vsel %vm545, %v519, 0
        %561 = vmatprep.subr.mxu0 %v507
        %562 = vmatpush1.msra.mxu0 %v506
        %563 = vmatprep.subr.mxu0 0.0
        %564 = vmatpush1.msra.mxu0 0.0
        %565 = vmatprep.subr.mxu0 0.0
        %566 = vmatpush1.msra.mxu0 0.0
        %567 = vmatprep.subr.mxu0 0.0
        %568 = vmatpush1.msra.mxu0 0.0
        %569 = vmatprep.subr.mxu0 0.0
        %570 = vmatpush1.msra.mxu0 0.0
        %571 = vmatprep.subr.mxu0 0.0
        %572 = vmatpush1.msra.mxu0 0.0
        %573 = vmatprep.subr.mxu0 0.0
        %574 = vmatpush1.msra.mxu0 0.0
        %575 = vmatprep.subr.mxu0 0.0
        %576 = vmatpush1.msra.mxu0 0.0
        %577 = vmatprep.subr.mxu0 0.0
        %578 = vmatpush1.msra.mxu0 0.0
        %579 = vmatprep.subr.mxu0 0.0
        %580 = vmatpush1.msra.mxu0 0.0
        %581 = vmatprep.subr.mxu0 0.0
        %582 = vmatpush1.msra.mxu0 0.0
        %583 = vmatprep.subr.mxu0 0.0
        %584 = vmatpush1.msra.mxu0 0.0
        %585 = vmatprep.subr.mxu0 0.0
        %586 = vmatpush1.msra.mxu0 0.0
        %587 = vmatprep.subr.mxu0 0.0
        %588 = vmatpush1.msra.mxu0 0.0
        %589 = vmatprep.subr.mxu0 0.0
        %590 = vmatpush1.msra.mxu0 0.0
        %591 = vmatprep.subr.mxu0 0.0
        %592 = vmatpush1.msra.mxu0 0.0
        %593 = vmatprep.subr.mxu0 0.0
        %594 = vmatpush1.msra.mxu0 0.0
        %595 = vmatprep.subr.mxu0 0.0
        %596 = vmatpush1.msra.mxu0 0.0
        %597 = vmatprep.subr.mxu0 0.0
        %598 = vmatpush1.msra.mxu0 0.0
        %599 = vmatprep.subr.mxu0 0.0
        %600 = vmatpush1.msra.mxu0 0.0
        %601 = vmatprep.subr.mxu0 0.0
        %602 = vmatpush1.msra.mxu0 0.0
        %603 = vmatprep.subr.mxu0 0.0
        %604 = vmatpush1.msra.mxu0 0.0
        %605 = vmatprep.subr.mxu0 0.0
        %606 = vmatpush1.msra.mxu0 0.0
        %607 = vmatprep.subr.mxu0 0.0
        %608 = vmatpush1.msra.mxu0 0.0
        %609 = vmatprep.subr.mxu0 0.0
        %610 = vmatpush1.msra.mxu0 0.0
        %611 = vmatprep.subr.mxu0 0.0
        %612 = vmatpush1.msra.mxu0 0.0
        %613 = vmatprep.subr.mxu0 0.0
        %614 = vmatpush1.msra.mxu0 0.0
        %615 = vmatprep.subr.mxu0 0.0
        %616 = vmatpush1.msra.mxu0 0.0
        %617 = vmatprep.subr.mxu0 0.0
        %618 = vmatpush1.msra.mxu0 0.0
        %619 = vmatprep.subr.mxu0 0.0
        %620 = vmatpush1.msra.mxu0 0.0
        %621 = vmatprep.subr.mxu0 0.0
        %622 = vmatpush1.msra.mxu0 0.0
        %623 = vmatprep.subr.mxu0 0.0
        %624 = vmatpush1.msra.mxu0 0.0
        %625 = vmatprep.mubr.f32.mxu0 0.0
        %626 = vmatmul.mubr.f32.gmra.mrb[0].mxu0 %v547
        %v627 = vpop.f32.mrb[0].mxu0
        %v628 = vadd.f32 %v523, %v627
        %v629 = vpop.f32.mrb[0].mxu0
        %v630 = vadd.f32 %v523, %v629
        %631 = vmatprep.mubr.f32.mxu0 0.0
        %632 = vmatmul.mubr.f32.gmra.mrb[0].mxu0 %v550
        %v633 = vpop.f32.mrb[0].mxu0
        %v634 = vadd.f32 %v528, %v633
        %v635 = vpop.f32.mrb[0].mxu0
        %v636 = vadd.f32 %v528, %v635
        %637 = vmatprep.mubr.f32.mxu0 0.0
        %638 = vmatmul.mubr.f32.gmra.mrb[0].mxu0 %v553
        %v639 = vpop.f32.mrb[0].mxu0
        %v640 = vadd.f32 %v533, %v639
        %v641 = vpop.f32.mrb[0].mxu0
        %v642 = vadd.f32 %v533, %v641
        %643 = vmatprep.mubr.f32.mxu0 0.0
        %644 = vmatmul.mubr.f32.gmra.mrb[0].mxu0 %v556
        %v645 = vpop.f32.mrb[0].mxu0
        %v646 = vadd.f32 %v538, %v645
        %v647 = vpop.f32.mrb[0].mxu0
        %v648 = vadd.f32 %v538, %v647
        %649 = vmatprep.mubr.f32.mxu0 0.0
        %650 = vmatmul.mubr.f32.gmra.mrb[0].mxu0 %v559
        %v651 = vpop.f32.mrb[0].mxu0
        %v652 = vadd.f32 %v543, %v651
        %v653 = vpop.f32.mrb[0].mxu0
        %v654 = vadd.f32 %v543, %v653
        %655 = vdwg.mxu0
        %656 = vmatprep.subr.mxu0 0.0
        %657 = vmatpush1.msra.mxu0 %v508
        %658 = vmatprep.subr.mxu0 0.0
        %659 = vmatpush1.msra.mxu0 0.0
        %660 = vmatprep.subr.mxu0 0.0
        %661 = vmatpush1.msra.mxu0 0.0
        %662 = vmatprep.subr.mxu0 0.0
        %663 = vmatpush1.msra.mxu0 0.0
        %664 = vmatprep.subr.mxu0 0.0
        %665 = vmatpush1.msra.mxu0 0.0
        %666 = vmatprep.subr.mxu0 0.0
        %667 = vmatpush1.msra.mxu0 0.0
        %668 = vmatprep.subr.mxu0 0.0
        %669 = vmatpush1.msra.mxu0 0.0
        %670 = vmatprep.subr.mxu0 0.0
        %671 = vmatpush1.msra.mxu0 0.0
        %672 = vmatprep.subr.mxu0 0.0
        %673 = vmatpush1.msra.mxu0 0.0
        %674 = vmatprep.subr.mxu0 0.0
        %675 = vmatpush1.msra.mxu0 0.0
        %676 = vmatprep.subr.mxu0 0.0
        %677 = vmatpush1.msra.mxu0 0.0
        %678 = vmatprep.subr.mxu0 0.0
        %679 = vmatpush1.msra.mxu0 0.0
        %680 = vmatprep.subr.mxu0 0.0
        %681 = vmatpush1.msra.mxu0 0.0
        %682 = vmatprep.subr.mxu0 0.0
        %683 = vmatpush1.msra.mxu0 0.0
        %684 = vmatprep.subr.mxu0 0.0
        %685 = vmatpush1.msra.mxu0 0.0
        %686 = vmatprep.subr.mxu0 0.0
        %687 = vmatpush1.msra.mxu0 0.0
        %688 = vmatprep.subr.mxu0 0.0
        %689 = vmatpush1.msra.mxu0 0.0
        %690 = vmatprep.subr.mxu0 0.0
        %691 = vmatpush1.msra.mxu0 0.0
        %692 = vmatprep.subr.mxu0 0.0
        %693 = vmatpush1.msra.mxu0 0.0
        %694 = vmatprep.subr.mxu0 0.0
        %695 = vmatpush1.msra.mxu0 0.0
        %696 = vmatprep.subr.mxu0 0.0
        %697 = vmatpush1.msra.mxu0 0.0
        %698 = vmatprep.subr.mxu0 0.0
        %699 = vmatpush1.msra.mxu0 0.0
        %700 = vmatprep.subr.mxu0 0.0
        %701 = vmatpush1.msra.mxu0 0.0
        %702 = vmatprep.subr.mxu0 0.0
        %703 = vmatpush1.msra.mxu0 0.0
        %704 = vmatprep.subr.mxu0 0.0
        %705 = vmatpush1.msra.mxu0 0.0
        %706 = vmatprep.subr.mxu0 0.0
        %707 = vmatpush1.msra.mxu0 0.0
        %708 = vmatprep.subr.mxu0 0.0
        %709 = vmatpush1.msra.mxu0 0.0
        %710 = vmatprep.subr.mxu0 0.0
        %711 = vmatpush1.msra.mxu0 0.0
        %712 = vmatprep.subr.mxu0 0.0
        %713 = vmatpush1.msra.mxu0 0.0
        %714 = vmatprep.subr.mxu0 0.0
        %715 = vmatpush1.msra.mxu0 0.0
        %716 = vmatprep.subr.mxu0 0.0
        %717 = vmatpush1.msra.mxu0 0.0
        %718 = vmatprep.subr.mxu0 0.0
        %719 = vmatpush1.msra.mxu0 0.0
        %720 = vmatprep.mubr.f32.mxu0 0.0
        %721 = vmatmul.mubr.f32.gmra.mrb[0].mxu0 %v547
        %v722 = vpop.f32.mrb[0].mxu0
        %v723 = vadd.f32 %v523, %v722
        %v724 = vpop.f32.mrb[0].mxu0
        %725 = vmatprep.mubr.f32.mxu0 0.0
        %726 = vmatmul.mubr.f32.gmra.mrb[0].mxu0 %v550
        %v727 = vpop.f32.mrb[0].mxu0
        %v728 = vadd.f32 %v528, %v727
        %v729 = vpop.f32.mrb[0].mxu0
        %730 = vmatprep.mubr.f32.mxu0 0.0
        %731 = vmatmul.mubr.f32.gmra.mrb[0].mxu0 %v553
        %v732 = vpop.f32.mrb[0].mxu0
        %v733 = vadd.f32 %v533, %v732
        %v734 = vpop.f32.mrb[0].mxu0
        %735 = vmatprep.mubr.f32.mxu0 0.0
        %736 = vmatmul.mubr.f32.gmra.mrb[0].mxu0 %v556
        %v737 = vpop.f32.mrb[0].mxu0
        %v738 = vadd.f32 %v538, %v737
        %v739 = vpop.f32.mrb[0].mxu0
        %740 = vmatprep.mubr.f32.mxu0 0.0
        %741 = vmatmul.mubr.f32.gmra.mrb[0].mxu0 %v559
        %v742 = vpop.f32.mrb[0].mxu0
        %v743 = vadd.f32 %v543, %v742
        %v744 = vpop.f32.mrb[0].mxu0
        %745 = vdwg.mxu0
        %v746 = vsel %vm505, 1, 0
        %v747 = vlaneseq
        %v748 = vshrl.u32 %v747, 7
        %v749 = vsub.s32 0, %v748
        %v750 = vrot.slane %v746, %v749
        %v751 = vlaneseq
        %v752 = vshrl.u32 %v751, 7
        %v753 = vsub.s32 1, %v752
        %v754 = vrot.slane %v746, %v753
        %v755 = vlaneseq
        %v756 = vshrl.u32 %v755, 7
        %v757 = vsub.s32 2, %v756
        %v758 = vrot.slane %v746, %v757
        %vm759 = vcmp.eq.s32.totalorder %v750, 1
        %vm760 = vcmp.eq.s32.totalorder %v754, 1
        %vm761 = vcmp.eq.s32.totalorder %v758, 1
        %v762 = vsel %vm759, %v628, 0.0
        %v763 = vsel %vm760, %v630, 0.0
        %v764 = vsel %vm761, %v723, 0.0
        %v765 = vsel %vm759, %v634, 0.0
        %v766 = vsel %vm760, %v636, 0.0
        %v767 = vsel %vm761, %v728, 0.0
        %v768 = vsel %vm759, %v640, 0.0
        %v769 = vsel %vm760, %v642, 0.0
        %v770 = vsel %vm761, %v733, 0.0
        %v771 = vsel %vm759, %v646, 0.0
        %v772 = vsel %vm760, %v648, 0.0
        %v773 = vsel %vm761, %v738, 0.0
        %v774 = vsel %vm759, %v652, 0.0
        %v775 = vsel %vm760, %v654, 0.0
        %v776 = vsel %vm761, %v743, 0.0
        %v777 = vld [vmem:[#allocation2] sm:$0xff]
        %778 = vrot.lane.b32.xlu0 %v506, 19
        %v779 = vpop.permute.xlu0 %778
        %780 = vrot.lane.b32.xlu0 %v762, 19
        %v781 = vpop.permute.xlu0 %780
        %782 = vrot.lane.b32.xlu0 %v765, 19
        %v783 = vpop.permute.xlu0 %782
        %784 = vrot.lane.b32.xlu0 %v507, 19
        %v785 = vpop.permute.xlu0 %784
        %786 = vrot.lane.b32.xlu0 %v763, 19
        %v787 = vpop.permute.xlu0 %786
        %788 = vrot.lane.b32.xlu0 %v766, 19
        %v789 = vpop.permute.xlu0 %788
        %790 = vrot.lane.b32.xlu0 %v508, 19
        %v791 = vpop.permute.xlu0 %790
        %792 = vrot.lane.b32.xlu0 %v764, 19
        %v793 = vpop.permute.xlu0 %792
        %794 = vrot.lane.b32.xlu0 %v767, 19
        %v795 = vpop.permute.xlu0 %794
        %v796 = vlaneseq
        %v797 = vand.u32 %v796, 127
        %vm798 = vcmp.lt.s32.totalorder %v797, 19
        %v799 = vsel %vm798, %v785, %v791
        %v800 = vsel %vm798, %v787, %v793
        %v801 = vsel %vm798, %v789, %v795
        %v802 = vsel %vm798, %v779, %v785
        %v803 = vsel %vm798, %v781, %v787
        %v804 = vsel %vm798, %v783, %v789
        %v805 = vsel %vm798, %v791, %v779
        %v806 = vsel %vm798, %v793, %v781
        %v807 = vsel %vm798, %v795, %v783
        %s808 = scalar_lea.vmem [#allocation2], 8
        %v809 = vld [vmem:[%s808] sm:$0xff]
        %810 = vrot.lane.b32.xlu0 %v506, 18
        %v811 = vpop.permute.xlu0 %810
        %812 = vrot.lane.b32.xlu0 %v762, 18
        %v813 = vpop.permute.xlu0 %812
        %814 = vrot.lane.b32.xlu0 %v765, 18
        %v815 = vpop.permute.xlu0 %814
        %816 = vrot.lane.b32.xlu0 %v507, 18
        %v817 = vpop.permute.xlu0 %816
        %818 = vrot.lane.b32.xlu0 %v763, 18
        %v819 = vpop.permute.xlu0 %818
        %820 = vrot.lane.b32.xlu0 %v766, 18
        %v821 = vpop.permute.xlu0 %820
        %822 = vrot.lane.b32.xlu0 %v508, 18
        %v823 = vpop.permute.xlu0 %822
        %824 = vrot.lane.b32.xlu0 %v764, 18
        %v825 = vpop.permute.xlu0 %824
        %826 = vrot.lane.b32.xlu0 %v767, 18
        %v827 = vpop.permute.xlu0 %826
        %vm828 = vcmp.lt.s32.totalorder %v797, 18
        %v829 = vsel %vm828, %v817, %v823
        %v830 = vsel %vm828, %v819, %v825
        %v831 = vsel %vm828, %v821, %v827
        %v832 = vsel %vm828, %v811, %v817
        %v833 = vsel %vm828, %v813, %v819
        %v834 = vsel %vm828, %v815, %v821
        %v835 = vsel %vm828, %v823, %v811
        %v836 = vsel %vm828, %v825, %v813
        %v837 = vsel %vm828, %v827, %v815
        %vm838 = vcmask 195584
        %v840 = vsel %vm838, %v809, 0
        %842 = vmatprep.subr.mxu0 %v832
        %843 = vmatpush1.msra.mxu0 %v835
        %844 = vmatprep.subr.mxu0 %v833
        %845 = vmatpush1.msra.mxu0 %v836
        %846 = vmatprep.subr.mxu0 %v834
        %847 = vmatpush1.msra.mxu0 %v837
        %848 = vmatprep.subr.mxu0 0.0
        %849 = vmatpush1.msra.mxu0 0.0
        %850 = vmatprep.subr.mxu0 0.0
        %851 = vmatpush1.msra.mxu0 0.0
        %852 = vmatprep.subr.mxu0 0.0
        %853 = vmatpush1.msra.mxu0 0.0
        %854 = vmatprep.subr.mxu0 0.0
        %855 = vmatpush1.msra.mxu0 0.0
        %856 = vmatprep.subr.mxu0 0.0
        %857 = vmatpush1.msra.mxu0 0.0
        %858 = vmatprep.subr.mxu0 0.0
        %859 = vmatpush1.msra.mxu0 0.0
        %860 = vmatprep.subr.mxu0 0.0
        %861 = vmatpush1.msra.mxu0 0.0
        %862 = vmatprep.subr.mxu0 0.0
        %863 = vmatpush1.msra.mxu0 0.0
        %864 = vmatprep.subr.mxu0 0.0
        %865 = vmatpush1.msra.mxu0 0.0
        %866 = vmatprep.subr.mxu0 0.0
        %867 = vmatpush1.msra.mxu0 0.0
        %868 = vmatprep.subr.mxu0 0.0
        %869 = vmatpush1.msra.mxu0 0.0
        %870 = vmatprep.subr.mxu0 0.0
        %871 = vmatpush1.msra.mxu0 0.0
        %872 = vmatprep.subr.mxu0 0.0
        %873 = vmatpush1.msra.mxu0 0.0
        %874 = vmatprep.subr.mxu0 0.0
        %875 = vmatpush1.msra.mxu0 0.0
        %876 = vmatprep.subr.mxu0 0.0
        %877 = vmatpush1.msra.mxu0 0.0
        %878 = vmatprep.subr.mxu0 0.0
        %879 = vmatpush1.msra.mxu0 0.0
        %880 = vmatprep.subr.mxu0 0.0
        %881 = vmatpush1.msra.mxu0 0.0
        %882 = vmatprep.subr.mxu0 0.0
        %883 = vmatpush1.msra.mxu0 0.0
        %884 = vmatprep.subr.mxu0 0.0
        %885 = vmatpush1.msra.mxu0 0.0
        %886 = vmatprep.subr.mxu0 0.0
        %887 = vmatpush1.msra.mxu0 0.0
        %888 = vmatprep.subr.mxu0 0.0
        %889 = vmatpush1.msra.mxu0 0.0
        %890 = vmatprep.subr.mxu0 0.0
        %891 = vmatpush1.msra.mxu0 0.0
        %892 = vmatprep.subr.mxu0 0.0
        %893 = vmatpush1.msra.mxu0 0.0
        %894 = vmatprep.subr.mxu0 0.0
        %895 = vmatpush1.msra.mxu0 0.0
        %896 = vmatprep.subr.mxu0 0.0
        %897 = vmatpush1.msra.mxu0 0.0
        %898 = vmatprep.subr.mxu0 0.0
        %899 = vmatpush1.msra.mxu0 0.0
        %900 = vmatprep.subr.mxu0 0.0
        %901 = vmatpush1.msra.mxu0 0.0
        %902 = vmatprep.subr.mxu0 0.0
        %903 = vmatpush1.msra.mxu0 0.0
        %904 = vmatprep.subr.mxu0 0.0
        %905 = vmatpush1.msra.mxu0 0.0
        %906 = vmatprep.mubr.f32.mxu0 0.0
        %907 = vmatmul.mubr.f32.gmra.mrb[0].mxu0 %v840
        %v908 = vpop.f32.mrb[0].mxu0
        %v909 = vadd.f32 0.0, %v908
        %v910 = vpop.f32.mrb[0].mxu0
        %v911 = vadd.f32 0.0, %v910
        %912 = vdwg.mxu0
        %913 = vmatprep.subr.mxu0 0.0
        %914 = vmatpush1.msra.mxu0 %v829
        %915 = vmatprep.subr.mxu0 0.0
        %916 = vmatpush1.msra.mxu0 %v830
        %917 = vmatprep.subr.mxu0 0.0
        %918 = vmatpush1.msra.mxu0 %v831
        %919 = vmatprep.subr.mxu0 0.0
        %920 = vmatpush1.msra.mxu0 0.0
        %921 = vmatprep.subr.mxu0 0.0
        %922 = vmatpush1.msra.mxu0 0.0
        %923 = vmatprep.subr.mxu0 0.0
        %924 = vmatpush1.msra.mxu0 0.0
        %925 = vmatprep.subr.mxu0 0.0
        %926 = vmatpush1.msra.mxu0 0.0
        %927 = vmatprep.subr.mxu0 0.0
        %928 = vmatpush1.msra.mxu0 0.0
        %929 = vmatprep.subr.mxu0 0.0
        %930 = vmatpush1.msra.mxu0 0.0
        %931 = vmatprep.subr.mxu0 0.0
        %932 = vmatpush1.msra.mxu0 0.0
        %933 = vmatprep.subr.mxu0 0.0
        %934 = vmatpush1.msra.mxu0 0.0
        %935 = vmatprep.subr.mxu0 0.0
        %936 = vmatpush1.msra.mxu0 0.0
        %937 = vmatprep.subr.mxu0 0.0
        %938 = vmatpush1.msra.mxu0 0.0
        %939 = vmatprep.subr.mxu0 0.0
        %940 = vmatpush1.msra.mxu0 0.0
        %941 = vmatprep.subr.mxu0 0.0
        %942 = vmatpush1.msra.mxu0 0.0
        %943 = vmatprep.subr.mxu0 0.0
        %944 = vmatpush1.msra.mxu0 0.0
        %945 = vmatprep.subr.mxu0 0.0
        %946 = vmatpush1.msra.mxu0 0.0
        %947 = vmatprep.subr.mxu0 0.0
        %948 = vmatpush1.msra.mxu0 0.0
        %949 = vmatprep.subr.mxu0 0.0
        %950 = vmatpush1.msra.mxu0 0.0
        %951 = vmatprep.subr.mxu0 0.0
        %952 = vmatpush1.msra.mxu0 0.0
        %953 = vmatprep.subr.mxu0 0.0
        %954 = vmatpush1.msra.mxu0 0.0
        %955 = vmatprep.subr.mxu0 0.0
        %956 = vmatpush1.msra.mxu0 0.0
        %957 = vmatprep.subr.mxu0 0.0
        %958 = vmatpush1.msra.mxu0 0.0
        %959 = vmatprep.subr.mxu0 0.0
        %960 = vmatpush1.msra.mxu0 0.0
        %961 = vmatprep.subr.mxu0 0.0
        %962 = vmatpush1.msra.mxu0 0.0
        %963 = vmatprep.subr.mxu0 0.0
        %964 = vmatpush1.msra.mxu0 0.0
        %965 = vmatprep.subr.mxu0 0.0
        %966 = vmatpush1.msra.mxu0 0.0
        %967 = vmatprep.subr.mxu0 0.0
        %968 = vmatpush1.msra.mxu0 0.0
        %969 = vmatprep.subr.mxu0 0.0
        %970 = vmatpush1.msra.mxu0 0.0
        %971 = vmatprep.subr.mxu0 0.0
        %972 = vmatpush1.msra.mxu0 0.0
        %973 = vmatprep.subr.mxu0 0.0
        %974 = vmatpush1.msra.mxu0 0.0
        %975 = vmatprep.subr.mxu0 0.0
        %976 = vmatpush1.msra.mxu0 0.0
        %977 = vmatprep.mubr.f32.mxu0 0.0
        %978 = vmatmul.mubr.f32.gmra.mrb[0].mxu0 %v840
        %v979 = vpop.f32.mrb[0].mxu0
        %v980 = vadd.f32 0.0, %v979
        %v981 = vpop.f32.mrb[0].mxu0
        %982 = vdwg.mxu0
        %v984 = vsel %vm838, %v777, 0
        %986 = vmatprep.subr.mxu0 %v802
        %987 = vmatpush1.msra.mxu0 %v805
        %988 = vmatprep.subr.mxu0 %v803
        %989 = vmatpush1.msra.mxu0 %v806
        %990 = vmatprep.subr.mxu0 %v804
        %991 = vmatpush1.msra.mxu0 %v807
        %992 = vmatprep.subr.mxu0 0.0
        %993 = vmatpush1.msra.mxu0 0.0
        %994 = vmatprep.subr.mxu0 0.0
        %995 = vmatpush1.msra.mxu0 0.0
        %996 = vmatprep.subr.mxu0 0.0
        %997 = vmatpush1.msra.mxu0 0.0
        %998 = vmatprep.subr.mxu0 0.0
        %999 = vmatpush1.msra.mxu0 0.0
        %1000 = vmatprep.subr.mxu0 0.0
        %1001 = vmatpush1.msra.mxu0 0.0
        %1002 = vmatprep.subr.mxu0 0.0
        %1003 = vmatpush1.msra.mxu0 0.0
        %1004 = vmatprep.subr.mxu0 0.0
        %1005 = vmatpush1.msra.mxu0 0.0
        %1006 = vmatprep.subr.mxu0 0.0
        %1007 = vmatpush1.msra.mxu0 0.0
        %1008 = vmatprep.subr.mxu0 0.0
        %1009 = vmatpush1.msra.mxu0 0.0
        %1010 = vmatprep.subr.mxu0 0.0
        %1011 = vmatpush1.msra.mxu0 0.0
        %1012 = vmatprep.subr.mxu0 0.0
        %1013 = vmatpush1.msra.mxu0 0.0
        %1014 = vmatprep.subr.mxu0 0.0
        %1015 = vmatpush1.msra.mxu0 0.0
        %1016 = vmatprep.subr.mxu0 0.0
        %1017 = vmatpush1.msra.mxu0 0.0
        %1018 = vmatprep.subr.mxu0 0.0
        %1019 = vmatpush1.msra.mxu0 0.0
        %1020 = vmatprep.subr.mxu0 0.0
        %1021 = vmatpush1.msra.mxu0 0.0
        %1022 = vmatprep.subr.mxu0 0.0
        %1023 = vmatpush1.msra.mxu0 0.0
        %1024 = vmatprep.subr.mxu0 0.0
        %1025 = vmatpush1.msra.mxu0 0.0
        %1026 = vmatprep.subr.mxu0 0.0
        %1027 = vmatpush1.msra.mxu0 0.0
        %1028 = vmatprep.subr.mxu0 0.0
        %1029 = vmatpush1.msra.mxu0 0.0
        %1030 = vmatprep.subr.mxu0 0.0
        %1031 = vmatpush1.msra.mxu0 0.0
        %1032 = vmatprep.subr.mxu0 0.0
        %1033 = vmatpush1.msra.mxu0 0.0
        %1034 = vmatprep.subr.mxu0 0.0
        %1035 = vmatpush1.msra.mxu0 0.0
        %1036 = vmatprep.subr.mxu0 0.0
        %1037 = vmatpush1.msra.mxu0 0.0
        %1038 = vmatprep.subr.mxu0 0.0
        %1039 = vmatpush1.msra.mxu0 0.0
        %1040 = vmatprep.subr.mxu0 0.0
        %1041 = vmatpush1.msra.mxu0 0.0
        %1042 = vmatprep.subr.mxu0 0.0
        %1043 = vmatpush1.msra.mxu0 0.0
        %1044 = vmatprep.subr.mxu0 0.0
        %1045 = vmatpush1.msra.mxu0 0.0
        %1046 = vmatprep.subr.mxu0 0.0
        %1047 = vmatpush1.msra.mxu0 0.0
        %1048 = vmatprep.subr.mxu0 0.0
        %1049 = vmatpush1.msra.mxu0 0.0
        %1050 = vmatprep.mubr.f32.mxu0 0.0
        %1051 = vmatmul.mubr.f32.gmra.mrb[0].mxu0 %v984
        %v1052 = vpop.f32.mrb[0].mxu0
        %v1053 = vadd.f32 %v909, %v1052
        %v1054 = vpop.f32.mrb[0].mxu0
        %v1055 = vadd.f32 %v911, %v1054
        %1056 = vdwg.mxu0
        %1057 = vmatprep.subr.mxu0 0.0
        %1058 = vmatpush1.msra.mxu0 %v799
        %1059 = vmatprep.subr.mxu0 0.0
        %1060 = vmatpush1.msra.mxu0 %v800
        %1061 = vmatprep.subr.mxu0 0.0
        %1062 = vmatpush1.msra.mxu0 %v801
        %1063 = vmatprep.subr.mxu0 0.0
        %1064 = vmatpush1.msra.mxu0 0.0
        %1065 = vmatprep.subr.mxu0 0.0
        %1066 = vmatpush1.msra.mxu0 0.0
        %1067 = vmatprep.subr.mxu0 0.0
        %1068 = vmatpush1.msra.mxu0 0.0
        %1069 = vmatprep.subr.mxu0 0.0
        %1070 = vmatpush1.msra.mxu0 0.0
        %1071 = vmatprep.subr.mxu0 0.0
        %1072 = vmatpush1.msra.mxu0 0.0
        %1073 = vmatprep.subr.mxu0 0.0
        %1074 = vmatpush1.msra.mxu0 0.0
        %1075 = vmatprep.subr.mxu0 0.0
        %1076 = vmatpush1.msra.mxu0 0.0
        %1077 = vmatprep.subr.mxu0 0.0
        %1078 = vmatpush1.msra.mxu0 0.0
        %1079 = vmatprep.subr.mxu0 0.0
        %1080 = vmatpush1.msra.mxu0 0.0
        %1081 = vmatprep.subr.mxu0 0.0
        %1082 = vmatpush1.msra.mxu0 0.0
        %1083 = vmatprep.subr.mxu0 0.0
        %1084 = vmatpush1.msra.mxu0 0.0
        %1085 = vmatprep.subr.mxu0 0.0
        %1086 = vmatpush1.msra.mxu0 0.0
        %1087 = vmatprep.subr.mxu0 0.0
        %1088 = vmatpush1.msra.mxu0 0.0
        %1089 = vmatprep.subr.mxu0 0.0
        %1090 = vmatpush1.msra.mxu0 0.0
        %1091 = vmatprep.subr.mxu0 0.0
        %1092 = vmatpush1.msra.mxu0 0.0
        %1093 = vmatprep.subr.mxu0 0.0
        %1094 = vmatpush1.msra.mxu0 0.0
        %1095 = vmatprep.subr.mxu0 0.0
        %1096 = vmatpush1.msra.mxu0 0.0
        %1097 = vmatprep.subr.mxu0 0.0
        %1098 = vmatpush1.msra.mxu0 0.0
        %1099 = vmatprep.subr.mxu0 0.0
        %1100 = vmatpush1.msra.mxu0 0.0
        %1101 = vmatprep.subr.mxu0 0.0
        %1102 = vmatpush1.msra.mxu0 0.0
        %1103 = vmatprep.subr.mxu0 0.0
        %1104 = vmatpush1.msra.mxu0 0.0
        %1105 = vmatprep.subr.mxu0 0.0
        %1106 = vmatpush1.msra.mxu0 0.0
        %1107 = vmatprep.subr.mxu0 0.0
        %1108 = vmatpush1.msra.mxu0 0.0
        %1109 = vmatprep.subr.mxu0 0.0
        %1110 = vmatpush1.msra.mxu0 0.0
        %1111 = vmatprep.subr.mxu0 0.0
        %1112 = vmatpush1.msra.mxu0 0.0
        %1113 = vmatprep.subr.mxu0 0.0
        %1114 = vmatpush1.msra.mxu0 0.0
        %1115 = vmatprep.subr.mxu0 0.0
        %1116 = vmatpush1.msra.mxu0 0.0
        %1117 = vmatprep.subr.mxu0 0.0
        %1118 = vmatpush1.msra.mxu0 0.0
        %1119 = vmatprep.subr.mxu0 0.0
        %1120 = vmatpush1.msra.mxu0 0.0
        %1121 = vmatprep.mubr.f32.mxu0 0.0
        %1122 = vmatmul.mubr.f32.gmra.mrb[0].mxu0 %v984
        %v1123 = vpop.f32.mrb[0].mxu0
        %v1124 = vadd.f32 %v980, %v1123
        %v1125 = vpop.f32.mrb[0].mxu0
        %1126 = vdwg.mxu0
        %s1127 = scalar_lea.vmem [#allocation2], 16
        %v1128 = vld [vmem:[%s1127] sm:$0xff]
        %1129 = vrot.lane.b32.xlu0 %v506, 17
        %v1130 = vpop.permute.xlu0 %1129
        %1131 = vrot.lane.b32.xlu0 %v762, 17
        %v1132 = vpop.permute.xlu0 %1131
        %1133 = vrot.lane.b32.xlu0 %v765, 17
        %v1134 = vpop.permute.xlu0 %1133
        %1135 = vrot.lane.b32.xlu0 %v507, 17
        %v1136 = vpop.permute.xlu0 %1135
        %1137 = vrot.lane.b32.xlu0 %v763, 17
        %v1138 = vpop.permute.xlu0 %1137
        %1139 = vrot.lane.b32.xlu0 %v766, 17
        %v1140 = vpop.permute.xlu0 %1139
        %1141 = vrot.lane.b32.xlu0 %v508, 17
        %v1142 = vpop.permute.xlu0 %1141
        %1143 = vrot.lane.b32.xlu0 %v764, 17
        %v1144 = vpop.permute.xlu0 %1143
        %1145 = vrot.lane.b32.xlu0 %v767, 17
        %v1146 = vpop.permute.xlu0 %1145
        %vm1147 = vcmp.lt.s32.totalorder %v797, 17
        %v1148 = vsel %vm1147, %v1136, %v1142
        %v1149 = vsel %vm1147, %v1138, %v1144
        %v1150 = vsel %vm1147, %v1140, %v1146
        %v1151 = vsel %vm1147, %v1130, %v1136
        %v1152 = vsel %vm1147, %v1132, %v1138
        %v1153 = vsel %vm1147, %v1134, %v1140
        %v1154 = vsel %vm1147, %v1142, %v1130
        %v1155 = vsel %vm1147, %v1144, %v1132
        %v1156 = vsel %vm1147, %v1146, %v1134
        %v1158 = vsel %vm838, %v1128, 0
        %1160 = vmatprep.subr.mxu0 %v1151
        %1161 = vmatpush1.msra.mxu0 %v1154
        %1162 = vmatprep.subr.mxu0 %v1152
        %1163 = vmatpush1.msra.mxu0 %v1155
        %1164 = vmatprep.subr.mxu0 %v1153
        %1165 = vmatpush1.msra.mxu0 %v1156
        %1166 = vmatprep.subr.mxu0 0.0
        %1167 = vmatpush1.msra.mxu0 0.0
        %1168 = vmatprep.subr.mxu0 0.0
        %1169 = vmatpush1.msra.mxu0 0.0
        %1170 = vmatprep.subr.mxu0 0.0
        %1171 = vmatpush1.msra.mxu0 0.0
        %1172 = vmatprep.subr.mxu0 0.0
        %1173 = vmatpush1.msra.mxu0 0.0
        %1174 = vmatprep.subr.mxu0 0.0
        %1175 = vmatpush1.msra.mxu0 0.0
        %1176 = vmatprep.subr.mxu0 0.0
        %1177 = vmatpush1.msra.mxu0 0.0
        %1178 = vmatprep.subr.mxu0 0.0
        %1179 = vmatpush1.msra.mxu0 0.0
        %1180 = vmatprep.subr.mxu0 0.0
        %1181 = vmatpush1.msra.mxu0 0.0
        %1182 = vmatprep.subr.mxu0 0.0
        %1183 = vmatpush1.msra.mxu0 0.0
        %1184 = vmatprep.subr.mxu0 0.0
        %1185 = vmatpush1.msra.mxu0 0.0
        %1186 = vmatprep.subr.mxu0 0.0
        %1187 = vmatpush1.msra.mxu0 0.0
        %1188 = vmatprep.subr.mxu0 0.0
        %1189 = vmatpush1.msra.mxu0 0.0
        %1190 = vmatprep.subr.mxu0 0.0
        %1191 = vmatpush1.msra.mxu0 0.0
        %1192 = vmatprep.subr.mxu0 0.0
        %1193 = vmatpush1.msra.mxu0 0.0
        %1194 = vmatprep.subr.mxu0 0.0
        %1195 = vmatpush1.msra.mxu0 0.0
        %1196 = vmatprep.subr.mxu0 0.0
        %1197 = vmatpush1.msra.mxu0 0.0
        %1198 = vmatprep.subr.mxu0 0.0
        %1199 = vmatpush1.msra.mxu0 0.0
        %1200 = vmatprep.subr.mxu0 0.0
        %1201 = vmatpush1.msra.mxu0 0.0
        %1202 = vmatprep.subr.mxu0 0.0
        %1203 = vmatpush1.msra.mxu0 0.0
        %1204 = vmatprep.subr.mxu0 0.0
        %1205 = vmatpush1.msra.mxu0 0.0
        %1206 = vmatprep.subr.mxu0 0.0
        %1207 = vmatpush1.msra.mxu0 0.0
        %1208 = vmatprep.subr.mxu0 0.0
        %1209 = vmatpush1.msra.mxu0 0.0
        %1210 = vmatprep.subr.mxu0 0.0
        %1211 = vmatpush1.msra.mxu0 0.0
        %1212 = vmatprep.subr.mxu0 0.0
        %1213 = vmatpush1.msra.mxu0 0.0
        %1214 = vmatprep.subr.mxu0 0.0
        %1215 = vmatpush1.msra.mxu0 0.0
        %1216 = vmatprep.subr.mxu0 0.0
        %1217 = vmatpush1.msra.mxu0 0.0
        %1218 = vmatprep.subr.mxu0 0.0
        %1219 = vmatpush1.msra.mxu0 0.0
        %1220 = vmatprep.subr.mxu0 0.0
        %1221 = vmatpush1.msra.mxu0 0.0
        %1222 = vmatprep.subr.mxu0 0.0
        %1223 = vmatpush1.msra.mxu0 0.0
        %1224 = vmatprep.mubr.f32.mxu0 0.0
        %1225 = vmatmul.mubr.f32.gmra.mrb[0].mxu0 %v1158
        %v1226 = vpop.f32.mrb[0].mxu0
        %v1227 = vadd.f32 0.0, %v1226
        %v1228 = vpop.f32.mrb[0].mxu0
        %v1229 = vadd.f32 0.0, %v1228
        %1230 = vdwg.mxu0
        %1231 = vmatprep.subr.mxu0 0.0
        %1232 = vmatpush1.msra.mxu0 %v1148
        %1233 = vmatprep.subr.mxu0 0.0
        %1234 = vmatpush1.msra.mxu0 %v1149
        %1235 = vmatprep.subr.mxu0 0.0
        %1236 = vmatpush1.msra.mxu0 %v1150
        %1237 = vmatprep.subr.mxu0 0.0
        %1238 = vmatpush1.msra.mxu0 0.0
        %1239 = vmatprep.subr.mxu0 0.0
        %1240 = vmatpush1.msra.mxu0 0.0
        %1241 = vmatprep.subr.mxu0 0.0
        %1242 = vmatpush1.msra.mxu0 0.0
        %1243 = vmatprep.subr.mxu0 0.0
        %1244 = vmatpush1.msra.mxu0 0.0
        %1245 = vmatprep.subr.mxu0 0.0
        %1246 = vmatpush1.msra.mxu0 0.0
        %1247 = vmatprep.subr.mxu0 0.0
        %1248 = vmatpush1.msra.mxu0 0.0
        %1249 = vmatprep.subr.mxu0 0.0
        %1250 = vmatpush1.msra.mxu0 0.0
        %1251 = vmatprep.subr.mxu0 0.0
        %1252 = vmatpush1.msra.mxu0 0.0
        %1253 = vmatprep.subr.mxu0 0.0
        %1254 = vmatpush1.msra.mxu0 0.0
        %1255 = vmatprep.subr.mxu0 0.0
        %1256 = vmatpush1.msra.mxu0 0.0
        %1257 = vmatprep.subr.mxu0 0.0
        %1258 = vmatpush1.msra.mxu0 0.0
        %1259 = vmatprep.subr.mxu0 0.0
        %1260 = vmatpush1.msra.mxu0 0.0
        %1261 = vmatprep.subr.mxu0 0.0
        %1262 = vmatpush1.msra.mxu0 0.0
        %1263 = vmatprep.subr.mxu0 0.0
        %1264 = vmatpush1.msra.mxu0 0.0
        %1265 = vmatprep.subr.mxu0 0.0
        %1266 = vmatpush1.msra.mxu0 0.0
        %1267 = vmatprep.subr.mxu0 0.0
        %1268 = vmatpush1.msra.mxu0 0.0
        %1269 = vmatprep.subr.mxu0 0.0
        %1270 = vmatpush1.msra.mxu0 0.0
        %1271 = vmatprep.subr.mxu0 0.0
        %1272 = vmatpush1.msra.mxu0 0.0
        %1273 = vmatprep.subr.mxu0 0.0
        %1274 = vmatpush1.msra.mxu0 0.0
        %1275 = vmatprep.subr.mxu0 0.0
        %1276 = vmatpush1.msra.mxu0 0.0
        %1277 = vmatprep.subr.mxu0 0.0
        %1278 = vmatpush1.msra.mxu0 0.0
        %1279 = vmatprep.subr.mxu0 0.0
        %1280 = vmatpush1.msra.mxu0 0.0
        %1281 = vmatprep.subr.mxu0 0.0
        %1282 = vmatpush1.msra.mxu0 0.0
        %1283 = vmatprep.subr.mxu0 0.0
        %1284 = vmatpush1.msra.mxu0 0.0
        %1285 = vmatprep.subr.mxu0 0.0
        %1286 = vmatpush1.msra.mxu0 0.0
        %1287 = vmatprep.subr.mxu0 0.0
        %1288 = vmatpush1.msra.mxu0 0.0
        %1289 = vmatprep.subr.mxu0 0.0
        %1290 = vmatpush1.msra.mxu0 0.0
        %1291 = vmatprep.subr.mxu0 0.0
        %1292 = vmatpush1.msra.mxu0 0.0
        %1293 = vmatprep.subr.mxu0 0.0
        %1294 = vmatpush1.msra.mxu0 0.0
        %1295 = vmatprep.mubr.f32.mxu0 0.0
        %1296 = vmatmul.mubr.f32.gmra.mrb[0].mxu0 %v1158
        %v1297 = vpop.f32.mrb[0].mxu0
        %v1298 = vadd.f32 0.0, %v1297
        %v1299 = vpop.f32.mrb[0].mxu0
        %1300 = vdwg.mxu0
        %v1301 = vadd.f32 %v1053, %v1227
        %v1302 = vadd.f32 %v1055, %v1229
        %v1303 = vadd.f32 %v1124, %v1298
        %s1304 = scalar_lea.vmem [#allocation2], 24
        %v1305 = vld [vmem:[%s1304] sm:$0xff]
        %1306 = vrot.lane.b32.xlu0 %v506, 1
        %v1307 = vpop.permute.xlu0 %1306
        %1308 = vrot.lane.b32.xlu0 %v762, 1
        %v1309 = vpop.permute.xlu0 %1308
        %1310 = vrot.lane.b32.xlu0 %v765, 1
        %v1311 = vpop.permute.xlu0 %1310
        %1312 = vrot.lane.b32.xlu0 %v507, 1
        %v1313 = vpop.permute.xlu0 %1312
        %1314 = vrot.lane.b32.xlu0 %v763, 1
        %v1315 = vpop.permute.xlu0 %1314
        %1316 = vrot.lane.b32.xlu0 %v766, 1
        %v1317 = vpop.permute.xlu0 %1316
        %1318 = vrot.lane.b32.xlu0 %v508, 1
        %v1319 = vpop.permute.xlu0 %1318
        %1320 = vrot.lane.b32.xlu0 %v764, 1
        %v1321 = vpop.permute.xlu0 %1320
        %1322 = vrot.lane.b32.xlu0 %v767, 1
        %v1323 = vpop.permute.xlu0 %1322
        %vm1324 = vcmp.lt.s32.totalorder %v797, 1
        %v1325 = vsel %vm1324, %v1313, %v1319
        %v1326 = vsel %vm1324, %v1315, %v1321
        %v1327 = vsel %vm1324, %v1317, %v1323
        %v1328 = vsel %vm1324, %v1307, %v1313
        %v1329 = vsel %vm1324, %v1309, %v1315
        %v1330 = vsel %vm1324, %v1311, %v1317
        %v1331 = vsel %vm1324, %v1319, %v1307
        %v1332 = vsel %vm1324, %v1321, %v1309
        %v1333 = vsel %vm1324, %v1323, %v1311
        %v1335 = vsel %vm838, %v1305, 0
        %1337 = vmatprep.subr.mxu0 %v1328
        %1338 = vmatpush1.msra.mxu0 %v1331
        %1339 = vmatprep.subr.mxu0 %v1329
        %1340 = vmatpush1.msra.mxu0 %v1332
        %1341 = vmatprep.subr.mxu0 %v1330
        %1342 = vmatpush1.msra.mxu0 %v1333
        %1343 = vmatprep.subr.mxu0 0.0
        %1344 = vmatpush1.msra.mxu0 0.0
        %1345 = vmatprep.subr.mxu0 0.0
        %1346 = vmatpush1.msra.mxu0 0.0
        %1347 = vmatprep.subr.mxu0 0.0
        %1348 = vmatpush1.msra.mxu0 0.0
        %1349 = vmatprep.subr.mxu0 0.0
        %1350 = vmatpush1.msra.mxu0 0.0
        %1351 = vmatprep.subr.mxu0 0.0
        %1352 = vmatpush1.msra.mxu0 0.0
        %1353 = vmatprep.subr.mxu0 0.0
        %1354 = vmatpush1.msra.mxu0 0.0
        %1355 = vmatprep.subr.mxu0 0.0
        %1356 = vmatpush1.msra.mxu0 0.0
        %1357 = vmatprep.subr.mxu0 0.0
        %1358 = vmatpush1.msra.mxu0 0.0
        %1359 = vmatprep.subr.mxu0 0.0
        %1360 = vmatpush1.msra.mxu0 0.0
        %1361 = vmatprep.subr.mxu0 0.0
        %1362 = vmatpush1.msra.mxu0 0.0
        %1363 = vmatprep.subr.mxu0 0.0
        %1364 = vmatpush1.msra.mxu0 0.0
        %1365 = vmatprep.subr.mxu0 0.0
        %1366 = vmatpush1.msra.mxu0 0.0
        %1367 = vmatprep.subr.mxu0 0.0
        %1368 = vmatpush1.msra.mxu0 0.0
        %1369 = vmatprep.subr.mxu0 0.0
        %1370 = vmatpush1.msra.mxu0 0.0
        %1371 = vmatprep.subr.mxu0 0.0
        %1372 = vmatpush1.msra.mxu0 0.0
        %1373 = vmatprep.subr.mxu0 0.0
        %1374 = vmatpush1.msra.mxu0 0.0
        %1375 = vmatprep.subr.mxu0 0.0
        %1376 = vmatpush1.msra.mxu0 0.0
        %1377 = vmatprep.subr.mxu0 0.0
        %1378 = vmatpush1.msra.mxu0 0.0
        %1379 = vmatprep.subr.mxu0 0.0
        %1380 = vmatpush1.msra.mxu0 0.0
        %1381 = vmatprep.subr.mxu0 0.0
        %1382 = vmatpush1.msra.mxu0 0.0
        %1383 = vmatprep.subr.mxu0 0.0
        %1384 = vmatpush1.msra.mxu0 0.0
        %1385 = vmatprep.subr.mxu0 0.0
        %1386 = vmatpush1.msra.mxu0 0.0
        %1387 = vmatprep.subr.mxu0 0.0
        %1388 = vmatpush1.msra.mxu0 0.0
        %1389 = vmatprep.subr.mxu0 0.0
        %1390 = vmatpush1.msra.mxu0 0.0
        %1391 = vmatprep.subr.mxu0 0.0
        %1392 = vmatpush1.msra.mxu0 0.0
        %1393 = vmatprep.subr.mxu0 0.0
        %1394 = vmatpush1.msra.mxu0 0.0
        %1395 = vmatprep.subr.mxu0 0.0
        %1396 = vmatpush1.msra.mxu0 0.0
        %1397 = vmatprep.subr.mxu0 0.0
        %1398 = vmatpush1.msra.mxu0 0.0
        %1399 = vmatprep.subr.mxu0 0.0
        %1400 = vmatpush1.msra.mxu0 0.0
        %1401 = vmatprep.mubr.f32.mxu0 0.0
        %1402 = vmatmul.mubr.f32.gmra.mrb[0].mxu0 %v1335
        %v1403 = vpop.f32.mrb[0].mxu0
        %v1404 = vadd.f32 0.0, %v1403
        %v1405 = vpop.f32.mrb[0].mxu0
        %v1406 = vadd.f32 0.0, %v1405
        %1407 = vdwg.mxu0
        %1408 = vmatprep.subr.mxu0 0.0
        %1409 = vmatpush1.msra.mxu0 %v1325
        %1410 = vmatprep.subr.mxu0 0.0
        %1411 = vmatpush1.msra.mxu0 %v1326
        %1412 = vmatprep.subr.mxu0 0.0
        %1413 = vmatpush1.msra.mxu0 %v1327
        %1414 = vmatprep.subr.mxu0 0.0
        %1415 = vmatpush1.msra.mxu0 0.0
        %1416 = vmatprep.subr.mxu0 0.0
        %1417 = vmatpush1.msra.mxu0 0.0
        %1418 = vmatprep.subr.mxu0 0.0
        %1419 = vmatpush1.msra.mxu0 0.0
        %1420 = vmatprep.subr.mxu0 0.0
        %1421 = vmatpush1.msra.mxu0 0.0
        %1422 = vmatprep.subr.mxu0 0.0
        %1423 = vmatpush1.msra.mxu0 0.0
        %1424 = vmatprep.subr.mxu0 0.0
        %1425 = vmatpush1.msra.mxu0 0.0
        %1426 = vmatprep.subr.mxu0 0.0
        %1427 = vmatpush1.msra.mxu0 0.0
        %1428 = vmatprep.subr.mxu0 0.0
        %1429 = vmatpush1.msra.mxu0 0.0
        %1430 = vmatprep.subr.mxu0 0.0
        %1431 = vmatpush1.msra.mxu0 0.0
        %1432 = vmatprep.subr.mxu0 0.0
        %1433 = vmatpush1.msra.mxu0 0.0
        %1434 = vmatprep.subr.mxu0 0.0
        %1435 = vmatpush1.msra.mxu0 0.0
        %1436 = vmatprep.subr.mxu0 0.0
        %1437 = vmatpush1.msra.mxu0 0.0
        %1438 = vmatprep.subr.mxu0 0.0
        %1439 = vmatpush1.msra.mxu0 0.0
        %1440 = vmatprep.subr.mxu0 0.0
        %1441 = vmatpush1.msra.mxu0 0.0
        %1442 = vmatprep.subr.mxu0 0.0
        %1443 = vmatpush1.msra.mxu0 0.0
        %1444 = vmatprep.subr.mxu0 0.0
        %1445 = vmatpush1.msra.mxu0 0.0
        %1446 = vmatprep.subr.mxu0 0.0
        %1447 = vmatpush1.msra.mxu0 0.0
        %1448 = vmatprep.subr.mxu0 0.0
        %1449 = vmatpush1.msra.mxu0 0.0
        %1450 = vmatprep.subr.mxu0 0.0
        %1451 = vmatpush1.msra.mxu0 0.0
        %1452 = vmatprep.subr.mxu0 0.0
        %1453 = vmatpush1.msra.mxu0 0.0
        %1454 = vmatprep.subr.mxu0 0.0
        %1455 = vmatpush1.msra.mxu0 0.0
        %1456 = vmatprep.subr.mxu0 0.0
        %1457 = vmatpush1.msra.mxu0 0.0
        %1458 = vmatprep.subr.mxu0 0.0
        %1459 = vmatpush1.msra.mxu0 0.0
        %1460 = vmatprep.subr.mxu0 0.0
        %1461 = vmatpush1.msra.mxu0 0.0
        %1462 = vmatprep.subr.mxu0 0.0
        %1463 = vmatpush1.msra.mxu0 0.0
        %1464 = vmatprep.subr.mxu0 0.0
        %1465 = vmatpush1.msra.mxu0 0.0
        %1466 = vmatprep.subr.mxu0 0.0
        %1467 = vmatpush1.msra.mxu0 0.0
        %1468 = vmatprep.subr.mxu0 0.0
        %1469 = vmatpush1.msra.mxu0 0.0
        %1470 = vmatprep.subr.mxu0 0.0
        %1471 = vmatpush1.msra.mxu0 0.0
        %1472 = vmatprep.mubr.f32.mxu0 0.0
        %1473 = vmatmul.mubr.f32.gmra.mrb[0].mxu0 %v1335
        %v1474 = vpop.f32.mrb[0].mxu0
        %v1475 = vadd.f32 0.0, %v1474
        %v1476 = vpop.f32.mrb[0].mxu0
        %1477 = vdwg.mxu0
        %v1478 = vadd.f32 %v1301, %v1404
        %v1479 = vadd.f32 %v1302, %v1406
        %v1480 = vadd.f32 %v1303, %v1475
        %s1481 = scalar_lea.vmem [#allocation2], 32
        %v1482 = vld [vmem:[%s1481] sm:$0xff]
        %v1484 = vsel %vm838, %v1482, 0
        %1486 = vmatprep.subr.mxu0 %v507
        %1487 = vmatpush1.msra.mxu0 %v506
        %1488 = vmatprep.subr.mxu0 %v763
        %1489 = vmatpush1.msra.mxu0 %v762
        %1490 = vmatprep.subr.mxu0 %v766
        %1491 = vmatpush1.msra.mxu0 %v765
        %1492 = vmatprep.subr.mxu0 0.0
        %1493 = vmatpush1.msra.mxu0 0.0
        %1494 = vmatprep.subr.mxu0 0.0
        %1495 = vmatpush1.msra.mxu0 0.0
        %1496 = vmatprep.subr.mxu0 0.0
        %1497 = vmatpush1.msra.mxu0 0.0
        %1498 = vmatprep.subr.mxu0 0.0
        %1499 = vmatpush1.msra.mxu0 0.0
        %1500 = vmatprep.subr.mxu0 0.0
        %1501 = vmatpush1.msra.mxu0 0.0
        %1502 = vmatprep.subr.mxu0 0.0
        %1503 = vmatpush1.msra.mxu0 0.0
        %1504 = vmatprep.subr.mxu0 0.0
        %1505 = vmatpush1.msra.mxu0 0.0
        %1506 = vmatprep.subr.mxu0 0.0
        %1507 = vmatpush1.msra.mxu0 0.0
        %1508 = vmatprep.subr.mxu0 0.0
        %1509 = vmatpush1.msra.mxu0 0.0
        %1510 = vmatprep.subr.mxu0 0.0
        %1511 = vmatpush1.msra.mxu0 0.0
        %1512 = vmatprep.subr.mxu0 0.0
        %1513 = vmatpush1.msra.mxu0 0.0
        %1514 = vmatprep.subr.mxu0 0.0
        %1515 = vmatpush1.msra.mxu0 0.0
        %1516 = vmatprep.subr.mxu0 0.0
        %1517 = vmatpush1.msra.mxu0 0.0
        %1518 = vmatprep.subr.mxu0 0.0
        %1519 = vmatpush1.msra.mxu0 0.0
        %1520 = vmatprep.subr.mxu0 0.0
        %1521 = vmatpush1.msra.mxu0 0.0
        %1522 = vmatprep.subr.mxu0 0.0
        %1523 = vmatpush1.msra.mxu0 0.0
        %1524 = vmatprep.subr.mxu0 0.0
        %1525 = vmatpush1.msra.mxu0 0.0
        %1526 = vmatprep.subr.mxu0 0.0
        %1527 = vmatpush1.msra.mxu0 0.0
        %1528 = vmatprep.subr.mxu0 0.0
        %1529 = vmatpush1.msra.mxu0 0.0
        %1530 = vmatprep.subr.mxu0 0.0
        %1531 = vmatpush1.msra.mxu0 0.0
        %1532 = vmatprep.subr.mxu0 0.0
        %1533 = vmatpush1.msra.mxu0 0.0
        %1534 = vmatprep.subr.mxu0 0.0
        %1535 = vmatpush1.msra.mxu0 0.0
        %1536 = vmatprep.subr.mxu0 0.0
        %1537 = vmatpush1.msra.mxu0 0.0
        %1538 = vmatprep.subr.mxu0 0.0
        %1539 = vmatpush1.msra.mxu0 0.0
        %1540 = vmatprep.subr.mxu0 0.0
        %1541 = vmatpush1.msra.mxu0 0.0
        %1542 = vmatprep.subr.mxu0 0.0
        %1543 = vmatpush1.msra.mxu0 0.0
        %1544 = vmatprep.subr.mxu0 0.0
        %1545 = vmatpush1.msra.mxu0 0.0
        %1546 = vmatprep.subr.mxu0 0.0
        %1547 = vmatpush1.msra.mxu0 0.0
        %1548 = vmatprep.subr.mxu0 0.0
        %1549 = vmatpush1.msra.mxu0 0.0
        %1550 = vmatprep.mubr.f32.mxu0 0.0
        %1551 = vmatmul.mubr.f32.gmra.mrb[0].mxu0 %v1484
        %v1552 = vpop.f32.mrb[0].mxu0
        %v1553 = vadd.f32 0.0, %v1552
        %v1554 = vpop.f32.mrb[0].mxu0
        %v1555 = vadd.f32 0.0, %v1554
        %1556 = vdwg.mxu0
        %1557 = vmatprep.subr.mxu0 0.0
        %1558 = vmatpush1.msra.mxu0 %v508
        %1559 = vmatprep.subr.mxu0 0.0
        %1560 = vmatpush1.msra.mxu0 %v764
        %1561 = vmatprep.subr.mxu0 0.0
        %1562 = vmatpush1.msra.mxu0 %v767
        %1563 = vmatprep.subr.mxu0 0.0
        %1564 = vmatpush1.msra.mxu0 0.0
        %1565 = vmatprep.subr.mxu0 0.0
        %1566 = vmatpush1.msra.mxu0 0.0
        %1567 = vmatprep.subr.mxu0 0.0
        %1568 = vmatpush1.msra.mxu0 0.0
        %1569 = vmatprep.subr.mxu0 0.0
        %1570 = vmatpush1.msra.mxu0 0.0
        %1571 = vmatprep.subr.mxu0 0.0
        %1572 = vmatpush1.msra.mxu0 0.0
        %1573 = vmatprep.subr.mxu0 0.0
        %1574 = vmatpush1.msra.mxu0 0.0
        %1575 = vmatprep.subr.mxu0 0.0
        %1576 = vmatpush1.msra.mxu0 0.0
        %1577 = vmatprep.subr.mxu0 0.0
        %1578 = vmatpush1.msra.mxu0 0.0
        %1579 = vmatprep.subr.mxu0 0.0
        %1580 = vmatpush1.msra.mxu0 0.0
        %1581 = vmatprep.subr.mxu0 0.0
        %1582 = vmatpush1.msra.mxu0 0.0
        %1583 = vmatprep.subr.mxu0 0.0
        %1584 = vmatpush1.msra.mxu0 0.0
        %1585 = vmatprep.subr.mxu0 0.0
        %1586 = vmatpush1.msra.mxu0 0.0
        %1587 = vmatprep.subr.mxu0 0.0
        %1588 = vmatpush1.msra.mxu0 0.0
        %1589 = vmatprep.subr.mxu0 0.0
        %1590 = vmatpush1.msra.mxu0 0.0
        %1591 = vmatprep.subr.mxu0 0.0
        %1592 = vmatpush1.msra.mxu0 0.0
        %1593 = vmatprep.subr.mxu0 0.0
        %1594 = vmatpush1.msra.mxu0 0.0
        %1595 = vmatprep.subr.mxu0 0.0
        %1596 = vmatpush1.msra.mxu0 0.0
        %1597 = vmatprep.subr.mxu0 0.0
        %1598 = vmatpush1.msra.mxu0 0.0
        %1599 = vmatprep.subr.mxu0 0.0
        %1600 = vmatpush1.msra.mxu0 0.0
        %1601 = vmatprep.subr.mxu0 0.0
        %1602 = vmatpush1.msra.mxu0 0.0
        %1603 = vmatprep.subr.mxu0 0.0
        %1604 = vmatpush1.msra.mxu0 0.0
        %1605 = vmatprep.subr.mxu0 0.0
        %1606 = vmatpush1.msra.mxu0 0.0
        %1607 = vmatprep.subr.mxu0 0.0
        %1608 = vmatpush1.msra.mxu0 0.0
        %1609 = vmatprep.subr.mxu0 0.0
        %1610 = vmatpush1.msra.mxu0 0.0
        %1611 = vmatprep.subr.mxu0 0.0
        %1612 = vmatpush1.msra.mxu0 0.0
        %1613 = vmatprep.subr.mxu0 0.0
        %1614 = vmatpush1.msra.mxu0 0.0
        %1615 = vmatprep.subr.mxu0 0.0
        %1616 = vmatpush1.msra.mxu0 0.0
        %1617 = vmatprep.subr.mxu0 0.0
        %1618 = vmatpush1.msra.mxu0 0.0
        %1619 = vmatprep.subr.mxu0 0.0
        %1620 = vmatpush1.msra.mxu0 0.0
        %1621 = vmatprep.mubr.f32.mxu0 0.0
        %1622 = vmatmul.mubr.f32.gmra.mrb[0].mxu0 %v1484
        %v1623 = vpop.f32.mrb[0].mxu0
        %v1624 = vadd.f32 0.0, %v1623
        %v1625 = vpop.f32.mrb[0].mxu0
        %1626 = vdwg.mxu0
        %v1627 = vadd.f32 %v1478, %v1553
        %v1628 = vadd.f32 %v1479, %v1555
        %v1629 = vadd.f32 %v1480, %v1624
        %s1630 = scalar_lea.vmem [#allocation2], 40
        %v1631 = vld [vmem:[%s1630] sm:$0xff]
        %1632 = vrot.lane.b32.xlu0 %v506, 127
        %v1633 = vpop.permute.xlu0 %1632
        %1634 = vrot.lane.b32.xlu0 %v762, 127
        %v1635 = vpop.permute.xlu0 %1634
        %1636 = vrot.lane.b32.xlu0 %v765, 127
        %v1637 = vpop.permute.xlu0 %1636
        %1638 = vrot.lane.b32.xlu0 %v507, 127
        %v1639 = vpop.permute.xlu0 %1638
        %1640 = vrot.lane.b32.xlu0 %v763, 127
        %v1641 = vpop.permute.xlu0 %1640
        %1642 = vrot.lane.b32.xlu0 %v766, 127
        %v1643 = vpop.permute.xlu0 %1642
        %1644 = vrot.lane.b32.xlu0 %v508, 127
        %v1645 = vpop.permute.xlu0 %1644
        %1646 = vrot.lane.b32.xlu0 %v764, 127
        %v1647 = vpop.permute.xlu0 %1646
        %1648 = vrot.lane.b32.xlu0 %v767, 127
        %v1649 = vpop.permute.xlu0 %1648
        %vm1650 = vcmp.lt.s32.totalorder %v797, 127
        %v1651 = vsel %vm1650, %v1639, %v1645
        %v1652 = vsel %vm1650, %v1641, %v1647
        %v1653 = vsel %vm1650, %v1643, %v1649
        %v1654 = vsel %vm1650, %v1633, %v1639
        %v1655 = vsel %vm1650, %v1635, %v1641
        %v1656 = vsel %vm1650, %v1637, %v1643
        %v1657 = vsel %vm1650, %v1645, %v1633
        %v1658 = vsel %vm1650, %v1647, %v1635
        %v1659 = vsel %vm1650, %v1649, %v1637
        %v1661 = vsel %vm838, %v1631, 0
        %1663 = vmatprep.subr.mxu0 %v1651
        %1664 = vmatpush1.msra.mxu0 %v1654
        %1665 = vmatprep.subr.mxu0 %v1652
        %1666 = vmatpush1.msra.mxu0 %v1655
        %1667 = vmatprep.subr.mxu0 %v1653
        %1668 = vmatpush1.msra.mxu0 %v1656
        %1669 = vmatprep.subr.mxu0 0.0
        %1670 = vmatpush1.msra.mxu0 0.0
        %1671 = vmatprep.subr.mxu0 0.0
        %1672 = vmatpush1.msra.mxu0 0.0
        %1673 = vmatprep.subr.mxu0 0.0
        %1674 = vmatpush1.msra.mxu0 0.0
        %1675 = vmatprep.subr.mxu0 0.0
        %1676 = vmatpush1.msra.mxu0 0.0
        %1677 = vmatprep.subr.mxu0 0.0
        %1678 = vmatpush1.msra.mxu0 0.0
        %1679 = vmatprep.subr.mxu0 0.0
        %1680 = vmatpush1.msra.mxu0 0.0
        %1681 = vmatprep.subr.mxu0 0.0
        %1682 = vmatpush1.msra.mxu0 0.0
        %1683 = vmatprep.subr.mxu0 0.0
        %1684 = vmatpush1.msra.mxu0 0.0
        %1685 = vmatprep.subr.mxu0 0.0
        %1686 = vmatpush1.msra.mxu0 0.0
        %1687 = vmatprep.subr.mxu0 0.0
        %1688 = vmatpush1.msra.mxu0 0.0
        %1689 = vmatprep.subr.mxu0 0.0
        %1690 = vmatpush1.msra.mxu0 0.0
        %1691 = vmatprep.subr.mxu0 0.0
        %1692 = vmatpush1.msra.mxu0 0.0
        %1693 = vmatprep.subr.mxu0 0.0
        %1694 = vmatpush1.msra.mxu0 0.0
        %1695 = vmatprep.subr.mxu0 0.0
        %1696 = vmatpush1.msra.mxu0 0.0
        %1697 = vmatprep.subr.mxu0 0.0
        %1698 = vmatpush1.msra.mxu0 0.0
        %1699 = vmatprep.subr.mxu0 0.0
        %1700 = vmatpush1.msra.mxu0 0.0
        %1701 = vmatprep.subr.mxu0 0.0
        %1702 = vmatpush1.msra.mxu0 0.0
        %1703 = vmatprep.subr.mxu0 0.0
        %1704 = vmatpush1.msra.mxu0 0.0
        %1705 = vmatprep.subr.mxu0 0.0
        %1706 = vmatpush1.msra.mxu0 0.0
        %1707 = vmatprep.subr.mxu0 0.0
        %1708 = vmatpush1.msra.mxu0 0.0
        %1709 = vmatprep.subr.mxu0 0.0
        %1710 = vmatpush1.msra.mxu0 0.0
        %1711 = vmatprep.subr.mxu0 0.0
        %1712 = vmatpush1.msra.mxu0 0.0
        %1713 = vmatprep.subr.mxu0 0.0
        %1714 = vmatpush1.msra.mxu0 0.0
        %1715 = vmatprep.subr.mxu0 0.0
        %1716 = vmatpush1.msra.mxu0 0.0
        %1717 = vmatprep.subr.mxu0 0.0
        %1718 = vmatpush1.msra.mxu0 0.0
        %1719 = vmatprep.subr.mxu0 0.0
        %1720 = vmatpush1.msra.mxu0 0.0
        %1721 = vmatprep.subr.mxu0 0.0
        %1722 = vmatpush1.msra.mxu0 0.0
        %1723 = vmatprep.subr.mxu0 0.0
        %1724 = vmatpush1.msra.mxu0 0.0
        %1725 = vmatprep.subr.mxu0 0.0
        %1726 = vmatpush1.msra.mxu0 0.0
        %1727 = vmatprep.mubr.f32.mxu0 0.0
        %1728 = vmatmul.mubr.f32.gmra.mrb[0].mxu0 %v1661
        %v1729 = vpop.f32.mrb[0].mxu0
        %v1730 = vadd.f32 0.0, %v1729
        %v1731 = vpop.f32.mrb[0].mxu0
        %v1732 = vadd.f32 0.0, %v1731
        %1733 = vdwg.mxu0
        %1734 = vmatprep.subr.mxu0 0.0
        %1735 = vmatpush1.msra.mxu0 %v1657
        %1736 = vmatprep.subr.mxu0 0.0
        %1737 = vmatpush1.msra.mxu0 %v1658
        %1738 = vmatprep.subr.mxu0 0.0
        %1739 = vmatpush1.msra.mxu0 %v1659
        %1740 = vmatprep.subr.mxu0 0.0
        %1741 = vmatpush1.msra.mxu0 0.0
        %1742 = vmatprep.subr.mxu0 0.0
        %1743 = vmatpush1.msra.mxu0 0.0
        %1744 = vmatprep.subr.mxu0 0.0
        %1745 = vmatpush1.msra.mxu0 0.0
        %1746 = vmatprep.subr.mxu0 0.0
        %1747 = vmatpush1.msra.mxu0 0.0
        %1748 = vmatprep.subr.mxu0 0.0
        %1749 = vmatpush1.msra.mxu0 0.0
        %1750 = vmatprep.subr.mxu0 0.0
        %1751 = vmatpush1.msra.mxu0 0.0
        %1752 = vmatprep.subr.mxu0 0.0
        %1753 = vmatpush1.msra.mxu0 0.0
        %1754 = vmatprep.subr.mxu0 0.0
        %1755 = vmatpush1.msra.mxu0 0.0
        %1756 = vmatprep.subr.mxu0 0.0
        %1757 = vmatpush1.msra.mxu0 0.0
        %1758 = vmatprep.subr.mxu0 0.0
        %1759 = vmatpush1.msra.mxu0 0.0
        %1760 = vmatprep.subr.mxu0 0.0
        %1761 = vmatpush1.msra.mxu0 0.0
        %1762 = vmatprep.subr.mxu0 0.0
        %1763 = vmatpush1.msra.mxu0 0.0
        %1764 = vmatprep.subr.mxu0 0.0
        %1765 = vmatpush1.msra.mxu0 0.0
        %1766 = vmatprep.subr.mxu0 0.0
        %1767 = vmatpush1.msra.mxu0 0.0
        %1768 = vmatprep.subr.mxu0 0.0
        %1769 = vmatpush1.msra.mxu0 0.0
        %1770 = vmatprep.subr.mxu0 0.0
        %1771 = vmatpush1.msra.mxu0 0.0
        %1772 = vmatprep.subr.mxu0 0.0
        %1773 = vmatpush1.msra.mxu0 0.0
        %1774 = vmatprep.subr.mxu0 0.0
        %1775 = vmatpush1.msra.mxu0 0.0
        %1776 = vmatprep.subr.mxu0 0.0
        %1777 = vmatpush1.msra.mxu0 0.0
        %1778 = vmatprep.subr.mxu0 0.0
        %1779 = vmatpush1.msra.mxu0 0.0
        %1780 = vmatprep.subr.mxu0 0.0
        %1781 = vmatpush1.msra.mxu0 0.0
        %1782 = vmatprep.subr.mxu0 0.0
        %1783 = vmatpush1.msra.mxu0 0.0
        %1784 = vmatprep.subr.mxu0 0.0
        %1785 = vmatpush1.msra.mxu0 0.0
        %1786 = vmatprep.subr.mxu0 0.0
        %1787 = vmatpush1.msra.mxu0 0.0
        %1788 = vmatprep.subr.mxu0 0.0
        %1789 = vmatpush1.msra.mxu0 0.0
        %1790 = vmatprep.subr.mxu0 0.0
        %1791 = vmatpush1.msra.mxu0 0.0
        %1792 = vmatprep.subr.mxu0 0.0
        %1793 = vmatpush1.msra.mxu0 0.0
        %1794 = vmatprep.subr.mxu0 0.0
        %1795 = vmatpush1.msra.mxu0 0.0
        %1796 = vmatprep.subr.mxu0 0.0
        %1797 = vmatpush1.msra.mxu0 0.0
        %1798 = vmatprep.mubr.f32.mxu0 0.0
        %1799 = vmatmul.mubr.f32.gmra.mrb[0].mxu0 %v1661
        %v1800 = vpop.f32.mrb[0].mxu0
        %v1801 = vadd.f32 0.0, %v1800
        %v1802 = vpop.f32.mrb[0].mxu0
        %1803 = vdwg.mxu0
        %v1804 = vadd.f32 %v1627, %v1730
        %v1805 = vadd.f32 %v1628, %v1732
        %v1806 = vadd.f32 %v1629, %v1801
        %s1807 = scalar_lea.vmem [#allocation2], 48
        %v1808 = vld [vmem:[%s1807] sm:$0xff]
        %1809 = vrot.lane.b32.xlu0 %v506, 111
        %v1810 = vpop.permute.xlu0 %1809
        %1811 = vrot.lane.b32.xlu0 %v762, 111
        %v1812 = vpop.permute.xlu0 %1811
        %1813 = vrot.lane.b32.xlu0 %v765, 111
        %v1814 = vpop.permute.xlu0 %1813
        %1815 = vrot.lane.b32.xlu0 %v507, 111
        %v1816 = vpop.permute.xlu0 %1815
        %1817 = vrot.lane.b32.xlu0 %v763, 111
        %v1818 = vpop.permute.xlu0 %1817
        %1819 = vrot.lane.b32.xlu0 %v766, 111
        %v1820 = vpop.permute.xlu0 %1819
        %1821 = vrot.lane.b32.xlu0 %v508, 111
        %v1822 = vpop.permute.xlu0 %1821
        %1823 = vrot.lane.b32.xlu0 %v764, 111
        %v1824 = vpop.permute.xlu0 %1823
        %1825 = vrot.lane.b32.xlu0 %v767, 111
        %v1826 = vpop.permute.xlu0 %1825
        %vm1827 = vcmp.lt.s32.totalorder %v797, 111
        %v1828 = vsel %vm1827, %v1816, %v1822
        %v1829 = vsel %vm1827, %v1818, %v1824
        %v1830 = vsel %vm1827, %v1820, %v1826
        %v1831 = vsel %vm1827, %v1810, %v1816
        %v1832 = vsel %vm1827, %v1812, %v1818
        %v1833 = vsel %vm1827, %v1814, %v1820
        %v1834 = vsel %vm1827, %v1822, %v1810
        %v1835 = vsel %vm1827, %v1824, %v1812
        %v1836 = vsel %vm1827, %v1826, %v1814
        %v1838 = vsel %vm838, %v1808, 0
        %1840 = vmatprep.subr.mxu0 %v1828
        %1841 = vmatpush1.msra.mxu0 %v1831
        %1842 = vmatprep.subr.mxu0 %v1829
        %1843 = vmatpush1.msra.mxu0 %v1832
        %1844 = vmatprep.subr.mxu0 %v1830
        %1845 = vmatpush1.msra.mxu0 %v1833
        %1846 = vmatprep.subr.mxu0 0.0
        %1847 = vmatpush1.msra.mxu0 0.0
        %1848 = vmatprep.subr.mxu0 0.0
        %1849 = vmatpush1.msra.mxu0 0.0
        %1850 = vmatprep.subr.mxu0 0.0
        %1851 = vmatpush1.msra.mxu0 0.0
        %1852 = vmatprep.subr.mxu0 0.0
        %1853 = vmatpush1.msra.mxu0 0.0
        %1854 = vmatprep.subr.mxu0 0.0
        %1855 = vmatpush1.msra.mxu0 0.0
        %1856 = vmatprep.subr.mxu0 0.0
        %1857 = vmatpush1.msra.mxu0 0.0
        %1858 = vmatprep.subr.mxu0 0.0
        %1859 = vmatpush1.msra.mxu0 0.0
        %1860 = vmatprep.subr.mxu0 0.0
        %1861 = vmatpush1.msra.mxu0 0.0
        %1862 = vmatprep.subr.mxu0 0.0
        %1863 = vmatpush1.msra.mxu0 0.0
        %1864 = vmatprep.subr.mxu0 0.0
        %1865 = vmatpush1.msra.mxu0 0.0
        %1866 = vmatprep.subr.mxu0 0.0
        %1867 = vmatpush1.msra.mxu0 0.0
        %1868 = vmatprep.subr.mxu0 0.0
        %1869 = vmatpush1.msra.mxu0 0.0
        %1870 = vmatprep.subr.mxu0 0.0
        %1871 = vmatpush1.msra.mxu0 0.0
        %1872 = vmatprep.subr.mxu0 0.0
        %1873 = vmatpush1.msra.mxu0 0.0
        %1874 = vmatprep.subr.mxu0 0.0
        %1875 = vmatpush1.msra.mxu0 0.0
        %1876 = vmatprep.subr.mxu0 0.0
        %1877 = vmatpush1.msra.mxu0 0.0
        %1878 = vmatprep.subr.mxu0 0.0
        %1879 = vmatpush1.msra.mxu0 0.0
        %1880 = vmatprep.subr.mxu0 0.0
        %1881 = vmatpush1.msra.mxu0 0.0
        %1882 = vmatprep.subr.mxu0 0.0
        %1883 = vmatpush1.msra.mxu0 0.0
        %1884 = vmatprep.subr.mxu0 0.0
        %1885 = vmatpush1.msra.mxu0 0.0
        %1886 = vmatprep.subr.mxu0 0.0
        %1887 = vmatpush1.msra.mxu0 0.0
        %1888 = vmatprep.subr.mxu0 0.0
        %1889 = vmatpush1.msra.mxu0 0.0
        %1890 = vmatprep.subr.mxu0 0.0
        %1891 = vmatpush1.msra.mxu0 0.0
        %1892 = vmatprep.subr.mxu0 0.0
        %1893 = vmatpush1.msra.mxu0 0.0
        %1894 = vmatprep.subr.mxu0 0.0
        %1895 = vmatpush1.msra.mxu0 0.0
        %1896 = vmatprep.subr.mxu0 0.0
        %1897 = vmatpush1.msra.mxu0 0.0
        %1898 = vmatprep.subr.mxu0 0.0
        %1899 = vmatpush1.msra.mxu0 0.0
        %1900 = vmatprep.subr.mxu0 0.0
        %1901 = vmatpush1.msra.mxu0 0.0
        %1902 = vmatprep.subr.mxu0 0.0
        %1903 = vmatpush1.msra.mxu0 0.0
        %1904 = vmatprep.mubr.f32.mxu0 0.0
        %1905 = vmatmul.mubr.f32.gmra.mrb[0].mxu0 %v1838
        %v1906 = vpop.f32.mrb[0].mxu0
        %v1907 = vadd.f32 0.0, %v1906
        %v1908 = vpop.f32.mrb[0].mxu0
        %v1909 = vadd.f32 0.0, %v1908
        %1910 = vdwg.mxu0
        %1911 = vmatprep.subr.mxu0 0.0
        %1912 = vmatpush1.msra.mxu0 %v1834
        %1913 = vmatprep.subr.mxu0 0.0
        %1914 = vmatpush1.msra.mxu0 %v1835
        %1915 = vmatprep.subr.mxu0 0.0
        %1916 = vmatpush1.msra.mxu0 %v1836
        %1917 = vmatprep.subr.mxu0 0.0
        %1918 = vmatpush1.msra.mxu0 0.0
        %1919 = vmatprep.subr.mxu0 0.0
        %1920 = vmatpush1.msra.mxu0 0.0
        %1921 = vmatprep.subr.mxu0 0.0
        %1922 = vmatpush1.msra.mxu0 0.0
        %1923 = vmatprep.subr.mxu0 0.0
        %1924 = vmatpush1.msra.mxu0 0.0
        %1925 = vmatprep.subr.mxu0 0.0
        %1926 = vmatpush1.msra.mxu0 0.0
        %1927 = vmatprep.subr.mxu0 0.0
        %1928 = vmatpush1.msra.mxu0 0.0
        %1929 = vmatprep.subr.mxu0 0.0
        %1930 = vmatpush1.msra.mxu0 0.0
        %1931 = vmatprep.subr.mxu0 0.0
        %1932 = vmatpush1.msra.mxu0 0.0
        %1933 = vmatprep.subr.mxu0 0.0
        %1934 = vmatpush1.msra.mxu0 0.0
        %1935 = vmatprep.subr.mxu0 0.0
        %1936 = vmatpush1.msra.mxu0 0.0
        %1937 = vmatprep.subr.mxu0 0.0
        %1938 = vmatpush1.msra.mxu0 0.0
        %1939 = vmatprep.subr.mxu0 0.0
        %1940 = vmatpush1.msra.mxu0 0.0
        %1941 = vmatprep.subr.mxu0 0.0
        %1942 = vmatpush1.msra.mxu0 0.0
        %1943 = vmatprep.subr.mxu0 0.0
        %1944 = vmatpush1.msra.mxu0 0.0
        %1945 = vmatprep.subr.mxu0 0.0
        %1946 = vmatpush1.msra.mxu0 0.0
        %1947 = vmatprep.subr.mxu0 0.0
        %1948 = vmatpush1.msra.mxu0 0.0
        %1949 = vmatprep.subr.mxu0 0.0
        %1950 = vmatpush1.msra.mxu0 0.0
        %1951 = vmatprep.subr.mxu0 0.0
        %1952 = vmatpush1.msra.mxu0 0.0
        %1953 = vmatprep.subr.mxu0 0.0
        %1954 = vmatpush1.msra.mxu0 0.0
        %1955 = vmatprep.subr.mxu0 0.0
        %1956 = vmatpush1.msra.mxu0 0.0
        %1957 = vmatprep.subr.mxu0 0.0
        %1958 = vmatpush1.msra.mxu0 0.0
        %1959 = vmatprep.subr.mxu0 0.0
        %1960 = vmatpush1.msra.mxu0 0.0
        %1961 = vmatprep.subr.mxu0 0.0
        %1962 = vmatpush1.msra.mxu0 0.0
        %1963 = vmatprep.subr.mxu0 0.0
        %1964 = vmatpush1.msra.mxu0 0.0
        %1965 = vmatprep.subr.mxu0 0.0
        %1966 = vmatpush1.msra.mxu0 0.0
        %1967 = vmatprep.subr.mxu0 0.0
        %1968 = vmatpush1.msra.mxu0 0.0
        %1969 = vmatprep.subr.mxu0 0.0
        %1970 = vmatpush1.msra.mxu0 0.0
        %1971 = vmatprep.subr.mxu0 0.0
        %1972 = vmatpush1.msra.mxu0 0.0
        %1973 = vmatprep.subr.mxu0 0.0
        %1974 = vmatpush1.msra.mxu0 0.0
        %1975 = vmatprep.mubr.f32.mxu0 0.0
        %1976 = vmatmul.mubr.f32.gmra.mrb[0].mxu0 %v1838
        %v1977 = vpop.f32.mrb[0].mxu0
        %v1978 = vadd.f32 0.0, %v1977
        %v1979 = vpop.f32.mrb[0].mxu0
        %1980 = vdwg.mxu0
        %v1981 = vadd.f32 %v1804, %v1907
        %v1982 = vadd.f32 %v1805, %v1909
        %v1983 = vadd.f32 %v1806, %v1978
        %s1984 = scalar_lea.vmem [#allocation2], 56
        %v1985 = vld [vmem:[%s1984] sm:$0xff]
        %1986 = vrot.lane.b32.xlu0 %v506, 110
        %v1987 = vpop.permute.xlu0 %1986
        %1988 = vrot.lane.b32.xlu0 %v762, 110
        %v1989 = vpop.permute.xlu0 %1988
        %1990 = vrot.lane.b32.xlu0 %v765, 110
        %v1991 = vpop.permute.xlu0 %1990
        %1992 = vrot.lane.b32.xlu0 %v507, 110
        %v1993 = vpop.permute.xlu0 %1992
        %1994 = vrot.lane.b32.xlu0 %v763, 110
        %v1995 = vpop.permute.xlu0 %1994
        %1996 = vrot.lane.b32.xlu0 %v766, 110
        %v1997 = vpop.permute.xlu0 %1996
        %1998 = vrot.lane.b32.xlu0 %v508, 110
        %v1999 = vpop.permute.xlu0 %1998
        %2000 = vrot.lane.b32.xlu0 %v764, 110
        %v2001 = vpop.permute.xlu0 %2000
        %2002 = vrot.lane.b32.xlu0 %v767, 110
        %v2003 = vpop.permute.xlu0 %2002
        %vm2004 = vcmp.lt.s32.totalorder %v797, 110
        %v2005 = vsel %vm2004, %v1993, %v1999
        %v2006 = vsel %vm2004, %v1995, %v2001
        %v2007 = vsel %vm2004, %v1997, %v2003
        %v2008 = vsel %vm2004, %v1987, %v1993
        %v2009 = vsel %vm2004, %v1989, %v1995
        %v2010 = vsel %vm2004, %v1991, %v1997
        %v2011 = vsel %vm2004, %v1999, %v1987
        %v2012 = vsel %vm2004, %v2001, %v1989
        %v2013 = vsel %vm2004, %v2003, %v1991
        %v2015 = vsel %vm838, %v1985, 0
        %2017 = vmatprep.subr.mxu0 %v2005
        %2018 = vmatpush1.msra.mxu0 %v2008
        %2019 = vmatprep.subr.mxu0 %v2006
        %2020 = vmatpush1.msra.mxu0 %v2009
        %2021 = vmatprep.subr.mxu0 %v2007
        %2022 = vmatpush1.msra.mxu0 %v2010
        %2023 = vmatprep.subr.mxu0 0.0
        %2024 = vmatpush1.msra.mxu0 0.0
        %2025 = vmatprep.subr.mxu0 0.0
        %2026 = vmatpush1.msra.mxu0 0.0
        %2027 = vmatprep.subr.mxu0 0.0
        %2028 = vmatpush1.msra.mxu0 0.0
        %2029 = vmatprep.subr.mxu0 0.0
        %2030 = vmatpush1.msra.mxu0 0.0
        %2031 = vmatprep.subr.mxu0 0.0
        %2032 = vmatpush1.msra.mxu0 0.0
        %2033 = vmatprep.subr.mxu0 0.0
        %2034 = vmatpush1.msra.mxu0 0.0
        %2035 = vmatprep.subr.mxu0 0.0
        %2036 = vmatpush1.msra.mxu0 0.0
        %2037 = vmatprep.subr.mxu0 0.0
        %2038 = vmatpush1.msra.mxu0 0.0
        %2039 = vmatprep.subr.mxu0 0.0
        %2040 = vmatpush1.msra.mxu0 0.0
        %2041 = vmatprep.subr.mxu0 0.0
        %2042 = vmatpush1.msra.mxu0 0.0
        %2043 = vmatprep.subr.mxu0 0.0
        %2044 = vmatpush1.msra.mxu0 0.0
        %2045 = vmatprep.subr.mxu0 0.0
        %2046 = vmatpush1.msra.mxu0 0.0
        %2047 = vmatprep.subr.mxu0 0.0
        %2048 = vmatpush1.msra.mxu0 0.0
        %2049 = vmatprep.subr.mxu0 0.0
        %2050 = vmatpush1.msra.mxu0 0.0
        %2051 = vmatprep.subr.mxu0 0.0
        %2052 = vmatpush1.msra.mxu0 0.0
        %2053 = vmatprep.subr.mxu0 0.0
        %2054 = vmatpush1.msra.mxu0 0.0
        %2055 = vmatprep.subr.mxu0 0.0
        %2056 = vmatpush1.msra.mxu0 0.0
        %2057 = vmatprep.subr.mxu0 0.0
        %2058 = vmatpush1.msra.mxu0 0.0
        %2059 = vmatprep.subr.mxu0 0.0
        %2060 = vmatpush1.msra.mxu0 0.0
        %2061 = vmatprep.subr.mxu0 0.0
        %2062 = vmatpush1.msra.mxu0 0.0
        %2063 = vmatprep.subr.mxu0 0.0
        %2064 = vmatpush1.msra.mxu0 0.0
        %2065 = vmatprep.subr.mxu0 0.0
        %2066 = vmatpush1.msra.mxu0 0.0
        %2067 = vmatprep.subr.mxu0 0.0
        %2068 = vmatpush1.msra.mxu0 0.0
        %2069 = vmatprep.subr.mxu0 0.0
        %2070 = vmatpush1.msra.mxu0 0.0
        %2071 = vmatprep.subr.mxu0 0.0
        %2072 = vmatpush1.msra.mxu0 0.0
        %2073 = vmatprep.subr.mxu0 0.0
        %2074 = vmatpush1.msra.mxu0 0.0
        %2075 = vmatprep.subr.mxu0 0.0
        %2076 = vmatpush1.msra.mxu0 0.0
        %2077 = vmatprep.subr.mxu0 0.0
        %2078 = vmatpush1.msra.mxu0 0.0
        %2079 = vmatprep.subr.mxu0 0.0
        %2080 = vmatpush1.msra.mxu0 0.0
        %2081 = vmatprep.mubr.f32.mxu0 0.0
        %2082 = vmatmul.mubr.f32.gmra.mrb[0].mxu0 %v2015
        %v2083 = vpop.f32.mrb[0].mxu0
        %v2084 = vadd.f32 0.0, %v2083
        %v2085 = vpop.f32.mrb[0].mxu0
        %v2086 = vadd.f32 0.0, %v2085
        %2087 = vdwg.mxu0
        %2088 = vmatprep.subr.mxu0 0.0
        %2089 = vmatpush1.msra.mxu0 %v2011
        %2090 = vmatprep.subr.mxu0 0.0
        %2091 = vmatpush1.msra.mxu0 %v2012
        %2092 = vmatprep.subr.mxu0 0.0
        %2093 = vmatpush1.msra.mxu0 %v2013
        %2094 = vmatprep.subr.mxu0 0.0
        %2095 = vmatpush1.msra.mxu0 0.0
        %2096 = vmatprep.subr.mxu0 0.0
        %2097 = vmatpush1.msra.mxu0 0.0
        %2098 = vmatprep.subr.mxu0 0.0
        %2099 = vmatpush1.msra.mxu0 0.0
        %2100 = vmatprep.subr.mxu0 0.0
        %2101 = vmatpush1.msra.mxu0 0.0
        %2102 = vmatprep.subr.mxu0 0.0
        %2103 = vmatpush1.msra.mxu0 0.0
        %2104 = vmatprep.subr.mxu0 0.0
        %2105 = vmatpush1.msra.mxu0 0.0
        %2106 = vmatprep.subr.mxu0 0.0
        %2107 = vmatpush1.msra.mxu0 0.0
        %2108 = vmatprep.subr.mxu0 0.0
        %2109 = vmatpush1.msra.mxu0 0.0
        %2110 = vmatprep.subr.mxu0 0.0
        %2111 = vmatpush1.msra.mxu0 0.0
        %2112 = vmatprep.subr.mxu0 0.0
        %2113 = vmatpush1.msra.mxu0 0.0
        %2114 = vmatprep.subr.mxu0 0.0
        %2115 = vmatpush1.msra.mxu0 0.0
        %2116 = vmatprep.subr.mxu0 0.0
        %2117 = vmatpush1.msra.mxu0 0.0
        %2118 = vmatprep.subr.mxu0 0.0
        %2119 = vmatpush1.msra.mxu0 0.0
        %2120 = vmatprep.subr.mxu0 0.0
        %2121 = vmatpush1.msra.mxu0 0.0
        %2122 = vmatprep.subr.mxu0 0.0
        %2123 = vmatpush1.msra.mxu0 0.0
        %2124 = vmatprep.subr.mxu0 0.0
        %2125 = vmatpush1.msra.mxu0 0.0
        %2126 = vmatprep.subr.mxu0 0.0
        %2127 = vmatpush1.msra.mxu0 0.0
        %2128 = vmatprep.subr.mxu0 0.0
        %2129 = vmatpush1.msra.mxu0 0.0
        %2130 = vmatprep.subr.mxu0 0.0
        %2131 = vmatpush1.msra.mxu0 0.0
        %2132 = vmatprep.subr.mxu0 0.0
        %2133 = vmatpush1.msra.mxu0 0.0
        %2134 = vmatprep.subr.mxu0 0.0
        %2135 = vmatpush1.msra.mxu0 0.0
        %2136 = vmatprep.subr.mxu0 0.0
        %2137 = vmatpush1.msra.mxu0 0.0
        %2138 = vmatprep.subr.mxu0 0.0
        %2139 = vmatpush1.msra.mxu0 0.0
        %2140 = vmatprep.subr.mxu0 0.0
        %2141 = vmatpush1.msra.mxu0 0.0
        %2142 = vmatprep.subr.mxu0 0.0
        %2143 = vmatpush1.msra.mxu0 0.0
        %2144 = vmatprep.subr.mxu0 0.0
        %2145 = vmatpush1.msra.mxu0 0.0
        %2146 = vmatprep.subr.mxu0 0.0
        %2147 = vmatpush1.msra.mxu0 0.0
        %2148 = vmatprep.subr.mxu0 0.0
        %2149 = vmatpush1.msra.mxu0 0.0
        %2150 = vmatprep.subr.mxu0 0.0
        %2151 = vmatpush1.msra.mxu0 0.0
        %2152 = vmatprep.mubr.f32.mxu0 0.0
        %2153 = vmatmul.mubr.f32.gmra.mrb[0].mxu0 %v2015
        %v2154 = vpop.f32.mrb[0].mxu0
        %v2155 = vadd.f32 0.0, %v2154
        %v2156 = vpop.f32.mrb[0].mxu0
        %2157 = vdwg.mxu0
        %v2158 = vadd.f32 %v1981, %v2084
        %v2159 = vadd.f32 %v1982, %v2086
        %v2160 = vadd.f32 %v1983, %v2155
        %s2161 = scalar_lea.vmem [#allocation2], 64
        %v2162 = vld [vmem:[%s2161] sm:$0xff]
        %2163 = vrot.lane.b32.xlu0 %v506, 109
        %v2164 = vpop.permute.xlu0 %2163
        %2165 = vrot.lane.b32.xlu0 %v762, 109
        %v2166 = vpop.permute.xlu0 %2165
        %2167 = vrot.lane.b32.xlu0 %v765, 109
        %v2168 = vpop.permute.xlu0 %2167
        %2169 = vrot.lane.b32.xlu0 %v507, 109
        %v2170 = vpop.permute.xlu0 %2169
        %2171 = vrot.lane.b32.xlu0 %v763, 109
        %v2172 = vpop.permute.xlu0 %2171
        %2173 = vrot.lane.b32.xlu0 %v766, 109
        %v2174 = vpop.permute.xlu0 %2173
        %2175 = vrot.lane.b32.xlu0 %v508, 109
        %v2176 = vpop.permute.xlu0 %2175
        %2177 = vrot.lane.b32.xlu0 %v764, 109
        %v2178 = vpop.permute.xlu0 %2177
        %2179 = vrot.lane.b32.xlu0 %v767, 109
        %v2180 = vpop.permute.xlu0 %2179
        %vm2181 = vcmp.lt.s32.totalorder %v797, 109
        %v2182 = vsel %vm2181, %v2170, %v2176
        %v2183 = vsel %vm2181, %v2172, %v2178
        %v2184 = vsel %vm2181, %v2174, %v2180
        %v2185 = vsel %vm2181, %v2164, %v2170
        %v2186 = vsel %vm2181, %v2166, %v2172
        %v2187 = vsel %vm2181, %v2168, %v2174
        %v2188 = vsel %vm2181, %v2176, %v2164
        %v2189 = vsel %vm2181, %v2178, %v2166
        %v2190 = vsel %vm2181, %v2180, %v2168
        %v2192 = vsel %vm838, %v2162, 0
        %2194 = vmatprep.subr.mxu0 %v2182
        %2195 = vmatpush1.msra.mxu0 %v2185
        %2196 = vmatprep.subr.mxu0 %v2183
        %2197 = vmatpush1.msra.mxu0 %v2186
        %2198 = vmatprep.subr.mxu0 %v2184
        %2199 = vmatpush1.msra.mxu0 %v2187
        %2200 = vmatprep.subr.mxu0 0.0
        %2201 = vmatpush1.msra.mxu0 0.0
        %2202 = vmatprep.subr.mxu0 0.0
        %2203 = vmatpush1.msra.mxu0 0.0
        %2204 = vmatprep.subr.mxu0 0.0
        %2205 = vmatpush1.msra.mxu0 0.0
        %2206 = vmatprep.subr.mxu0 0.0
        %2207 = vmatpush1.msra.mxu0 0.0
        %2208 = vmatprep.subr.mxu0 0.0
        %2209 = vmatpush1.msra.mxu0 0.0
        %2210 = vmatprep.subr.mxu0 0.0
        %2211 = vmatpush1.msra.mxu0 0.0
        %2212 = vmatprep.subr.mxu0 0.0
        %2213 = vmatpush1.msra.mxu0 0.0
        %2214 = vmatprep.subr.mxu0 0.0
        %2215 = vmatpush1.msra.mxu0 0.0
        %2216 = vmatprep.subr.mxu0 0.0
        %2217 = vmatpush1.msra.mxu0 0.0
        %2218 = vmatprep.subr.mxu0 0.0
        %2219 = vmatpush1.msra.mxu0 0.0
        %2220 = vmatprep.subr.mxu0 0.0
        %2221 = vmatpush1.msra.mxu0 0.0
        %2222 = vmatprep.subr.mxu0 0.0
        %2223 = vmatpush1.msra.mxu0 0.0
        %2224 = vmatprep.subr.mxu0 0.0
        %2225 = vmatpush1.msra.mxu0 0.0
        %2226 = vmatprep.subr.mxu0 0.0
        %2227 = vmatpush1.msra.mxu0 0.0
        %2228 = vmatprep.subr.mxu0 0.0
        %2229 = vmatpush1.msra.mxu0 0.0
        %2230 = vmatprep.subr.mxu0 0.0
        %2231 = vmatpush1.msra.mxu0 0.0
        %2232 = vmatprep.subr.mxu0 0.0
        %2233 = vmatpush1.msra.mxu0 0.0
        %2234 = vmatprep.subr.mxu0 0.0
        %2235 = vmatpush1.msra.mxu0 0.0
        %2236 = vmatprep.subr.mxu0 0.0
        %2237 = vmatpush1.msra.mxu0 0.0
        %2238 = vmatprep.subr.mxu0 0.0
        %2239 = vmatpush1.msra.mxu0 0.0
        %2240 = vmatprep.subr.mxu0 0.0
        %2241 = vmatpush1.msra.mxu0 0.0
        %2242 = vmatprep.subr.mxu0 0.0
        %2243 = vmatpush1.msra.mxu0 0.0
        %2244 = vmatprep.subr.mxu0 0.0
        %2245 = vmatpush1.msra.mxu0 0.0
        %2246 = vmatprep.subr.mxu0 0.0
        %2247 = vmatpush1.msra.mxu0 0.0
        %2248 = vmatprep.subr.mxu0 0.0
        %2249 = vmatpush1.msra.mxu0 0.0
        %2250 = vmatprep.subr.mxu0 0.0
        %2251 = vmatpush1.msra.mxu0 0.0
        %2252 = vmatprep.subr.mxu0 0.0
        %2253 = vmatpush1.msra.mxu0 0.0
        %2254 = vmatprep.subr.mxu0 0.0
        %2255 = vmatpush1.msra.mxu0 0.0
        %2256 = vmatprep.subr.mxu0 0.0
        %2257 = vmatpush1.msra.mxu0 0.0
        %2258 = vmatprep.mubr.f32.mxu0 0.0
        %2259 = vmatmul.mubr.f32.gmra.mrb[0].mxu0 %v2192
        %v2260 = vpop.f32.mrb[0].mxu0
        %v2261 = vadd.f32 0.0, %v2260
        %v2262 = vpop.f32.mrb[0].mxu0
        %v2263 = vadd.f32 0.0, %v2262
        %2264 = vdwg.mxu0
        %2265 = vmatprep.subr.mxu0 0.0
        %2266 = vmatpush1.msra.mxu0 %v2188
        %2267 = vmatprep.subr.mxu0 0.0
        %2268 = vmatpush1.msra.mxu0 %v2189
        %2269 = vmatprep.subr.mxu0 0.0
        %2270 = vmatpush1.msra.mxu0 %v2190
        %2271 = vmatprep.subr.mxu0 0.0
        %2272 = vmatpush1.msra.mxu0 0.0
        %2273 = vmatprep.subr.mxu0 0.0
        %2274 = vmatpush1.msra.mxu0 0.0
        %2275 = vmatprep.subr.mxu0 0.0
        %2276 = vmatpush1.msra.mxu0 0.0
        %2277 = vmatprep.subr.mxu0 0.0
        %2278 = vmatpush1.msra.mxu0 0.0
        %2279 = vmatprep.subr.mxu0 0.0
        %2280 = vmatpush1.msra.mxu0 0.0
        %2281 = vmatprep.subr.mxu0 0.0
        %2282 = vmatpush1.msra.mxu0 0.0
        %2283 = vmatprep.subr.mxu0 0.0
        %2284 = vmatpush1.msra.mxu0 0.0
        %2285 = vmatprep.subr.mxu0 0.0
        %2286 = vmatpush1.msra.mxu0 0.0
        %2287 = vmatprep.subr.mxu0 0.0
        %2288 = vmatpush1.msra.mxu0 0.0
        %2289 = vmatprep.subr.mxu0 0.0
        %2290 = vmatpush1.msra.mxu0 0.0
        %2291 = vmatprep.subr.mxu0 0.0
        %2292 = vmatpush1.msra.mxu0 0.0
        %2293 = vmatprep.subr.mxu0 0.0
        %2294 = vmatpush1.msra.mxu0 0.0
        %2295 = vmatprep.subr.mxu0 0.0
        %2296 = vmatpush1.msra.mxu0 0.0
        %2297 = vmatprep.subr.mxu0 0.0
        %2298 = vmatpush1.msra.mxu0 0.0
        %2299 = vmatprep.subr.mxu0 0.0
        %2300 = vmatpush1.msra.mxu0 0.0
        %2301 = vmatprep.subr.mxu0 0.0
        %2302 = vmatpush1.msra.mxu0 0.0
        %2303 = vmatprep.subr.mxu0 0.0
        %2304 = vmatpush1.msra.mxu0 0.0
        %2305 = vmatprep.subr.mxu0 0.0
        %2306 = vmatpush1.msra.mxu0 0.0
        %2307 = vmatprep.subr.mxu0 0.0
        %2308 = vmatpush1.msra.mxu0 0.0
        %2309 = vmatprep.subr.mxu0 0.0
        %2310 = vmatpush1.msra.mxu0 0.0
        %2311 = vmatprep.subr.mxu0 0.0
        %2312 = vmatpush1.msra.mxu0 0.0
        %2313 = vmatprep.subr.mxu0 0.0
        %2314 = vmatpush1.msra.mxu0 0.0
        %2315 = vmatprep.subr.mxu0 0.0
        %2316 = vmatpush1.msra.mxu0 0.0
        %2317 = vmatprep.subr.mxu0 0.0
        %2318 = vmatpush1.msra.mxu0 0.0
        %2319 = vmatprep.subr.mxu0 0.0
        %2320 = vmatpush1.msra.mxu0 0.0
        %2321 = vmatprep.subr.mxu0 0.0
        %2322 = vmatpush1.msra.mxu0 0.0
        %2323 = vmatprep.subr.mxu0 0.0
        %2324 = vmatpush1.msra.mxu0 0.0
        %2325 = vmatprep.subr.mxu0 0.0
        %2326 = vmatpush1.msra.mxu0 0.0
        %2327 = vmatprep.subr.mxu0 0.0
        %2328 = vmatpush1.msra.mxu0 0.0
        %2329 = vmatprep.mubr.f32.mxu0 0.0
        %2330 = vmatmul.mubr.f32.gmra.mrb[0].mxu0 %v2192
        %v2331 = vpop.f32.mrb[0].mxu0
        %v2332 = vadd.f32 0.0, %v2331
        %v2333 = vpop.f32.mrb[0].mxu0
        %2334 = vdwg.mxu0
        %v2335 = vadd.f32 %v2158, %v2261
        %v2336 = vadd.f32 %v2159, %v2263
        %v2337 = vadd.f32 %v2160, %v2332
        %2338 = vrot.lane.b32.xlu0 %v768, 1
        %v2339 = vpop.permute.xlu0 %2338
        %2340 = vrot.lane.b32.xlu0 %v771, 1
        %v2341 = vpop.permute.xlu0 %2340
        %2342 = vrot.lane.b32.xlu0 %v774, 1
        %v2343 = vpop.permute.xlu0 %2342
        %2344 = vrot.lane.b32.xlu0 %v769, 1
        %v2345 = vpop.permute.xlu0 %2344
        %2346 = vrot.lane.b32.xlu0 %v772, 1
        %v2347 = vpop.permute.xlu0 %2346
        %2348 = vrot.lane.b32.xlu0 %v775, 1
        %v2349 = vpop.permute.xlu0 %2348
        %2350 = vrot.lane.b32.xlu0 %v770, 1
        %v2351 = vpop.permute.xlu0 %2350
        %2352 = vrot.lane.b32.xlu0 %v773, 1
        %v2353 = vpop.permute.xlu0 %2352
        %2354 = vrot.lane.b32.xlu0 %v776, 1
        %v2355 = vpop.permute.xlu0 %2354
        %v2356 = vsel %vm1324, %v2345, %v2351
        %v2357 = vsel %vm1324, %v2347, %v2353
        %v2358 = vsel %vm1324, %v2349, %v2355
        %v2359 = vsel %vm1324, %v2339, %v2345
        %v2360 = vsel %vm1324, %v2341, %v2347
        %v2361 = vsel %vm1324, %v2343, %v2349
        %v2362 = vsel %vm1324, %v2351, %v2339
        %v2363 = vsel %vm1324, %v2353, %v2341
        %v2364 = vsel %vm1324, %v2355, %v2343
        %2365 = vrot.lane.b32.xlu0 %v768, 127
        %v2366 = vpop.permute.xlu0 %2365
        %2367 = vrot.lane.b32.xlu0 %v771, 127
        %v2368 = vpop.permute.xlu0 %2367
        %2369 = vrot.lane.b32.xlu0 %v774, 127
        %v2370 = vpop.permute.xlu0 %2369
        %2371 = vrot.lane.b32.xlu0 %v769, 127
        %v2372 = vpop.permute.xlu0 %2371
        %2373 = vrot.lane.b32.xlu0 %v772, 127
        %v2374 = vpop.permute.xlu0 %2373
        %2375 = vrot.lane.b32.xlu0 %v775, 127
        %v2376 = vpop.permute.xlu0 %2375
        %2377 = vrot.lane.b32.xlu0 %v770, 127
        %v2378 = vpop.permute.xlu0 %2377
        %2379 = vrot.lane.b32.xlu0 %v773, 127
        %v2380 = vpop.permute.xlu0 %2379
        %2381 = vrot.lane.b32.xlu0 %v776, 127
        %v2382 = vpop.permute.xlu0 %2381
        %v2383 = vsel %vm1650, %v2372, %v2378
        %v2384 = vsel %vm1650, %v2374, %v2380
        %v2385 = vsel %vm1650, %v2376, %v2382
        %v2386 = vsel %vm1650, %v2366, %v2372
        %v2387 = vsel %vm1650, %v2368, %v2374
        %v2388 = vsel %vm1650, %v2370, %v2376
        %v2389 = vsel %vm1650, %v2378, %v2366
        %v2390 = vsel %vm1650, %v2380, %v2368
        %v2391 = vsel %vm1650, %v2382, %v2370
        %v2392 = vsub.f32 %v2362, %v2386
        %v2393 = vsub.f32 %v2359, %v2383
        %v2394 = vsub.f32 %v2356, %v2389
        %2395 = vrot.lane.b32.xlu0 %v2392, 18
        %v2396 = vpop.permute.xlu0 %2395
        %2397 = vrot.lane.b32.xlu0 %v2393, 18
        %v2398 = vpop.permute.xlu0 %2397
        %2399 = vrot.lane.b32.xlu0 %v2394, 18
        %v2400 = vpop.permute.xlu0 %2399
        %v2401 = vsel %vm828, %v2398, %v2400
        %v2402 = vsel %vm828, %v2396, %v2398
        %v2403 = vsel %vm828, %v2400, %v2396
        %v2404 = vadd.f32 %v2335, %v2403
        %v2405 = vadd.f32 %v2336, %v2402
        %v2406 = vadd.f32 %v2337, %v2401
        %v2407 = vmul.f32 %v2392, 2.0
        %v2408 = vmul.f32 %v2393, 2.0
        %v2409 = vmul.f32 %v2394, 2.0
        %v2410 = vadd.f32 %v2404, %v2407
        %v2411 = vadd.f32 %v2405, %v2408
        %v2412 = vadd.f32 %v2406, %v2409
        %2413 = vrot.lane.b32.xlu0 %v2392, 110
        %v2414 = vpop.permute.xlu0 %2413
        %2415 = vrot.lane.b32.xlu0 %v2393, 110
        %v2416 = vpop.permute.xlu0 %2415
        %2417 = vrot.lane.b32.xlu0 %v2394, 110
        %v2418 = vpop.permute.xlu0 %2417
        %v2419 = vsel %vm2004, %v2416, %v2418
        %v2420 = vsel %vm2004, %v2414, %v2416
        %v2421 = vsel %vm2004, %v2418, %v2414
        %v2422 = vadd.f32 %v2410, %v2420
        %v2423 = vadd.f32 %v2411, %v2419
        %v2424 = vadd.f32 %v2412, %v2421
        %v2425 = vmul.f32 %v771, 2.0
        %v2426 = vmul.f32 %v772, 2.0
        %v2427 = vmul.f32 %v773, 2.0
        %v2428 = vadd.f32 %v2363, %v2425
        %v2429 = vadd.f32 %v2360, %v2426
        %v2430 = vadd.f32 %v2357, %v2427
        %v2431 = vadd.f32 %v2428, %v2387
        %v2432 = vadd.f32 %v2429, %v2384
        %v2433 = vadd.f32 %v2430, %v2390
        %2434 = vrot.lane.b32.xlu0 %v2431, 18
        %v2435 = vpop.permute.xlu0 %2434
        %2436 = vrot.lane.b32.xlu0 %v2432, 18
        %v2437 = vpop.permute.xlu0 %2436
        %2438 = vrot.lane.b32.xlu0 %v2433, 18
        %v2439 = vpop.permute.xlu0 %2438
        %v2440 = vsel %vm828, %v2437, %v2439
        %v2441 = vsel %vm828, %v2435, %v2437
        %v2442 = vsel %vm828, %v2439, %v2435
        %v2443 = vadd.f32 %v2422, %v2442
        %v2444 = vadd.f32 %v2423, %v2441
        %v2445 = vadd.f32 %v2424, %v2440
        %2446 = vrot.lane.b32.xlu0 %v2431, 110
        %v2447 = vpop.permute.xlu0 %2446
        %2448 = vrot.lane.b32.xlu0 %v2432, 110
        %v2449 = vpop.permute.xlu0 %2448
        %2450 = vrot.lane.b32.xlu0 %v2433, 110
        %v2451 = vpop.permute.xlu0 %2450
        %v2452 = vsel %vm2004, %v2449, %v2451
        %v2453 = vsel %vm2004, %v2447, %v2449
        %v2454 = vsel %vm2004, %v2451, %v2447
        %v2455 = vsub.f32 %v2443, %v2453
        %v2456 = vsub.f32 %v2444, %v2452
        %v2457 = vsub.f32 %v2445, %v2454
        %v2458 = vadd.f32 %v2455, %v2364
        %v2459 = vadd.f32 %v2456, %v2361
        %v2460 = vadd.f32 %v2457, %v2358
        %v2461 = vadd.f32 %v2458, %v2388
        %v2462 = vadd.f32 %v2459, %v2385
        %v2463 = vadd.f32 %v2460, %v2391
        %2464 = vrot.lane.b32.xlu0 %v774, 18
        %v2465 = vpop.permute.xlu0 %2464
        %2466 = vrot.lane.b32.xlu0 %v775, 18
        %v2467 = vpop.permute.xlu0 %2466
        %2468 = vrot.lane.b32.xlu0 %v776, 18
        %v2469 = vpop.permute.xlu0 %2468
        %v2470 = vsel %vm828, %v2467, %v2469
        %v2471 = vsel %vm828, %v2465, %v2467
        %v2472 = vsel %vm828, %v2469, %v2465
        %v2473 = vadd.f32 %v2461, %v2472
        %v2474 = vadd.f32 %v2462, %v2471
        %v2475 = vadd.f32 %v2463, %v2470
        %2476 = vrot.lane.b32.xlu0 %v774, 110
        %v2477 = vpop.permute.xlu0 %2476
        %2478 = vrot.lane.b32.xlu0 %v775, 110
        %v2479 = vpop.permute.xlu0 %2478
        %2480 = vrot.lane.b32.xlu0 %v776, 110
        %v2481 = vpop.permute.xlu0 %2480
        %v2482 = vsel %vm2004, %v2479, %v2481
        %v2483 = vsel %vm2004, %v2477, %v2479
        %v2484 = vsel %vm2004, %v2481, %v2477
        %v2485 = vadd.f32 %v2473, %v2483
        %v2486 = vadd.f32 %v2474, %v2482
        %v2487 = vadd.f32 %v2475, %v2484
        %v2488 = vmul.f32 %v774, 4.0
        %v2489 = vmul.f32 %v775, 4.0
        %v2490 = vmul.f32 %v776, 4.0
        %v2491 = vsub.f32 %v2485, %v2488
        %v2492 = vsub.f32 %v2486, %v2489
        %v2493 = vsub.f32 %v2487, %v2490
        %2495 = vset.pattern.permute.xlu0 0
        %2496 = vperm.xlu0 %2495, %v514
        %v2497 = vpop.permute.xlu0 %2496
        %v2499 = vadd.f32 %v2491, %v2497
        %v2500 = vadd.f32 %v2492, %v2497
        %v2501 = vadd.f32 %v2493, %v2497
        %v2502 = vld [vmem:[#allocation6 + $0x30] sm:$0xff]
        %vm2503 = vcmp.ge.f32.partialorder %v2499, 0.0
        %vm2504 = vcmp.ge.f32.partialorder %v2500, 0.0
        %vm2505 = vcmp.ge.f32.partialorder %v2501, 0.0
        %2507 = vset.pattern.permute.xlu0 0
        %2508 = vperm.xlu0 %2507, %v2502
        %v2509 = vpop.permute.xlu0 %2508
        %v2511 = vmul.f32 %v2499, %v2509
        %v2512 = vmul.f32 %v2500, %v2509
        %v2513 = vmul.f32 %v2501, %v2509
        %v2514 = vsel %vm2503, %v2499, %v2511
        %v2515 = vsel %vm2504, %v2500, %v2512
        %v2516 = vsel %vm2505, %v2501, %v2513
        %v2517 = vsel %vm759, %v2514, 0.0
        %v2518 = vsel %vm760, %v2515, 0.0
        %v2519 = vsel %vm761, %v2516, 0.0
        %v2520 = vld [vmem:[#allocation10] sm:$0xff]
        %v2521 = vld [vmem:[#allocation10 + $0x8] sm:$0xff]
        %v2522 = vld [vmem:[#allocation10 + $0x10] sm:$0xff]
        %v2523 = vld [vmem:[#allocation10 + $0x18] sm:$0xff]
        %v2524 = vld [vmem:[#allocation10 + $0x20] sm:$0xff]
        %v2525 = vld [vmem:[#allocation10 + $0x28] sm:$0xff]
        %v2526 = vld [vmem:[#allocation9] sm:$0xff]
        %v2527 = vld [vmem:[#allocation9 + $0x8] sm:$0xff]
        %v2528 = vld [vmem:[#allocation9 + $0x10] sm:$0xff]
        %v2529 = vld [vmem:[#allocation9 + $0x18] sm:$0xff]
        %v2530 = vld [vmem:[#allocation9 + $0x20] sm:$0xff]
        %2532 = vset.pattern.permute.xlu0 0
        %2533 = vperm.xlu0 %2532, %v2520
        %v2534 = vpop.permute.xlu0 %2533
        %2537 = vset.pattern.permute.xlu0 0
        %2538 = vperm.xlu0 %2537, %v2521
        %v2539 = vpop.permute.xlu0 %2538
        %2542 = vset.pattern.permute.xlu0 0
        %2543 = vperm.xlu0 %2542, %v2522
        %v2544 = vpop.permute.xlu0 %2543
        %2547 = vset.pattern.permute.xlu0 0
        %2548 = vperm.xlu0 %2547, %v2523
        %v2549 = vpop.permute.xlu0 %2548
        %2552 = vset.pattern.permute.xlu0 0
        %2553 = vperm.xlu0 %2552, %v2524
        %v2554 = vpop.permute.xlu0 %2553
        %v2557 = vsel %vm545, %v2526, 0
        %v2560 = vsel %vm545, %v2527, 0
        %v2563 = vsel %vm545, %v2528, 0
        %v2566 = vsel %vm545, %v2529, 0
        %v2569 = vsel %vm545, %v2530, 0
        %2571 = vmatprep.subr.mxu0 %v2518
        %2572 = vmatpush1.msra.mxu0 %v2517
        %2573 = vmatprep.subr.mxu0 0.0
        %2574 = vmatpush1.msra.mxu0 0.0
        %2575 = vmatprep.subr.mxu0 0.0
        %2576 = vmatpush1.msra.mxu0 0.0
        %2577 = vmatprep.subr.mxu0 0.0
        %2578 = vmatpush1.msra.mxu0 0.0
        %2579 = vmatprep.subr.mxu0 0.0
        %2580 = vmatpush1.msra.mxu0 0.0
        %2581 = vmatprep.subr.mxu0 0.0
        %2582 = vmatpush1.msra.mxu0 0.0
        %2583 = vmatprep.subr.mxu0 0.0
        %2584 = vmatpush1.msra.mxu0 0.0
        %2585 = vmatprep.subr.mxu0 0.0
        %2586 = vmatpush1.msra.mxu0 0.0
        %2587 = vmatprep.subr.mxu0 0.0
        %2588 = vmatpush1.msra.mxu0 0.0
        %2589 = vmatprep.subr.mxu0 0.0
        %2590 = vmatpush1.msra.mxu0 0.0
        %2591 = vmatprep.subr.mxu0 0.0
        %2592 = vmatpush1.msra.mxu0 0.0
        %2593 = vmatprep.subr.mxu0 0.0
        %2594 = vmatpush1.msra.mxu0 0.0
        %2595 = vmatprep.subr.mxu0 0.0
        %2596 = vmatpush1.msra.mxu0 0.0
        %2597 = vmatprep.subr.mxu0 0.0
        %2598 = vmatpush1.msra.mxu0 0.0
        %2599 = vmatprep.subr.mxu0 0.0
        %2600 = vmatpush1.msra.mxu0 0.0
        %2601 = vmatprep.subr.mxu0 0.0
        %2602 = vmatpush1.msra.mxu0 0.0
        %2603 = vmatprep.subr.mxu0 0.0
        %2604 = vmatpush1.msra.mxu0 0.0
        %2605 = vmatprep.subr.mxu0 0.0
        %2606 = vmatpush1.msra.mxu0 0.0
        %2607 = vmatprep.subr.mxu0 0.0
        %2608 = vmatpush1.msra.mxu0 0.0
        %2609 = vmatprep.subr.mxu0 0.0
        %2610 = vmatpush1.msra.mxu0 0.0
        %2611 = vmatprep.subr.mxu0 0.0
        %2612 = vmatpush1.msra.mxu0 0.0
        %2613 = vmatprep.subr.mxu0 0.0
        %2614 = vmatpush1.msra.mxu0 0.0
        %2615 = vmatprep.subr.mxu0 0.0
        %2616 = vmatpush1.msra.mxu0 0.0
        %2617 = vmatprep.subr.mxu0 0.0
        %2618 = vmatpush1.msra.mxu0 0.0
        %2619 = vmatprep.subr.mxu0 0.0
        %2620 = vmatpush1.msra.mxu0 0.0
        %2621 = vmatprep.subr.mxu0 0.0
        %2622 = vmatpush1.msra.mxu0 0.0
        %2623 = vmatprep.subr.mxu0 0.0
        %2624 = vmatpush1.msra.mxu0 0.0
        %2625 = vmatprep.subr.mxu0 0.0
        %2626 = vmatpush1.msra.mxu0 0.0
        %2627 = vmatprep.subr.mxu0 0.0
        %2628 = vmatpush1.msra.mxu0 0.0
        %2629 = vmatprep.subr.mxu0 0.0
        %2630 = vmatpush1.msra.mxu0 0.0
        %2631 = vmatprep.subr.mxu0 0.0
        %2632 = vmatpush1.msra.mxu0 0.0
        %2633 = vmatprep.subr.mxu0 0.0
        %2634 = vmatpush1.msra.mxu0 0.0
        %2635 = vmatprep.mubr.f32.mxu0 0.0
        %2636 = vmatmul.mubr.f32.gmra.mrb[0].mxu0 %v2557
        %v2637 = vpop.f32.mrb[0].mxu0
        %v2638 = vadd.f32 %v2534, %v2637
        %v2639 = vpop.f32.mrb[0].mxu0
        %v2640 = vadd.f32 %v2534, %v2639
        %2641 = vmatprep.mubr.f32.mxu0 0.0
        %2642 = vmatmul.mubr.f32.gmra.mrb[0].mxu0 %v2560
        %v2643 = vpop.f32.mrb[0].mxu0
        %v2644 = vadd.f32 %v2539, %v2643
        %v2645 = vpop.f32.mrb[0].mxu0
        %v2646 = vadd.f32 %v2539, %v2645
        %2647 = vmatprep.mubr.f32.mxu0 0.0
        %2648 = vmatmul.mubr.f32.gmra.mrb[0].mxu0 %v2563
        %v2649 = vpop.f32.mrb[0].mxu0
        %v2650 = vadd.f32 %v2544, %v2649
        %v2651 = vpop.f32.mrb[0].mxu0
        %v2652 = vadd.f32 %v2544, %v2651
        %2653 = vmatprep.mubr.f32.mxu0 0.0
        %2654 = vmatmul.mubr.f32.gmra.mrb[0].mxu0 %v2566
        %v2655 = vpop.f32.mrb[0].mxu0
        %v2656 = vadd.f32 %v2549, %v2655
        %v2657 = vpop.f32.mrb[0].mxu0
        %v2658 = vadd.f32 %v2549, %v2657
        %2659 = vmatprep.mubr.f32.mxu0 0.0
        %2660 = vmatmul.mubr.f32.gmra.mrb[0].mxu0 %v2569
        %v2661 = vpop.f32.mrb[0].mxu0
        %v2662 = vadd.f32 %v2554, %v2661
        %v2663 = vpop.f32.mrb[0].mxu0
        %v2664 = vadd.f32 %v2554, %v2663
        %2665 = vdwg.mxu0
        %2666 = vmatprep.subr.mxu0 0.0
        %2667 = vmatpush1.msra.mxu0 %v2519
        %2668 = vmatprep.subr.mxu0 0.0
        %2669 = vmatpush1.msra.mxu0 0.0
        %2670 = vmatprep.subr.mxu0 0.0
        %2671 = vmatpush1.msra.mxu0 0.0
        %2672 = vmatprep.subr.mxu0 0.0
        %2673 = vmatpush1.msra.mxu0 0.0
        %2674 = vmatprep.subr.mxu0 0.0
        %2675 = vmatpush1.msra.mxu0 0.0
        %2676 = vmatprep.subr.mxu0 0.0
        %2677 = vmatpush1.msra.mxu0 0.0
        %2678 = vmatprep.subr.mxu0 0.0
        %2679 = vmatpush1.msra.mxu0 0.0
        %2680 = vmatprep.subr.mxu0 0.0
        %2681 = vmatpush1.msra.mxu0 0.0
        %2682 = vmatprep.subr.mxu0 0.0
        %2683 = vmatpush1.msra.mxu0 0.0
        %2684 = vmatprep.subr.mxu0 0.0
        %2685 = vmatpush1.msra.mxu0 0.0
        %2686 = vmatprep.subr.mxu0 0.0
        %2687 = vmatpush1.msra.mxu0 0.0
        %2688 = vmatprep.subr.mxu0 0.0
        %2689 = vmatpush1.msra.mxu0 0.0
        %2690 = vmatprep.subr.mxu0 0.0
        %2691 = vmatpush1.msra.mxu0 0.0
        %2692 = vmatprep.subr.mxu0 0.0
        %2693 = vmatpush1.msra.mxu0 0.0
        %2694 = vmatprep.subr.mxu0 0.0
        %2695 = vmatpush1.msra.mxu0 0.0
        %2696 = vmatprep.subr.mxu0 0.0
        %2697 = vmatpush1.msra.mxu0 0.0
        %2698 = vmatprep.subr.mxu0 0.0
        %2699 = vmatpush1.msra.mxu0 0.0
        %2700 = vmatprep.subr.mxu0 0.0
        %2701 = vmatpush1.msra.mxu0 0.0
        %2702 = vmatprep.subr.mxu0 0.0
        %2703 = vmatpush1.msra.mxu0 0.0
        %2704 = vmatprep.subr.mxu0 0.0
        %2705 = vmatpush1.msra.mxu0 0.0
        %2706 = vmatprep.subr.mxu0 0.0
        %2707 = vmatpush1.msra.mxu0 0.0
        %2708 = vmatprep.subr.mxu0 0.0
        %2709 = vmatpush1.msra.mxu0 0.0
        %2710 = vmatprep.subr.mxu0 0.0
        %2711 = vmatpush1.msra.mxu0 0.0
        %2712 = vmatprep.subr.mxu0 0.0
        %2713 = vmatpush1.msra.mxu0 0.0
        %2714 = vmatprep.subr.mxu0 0.0
        %2715 = vmatpush1.msra.mxu0 0.0
        %2716 = vmatprep.subr.mxu0 0.0
        %2717 = vmatpush1.msra.mxu0 0.0
        %2718 = vmatprep.subr.mxu0 0.0
        %2719 = vmatpush1.msra.mxu0 0.0
        %2720 = vmatprep.subr.mxu0 0.0
        %2721 = vmatpush1.msra.mxu0 0.0
        %2722 = vmatprep.subr.mxu0 0.0
        %2723 = vmatpush1.msra.mxu0 0.0
        %2724 = vmatprep.subr.mxu0 0.0
        %2725 = vmatpush1.msra.mxu0 0.0
        %2726 = vmatprep.subr.mxu0 0.0
        %2727 = vmatpush1.msra.mxu0 0.0
        %2728 = vmatprep.subr.mxu0 0.0
        %2729 = vmatpush1.msra.mxu0 0.0
        %2730 = vmatprep.mubr.f32.mxu0 0.0
        %2731 = vmatmul.mubr.f32.gmra.mrb[0].mxu0 %v2557
        %v2732 = vpop.f32.mrb[0].mxu0
        %v2733 = vadd.f32 %v2534, %v2732
        %v2734 = vpop.f32.mrb[0].mxu0
        %2735 = vmatprep.mubr.f32.mxu0 0.0
        %2736 = vmatmul.mubr.f32.gmra.mrb[0].mxu0 %v2560
        %v2737 = vpop.f32.mrb[0].mxu0
        %v2738 = vadd.f32 %v2539, %v2737
        %v2739 = vpop.f32.mrb[0].mxu0
        %2740 = vmatprep.mubr.f32.mxu0 0.0
        %2741 = vmatmul.mubr.f32.gmra.mrb[0].mxu0 %v2563
        %v2742 = vpop.f32.mrb[0].mxu0
        %v2743 = vadd.f32 %v2544, %v2742
        %v2744 = vpop.f32.mrb[0].mxu0
        %2745 = vmatprep.mubr.f32.mxu0 0.0
        %2746 = vmatmul.mubr.f32.gmra.mrb[0].mxu0 %v2566
        %v2747 = vpop.f32.mrb[0].mxu0
        %v2748 = vadd.f32 %v2549, %v2747
        %v2749 = vpop.f32.mrb[0].mxu0
        %2750 = vmatprep.mubr.f32.mxu0 0.0
        %2751 = vmatmul.mubr.f32.gmra.mrb[0].mxu0 %v2569
        %v2752 = vpop.f32.mrb[0].mxu0
        %v2753 = vadd.f32 %v2554, %v2752
        %v2754 = vpop.f32.mrb[0].mxu0
        %2755 = vdwg.mxu0
        %v2756 = vsel %vm759, %v2638, 0.0
        %v2757 = vsel %vm760, %v2640, 0.0
        %v2758 = vsel %vm761, %v2733, 0.0
        %v2759 = vsel %vm759, %v2644, 0.0
        %v2760 = vsel %vm760, %v2646, 0.0
        %v2761 = vsel %vm761, %v2738, 0.0
        %v2762 = vsel %vm759, %v2650, 0.0
        %v2763 = vsel %vm760, %v2652, 0.0
        %v2764 = vsel %vm761, %v2743, 0.0
        %v2765 = vsel %vm759, %v2656, 0.0
        %v2766 = vsel %vm760, %v2658, 0.0
        %v2767 = vsel %vm761, %v2748, 0.0
        %v2768 = vsel %vm759, %v2662, 0.0
        %v2769 = vsel %vm760, %v2664, 0.0
        %v2770 = vsel %vm761, %v2753, 0.0
        %v2771 = vld [vmem:[#allocation7] sm:$0xff]
        %2772 = vrot.lane.b32.xlu0 %v2517, 19
        %v2773 = vpop.permute.xlu0 %2772
        %2774 = vrot.lane.b32.xlu0 %v2756, 19
        %v2775 = vpop.permute.xlu0 %2774
        %2776 = vrot.lane.b32.xlu0 %v2759, 19
        %v2777 = vpop.permute.xlu0 %2776
        %2778 = vrot.lane.b32.xlu0 %v2518, 19
        %v2779 = vpop.permute.xlu0 %2778
        %2780 = vrot.lane.b32.xlu0 %v2757, 19
        %v2781 = vpop.permute.xlu0 %2780
        %2782 = vrot.lane.b32.xlu0 %v2760, 19
        %v2783 = vpop.permute.xlu0 %2782
        %2784 = vrot.lane.b32.xlu0 %v2519, 19
        %v2785 = vpop.permute.xlu0 %2784
        %2786 = vrot.lane.b32.xlu0 %v2758, 19
        %v2787 = vpop.permute.xlu0 %2786
        %2788 = vrot.lane.b32.xlu0 %v2761, 19
        %v2789 = vpop.permute.xlu0 %2788
        %v2790 = vsel %vm798, %v2779, %v2785
        %v2791 = vsel %vm798, %v2781, %v2787
        %v2792 = vsel %vm798, %v2783, %v2789
        %v2793 = vsel %vm798, %v2773, %v2779
        %v2794 = vsel %vm798, %v2775, %v2781
        %v2795 = vsel %vm798, %v2777, %v2783
        %v2796 = vsel %vm798, %v2785, %v2773
        %v2797 = vsel %vm798, %v2787, %v2775
        %v2798 = vsel %vm798, %v2789, %v2777
        %s2799 = scalar_lea.vmem [#allocation7], 8
        %v2800 = vld [vmem:[%s2799] sm:$0xff]
        %2801 = vrot.lane.b32.xlu0 %v2517, 18
        %v2802 = vpop.permute.xlu0 %2801
        %2803 = vrot.lane.b32.xlu0 %v2756, 18
        %v2804 = vpop.permute.xlu0 %2803
        %2805 = vrot.lane.b32.xlu0 %v2759, 18
        %v2806 = vpop.permute.xlu0 %2805
        %2807 = vrot.lane.b32.xlu0 %v2518, 18
        %v2808 = vpop.permute.xlu0 %2807
        %2809 = vrot.lane.b32.xlu0 %v2757, 18
        %v2810 = vpop.permute.xlu0 %2809
        %2811 = vrot.lane.b32.xlu0 %v2760, 18
        %v2812 = vpop.permute.xlu0 %2811
        %2813 = vrot.lane.b32.xlu0 %v2519, 18
        %v2814 = vpop.permute.xlu0 %2813
        %2815 = vrot.lane.b32.xlu0 %v2758, 18
        %v2816 = vpop.permute.xlu0 %2815
        %2817 = vrot.lane.b32.xlu0 %v2761, 18
        %v2818 = vpop.permute.xlu0 %2817
        %v2819 = vsel %vm828, %v2808, %v2814
        %v2820 = vsel %vm828, %v2810, %v2816
        %v2821 = vsel %vm828, %v2812, %v2818
        %v2822 = vsel %vm828, %v2802, %v2808
        %v2823 = vsel %vm828, %v2804, %v2810
        %v2824 = vsel %vm828, %v2806, %v2812
        %v2825 = vsel %vm828, %v2814, %v2802
        %v2826 = vsel %vm828, %v2816, %v2804
        %v2827 = vsel %vm828, %v2818, %v2806
        %v2829 = vsel %vm838, %v2800, 0
        %2831 = vmatprep.subr.mxu0 %v2822
        %2832 = vmatpush1.msra.mxu0 %v2825
        %2833 = vmatprep.subr.mxu0 %v2823
        %2834 = vmatpush1.msra.mxu0 %v2826
        %2835 = vmatprep.subr.mxu0 %v2824
        %2836 = vmatpush1.msra.mxu0 %v2827
        %2837 = vmatprep.subr.mxu0 0.0
        %2838 = vmatpush1.msra.mxu0 0.0
        %2839 = vmatprep.subr.mxu0 0.0
        %2840 = vmatpush1.msra.mxu0 0.0
        %2841 = vmatprep.subr.mxu0 0.0
        %2842 = vmatpush1.msra.mxu0 0.0
        %2843 = vmatprep.subr.mxu0 0.0
        %2844 = vmatpush1.msra.mxu0 0.0
        %2845 = vmatprep.subr.mxu0 0.0
        %2846 = vmatpush1.msra.mxu0 0.0
        %2847 = vmatprep.subr.mxu0 0.0
        %2848 = vmatpush1.msra.mxu0 0.0
        %2849 = vmatprep.subr.mxu0 0.0
        %2850 = vmatpush1.msra.mxu0 0.0
        %2851 = vmatprep.subr.mxu0 0.0
        %2852 = vmatpush1.msra.mxu0 0.0
        %2853 = vmatprep.subr.mxu0 0.0
        %2854 = vmatpush1.msra.mxu0 0.0
        %2855 = vmatprep.subr.mxu0 0.0
        %2856 = vmatpush1.msra.mxu0 0.0
        %2857 = vmatprep.subr.mxu0 0.0
        %2858 = vmatpush1.msra.mxu0 0.0
        %2859 = vmatprep.subr.mxu0 0.0
        %2860 = vmatpush1.msra.mxu0 0.0
        %2861 = vmatprep.subr.mxu0 0.0
        %2862 = vmatpush1.msra.mxu0 0.0
        %2863 = vmatprep.subr.mxu0 0.0
        %2864 = vmatpush1.msra.mxu0 0.0
        %2865 = vmatprep.subr.mxu0 0.0
        %2866 = vmatpush1.msra.mxu0 0.0
        %2867 = vmatprep.subr.mxu0 0.0
        %2868 = vmatpush1.msra.mxu0 0.0
        %2869 = vmatprep.subr.mxu0 0.0
        %2870 = vmatpush1.msra.mxu0 0.0
        %2871 = vmatprep.subr.mxu0 0.0
        %2872 = vmatpush1.msra.mxu0 0.0
        %2873 = vmatprep.subr.mxu0 0.0
        %2874 = vmatpush1.msra.mxu0 0.0
        %2875 = vmatprep.subr.mxu0 0.0
        %2876 = vmatpush1.msra.mxu0 0.0
        %2877 = vmatprep.subr.mxu0 0.0
        %2878 = vmatpush1.msra.mxu0 0.0
        %2879 = vmatprep.subr.mxu0 0.0
        %2880 = vmatpush1.msra.mxu0 0.0
        %2881 = vmatprep.subr.mxu0 0.0
        %2882 = vmatpush1.msra.mxu0 0.0
        %2883 = vmatprep.subr.mxu0 0.0
        %2884 = vmatpush1.msra.mxu0 0.0
        %2885 = vmatprep.subr.mxu0 0.0
        %2886 = vmatpush1.msra.mxu0 0.0
        %2887 = vmatprep.subr.mxu0 0.0
        %2888 = vmatpush1.msra.mxu0 0.0
        %2889 = vmatprep.subr.mxu0 0.0
        %2890 = vmatpush1.msra.mxu0 0.0
        %2891 = vmatprep.subr.mxu0 0.0
        %2892 = vmatpush1.msra.mxu0 0.0
        %2893 = vmatprep.subr.mxu0 0.0
        %2894 = vmatpush1.msra.mxu0 0.0
        %2895 = vmatprep.mubr.f32.mxu0 0.0
        %2896 = vmatmul.mubr.f32.gmra.mrb[0].mxu0 %v2829
        %v2897 = vpop.f32.mrb[0].mxu0
        %v2898 = vadd.f32 0.0, %v2897
        %v2899 = vpop.f32.mrb[0].mxu0
        %v2900 = vadd.f32 0.0, %v2899
        %2901 = vdwg.mxu0
        %2902 = vmatprep.subr.mxu0 0.0
        %2903 = vmatpush1.msra.mxu0 %v2819
        %2904 = vmatprep.subr.mxu0 0.0
        %2905 = vmatpush1.msra.mxu0 %v2820
        %2906 = vmatprep.subr.mxu0 0.0
        %2907 = vmatpush1.msra.mxu0 %v2821
        %2908 = vmatprep.subr.mxu0 0.0
        %2909 = vmatpush1.msra.mxu0 0.0
        %2910 = vmatprep.subr.mxu0 0.0
        %2911 = vmatpush1.msra.mxu0 0.0
        %2912 = vmatprep.subr.mxu0 0.0
        %2913 = vmatpush1.msra.mxu0 0.0
        %2914 = vmatprep.subr.mxu0 0.0
        %2915 = vmatpush1.msra.mxu0 0.0
        %2916 = vmatprep.subr.mxu0 0.0
        %2917 = vmatpush1.msra.mxu0 0.0
        %2918 = vmatprep.subr.mxu0 0.0
        %2919 = vmatpush1.msra.mxu0 0.0
        %2920 = vmatprep.subr.mxu0 0.0
        %2921 = vmatpush1.msra.mxu0 0.0
        %2922 = vmatprep.subr.mxu0 0.0
        %2923 = vmatpush1.msra.mxu0 0.0
        %2924 = vmatprep.subr.mxu0 0.0
        %2925 = vmatpush1.msra.mxu0 0.0
        %2926 = vmatprep.subr.mxu0 0.0
        %2927 = vmatpush1.msra.mxu0 0.0
        %2928 = vmatprep.subr.mxu0 0.0
        %2929 = vmatpush1.msra.mxu0 0.0
        %2930 = vmatprep.subr.mxu0 0.0
        %2931 = vmatpush1.msra.mxu0 0.0
        %2932 = vmatprep.subr.mxu0 0.0
        %2933 = vmatpush1.msra.mxu0 0.0
        %2934 = vmatprep.subr.mxu0 0.0
        %2935 = vmatpush1.msra.mxu0 0.0
        %2936 = vmatprep.subr.mxu0 0.0
        %2937 = vmatpush1.msra.mxu0 0.0
        %2938 = vmatprep.subr.mxu0 0.0
        %2939 = vmatpush1.msra.mxu0 0.0
        %2940 = vmatprep.subr.mxu0 0.0
        %2941 = vmatpush1.msra.mxu0 0.0
        %2942 = vmatprep.subr.mxu0 0.0
        %2943 = vmatpush1.msra.mxu0 0.0
        %2944 = vmatprep.subr.mxu0 0.0
        %2945 = vmatpush1.msra.mxu0 0.0
        %2946 = vmatprep.subr.mxu0 0.0
        %2947 = vmatpush1.msra.mxu0 0.0
        %2948 = vmatprep.subr.mxu0 0.0
        %2949 = vmatpush1.msra.mxu0 0.0
        %2950 = vmatprep.subr.mxu0 0.0
        %2951 = vmatpush1.msra.mxu0 0.0
        %2952 = vmatprep.subr.mxu0 0.0
        %2953 = vmatpush1.msra.mxu0 0.0
        %2954 = vmatprep.subr.mxu0 0.0
        %2955 = vmatpush1.msra.mxu0 0.0
        %2956 = vmatprep.subr.mxu0 0.0
        %2957 = vmatpush1.msra.mxu0 0.0
        %2958 = vmatprep.subr.mxu0 0.0
        %2959 = vmatpush1.msra.mxu0 0.0
        %2960 = vmatprep.subr.mxu0 0.0
        %2961 = vmatpush1.msra.mxu0 0.0
        %2962 = vmatprep.subr.mxu0 0.0
        %2963 = vmatpush1.msra.mxu0 0.0
        %2964 = vmatprep.subr.mxu0 0.0
        %2965 = vmatpush1.msra.mxu0 0.0
        %2966 = vmatprep.mubr.f32.mxu0 0.0
        %2967 = vmatmul.mubr.f32.gmra.mrb[0].mxu0 %v2829
        %v2968 = vpop.f32.mrb[0].mxu0
        %v2969 = vadd.f32 0.0, %v2968
        %v2970 = vpop.f32.mrb[0].mxu0
        %2971 = vdwg.mxu0
        %v2973 = vsel %vm838, %v2771, 0
        %2975 = vmatprep.subr.mxu0 %v2793
        %2976 = vmatpush1.msra.mxu0 %v2796
        %2977 = vmatprep.subr.mxu0 %v2794
        %2978 = vmatpush1.msra.mxu0 %v2797
        %2979 = vmatprep.subr.mxu0 %v2795
        %2980 = vmatpush1.msra.mxu0 %v2798
        %2981 = vmatprep.subr.mxu0 0.0
        %2982 = vmatpush1.msra.mxu0 0.0
        %2983 = vmatprep.subr.mxu0 0.0
        %2984 = vmatpush1.msra.mxu0 0.0
        %2985 = vmatprep.subr.mxu0 0.0
        %2986 = vmatpush1.msra.mxu0 0.0
        %2987 = vmatprep.subr.mxu0 0.0
        %2988 = vmatpush1.msra.mxu0 0.0
        %2989 = vmatprep.subr.mxu0 0.0
        %2990 = vmatpush1.msra.mxu0 0.0
        %2991 = vmatprep.subr.mxu0 0.0
        %2992 = vmatpush1.msra.mxu0 0.0
        %2993 = vmatprep.subr.mxu0 0.0
        %2994 = vmatpush1.msra.mxu0 0.0
        %2995 = vmatprep.subr.mxu0 0.0
        %2996 = vmatpush1.msra.mxu0 0.0
        %2997 = vmatprep.subr.mxu0 0.0
        %2998 = vmatpush1.msra.mxu0 0.0
        %2999 = vmatprep.subr.mxu0 0.0
        %3000 = vmatpush1.msra.mxu0 0.0
        %3001 = vmatprep.subr.mxu0 0.0
        %3002 = vmatpush1.msra.mxu0 0.0
        %3003 = vmatprep.subr.mxu0 0.0
        %3004 = vmatpush1.msra.mxu0 0.0
        %3005 = vmatprep.subr.mxu0 0.0
        %3006 = vmatpush1.msra.mxu0 0.0
        %3007 = vmatprep.subr.mxu0 0.0
        %3008 = vmatpush1.msra.mxu0 0.0
        %3009 = vmatprep.subr.mxu0 0.0
        %3010 = vmatpush1.msra.mxu0 0.0
        %3011 = vmatprep.subr.mxu0 0.0
        %3012 = vmatpush1.msra.mxu0 0.0
        %3013 = vmatprep.subr.mxu0 0.0
        %3014 = vmatpush1.msra.mxu0 0.0
        %3015 = vmatprep.subr.mxu0 0.0
        %3016 = vmatpush1.msra.mxu0 0.0
        %3017 = vmatprep.subr.mxu0 0.0
        %3018 = vmatpush1.msra.mxu0 0.0
        %3019 = vmatprep.subr.mxu0 0.0
        %3020 = vmatpush1.msra.mxu0 0.0
        %3021 = vmatprep.subr.mxu0 0.0
        %3022 = vmatpush1.msra.mxu0 0.0
        %3023 = vmatprep.subr.mxu0 0.0
        %3024 = vmatpush1.msra.mxu0 0.0
        %3025 = vmatprep.subr.mxu0 0.0
        %3026 = vmatpush1.msra.mxu0 0.0
        %3027 = vmatprep.subr.mxu0 0.0
        %3028 = vmatpush1.msra.mxu0 0.0
        %3029 = vmatprep.subr.mxu0 0.0
        %3030 = vmatpush1.msra.mxu0 0.0
        %3031 = vmatprep.subr.mxu0 0.0
        %3032 = vmatpush1.msra.mxu0 0.0
        %3033 = vmatprep.subr.mxu0 0.0
        %3034 = vmatpush1.msra.mxu0 0.0
        %3035 = vmatprep.subr.mxu0 0.0
        %3036 = vmatpush1.msra.mxu0 0.0
        %3037 = vmatprep.subr.mxu0 0.0
        %3038 = vmatpush1.msra.mxu0 0.0
        %3039 = vmatprep.mubr.f32.mxu0 0.0
        %3040 = vmatmul.mubr.f32.gmra.mrb[0].mxu0 %v2973
        %v3041 = vpop.f32.mrb[0].mxu0
        %v3042 = vadd.f32 %v2898, %v3041
        %v3043 = vpop.f32.mrb[0].mxu0
        %v3044 = vadd.f32 %v2900, %v3043
        %3045 = vdwg.mxu0
        %3046 = vmatprep.subr.mxu0 0.0
        %3047 = vmatpush1.msra.mxu0 %v2790
        %3048 = vmatprep.subr.mxu0 0.0
        %3049 = vmatpush1.msra.mxu0 %v2791
        %3050 = vmatprep.subr.mxu0 0.0
        %3051 = vmatpush1.msra.mxu0 %v2792
        %3052 = vmatprep.subr.mxu0 0.0
        %3053 = vmatpush1.msra.mxu0 0.0
        %3054 = vmatprep.subr.mxu0 0.0
        %3055 = vmatpush1.msra.mxu0 0.0
        %3056 = vmatprep.subr.mxu0 0.0
        %3057 = vmatpush1.msra.mxu0 0.0
        %3058 = vmatprep.subr.mxu0 0.0
        %3059 = vmatpush1.msra.mxu0 0.0
        %3060 = vmatprep.subr.mxu0 0.0
        %3061 = vmatpush1.msra.mxu0 0.0
        %3062 = vmatprep.subr.mxu0 0.0
        %3063 = vmatpush1.msra.mxu0 0.0
        %3064 = vmatprep.subr.mxu0 0.0
        %3065 = vmatpush1.msra.mxu0 0.0
        %3066 = vmatprep.subr.mxu0 0.0
        %3067 = vmatpush1.msra.mxu0 0.0
        %3068 = vmatprep.subr.mxu0 0.0
        %3069 = vmatpush1.msra.mxu0 0.0
        %3070 = vmatprep.subr.mxu0 0.0
        %3071 = vmatpush1.msra.mxu0 0.0
        %3072 = vmatprep.subr.mxu0 0.0
        %3073 = vmatpush1.msra.mxu0 0.0
        %3074 = vmatprep.subr.mxu0 0.0
        %3075 = vmatpush1.msra.mxu0 0.0
        %3076 = vmatprep.subr.mxu0 0.0
        %3077 = vmatpush1.msra.mxu0 0.0
        %3078 = vmatprep.subr.mxu0 0.0
        %3079 = vmatpush1.msra.mxu0 0.0
        %3080 = vmatprep.subr.mxu0 0.0
        %3081 = vmatpush1.msra.mxu0 0.0
        %3082 = vmatprep.subr.mxu0 0.0
        %3083 = vmatpush1.msra.mxu0 0.0
        %3084 = vmatprep.subr.mxu0 0.0
        %3085 = vmatpush1.msra.mxu0 0.0
        %3086 = vmatprep.subr.mxu0 0.0
        %3087 = vmatpush1.msra.mxu0 0.0
        %3088 = vmatprep.subr.mxu0 0.0
        %3089 = vmatpush1.msra.mxu0 0.0
        %3090 = vmatprep.subr.mxu0 0.0
        %3091 = vmatpush1.msra.mxu0 0.0
        %3092 = vmatprep.subr.mxu0 0.0
        %3093 = vmatpush1.msra.mxu0 0.0
        %3094 = vmatprep.subr.mxu0 0.0
        %3095 = vmatpush1.msra.mxu0 0.0
        %3096 = vmatprep.subr.mxu0 0.0
        %3097 = vmatpush1.msra.mxu0 0.0
        %3098 = vmatprep.subr.mxu0 0.0
        %3099 = vmatpush1.msra.mxu0 0.0
        %3100 = vmatprep.subr.mxu0 0.0
        %3101 = vmatpush1.msra.mxu0 0.0
        %3102 = vmatprep.subr.mxu0 0.0
        %3103 = vmatpush1.msra.mxu0 0.0
        %3104 = vmatprep.subr.mxu0 0.0
        %3105 = vmatpush1.msra.mxu0 0.0
        %3106 = vmatprep.subr.mxu0 0.0
        %3107 = vmatpush1.msra.mxu0 0.0
        %3108 = vmatprep.subr.mxu0 0.0
        %3109 = vmatpush1.msra.mxu0 0.0
        %3110 = vmatprep.mubr.f32.mxu0 0.0
        %3111 = vmatmul.mubr.f32.gmra.mrb[0].mxu0 %v2973
        %v3112 = vpop.f32.mrb[0].mxu0
        %v3113 = vadd.f32 %v2969, %v3112
        %v3114 = vpop.f32.mrb[0].mxu0
        %3115 = vdwg.mxu0
        %s3116 = scalar_lea.vmem [#allocation7], 16
        %v3117 = vld [vmem:[%s3116] sm:$0xff]
        %3118 = vrot.lane.b32.xlu0 %v2517, 17
        %v3119 = vpop.permute.xlu0 %3118
        %3120 = vrot.lane.b32.xlu0 %v2756, 17
        %v3121 = vpop.permute.xlu0 %3120
        %3122 = vrot.lane.b32.xlu0 %v2759, 17
        %v3123 = vpop.permute.xlu0 %3122
        %3124 = vrot.lane.b32.xlu0 %v2518, 17
        %v3125 = vpop.permute.xlu0 %3124
        %3126 = vrot.lane.b32.xlu0 %v2757, 17
        %v3127 = vpop.permute.xlu0 %3126
        %3128 = vrot.lane.b32.xlu0 %v2760, 17
        %v3129 = vpop.permute.xlu0 %3128
        %3130 = vrot.lane.b32.xlu0 %v2519, 17
        %v3131 = vpop.permute.xlu0 %3130
        %3132 = vrot.lane.b32.xlu0 %v2758, 17
        %v3133 = vpop.permute.xlu0 %3132
        %3134 = vrot.lane.b32.xlu0 %v2761, 17
        %v3135 = vpop.permute.xlu0 %3134
        %v3136 = vsel %vm1147, %v3125, %v3131
        %v3137 = vsel %vm1147, %v3127, %v3133
        %v3138 = vsel %vm1147, %v3129, %v3135
        %v3139 = vsel %vm1147, %v3119, %v3125
        %v3140 = vsel %vm1147, %v3121, %v3127
        %v3141 = vsel %vm1147, %v3123, %v3129
        %v3142 = vsel %vm1147, %v3131, %v3119
        %v3143 = vsel %vm1147, %v3133, %v3121
        %v3144 = vsel %vm1147, %v3135, %v3123
        %v3146 = vsel %vm838, %v3117, 0
        %3148 = vmatprep.subr.mxu0 %v3139
        %3149 = vmatpush1.msra.mxu0 %v3142
        %3150 = vmatprep.subr.mxu0 %v3140
        %3151 = vmatpush1.msra.mxu0 %v3143
        %3152 = vmatprep.subr.mxu0 %v3141
        %3153 = vmatpush1.msra.mxu0 %v3144
        %3154 = vmatprep.subr.mxu0 0.0
        %3155 = vmatpush1.msra.mxu0 0.0
        %3156 = vmatprep.subr.mxu0 0.0
        %3157 = vmatpush1.msra.mxu0 0.0
        %3158 = vmatprep.subr.mxu0 0.0
        %3159 = vmatpush1.msra.mxu0 0.0
        %3160 = vmatprep.subr.mxu0 0.0
        %3161 = vmatpush1.msra.mxu0 0.0
        %3162 = vmatprep.subr.mxu0 0.0
        %3163 = vmatpush1.msra.mxu0 0.0
        %3164 = vmatprep.subr.mxu0 0.0
        %3165 = vmatpush1.msra.mxu0 0.0
        %3166 = vmatprep.subr.mxu0 0.0
        %3167 = vmatpush1.msra.mxu0 0.0
        %3168 = vmatprep.subr.mxu0 0.0
        %3169 = vmatpush1.msra.mxu0 0.0
        %3170 = vmatprep.subr.mxu0 0.0
        %3171 = vmatpush1.msra.mxu0 0.0
        %3172 = vmatprep.subr.mxu0 0.0
        %3173 = vmatpush1.msra.mxu0 0.0
        %3174 = vmatprep.subr.mxu0 0.0
        %3175 = vmatpush1.msra.mxu0 0.0
        %3176 = vmatprep.subr.mxu0 0.0
        %3177 = vmatpush1.msra.mxu0 0.0
        %3178 = vmatprep.subr.mxu0 0.0
        %3179 = vmatpush1.msra.mxu0 0.0
        %3180 = vmatprep.subr.mxu0 0.0
        %3181 = vmatpush1.msra.mxu0 0.0
        %3182 = vmatprep.subr.mxu0 0.0
        %3183 = vmatpush1.msra.mxu0 0.0
        %3184 = vmatprep.subr.mxu0 0.0
        %3185 = vmatpush1.msra.mxu0 0.0
        %3186 = vmatprep.subr.mxu0 0.0
        %3187 = vmatpush1.msra.mxu0 0.0
        %3188 = vmatprep.subr.mxu0 0.0
        %3189 = vmatpush1.msra.mxu0 0.0
        %3190 = vmatprep.subr.mxu0 0.0
        %3191 = vmatpush1.msra.mxu0 0.0
        %3192 = vmatprep.subr.mxu0 0.0
        %3193 = vmatpush1.msra.mxu0 0.0
        %3194 = vmatprep.subr.mxu0 0.0
        %3195 = vmatpush1.msra.mxu0 0.0
        %3196 = vmatprep.subr.mxu0 0.0
        %3197 = vmatpush1.msra.mxu0 0.0
        %3198 = vmatprep.subr.mxu0 0.0
        %3199 = vmatpush1.msra.mxu0 0.0
        %3200 = vmatprep.subr.mxu0 0.0
        %3201 = vmatpush1.msra.mxu0 0.0
        %3202 = vmatprep.subr.mxu0 0.0
        %3203 = vmatpush1.msra.mxu0 0.0
        %3204 = vmatprep.subr.mxu0 0.0
        %3205 = vmatpush1.msra.mxu0 0.0
        %3206 = vmatprep.subr.mxu0 0.0
        %3207 = vmatpush1.msra.mxu0 0.0
        %3208 = vmatprep.subr.mxu0 0.0
        %3209 = vmatpush1.msra.mxu0 0.0
        %3210 = vmatprep.subr.mxu0 0.0
        %3211 = vmatpush1.msra.mxu0 0.0
        %3212 = vmatprep.mubr.f32.mxu0 0.0
        %3213 = vmatmul.mubr.f32.gmra.mrb[0].mxu0 %v3146
        %v3214 = vpop.f32.mrb[0].mxu0
        %v3215 = vadd.f32 0.0, %v3214
        %v3216 = vpop.f32.mrb[0].mxu0
        %v3217 = vadd.f32 0.0, %v3216
        %3218 = vdwg.mxu0
        %3219 = vmatprep.subr.mxu0 0.0
        %3220 = vmatpush1.msra.mxu0 %v3136
        %3221 = vmatprep.subr.mxu0 0.0
        %3222 = vmatpush1.msra.mxu0 %v3137
        %3223 = vmatprep.subr.mxu0 0.0
        %3224 = vmatpush1.msra.mxu0 %v3138
        %3225 = vmatprep.subr.mxu0 0.0
        %3226 = vmatpush1.msra.mxu0 0.0
        %3227 = vmatprep.subr.mxu0 0.0
        %3228 = vmatpush1.msra.mxu0 0.0
        %3229 = vmatprep.subr.mxu0 0.0
        %3230 = vmatpush1.msra.mxu0 0.0
        %3231 = vmatprep.subr.mxu0 0.0
        %3232 = vmatpush1.msra.mxu0 0.0
        %3233 = vmatprep.subr.mxu0 0.0
        %3234 = vmatpush1.msra.mxu0 0.0
        %3235 = vmatprep.subr.mxu0 0.0
        %3236 = vmatpush1.msra.mxu0 0.0
        %3237 = vmatprep.subr.mxu0 0.0
        %3238 = vmatpush1.msra.mxu0 0.0
        %3239 = vmatprep.subr.mxu0 0.0
        %3240 = vmatpush1.msra.mxu0 0.0
        %3241 = vmatprep.subr.mxu0 0.0
        %3242 = vmatpush1.msra.mxu0 0.0
        %3243 = vmatprep.subr.mxu0 0.0
        %3244 = vmatpush1.msra.mxu0 0.0
        %3245 = vmatprep.subr.mxu0 0.0
        %3246 = vmatpush1.msra.mxu0 0.0
        %3247 = vmatprep.subr.mxu0 0.0
        %3248 = vmatpush1.msra.mxu0 0.0
        %3249 = vmatprep.subr.mxu0 0.0
        %3250 = vmatpush1.msra.mxu0 0.0
        %3251 = vmatprep.subr.mxu0 0.0
        %3252 = vmatpush1.msra.mxu0 0.0
        %3253 = vmatprep.subr.mxu0 0.0
        %3254 = vmatpush1.msra.mxu0 0.0
        %3255 = vmatprep.subr.mxu0 0.0
        %3256 = vmatpush1.msra.mxu0 0.0
        %3257 = vmatprep.subr.mxu0 0.0
        %3258 = vmatpush1.msra.mxu0 0.0
        %3259 = vmatprep.subr.mxu0 0.0
        %3260 = vmatpush1.msra.mxu0 0.0
        %3261 = vmatprep.subr.mxu0 0.0
        %3262 = vmatpush1.msra.mxu0 0.0
        %3263 = vmatprep.subr.mxu0 0.0
        %3264 = vmatpush1.msra.mxu0 0.0
        %3265 = vmatprep.subr.mxu0 0.0
        %3266 = vmatpush1.msra.mxu0 0.0
        %3267 = vmatprep.subr.mxu0 0.0
        %3268 = vmatpush1.msra.mxu0 0.0
        %3269 = vmatprep.subr.mxu0 0.0
        %3270 = vmatpush1.msra.mxu0 0.0
        %3271 = vmatprep.subr.mxu0 0.0
        %3272 = vmatpush1.msra.mxu0 0.0
        %3273 = vmatprep.subr.mxu0 0.0
        %3274 = vmatpush1.msra.mxu0 0.0
        %3275 = vmatprep.subr.mxu0 0.0
        %3276 = vmatpush1.msra.mxu0 0.0
        %3277 = vmatprep.subr.mxu0 0.0
        %3278 = vmatpush1.msra.mxu0 0.0
        %3279 = vmatprep.subr.mxu0 0.0
        %3280 = vmatpush1.msra.mxu0 0.0
        %3281 = vmatprep.subr.mxu0 0.0
        %3282 = vmatpush1.msra.mxu0 0.0
        %3283 = vmatprep.mubr.f32.mxu0 0.0
        %3284 = vmatmul.mubr.f32.gmra.mrb[0].mxu0 %v3146
        %v3285 = vpop.f32.mrb[0].mxu0
        %v3286 = vadd.f32 0.0, %v3285
        %v3287 = vpop.f32.mrb[0].mxu0
        %3288 = vdwg.mxu0
        %v3289 = vadd.f32 %v3042, %v3215
        %v3290 = vadd.f32 %v3044, %v3217
        %v3291 = vadd.f32 %v3113, %v3286
        %s3292 = scalar_lea.vmem [#allocation7], 24
        %v3293 = vld [vmem:[%s3292] sm:$0xff]
        %3294 = vrot.lane.b32.xlu0 %v2517, 1
        %v3295 = vpop.permute.xlu0 %3294
        %3296 = vrot.lane.b32.xlu0 %v2756, 1
        %v3297 = vpop.permute.xlu0 %3296
        %3298 = vrot.lane.b32.xlu0 %v2759, 1
        %v3299 = vpop.permute.xlu0 %3298
        %3300 = vrot.lane.b32.xlu0 %v2518, 1
        %v3301 = vpop.permute.xlu0 %3300
        %3302 = vrot.lane.b32.xlu0 %v2757, 1
        %v3303 = vpop.permute.xlu0 %3302
        %3304 = vrot.lane.b32.xlu0 %v2760, 1
        %v3305 = vpop.permute.xlu0 %3304
        %3306 = vrot.lane.b32.xlu0 %v2519, 1
        %v3307 = vpop.permute.xlu0 %3306
        %3308 = vrot.lane.b32.xlu0 %v2758, 1
        %v3309 = vpop.permute.xlu0 %3308
        %3310 = vrot.lane.b32.xlu0 %v2761, 1
        %v3311 = vpop.permute.xlu0 %3310
        %v3312 = vsel %vm1324, %v3301, %v3307
        %v3313 = vsel %vm1324, %v3303, %v3309
        %v3314 = vsel %vm1324, %v3305, %v3311
        %v3315 = vsel %vm1324, %v3295, %v3301
        %v3316 = vsel %vm1324, %v3297, %v3303
        %v3317 = vsel %vm1324, %v3299, %v3305
        %v3318 = vsel %vm1324, %v3307, %v3295
        %v3319 = vsel %vm1324, %v3309, %v3297
        %v3320 = vsel %vm1324, %v3311, %v3299
        %v3322 = vsel %vm838, %v3293, 0
        %3324 = vmatprep.subr.mxu0 %v3315
        %3325 = vmatpush1.msra.mxu0 %v3318
        %3326 = vmatprep.subr.mxu0 %v3316
        %3327 = vmatpush1.msra.mxu0 %v3319
        %3328 = vmatprep.subr.mxu0 %v3317
        %3329 = vmatpush1.msra.mxu0 %v3320
        %3330 = vmatprep.subr.mxu0 0.0
        %3331 = vmatpush1.msra.mxu0 0.0
        %3332 = vmatprep.subr.mxu0 0.0
        %3333 = vmatpush1.msra.mxu0 0.0
        %3334 = vmatprep.subr.mxu0 0.0
        %3335 = vmatpush1.msra.mxu0 0.0
        %3336 = vmatprep.subr.mxu0 0.0
        %3337 = vmatpush1.msra.mxu0 0.0
        %3338 = vmatprep.subr.mxu0 0.0
        %3339 = vmatpush1.msra.mxu0 0.0
        %3340 = vmatprep.subr.mxu0 0.0
        %3341 = vmatpush1.msra.mxu0 0.0
        %3342 = vmatprep.subr.mxu0 0.0
        %3343 = vmatpush1.msra.mxu0 0.0
        %3344 = vmatprep.subr.mxu0 0.0
        %3345 = vmatpush1.msra.mxu0 0.0
        %3346 = vmatprep.subr.mxu0 0.0
        %3347 = vmatpush1.msra.mxu0 0.0
        %3348 = vmatprep.subr.mxu0 0.0
        %3349 = vmatpush1.msra.mxu0 0.0
        %3350 = vmatprep.subr.mxu0 0.0
        %3351 = vmatpush1.msra.mxu0 0.0
        %3352 = vmatprep.subr.mxu0 0.0
        %3353 = vmatpush1.msra.mxu0 0.0
        %3354 = vmatprep.subr.mxu0 0.0
        %3355 = vmatpush1.msra.mxu0 0.0
        %3356 = vmatprep.subr.mxu0 0.0
        %3357 = vmatpush1.msra.mxu0 0.0
        %3358 = vmatprep.subr.mxu0 0.0
        %3359 = vmatpush1.msra.mxu0 0.0
        %3360 = vmatprep.subr.mxu0 0.0
        %3361 = vmatpush1.msra.mxu0 0.0
        %3362 = vmatprep.subr.mxu0 0.0
        %3363 = vmatpush1.msra.mxu0 0.0
        %3364 = vmatprep.subr.mxu0 0.0
        %3365 = vmatpush1.msra.mxu0 0.0
        %3366 = vmatprep.subr.mxu0 0.0
        %3367 = vmatpush1.msra.mxu0 0.0
        %3368 = vmatprep.subr.mxu0 0.0
        %3369 = vmatpush1.msra.mxu0 0.0
        %3370 = vmatprep.subr.mxu0 0.0
        %3371 = vmatpush1.msra.mxu0 0.0
        %3372 = vmatprep.subr.mxu0 0.0
        %3373 = vmatpush1.msra.mxu0 0.0
        %3374 = vmatprep.subr.mxu0 0.0
        %3375 = vmatpush1.msra.mxu0 0.0
        %3376 = vmatprep.subr.mxu0 0.0
        %3377 = vmatpush1.msra.mxu0 0.0
        %3378 = vmatprep.subr.mxu0 0.0
        %3379 = vmatpush1.msra.mxu0 0.0
        %3380 = vmatprep.subr.mxu0 0.0
        %3381 = vmatpush1.msra.mxu0 0.0
        %3382 = vmatprep.subr.mxu0 0.0
        %3383 = vmatpush1.msra.mxu0 0.0
        %3384 = vmatprep.subr.mxu0 0.0
        %3385 = vmatpush1.msra.mxu0 0.0
        %3386 = vmatprep.subr.mxu0 0.0
        %3387 = vmatpush1.msra.mxu0 0.0
        %3388 = vmatprep.mubr.f32.mxu0 0.0
        %3389 = vmatmul.mubr.f32.gmra.mrb[0].mxu0 %v3322
        %v3390 = vpop.f32.mrb[0].mxu0
        %v3391 = vadd.f32 0.0, %v3390
        %v3392 = vpop.f32.mrb[0].mxu0
        %v3393 = vadd.f32 0.0, %v3392
        %3394 = vdwg.mxu0
        %3395 = vmatprep.subr.mxu0 0.0
        %3396 = vmatpush1.msra.mxu0 %v3312
        %3397 = vmatprep.subr.mxu0 0.0
        %3398 = vmatpush1.msra.mxu0 %v3313
        %3399 = vmatprep.subr.mxu0 0.0
        %3400 = vmatpush1.msra.mxu0 %v3314
        %3401 = vmatprep.subr.mxu0 0.0
        %3402 = vmatpush1.msra.mxu0 0.0
        %3403 = vmatprep.subr.mxu0 0.0
        %3404 = vmatpush1.msra.mxu0 0.0
        %3405 = vmatprep.subr.mxu0 0.0
        %3406 = vmatpush1.msra.mxu0 0.0
        %3407 = vmatprep.subr.mxu0 0.0
        %3408 = vmatpush1.msra.mxu0 0.0
        %3409 = vmatprep.subr.mxu0 0.0
        %3410 = vmatpush1.msra.mxu0 0.0
        %3411 = vmatprep.subr.mxu0 0.0
        %3412 = vmatpush1.msra.mxu0 0.0
        %3413 = vmatprep.subr.mxu0 0.0
        %3414 = vmatpush1.msra.mxu0 0.0
        %3415 = vmatprep.subr.mxu0 0.0
        %3416 = vmatpush1.msra.mxu0 0.0
        %3417 = vmatprep.subr.mxu0 0.0
        %3418 = vmatpush1.msra.mxu0 0.0
        %3419 = vmatprep.subr.mxu0 0.0
        %3420 = vmatpush1.msra.mxu0 0.0
        %3421 = vmatprep.subr.mxu0 0.0
        %3422 = vmatpush1.msra.mxu0 0.0
        %3423 = vmatprep.subr.mxu0 0.0
        %3424 = vmatpush1.msra.mxu0 0.0
        %3425 = vmatprep.subr.mxu0 0.0
        %3426 = vmatpush1.msra.mxu0 0.0
        %3427 = vmatprep.subr.mxu0 0.0
        %3428 = vmatpush1.msra.mxu0 0.0
        %3429 = vmatprep.subr.mxu0 0.0
        %3430 = vmatpush1.msra.mxu0 0.0
        %3431 = vmatprep.subr.mxu0 0.0
        %3432 = vmatpush1.msra.mxu0 0.0
        %3433 = vmatprep.subr.mxu0 0.0
        %3434 = vmatpush1.msra.mxu0 0.0
        %3435 = vmatprep.subr.mxu0 0.0
        %3436 = vmatpush1.msra.mxu0 0.0
        %3437 = vmatprep.subr.mxu0 0.0
        %3438 = vmatpush1.msra.mxu0 0.0
        %3439 = vmatprep.subr.mxu0 0.0
        %3440 = vmatpush1.msra.mxu0 0.0
        %3441 = vmatprep.subr.mxu0 0.0
        %3442 = vmatpush1.msra.mxu0 0.0
        %3443 = vmatprep.subr.mxu0 0.0
        %3444 = vmatpush1.msra.mxu0 0.0
        %3445 = vmatprep.subr.mxu0 0.0
        %3446 = vmatpush1.msra.mxu0 0.0
        %3447 = vmatprep.subr.mxu0 0.0
        %3448 = vmatpush1.msra.mxu0 0.0
        %3449 = vmatprep.subr.mxu0 0.0
        %3450 = vmatpush1.msra.mxu0 0.0
        %3451 = vmatprep.subr.mxu0 0.0
        %3452 = vmatpush1.msra.mxu0 0.0
        %3453 = vmatprep.subr.mxu0 0.0
        %3454 = vmatpush1.msra.mxu0 0.0
        %3455 = vmatprep.subr.mxu0 0.0
        %3456 = vmatpush1.msra.mxu0 0.0
        %3457 = vmatprep.subr.mxu0 0.0
        %3458 = vmatpush1.msra.mxu0 0.0
        %3459 = vmatprep.mubr.f32.mxu0 0.0
        %3460 = vmatmul.mubr.f32.gmra.mrb[0].mxu0 %v3322
        %v3461 = vpop.f32.mrb[0].mxu0
        %v3462 = vadd.f32 0.0, %v3461
        %v3463 = vpop.f32.mrb[0].mxu0
        %3464 = vdwg.mxu0
        %v3465 = vadd.f32 %v3289, %v3391
        %v3466 = vadd.f32 %v3290, %v3393
        %v3467 = vadd.f32 %v3291, %v3462
        %s3468 = scalar_lea.vmem [#allocation7], 32
        %v3469 = vld [vmem:[%s3468] sm:$0xff]
        %v3471 = vsel %vm838, %v3469, 0
        %3473 = vmatprep.subr.mxu0 %v2518
        %3474 = vmatpush1.msra.mxu0 %v2517
        %3475 = vmatprep.subr.mxu0 %v2757
        %3476 = vmatpush1.msra.mxu0 %v2756
        %3477 = vmatprep.subr.mxu0 %v2760
        %3478 = vmatpush1.msra.mxu0 %v2759
        %3479 = vmatprep.subr.mxu0 0.0
        %3480 = vmatpush1.msra.mxu0 0.0
        %3481 = vmatprep.subr.mxu0 0.0
        %3482 = vmatpush1.msra.mxu0 0.0
        %3483 = vmatprep.subr.mxu0 0.0
        %3484 = vmatpush1.msra.mxu0 0.0
        %3485 = vmatprep.subr.mxu0 0.0
        %3486 = vmatpush1.msra.mxu0 0.0
        %3487 = vmatprep.subr.mxu0 0.0
        %3488 = vmatpush1.msra.mxu0 0.0
        %3489 = vmatprep.subr.mxu0 0.0
        %3490 = vmatpush1.msra.mxu0 0.0
        %3491 = vmatprep.subr.mxu0 0.0
        %3492 = vmatpush1.msra.mxu0 0.0
        %3493 = vmatprep.subr.mxu0 0.0
        %3494 = vmatpush1.msra.mxu0 0.0
        %3495 = vmatprep.subr.mxu0 0.0
        %3496 = vmatpush1.msra.mxu0 0.0
        %3497 = vmatprep.subr.mxu0 0.0
        %3498 = vmatpush1.msra.mxu0 0.0
        %3499 = vmatprep.subr.mxu0 0.0
        %3500 = vmatpush1.msra.mxu0 0.0
        %3501 = vmatprep.subr.mxu0 0.0
        %3502 = vmatpush1.msra.mxu0 0.0
        %3503 = vmatprep.subr.mxu0 0.0
        %3504 = vmatpush1.msra.mxu0 0.0
        %3505 = vmatprep.subr.mxu0 0.0
        %3506 = vmatpush1.msra.mxu0 0.0
        %3507 = vmatprep.subr.mxu0 0.0
        %3508 = vmatpush1.msra.mxu0 0.0
        %3509 = vmatprep.subr.mxu0 0.0
        %3510 = vmatpush1.msra.mxu0 0.0
        %3511 = vmatprep.subr.mxu0 0.0
        %3512 = vmatpush1.msra.mxu0 0.0
        %3513 = vmatprep.subr.mxu0 0.0
        %3514 = vmatpush1.msra.mxu0 0.0
        %3515 = vmatprep.subr.mxu0 0.0
        %3516 = vmatpush1.msra.mxu0 0.0
        %3517 = vmatprep.subr.mxu0 0.0
        %3518 = vmatpush1.msra.mxu0 0.0
        %3519 = vmatprep.subr.mxu0 0.0
        %3520 = vmatpush1.msra.mxu0 0.0
        %3521 = vmatprep.subr.mxu0 0.0
        %3522 = vmatpush1.msra.mxu0 0.0
        %3523 = vmatprep.subr.mxu0 0.0
        %3524 = vmatpush1.msra.mxu0 0.0
        %3525 = vmatprep.subr.mxu0 0.0
        %3526 = vmatpush1.msra.mxu0 0.0
        %3527 = vmatprep.subr.mxu0 0.0
        %3528 = vmatpush1.msra.mxu0 0.0
        %3529 = vmatprep.subr.mxu0 0.0
        %3530 = vmatpush1.msra.mxu0 0.0
        %3531 = vmatprep.subr.mxu0 0.0
        %3532 = vmatpush1.msra.mxu0 0.0
        %3533 = vmatprep.subr.mxu0 0.0
        %3534 = vmatpush1.msra.mxu0 0.0
        %3535 = vmatprep.subr.mxu0 0.0
        %3536 = vmatpush1.msra.mxu0 0.0
        %3537 = vmatprep.mubr.f32.mxu0 0.0
        %3538 = vmatmul.mubr.f32.gmra.mrb[0].mxu0 %v3471
        %v3539 = vpop.f32.mrb[0].mxu0
        %v3540 = vadd.f32 0.0, %v3539
        %v3541 = vpop.f32.mrb[0].mxu0
        %v3542 = vadd.f32 0.0, %v3541
        %3543 = vdwg.mxu0
        %3544 = vmatprep.subr.mxu0 0.0
        %3545 = vmatpush1.msra.mxu0 %v2519
        %3546 = vmatprep.subr.mxu0 0.0
        %3547 = vmatpush1.msra.mxu0 %v2758
        %3548 = vmatprep.subr.mxu0 0.0
        %3549 = vmatpush1.msra.mxu0 %v2761
        %3550 = vmatprep.subr.mxu0 0.0
        %3551 = vmatpush1.msra.mxu0 0.0
        %3552 = vmatprep.subr.mxu0 0.0
        %3553 = vmatpush1.msra.mxu0 0.0
        %3554 = vmatprep.subr.mxu0 0.0
        %3555 = vmatpush1.msra.mxu0 0.0
        %3556 = vmatprep.subr.mxu0 0.0
        %3557 = vmatpush1.msra.mxu0 0.0
        %3558 = vmatprep.subr.mxu0 0.0
        %3559 = vmatpush1.msra.mxu0 0.0
        %3560 = vmatprep.subr.mxu0 0.0
        %3561 = vmatpush1.msra.mxu0 0.0
        %3562 = vmatprep.subr.mxu0 0.0
        %3563 = vmatpush1.msra.mxu0 0.0
        %3564 = vmatprep.subr.mxu0 0.0
        %3565 = vmatpush1.msra.mxu0 0.0
        %3566 = vmatprep.subr.mxu0 0.0
        %3567 = vmatpush1.msra.mxu0 0.0
        %3568 = vmatprep.subr.mxu0 0.0
        %3569 = vmatpush1.msra.mxu0 0.0
        %3570 = vmatprep.subr.mxu0 0.0
        %3571 = vmatpush1.msra.mxu0 0.0
        %3572 = vmatprep.subr.mxu0 0.0
        %3573 = vmatpush1.msra.mxu0 0.0
        %3574 = vmatprep.subr.mxu0 0.0
        %3575 = vmatpush1.msra.mxu0 0.0
        %3576 = vmatprep.subr.mxu0 0.0
        %3577 = vmatpush1.msra.mxu0 0.0
        %3578 = vmatprep.subr.mxu0 0.0
        %3579 = vmatpush1.msra.mxu0 0.0
        %3580 = vmatprep.subr.mxu0 0.0
        %3581 = vmatpush1.msra.mxu0 0.0
        %3582 = vmatprep.subr.mxu0 0.0
        %3583 = vmatpush1.msra.mxu0 0.0
        %3584 = vmatprep.subr.mxu0 0.0
        %3585 = vmatpush1.msra.mxu0 0.0
        %3586 = vmatprep.subr.mxu0 0.0
        %3587 = vmatpush1.msra.mxu0 0.0
        %3588 = vmatprep.subr.mxu0 0.0
        %3589 = vmatpush1.msra.mxu0 0.0
        %3590 = vmatprep.subr.mxu0 0.0
        %3591 = vmatpush1.msra.mxu0 0.0
        %3592 = vmatprep.subr.mxu0 0.0
        %3593 = vmatpush1.msra.mxu0 0.0
        %3594 = vmatprep.subr.mxu0 0.0
        %3595 = vmatpush1.msra.mxu0 0.0
        %3596 = vmatprep.subr.mxu0 0.0
        %3597 = vmatpush1.msra.mxu0 0.0
        %3598 = vmatprep.subr.mxu0 0.0
        %3599 = vmatpush1.msra.mxu0 0.0
        %3600 = vmatprep.subr.mxu0 0.0
        %3601 = vmatpush1.msra.mxu0 0.0
        %3602 = vmatprep.subr.mxu0 0.0
        %3603 = vmatpush1.msra.mxu0 0.0
        %3604 = vmatprep.subr.mxu0 0.0
        %3605 = vmatpush1.msra.mxu0 0.0
        %3606 = vmatprep.subr.mxu0 0.0
        %3607 = vmatpush1.msra.mxu0 0.0
        %3608 = vmatprep.mubr.f32.mxu0 0.0
        %3609 = vmatmul.mubr.f32.gmra.mrb[0].mxu0 %v3471
        %v3610 = vpop.f32.mrb[0].mxu0
        %v3611 = vadd.f32 0.0, %v3610
        %v3612 = vpop.f32.mrb[0].mxu0
        %3613 = vdwg.mxu0
        %v3614 = vadd.f32 %v3465, %v3540
        %v3615 = vadd.f32 %v3466, %v3542
        %v3616 = vadd.f32 %v3467, %v3611
        %s3617 = scalar_lea.vmem [#allocation7], 40
        %v3618 = vld [vmem:[%s3617] sm:$0xff]
        %3619 = vrot.lane.b32.xlu0 %v2517, 127
        %v3620 = vpop.permute.xlu0 %3619
        %3621 = vrot.lane.b32.xlu0 %v2756, 127
        %v3622 = vpop.permute.xlu0 %3621
        %3623 = vrot.lane.b32.xlu0 %v2759, 127
        %v3624 = vpop.permute.xlu0 %3623
        %3625 = vrot.lane.b32.xlu0 %v2518, 127
        %v3626 = vpop.permute.xlu0 %3625
        %3627 = vrot.lane.b32.xlu0 %v2757, 127
        %v3628 = vpop.permute.xlu0 %3627
        %3629 = vrot.lane.b32.xlu0 %v2760, 127
        %v3630 = vpop.permute.xlu0 %3629
        %3631 = vrot.lane.b32.xlu0 %v2519, 127
        %v3632 = vpop.permute.xlu0 %3631
        %3633 = vrot.lane.b32.xlu0 %v2758, 127
        %v3634 = vpop.permute.xlu0 %3633
        %3635 = vrot.lane.b32.xlu0 %v2761, 127
        %v3636 = vpop.permute.xlu0 %3635
        %v3637 = vsel %vm1650, %v3626, %v3632
        %v3638 = vsel %vm1650, %v3628, %v3634
        %v3639 = vsel %vm1650, %v3630, %v3636
        %v3640 = vsel %vm1650, %v3620, %v3626
        %v3641 = vsel %vm1650, %v3622, %v3628
        %v3642 = vsel %vm1650, %v3624, %v3630
        %v3643 = vsel %vm1650, %v3632, %v3620
        %v3644 = vsel %vm1650, %v3634, %v3622
        %v3645 = vsel %vm1650, %v3636, %v3624
        %v3647 = vsel %vm838, %v3618, 0
        %3649 = vmatprep.subr.mxu0 %v3637
        %3650 = vmatpush1.msra.mxu0 %v3640
        %3651 = vmatprep.subr.mxu0 %v3638
        %3652 = vmatpush1.msra.mxu0 %v3641
        %3653 = vmatprep.subr.mxu0 %v3639
        %3654 = vmatpush1.msra.mxu0 %v3642
        %3655 = vmatprep.subr.mxu0 0.0
        %3656 = vmatpush1.msra.mxu0 0.0
        %3657 = vmatprep.subr.mxu0 0.0
        %3658 = vmatpush1.msra.mxu0 0.0
        %3659 = vmatprep.subr.mxu0 0.0
        %3660 = vmatpush1.msra.mxu0 0.0
        %3661 = vmatprep.subr.mxu0 0.0
        %3662 = vmatpush1.msra.mxu0 0.0
        %3663 = vmatprep.subr.mxu0 0.0
        %3664 = vmatpush1.msra.mxu0 0.0
        %3665 = vmatprep.subr.mxu0 0.0
        %3666 = vmatpush1.msra.mxu0 0.0
        %3667 = vmatprep.subr.mxu0 0.0
        %3668 = vmatpush1.msra.mxu0 0.0
        %3669 = vmatprep.subr.mxu0 0.0
        %3670 = vmatpush1.msra.mxu0 0.0
        %3671 = vmatprep.subr.mxu0 0.0
        %3672 = vmatpush1.msra.mxu0 0.0
        %3673 = vmatprep.subr.mxu0 0.0
        %3674 = vmatpush1.msra.mxu0 0.0
        %3675 = vmatprep.subr.mxu0 0.0
        %3676 = vmatpush1.msra.mxu0 0.0
        %3677 = vmatprep.subr.mxu0 0.0
        %3678 = vmatpush1.msra.mxu0 0.0
        %3679 = vmatprep.subr.mxu0 0.0
        %3680 = vmatpush1.msra.mxu0 0.0
        %3681 = vmatprep.subr.mxu0 0.0
        %3682 = vmatpush1.msra.mxu0 0.0
        %3683 = vmatprep.subr.mxu0 0.0
        %3684 = vmatpush1.msra.mxu0 0.0
        %3685 = vmatprep.subr.mxu0 0.0
        %3686 = vmatpush1.msra.mxu0 0.0
        %3687 = vmatprep.subr.mxu0 0.0
        %3688 = vmatpush1.msra.mxu0 0.0
        %3689 = vmatprep.subr.mxu0 0.0
        %3690 = vmatpush1.msra.mxu0 0.0
        %3691 = vmatprep.subr.mxu0 0.0
        %3692 = vmatpush1.msra.mxu0 0.0
        %3693 = vmatprep.subr.mxu0 0.0
        %3694 = vmatpush1.msra.mxu0 0.0
        %3695 = vmatprep.subr.mxu0 0.0
        %3696 = vmatpush1.msra.mxu0 0.0
        %3697 = vmatprep.subr.mxu0 0.0
        %3698 = vmatpush1.msra.mxu0 0.0
        %3699 = vmatprep.subr.mxu0 0.0
        %3700 = vmatpush1.msra.mxu0 0.0
        %3701 = vmatprep.subr.mxu0 0.0
        %3702 = vmatpush1.msra.mxu0 0.0
        %3703 = vmatprep.subr.mxu0 0.0
        %3704 = vmatpush1.msra.mxu0 0.0
        %3705 = vmatprep.subr.mxu0 0.0
        %3706 = vmatpush1.msra.mxu0 0.0
        %3707 = vmatprep.subr.mxu0 0.0
        %3708 = vmatpush1.msra.mxu0 0.0
        %3709 = vmatprep.subr.mxu0 0.0
        %3710 = vmatpush1.msra.mxu0 0.0
        %3711 = vmatprep.subr.mxu0 0.0
        %3712 = vmatpush1.msra.mxu0 0.0
        %3713 = vmatprep.mubr.f32.mxu0 0.0
        %3714 = vmatmul.mubr.f32.gmra.mrb[0].mxu0 %v3647
        %v3715 = vpop.f32.mrb[0].mxu0
        %v3716 = vadd.f32 0.0, %v3715
        %v3717 = vpop.f32.mrb[0].mxu0
        %v3718 = vadd.f32 0.0, %v3717
        %3719 = vdwg.mxu0
        %3720 = vmatprep.subr.mxu0 0.0
        %3721 = vmatpush1.msra.mxu0 %v3643
        %3722 = vmatprep.subr.mxu0 0.0
        %3723 = vmatpush1.msra.mxu0 %v3644
        %3724 = vmatprep.subr.mxu0 0.0
        %3725 = vmatpush1.msra.mxu0 %v3645
        %3726 = vmatprep.subr.mxu0 0.0
        %3727 = vmatpush1.msra.mxu0 0.0
        %3728 = vmatprep.subr.mxu0 0.0
        %3729 = vmatpush1.msra.mxu0 0.0
        %3730 = vmatprep.subr.mxu0 0.0
        %3731 = vmatpush1.msra.mxu0 0.0
        %3732 = vmatprep.subr.mxu0 0.0
        %3733 = vmatpush1.msra.mxu0 0.0
        %3734 = vmatprep.subr.mxu0 0.0
        %3735 = vmatpush1.msra.mxu0 0.0
        %3736 = vmatprep.subr.mxu0 0.0
        %3737 = vmatpush1.msra.mxu0 0.0
        %3738 = vmatprep.subr.mxu0 0.0
        %3739 = vmatpush1.msra.mxu0 0.0
        %3740 = vmatprep.subr.mxu0 0.0
        %3741 = vmatpush1.msra.mxu0 0.0
        %3742 = vmatprep.subr.mxu0 0.0
        %3743 = vmatpush1.msra.mxu0 0.0
        %3744 = vmatprep.subr.mxu0 0.0
        %3745 = vmatpush1.msra.mxu0 0.0
        %3746 = vmatprep.subr.mxu0 0.0
        %3747 = vmatpush1.msra.mxu0 0.0
        %3748 = vmatprep.subr.mxu0 0.0
        %3749 = vmatpush1.msra.mxu0 0.0
        %3750 = vmatprep.subr.mxu0 0.0
        %3751 = vmatpush1.msra.mxu0 0.0
        %3752 = vmatprep.subr.mxu0 0.0
        %3753 = vmatpush1.msra.mxu0 0.0
        %3754 = vmatprep.subr.mxu0 0.0
        %3755 = vmatpush1.msra.mxu0 0.0
        %3756 = vmatprep.subr.mxu0 0.0
        %3757 = vmatpush1.msra.mxu0 0.0
        %3758 = vmatprep.subr.mxu0 0.0
        %3759 = vmatpush1.msra.mxu0 0.0
        %3760 = vmatprep.subr.mxu0 0.0
        %3761 = vmatpush1.msra.mxu0 0.0
        %3762 = vmatprep.subr.mxu0 0.0
        %3763 = vmatpush1.msra.mxu0 0.0
        %3764 = vmatprep.subr.mxu0 0.0
        %3765 = vmatpush1.msra.mxu0 0.0
        %3766 = vmatprep.subr.mxu0 0.0
        %3767 = vmatpush1.msra.mxu0 0.0
        %3768 = vmatprep.subr.mxu0 0.0
        %3769 = vmatpush1.msra.mxu0 0.0
        %3770 = vmatprep.subr.mxu0 0.0
        %3771 = vmatpush1.msra.mxu0 0.0
        %3772 = vmatprep.subr.mxu0 0.0
        %3773 = vmatpush1.msra.mxu0 0.0
        %3774 = vmatprep.subr.mxu0 0.0
        %3775 = vmatpush1.msra.mxu0 0.0
        %3776 = vmatprep.subr.mxu0 0.0
        %3777 = vmatpush1.msra.mxu0 0.0
        %3778 = vmatprep.subr.mxu0 0.0
        %3779 = vmatpush1.msra.mxu0 0.0
        %3780 = vmatprep.subr.mxu0 0.0
        %3781 = vmatpush1.msra.mxu0 0.0
        %3782 = vmatprep.subr.mxu0 0.0
        %3783 = vmatpush1.msra.mxu0 0.0
        %3784 = vmatprep.mubr.f32.mxu0 0.0
        %3785 = vmatmul.mubr.f32.gmra.mrb[0].mxu0 %v3647
        %v3786 = vpop.f32.mrb[0].mxu0
        %v3787 = vadd.f32 0.0, %v3786
        %v3788 = vpop.f32.mrb[0].mxu0
        %3789 = vdwg.mxu0
        %v3790 = vadd.f32 %v3614, %v3716
        %v3791 = vadd.f32 %v3615, %v3718
        %v3792 = vadd.f32 %v3616, %v3787
        %s3793 = scalar_lea.vmem [#allocation7], 48
        %v3794 = vld [vmem:[%s3793] sm:$0xff]
        %3795 = vrot.lane.b32.xlu0 %v2517, 111
        %v3796 = vpop.permute.xlu0 %3795
        %3797 = vrot.lane.b32.xlu0 %v2756, 111
        %v3798 = vpop.permute.xlu0 %3797
        %3799 = vrot.lane.b32.xlu0 %v2759, 111
        %v3800 = vpop.permute.xlu0 %3799
        %3801 = vrot.lane.b32.xlu0 %v2518, 111
        %v3802 = vpop.permute.xlu0 %3801
        %3803 = vrot.lane.b32.xlu0 %v2757, 111
        %v3804 = vpop.permute.xlu0 %3803
        %3805 = vrot.lane.b32.xlu0 %v2760, 111
        %v3806 = vpop.permute.xlu0 %3805
        %3807 = vrot.lane.b32.xlu0 %v2519, 111
        %v3808 = vpop.permute.xlu0 %3807
        %3809 = vrot.lane.b32.xlu0 %v2758, 111
        %v3810 = vpop.permute.xlu0 %3809
        %3811 = vrot.lane.b32.xlu0 %v2761, 111
        %v3812 = vpop.permute.xlu0 %3811
        %v3813 = vsel %vm1827, %v3802, %v3808
        %v3814 = vsel %vm1827, %v3804, %v3810
        %v3815 = vsel %vm1827, %v3806, %v3812
        %v3816 = vsel %vm1827, %v3796, %v3802
        %v3817 = vsel %vm1827, %v3798, %v3804
        %v3818 = vsel %vm1827, %v3800, %v3806
        %v3819 = vsel %vm1827, %v3808, %v3796
        %v3820 = vsel %vm1827, %v3810, %v3798
        %v3821 = vsel %vm1827, %v3812, %v3800
        %v3823 = vsel %vm838, %v3794, 0
        %3825 = vmatprep.subr.mxu0 %v3813
        %3826 = vmatpush1.msra.mxu0 %v3816
        %3827 = vmatprep.subr.mxu0 %v3814
        %3828 = vmatpush1.msra.mxu0 %v3817
        %3829 = vmatprep.subr.mxu0 %v3815
        %3830 = vmatpush1.msra.mxu0 %v3818
        %3831 = vmatprep.subr.mxu0 0.0
        %3832 = vmatpush1.msra.mxu0 0.0
        %3833 = vmatprep.subr.mxu0 0.0
        %3834 = vmatpush1.msra.mxu0 0.0
        %3835 = vmatprep.subr.mxu0 0.0
        %3836 = vmatpush1.msra.mxu0 0.0
        %3837 = vmatprep.subr.mxu0 0.0
        %3838 = vmatpush1.msra.mxu0 0.0
        %3839 = vmatprep.subr.mxu0 0.0
        %3840 = vmatpush1.msra.mxu0 0.0
        %3841 = vmatprep.subr.mxu0 0.0
        %3842 = vmatpush1.msra.mxu0 0.0
        %3843 = vmatprep.subr.mxu0 0.0
        %3844 = vmatpush1.msra.mxu0 0.0
        %3845 = vmatprep.subr.mxu0 0.0
        %3846 = vmatpush1.msra.mxu0 0.0
        %3847 = vmatprep.subr.mxu0 0.0
        %3848 = vmatpush1.msra.mxu0 0.0
        %3849 = vmatprep.subr.mxu0 0.0
        %3850 = vmatpush1.msra.mxu0 0.0
        %3851 = vmatprep.subr.mxu0 0.0
        %3852 = vmatpush1.msra.mxu0 0.0
        %3853 = vmatprep.subr.mxu0 0.0
        %3854 = vmatpush1.msra.mxu0 0.0
        %3855 = vmatprep.subr.mxu0 0.0
        %3856 = vmatpush1.msra.mxu0 0.0
        %3857 = vmatprep.subr.mxu0 0.0
        %3858 = vmatpush1.msra.mxu0 0.0
        %3859 = vmatprep.subr.mxu0 0.0
        %3860 = vmatpush1.msra.mxu0 0.0
        %3861 = vmatprep.subr.mxu0 0.0
        %3862 = vmatpush1.msra.mxu0 0.0
        %3863 = vmatprep.subr.mxu0 0.0
        %3864 = vmatpush1.msra.mxu0 0.0
        %3865 = vmatprep.subr.mxu0 0.0
        %3866 = vmatpush1.msra.mxu0 0.0
        %3867 = vmatprep.subr.mxu0 0.0
        %3868 = vmatpush1.msra.mxu0 0.0
        %3869 = vmatprep.subr.mxu0 0.0
        %3870 = vmatpush1.msra.mxu0 0.0
        %3871 = vmatprep.subr.mxu0 0.0
        %3872 = vmatpush1.msra.mxu0 0.0
        %3873 = vmatprep.subr.mxu0 0.0
        %3874 = vmatpush1.msra.mxu0 0.0
        %3875 = vmatprep.subr.mxu0 0.0
        %3876 = vmatpush1.msra.mxu0 0.0
        %3877 = vmatprep.subr.mxu0 0.0
        %3878 = vmatpush1.msra.mxu0 0.0
        %3879 = vmatprep.subr.mxu0 0.0
        %3880 = vmatpush1.msra.mxu0 0.0
        %3881 = vmatprep.subr.mxu0 0.0
        %3882 = vmatpush1.msra.mxu0 0.0
        %3883 = vmatprep.subr.mxu0 0.0
        %3884 = vmatpush1.msra.mxu0 0.0
        %3885 = vmatprep.subr.mxu0 0.0
        %3886 = vmatpush1.msra.mxu0 0.0
        %3887 = vmatprep.subr.mxu0 0.0
        %3888 = vmatpush1.msra.mxu0 0.0
        %3889 = vmatprep.mubr.f32.mxu0 0.0
        %3890 = vmatmul.mubr.f32.gmra.mrb[0].mxu0 %v3823
        %v3891 = vpop.f32.mrb[0].mxu0
        %v3892 = vadd.f32 0.0, %v3891
        %v3893 = vpop.f32.mrb[0].mxu0
        %v3894 = vadd.f32 0.0, %v3893
        %3895 = vdwg.mxu0
        %3896 = vmatprep.subr.mxu0 0.0
        %3897 = vmatpush1.msra.mxu0 %v3819
        %3898 = vmatprep.subr.mxu0 0.0
        %3899 = vmatpush1.msra.mxu0 %v3820
        %3900 = vmatprep.subr.mxu0 0.0
        %3901 = vmatpush1.msra.mxu0 %v3821
        %3902 = vmatprep.subr.mxu0 0.0
        %3903 = vmatpush1.msra.mxu0 0.0
        %3904 = vmatprep.subr.mxu0 0.0
        %3905 = vmatpush1.msra.mxu0 0.0
        %3906 = vmatprep.subr.mxu0 0.0
        %3907 = vmatpush1.msra.mxu0 0.0
        %3908 = vmatprep.subr.mxu0 0.0
        %3909 = vmatpush1.msra.mxu0 0.0
        %3910 = vmatprep.subr.mxu0 0.0
        %3911 = vmatpush1.msra.mxu0 0.0
        %3912 = vmatprep.subr.mxu0 0.0
        %3913 = vmatpush1.msra.mxu0 0.0
        %3914 = vmatprep.subr.mxu0 0.0
        %3915 = vmatpush1.msra.mxu0 0.0
        %3916 = vmatprep.subr.mxu0 0.0
        %3917 = vmatpush1.msra.mxu0 0.0
        %3918 = vmatprep.subr.mxu0 0.0
        %3919 = vmatpush1.msra.mxu0 0.0
        %3920 = vmatprep.subr.mxu0 0.0
        %3921 = vmatpush1.msra.mxu0 0.0
        %3922 = vmatprep.subr.mxu0 0.0
        %3923 = vmatpush1.msra.mxu0 0.0
        %3924 = vmatprep.subr.mxu0 0.0
        %3925 = vmatpush1.msra.mxu0 0.0
        %3926 = vmatprep.subr.mxu0 0.0
        %3927 = vmatpush1.msra.mxu0 0.0
        %3928 = vmatprep.subr.mxu0 0.0
        %3929 = vmatpush1.msra.mxu0 0.0
        %3930 = vmatprep.subr.mxu0 0.0
        %3931 = vmatpush1.msra.mxu0 0.0
        %3932 = vmatprep.subr.mxu0 0.0
        %3933 = vmatpush1.msra.mxu0 0.0
        %3934 = vmatprep.subr.mxu0 0.0
        %3935 = vmatpush1.msra.mxu0 0.0
        %3936 = vmatprep.subr.mxu0 0.0
        %3937 = vmatpush1.msra.mxu0 0.0
        %3938 = vmatprep.subr.mxu0 0.0
        %3939 = vmatpush1.msra.mxu0 0.0
        %3940 = vmatprep.subr.mxu0 0.0
        %3941 = vmatpush1.msra.mxu0 0.0
        %3942 = vmatprep.subr.mxu0 0.0
        %3943 = vmatpush1.msra.mxu0 0.0
        %3944 = vmatprep.subr.mxu0 0.0
        %3945 = vmatpush1.msra.mxu0 0.0
        %3946 = vmatprep.subr.mxu0 0.0
        %3947 = vmatpush1.msra.mxu0 0.0
        %3948 = vmatprep.subr.mxu0 0.0
        %3949 = vmatpush1.msra.mxu0 0.0
        %3950 = vmatprep.subr.mxu0 0.0
        %3951 = vmatpush1.msra.mxu0 0.0
        %3952 = vmatprep.subr.mxu0 0.0
        %3953 = vmatpush1.msra.mxu0 0.0
        %3954 = vmatprep.subr.mxu0 0.0
        %3955 = vmatpush1.msra.mxu0 0.0
        %3956 = vmatprep.subr.mxu0 0.0
        %3957 = vmatpush1.msra.mxu0 0.0
        %3958 = vmatprep.subr.mxu0 0.0
        %3959 = vmatpush1.msra.mxu0 0.0
        %3960 = vmatprep.mubr.f32.mxu0 0.0
        %3961 = vmatmul.mubr.f32.gmra.mrb[0].mxu0 %v3823
        %v3962 = vpop.f32.mrb[0].mxu0
        %v3963 = vadd.f32 0.0, %v3962
        %v3964 = vpop.f32.mrb[0].mxu0
        %3965 = vdwg.mxu0
        %v3966 = vadd.f32 %v3790, %v3892
        %v3967 = vadd.f32 %v3791, %v3894
        %v3968 = vadd.f32 %v3792, %v3963
        %s3969 = scalar_lea.vmem [#allocation7], 56
        %v3970 = vld [vmem:[%s3969] sm:$0xff]
        %3971 = vrot.lane.b32.xlu0 %v2517, 110
        %v3972 = vpop.permute.xlu0 %3971
        %3973 = vrot.lane.b32.xlu0 %v2756, 110
        %v3974 = vpop.permute.xlu0 %3973
        %3975 = vrot.lane.b32.xlu0 %v2759, 110
        %v3976 = vpop.permute.xlu0 %3975
        %3977 = vrot.lane.b32.xlu0 %v2518, 110
        %v3978 = vpop.permute.xlu0 %3977
        %3979 = vrot.lane.b32.xlu0 %v2757, 110
        %v3980 = vpop.permute.xlu0 %3979
        %3981 = vrot.lane.b32.xlu0 %v2760, 110
        %v3982 = vpop.permute.xlu0 %3981
        %3983 = vrot.lane.b32.xlu0 %v2519, 110
        %v3984 = vpop.permute.xlu0 %3983
        %3985 = vrot.lane.b32.xlu0 %v2758, 110
        %v3986 = vpop.permute.xlu0 %3985
        %3987 = vrot.lane.b32.xlu0 %v2761, 110
        %v3988 = vpop.permute.xlu0 %3987
        %v3989 = vsel %vm2004, %v3978, %v3984
        %v3990 = vsel %vm2004, %v3980, %v3986
        %v3991 = vsel %vm2004, %v3982, %v3988
        %v3992 = vsel %vm2004, %v3972, %v3978
        %v3993 = vsel %vm2004, %v3974, %v3980
        %v3994 = vsel %vm2004, %v3976, %v3982
        %v3995 = vsel %vm2004, %v3984, %v3972
        %v3996 = vsel %vm2004, %v3986, %v3974
        %v3997 = vsel %vm2004, %v3988, %v3976
        %v3999 = vsel %vm838, %v3970, 0
        %4001 = vmatprep.subr.mxu0 %v3989
        %4002 = vmatpush1.msra.mxu0 %v3992
        %4003 = vmatprep.subr.mxu0 %v3990
        %4004 = vmatpush1.msra.mxu0 %v3993
        %4005 = vmatprep.subr.mxu0 %v3991
        %4006 = vmatpush1.msra.mxu0 %v3994
        %4007 = vmatprep.subr.mxu0 0.0
        %4008 = vmatpush1.msra.mxu0 0.0
        %4009 = vmatprep.subr.mxu0 0.0
        %4010 = vmatpush1.msra.mxu0 0.0
        %4011 = vmatprep.subr.mxu0 0.0
        %4012 = vmatpush1.msra.mxu0 0.0
        %4013 = vmatprep.subr.mxu0 0.0
        %4014 = vmatpush1.msra.mxu0 0.0
        %4015 = vmatprep.subr.mxu0 0.0
        %4016 = vmatpush1.msra.mxu0 0.0
        %4017 = vmatprep.subr.mxu0 0.0
        %4018 = vmatpush1.msra.mxu0 0.0
        %4019 = vmatprep.subr.mxu0 0.0
        %4020 = vmatpush1.msra.mxu0 0.0
        %4021 = vmatprep.subr.mxu0 0.0
        %4022 = vmatpush1.msra.mxu0 0.0
        %4023 = vmatprep.subr.mxu0 0.0
        %4024 = vmatpush1.msra.mxu0 0.0
        %4025 = vmatprep.subr.mxu0 0.0
        %4026 = vmatpush1.msra.mxu0 0.0
        %4027 = vmatprep.subr.mxu0 0.0
        %4028 = vmatpush1.msra.mxu0 0.0
        %4029 = vmatprep.subr.mxu0 0.0
        %4030 = vmatpush1.msra.mxu0 0.0
        %4031 = vmatprep.subr.mxu0 0.0
        %4032 = vmatpush1.msra.mxu0 0.0
        %4033 = vmatprep.subr.mxu0 0.0
        %4034 = vmatpush1.msra.mxu0 0.0
        %4035 = vmatprep.subr.mxu0 0.0
        %4036 = vmatpush1.msra.mxu0 0.0
        %4037 = vmatprep.subr.mxu0 0.0
        %4038 = vmatpush1.msra.mxu0 0.0
        %4039 = vmatprep.subr.mxu0 0.0
        %4040 = vmatpush1.msra.mxu0 0.0
        %4041 = vmatprep.subr.mxu0 0.0
        %4042 = vmatpush1.msra.mxu0 0.0
        %4043 = vmatprep.subr.mxu0 0.0
        %4044 = vmatpush1.msra.mxu0 0.0
        %4045 = vmatprep.subr.mxu0 0.0
        %4046 = vmatpush1.msra.mxu0 0.0
        %4047 = vmatprep.subr.mxu0 0.0
        %4048 = vmatpush1.msra.mxu0 0.0
        %4049 = vmatprep.subr.mxu0 0.0
        %4050 = vmatpush1.msra.mxu0 0.0
        %4051 = vmatprep.subr.mxu0 0.0
        %4052 = vmatpush1.msra.mxu0 0.0
        %4053 = vmatprep.subr.mxu0 0.0
        %4054 = vmatpush1.msra.mxu0 0.0
        %4055 = vmatprep.subr.mxu0 0.0
        %4056 = vmatpush1.msra.mxu0 0.0
        %4057 = vmatprep.subr.mxu0 0.0
        %4058 = vmatpush1.msra.mxu0 0.0
        %4059 = vmatprep.subr.mxu0 0.0
        %4060 = vmatpush1.msra.mxu0 0.0
        %4061 = vmatprep.subr.mxu0 0.0
        %4062 = vmatpush1.msra.mxu0 0.0
        %4063 = vmatprep.subr.mxu0 0.0
        %4064 = vmatpush1.msra.mxu0 0.0
        %4065 = vmatprep.mubr.f32.mxu0 0.0
        %4066 = vmatmul.mubr.f32.gmra.mrb[0].mxu0 %v3999
        %v4067 = vpop.f32.mrb[0].mxu0
        %v4068 = vadd.f32 0.0, %v4067
        %v4069 = vpop.f32.mrb[0].mxu0
        %v4070 = vadd.f32 0.0, %v4069
        %4071 = vdwg.mxu0
        %4072 = vmatprep.subr.mxu0 0.0
        %4073 = vmatpush1.msra.mxu0 %v3995
        %4074 = vmatprep.subr.mxu0 0.0
        %4075 = vmatpush1.msra.mxu0 %v3996
        %4076 = vmatprep.subr.mxu0 0.0
        %4077 = vmatpush1.msra.mxu0 %v3997
        %4078 = vmatprep.subr.mxu0 0.0
        %4079 = vmatpush1.msra.mxu0 0.0
        %4080 = vmatprep.subr.mxu0 0.0
        %4081 = vmatpush1.msra.mxu0 0.0
        %4082 = vmatprep.subr.mxu0 0.0
        %4083 = vmatpush1.msra.mxu0 0.0
        %4084 = vmatprep.subr.mxu0 0.0
        %4085 = vmatpush1.msra.mxu0 0.0
        %4086 = vmatprep.subr.mxu0 0.0
        %4087 = vmatpush1.msra.mxu0 0.0
        %4088 = vmatprep.subr.mxu0 0.0
        %4089 = vmatpush1.msra.mxu0 0.0
        %4090 = vmatprep.subr.mxu0 0.0
        %4091 = vmatpush1.msra.mxu0 0.0
        %4092 = vmatprep.subr.mxu0 0.0
        %4093 = vmatpush1.msra.mxu0 0.0
        %4094 = vmatprep.subr.mxu0 0.0
        %4095 = vmatpush1.msra.mxu0 0.0
        %4096 = vmatprep.subr.mxu0 0.0
        %4097 = vmatpush1.msra.mxu0 0.0
        %4098 = vmatprep.subr.mxu0 0.0
        %4099 = vmatpush1.msra.mxu0 0.0
        %4100 = vmatprep.subr.mxu0 0.0
        %4101 = vmatpush1.msra.mxu0 0.0
        %4102 = vmatprep.subr.mxu0 0.0
        %4103 = vmatpush1.msra.mxu0 0.0
        %4104 = vmatprep.subr.mxu0 0.0
        %4105 = vmatpush1.msra.mxu0 0.0
        %4106 = vmatprep.subr.mxu0 0.0
        %4107 = vmatpush1.msra.mxu0 0.0
        %4108 = vmatprep.subr.mxu0 0.0
        %4109 = vmatpush1.msra.mxu0 0.0
        %4110 = vmatprep.subr.mxu0 0.0
        %4111 = vmatpush1.msra.mxu0 0.0
        %4112 = vmatprep.subr.mxu0 0.0
        %4113 = vmatpush1.msra.mxu0 0.0
        %4114 = vmatprep.subr.mxu0 0.0
        %4115 = vmatpush1.msra.mxu0 0.0
        %4116 = vmatprep.subr.mxu0 0.0
        %4117 = vmatpush1.msra.mxu0 0.0
        %4118 = vmatprep.subr.mxu0 0.0
        %4119 = vmatpush1.msra.mxu0 0.0
        %4120 = vmatprep.subr.mxu0 0.0
        %4121 = vmatpush1.msra.mxu0 0.0
        %4122 = vmatprep.subr.mxu0 0.0
        %4123 = vmatpush1.msra.mxu0 0.0
        %4124 = vmatprep.subr.mxu0 0.0
        %4125 = vmatpush1.msra.mxu0 0.0
        %4126 = vmatprep.subr.mxu0 0.0
        %4127 = vmatpush1.msra.mxu0 0.0
        %4128 = vmatprep.subr.mxu0 0.0
        %4129 = vmatpush1.msra.mxu0 0.0
        %4130 = vmatprep.subr.mxu0 0.0
        %4131 = vmatpush1.msra.mxu0 0.0
        %4132 = vmatprep.subr.mxu0 0.0
        %4133 = vmatpush1.msra.mxu0 0.0
        %4134 = vmatprep.subr.mxu0 0.0
        %4135 = vmatpush1.msra.mxu0 0.0
        %4136 = vmatprep.mubr.f32.mxu0 0.0
        %4137 = vmatmul.mubr.f32.gmra.mrb[0].mxu0 %v3999
        %v4138 = vpop.f32.mrb[0].mxu0
        %v4139 = vadd.f32 0.0, %v4138
        %v4140 = vpop.f32.mrb[0].mxu0
        %4141 = vdwg.mxu0
        %v4142 = vadd.f32 %v3966, %v4068
        %v4143 = vadd.f32 %v3967, %v4070
        %v4144 = vadd.f32 %v3968, %v4139
        %s4145 = scalar_lea.vmem [#allocation7], 64
        %v4146 = vld [vmem:[%s4145] sm:$0xff]
        %4147 = vrot.lane.b32.xlu0 %v2517, 109
        %v4148 = vpop.permute.xlu0 %4147
        %4149 = vrot.lane.b32.xlu0 %v2756, 109
        %v4150 = vpop.permute.xlu0 %4149
        %4151 = vrot.lane.b32.xlu0 %v2759, 109
        %v4152 = vpop.permute.xlu0 %4151
        %4153 = vrot.lane.b32.xlu0 %v2518, 109
        %v4154 = vpop.permute.xlu0 %4153
        %4155 = vrot.lane.b32.xlu0 %v2757, 109
        %v4156 = vpop.permute.xlu0 %4155
        %4157 = vrot.lane.b32.xlu0 %v2760, 109
        %v4158 = vpop.permute.xlu0 %4157
        %4159 = vrot.lane.b32.xlu0 %v2519, 109
        %v4160 = vpop.permute.xlu0 %4159
        %4161 = vrot.lane.b32.xlu0 %v2758, 109
        %v4162 = vpop.permute.xlu0 %4161
        %4163 = vrot.lane.b32.xlu0 %v2761, 109
        %v4164 = vpop.permute.xlu0 %4163
        %v4165 = vsel %vm2181, %v4154, %v4160
        %v4166 = vsel %vm2181, %v4156, %v4162
        %v4167 = vsel %vm2181, %v4158, %v4164
        %v4168 = vsel %vm2181, %v4148, %v4154
        %v4169 = vsel %vm2181, %v4150, %v4156
        %v4170 = vsel %vm2181, %v4152, %v4158
        %v4171 = vsel %vm2181, %v4160, %v4148
        %v4172 = vsel %vm2181, %v4162, %v4150
        %v4173 = vsel %vm2181, %v4164, %v4152
        %v4175 = vsel %vm838, %v4146, 0
        %4177 = vmatprep.subr.mxu0 %v4165
        %4178 = vmatpush1.msra.mxu0 %v4168
        %4179 = vmatprep.subr.mxu0 %v4166
        %4180 = vmatpush1.msra.mxu0 %v4169
        %4181 = vmatprep.subr.mxu0 %v4167
        %4182 = vmatpush1.msra.mxu0 %v4170
        %4183 = vmatprep.subr.mxu0 0.0
        %4184 = vmatpush1.msra.mxu0 0.0
        %4185 = vmatprep.subr.mxu0 0.0
        %4186 = vmatpush1.msra.mxu0 0.0
        %4187 = vmatprep.subr.mxu0 0.0
        %4188 = vmatpush1.msra.mxu0 0.0
        %4189 = vmatprep.subr.mxu0 0.0
        %4190 = vmatpush1.msra.mxu0 0.0
        %4191 = vmatprep.subr.mxu0 0.0
        %4192 = vmatpush1.msra.mxu0 0.0
        %4193 = vmatprep.subr.mxu0 0.0
        %4194 = vmatpush1.msra.mxu0 0.0
        %4195 = vmatprep.subr.mxu0 0.0
        %4196 = vmatpush1.msra.mxu0 0.0
        %4197 = vmatprep.subr.mxu0 0.0
        %4198 = vmatpush1.msra.mxu0 0.0
        %4199 = vmatprep.subr.mxu0 0.0
        %4200 = vmatpush1.msra.mxu0 0.0
        %4201 = vmatprep.subr.mxu0 0.0
        %4202 = vmatpush1.msra.mxu0 0.0
        %4203 = vmatprep.subr.mxu0 0.0
        %4204 = vmatpush1.msra.mxu0 0.0
        %4205 = vmatprep.subr.mxu0 0.0
        %4206 = vmatpush1.msra.mxu0 0.0
        %4207 = vmatprep.subr.mxu0 0.0
        %4208 = vmatpush1.msra.mxu0 0.0
        %4209 = vmatprep.subr.mxu0 0.0
        %4210 = vmatpush1.msra.mxu0 0.0
        %4211 = vmatprep.subr.mxu0 0.0
        %4212 = vmatpush1.msra.mxu0 0.0
        %4213 = vmatprep.subr.mxu0 0.0
        %4214 = vmatpush1.msra.mxu0 0.0
        %4215 = vmatprep.subr.mxu0 0.0
        %4216 = vmatpush1.msra.mxu0 0.0
        %4217 = vmatprep.subr.mxu0 0.0
        %4218 = vmatpush1.msra.mxu0 0.0
        %4219 = vmatprep.subr.mxu0 0.0
        %4220 = vmatpush1.msra.mxu0 0.0
        %4221 = vmatprep.subr.mxu0 0.0
        %4222 = vmatpush1.msra.mxu0 0.0
        %4223 = vmatprep.subr.mxu0 0.0
        %4224 = vmatpush1.msra.mxu0 0.0
        %4225 = vmatprep.subr.mxu0 0.0
        %4226 = vmatpush1.msra.mxu0 0.0
        %4227 = vmatprep.subr.mxu0 0.0
        %4228 = vmatpush1.msra.mxu0 0.0
        %4229 = vmatprep.subr.mxu0 0.0
        %4230 = vmatpush1.msra.mxu0 0.0
        %4231 = vmatprep.subr.mxu0 0.0
        %4232 = vmatpush1.msra.mxu0 0.0
        %4233 = vmatprep.subr.mxu0 0.0
        %4234 = vmatpush1.msra.mxu0 0.0
        %4235 = vmatprep.subr.mxu0 0.0
        %4236 = vmatpush1.msra.mxu0 0.0
        %4237 = vmatprep.subr.mxu0 0.0
        %4238 = vmatpush1.msra.mxu0 0.0
        %4239 = vmatprep.subr.mxu0 0.0
        %4240 = vmatpush1.msra.mxu0 0.0
        %4241 = vmatprep.mubr.f32.mxu0 0.0
        %4242 = vmatmul.mubr.f32.gmra.mrb[0].mxu0 %v4175
        %v4243 = vpop.f32.mrb[0].mxu0
        %v4244 = vadd.f32 0.0, %v4243
        %v4245 = vpop.f32.mrb[0].mxu0
        %v4246 = vadd.f32 0.0, %v4245
        %4247 = vdwg.mxu0
        %4248 = vmatprep.subr.mxu0 0.0
        %4249 = vmatpush1.msra.mxu0 %v4171
        %4250 = vmatprep.subr.mxu0 0.0
        %4251 = vmatpush1.msra.mxu0 %v4172
        %4252 = vmatprep.subr.mxu0 0.0
        %4253 = vmatpush1.msra.mxu0 %v4173
        %4254 = vmatprep.subr.mxu0 0.0
        %4255 = vmatpush1.msra.mxu0 0.0
        %4256 = vmatprep.subr.mxu0 0.0
        %4257 = vmatpush1.msra.mxu0 0.0
        %4258 = vmatprep.subr.mxu0 0.0
        %4259 = vmatpush1.msra.mxu0 0.0
        %4260 = vmatprep.subr.mxu0 0.0
        %4261 = vmatpush1.msra.mxu0 0.0
        %4262 = vmatprep.subr.mxu0 0.0
        %4263 = vmatpush1.msra.mxu0 0.0
        %4264 = vmatprep.subr.mxu0 0.0
        %4265 = vmatpush1.msra.mxu0 0.0
        %4266 = vmatprep.subr.mxu0 0.0
        %4267 = vmatpush1.msra.mxu0 0.0
        %4268 = vmatprep.subr.mxu0 0.0
        %4269 = vmatpush1.msra.mxu0 0.0
        %4270 = vmatprep.subr.mxu0 0.0
        %4271 = vmatpush1.msra.mxu0 0.0
        %4272 = vmatprep.subr.mxu0 0.0
        %4273 = vmatpush1.msra.mxu0 0.0
        %4274 = vmatprep.subr.mxu0 0.0
        %4275 = vmatpush1.msra.mxu0 0.0
        %4276 = vmatprep.subr.mxu0 0.0
        %4277 = vmatpush1.msra.mxu0 0.0
        %4278 = vmatprep.subr.mxu0 0.0
        %4279 = vmatpush1.msra.mxu0 0.0
        %4280 = vmatprep.subr.mxu0 0.0
        %4281 = vmatpush1.msra.mxu0 0.0
        %4282 = vmatprep.subr.mxu0 0.0
        %4283 = vmatpush1.msra.mxu0 0.0
        %4284 = vmatprep.subr.mxu0 0.0
        %4285 = vmatpush1.msra.mxu0 0.0
        %4286 = vmatprep.subr.mxu0 0.0
        %4287 = vmatpush1.msra.mxu0 0.0
        %4288 = vmatprep.subr.mxu0 0.0
        %4289 = vmatpush1.msra.mxu0 0.0
        %4290 = vmatprep.subr.mxu0 0.0
        %4291 = vmatpush1.msra.mxu0 0.0
        %4292 = vmatprep.subr.mxu0 0.0
        %4293 = vmatpush1.msra.mxu0 0.0
        %4294 = vmatprep.subr.mxu0 0.0
        %4295 = vmatpush1.msra.mxu0 0.0
        %4296 = vmatprep.subr.mxu0 0.0
        %4297 = vmatpush1.msra.mxu0 0.0
        %4298 = vmatprep.subr.mxu0 0.0
        %4299 = vmatpush1.msra.mxu0 0.0
        %4300 = vmatprep.subr.mxu0 0.0
        %4301 = vmatpush1.msra.mxu0 0.0
        %4302 = vmatprep.subr.mxu0 0.0
        %4303 = vmatpush1.msra.mxu0 0.0
        %4304 = vmatprep.subr.mxu0 0.0
        %4305 = vmatpush1.msra.mxu0 0.0
        %4306 = vmatprep.subr.mxu0 0.0
        %4307 = vmatpush1.msra.mxu0 0.0
        %4308 = vmatprep.subr.mxu0 0.0
        %4309 = vmatpush1.msra.mxu0 0.0
        %4310 = vmatprep.subr.mxu0 0.0
        %4311 = vmatpush1.msra.mxu0 0.0
        %4312 = vmatprep.mubr.f32.mxu0 0.0
        %4313 = vmatmul.mubr.f32.gmra.mrb[0].mxu0 %v4175
        %v4314 = vpop.f32.mrb[0].mxu0
        %v4315 = vadd.f32 0.0, %v4314
        %v4316 = vpop.f32.mrb[0].mxu0
        %4317 = vdwg.mxu0
        %v4318 = vadd.f32 %v4142, %v4244
        %v4319 = vadd.f32 %v4143, %v4246
        %v4320 = vadd.f32 %v4144, %v4315
        %4321 = vrot.lane.b32.xlu0 %v2762, 1
        %v4322 = vpop.permute.xlu0 %4321
        %4323 = vrot.lane.b32.xlu0 %v2765, 1
        %v4324 = vpop.permute.xlu0 %4323
        %4325 = vrot.lane.b32.xlu0 %v2768, 1
        %v4326 = vpop.permute.xlu0 %4325
        %4327 = vrot.lane.b32.xlu0 %v2763, 1
        %v4328 = vpop.permute.xlu0 %4327
        %4329 = vrot.lane.b32.xlu0 %v2766, 1
        %v4330 = vpop.permute.xlu0 %4329
        %4331 = vrot.lane.b32.xlu0 %v2769, 1
        %v4332 = vpop.permute.xlu0 %4331
        %4333 = vrot.lane.b32.xlu0 %v2764, 1
        %v4334 = vpop.permute.xlu0 %4333
        %4335 = vrot.lane.b32.xlu0 %v2767, 1
        %v4336 = vpop.permute.xlu0 %4335
        %4337 = vrot.lane.b32.xlu0 %v2770, 1
        %v4338 = vpop.permute.xlu0 %4337
        %v4339 = vsel %vm1324, %v4328, %v4334
        %v4340 = vsel %vm1324, %v4330, %v4336
        %v4341 = vsel %vm1324, %v4332, %v4338
        %v4342 = vsel %vm1324, %v4322, %v4328
        %v4343 = vsel %vm1324, %v4324, %v4330
        %v4344 = vsel %vm1324, %v4326, %v4332
        %v4345 = vsel %vm1324, %v4334, %v4322
        %v4346 = vsel %vm1324, %v4336, %v4324
        %v4347 = vsel %vm1324, %v4338, %v4326
        %4348 = vrot.lane.b32.xlu0 %v2762, 127
        %v4349 = vpop.permute.xlu0 %4348
        %4350 = vrot.lane.b32.xlu0 %v2765, 127
        %v4351 = vpop.permute.xlu0 %4350
        %4352 = vrot.lane.b32.xlu0 %v2768, 127
        %v4353 = vpop.permute.xlu0 %4352
        %4354 = vrot.lane.b32.xlu0 %v2763, 127
        %v4355 = vpop.permute.xlu0 %4354
        %4356 = vrot.lane.b32.xlu0 %v2766, 127
        %v4357 = vpop.permute.xlu0 %4356
        %4358 = vrot.lane.b32.xlu0 %v2769, 127
        %v4359 = vpop.permute.xlu0 %4358
        %4360 = vrot.lane.b32.xlu0 %v2764, 127
        %v4361 = vpop.permute.xlu0 %4360
        %4362 = vrot.lane.b32.xlu0 %v2767, 127
        %v4363 = vpop.permute.xlu0 %4362
        %4364 = vrot.lane.b32.xlu0 %v2770, 127
        %v4365 = vpop.permute.xlu0 %4364
        %v4366 = vsel %vm1650, %v4355, %v4361
        %v4367 = vsel %vm1650, %v4357, %v4363
        %v4368 = vsel %vm1650, %v4359, %v4365
        %v4369 = vsel %vm1650, %v4349, %v4355
        %v4370 = vsel %vm1650, %v4351, %v4357
        %v4371 = vsel %vm1650, %v4353, %v4359
        %v4372 = vsel %vm1650, %v4361, %v4349
        %v4373 = vsel %vm1650, %v4363, %v4351
        %v4374 = vsel %vm1650, %v4365, %v4353
        %v4375 = vsub.f32 %v4345, %v4369
        %v4376 = vsub.f32 %v4342, %v4366
        %v4377 = vsub.f32 %v4339, %v4372
        %4378 = vrot.lane.b32.xlu0 %v4375, 18
        %v4379 = vpop.permute.xlu0 %4378
        %4380 = vrot.lane.b32.xlu0 %v4376, 18
        %v4381 = vpop.permute.xlu0 %4380
        %4382 = vrot.lane.b32.xlu0 %v4377, 18
        %v4383 = vpop.permute.xlu0 %4382
        %v4384 = vsel %vm828, %v4381, %v4383
        %v4385 = vsel %vm828, %v4379, %v4381
        %v4386 = vsel %vm828, %v4383, %v4379
        %v4387 = vadd.f32 %v4318, %v4386
        %v4388 = vadd.f32 %v4319, %v4385
        %v4389 = vadd.f32 %v4320, %v4384
        %v4390 = vmul.f32 %v4375, 2.0
        %v4391 = vmul.f32 %v4376, 2.0
        %v4392 = vmul.f32 %v4377, 2.0
        %v4393 = vadd.f32 %v4387, %v4390
        %v4394 = vadd.f32 %v4388, %v4391
        %v4395 = vadd.f32 %v4389, %v4392
        %4396 = vrot.lane.b32.xlu0 %v4375, 110
        %v4397 = vpop.permute.xlu0 %4396
        %4398 = vrot.lane.b32.xlu0 %v4376, 110
        %v4399 = vpop.permute.xlu0 %4398
        %4400 = vrot.lane.b32.xlu0 %v4377, 110
        %v4401 = vpop.permute.xlu0 %4400
        %v4402 = vsel %vm2004, %v4399, %v4401
        %v4403 = vsel %vm2004, %v4397, %v4399
        %v4404 = vsel %vm2004, %v4401, %v4397
        %v4405 = vadd.f32 %v4393, %v4403
        %v4406 = vadd.f32 %v4394, %v4402
        %v4407 = vadd.f32 %v4395, %v4404
        %v4408 = vmul.f32 %v2765, 2.0
        %v4409 = vmul.f32 %v2766, 2.0
        %v4410 = vmul.f32 %v2767, 2.0
        %v4411 = vadd.f32 %v4346, %v4408
        %v4412 = vadd.f32 %v4343, %v4409
        %v4413 = vadd.f32 %v4340, %v4410
        %v4414 = vadd.f32 %v4411, %v4370
        %v4415 = vadd.f32 %v4412, %v4367
        %v4416 = vadd.f32 %v4413, %v4373
        %4417 = vrot.lane.b32.xlu0 %v4414, 18
        %v4418 = vpop.permute.xlu0 %4417
        %4419 = vrot.lane.b32.xlu0 %v4415, 18
        %v4420 = vpop.permute.xlu0 %4419
        %4421 = vrot.lane.b32.xlu0 %v4416, 18
        %v4422 = vpop.permute.xlu0 %4421
        %v4423 = vsel %vm828, %v4420, %v4422
        %v4424 = vsel %vm828, %v4418, %v4420
        %v4425 = vsel %vm828, %v4422, %v4418
        %v4426 = vadd.f32 %v4405, %v4425
        %v4427 = vadd.f32 %v4406, %v4424
        %v4428 = vadd.f32 %v4407, %v4423
        %4429 = vrot.lane.b32.xlu0 %v4414, 110
        %v4430 = vpop.permute.xlu0 %4429
        %4431 = vrot.lane.b32.xlu0 %v4415, 110
        %v4432 = vpop.permute.xlu0 %4431
        %4433 = vrot.lane.b32.xlu0 %v4416, 110
        %v4434 = vpop.permute.xlu0 %4433
        %v4435 = vsel %vm2004, %v4432, %v4434
        %v4436 = vsel %vm2004, %v4430, %v4432
        %v4437 = vsel %vm2004, %v4434, %v4430
        %v4438 = vsub.f32 %v4426, %v4436
        %v4439 = vsub.f32 %v4427, %v4435
        %v4440 = vsub.f32 %v4428, %v4437
        %v4441 = vadd.f32 %v4438, %v4347
        %v4442 = vadd.f32 %v4439, %v4344
        %v4443 = vadd.f32 %v4440, %v4341
        %v4444 = vadd.f32 %v4441, %v4371
        %v4445 = vadd.f32 %v4442, %v4368
        %v4446 = vadd.f32 %v4443, %v4374
        %4447 = vrot.lane.b32.xlu0 %v2768, 18
        %v4448 = vpop.permute.xlu0 %4447
        %4449 = vrot.lane.b32.xlu0 %v2769, 18
        %v4450 = vpop.permute.xlu0 %4449
        %4451 = vrot.lane.b32.xlu0 %v2770, 18
        %v4452 = vpop.permute.xlu0 %4451
        %v4453 = vsel %vm828, %v4450, %v4452
        %v4454 = vsel %vm828, %v4448, %v4450
        %v4455 = vsel %vm828, %v4452, %v4448
        %v4456 = vadd.f32 %v4444, %v4455
        %v4457 = vadd.f32 %v4445, %v4454
        %v4458 = vadd.f32 %v4446, %v4453
        %4459 = vrot.lane.b32.xlu0 %v2768, 110
        %v4460 = vpop.permute.xlu0 %4459
        %4461 = vrot.lane.b32.xlu0 %v2769, 110
        %v4462 = vpop.permute.xlu0 %4461
        %4463 = vrot.lane.b32.xlu0 %v2770, 110
        %v4464 = vpop.permute.xlu0 %4463
        %v4465 = vsel %vm2004, %v4462, %v4464
        %v4466 = vsel %vm2004, %v4460, %v4462
        %v4467 = vsel %vm2004, %v4464, %v4460
        %v4468 = vadd.f32 %v4456, %v4466
        %v4469 = vadd.f32 %v4457, %v4465
        %v4470 = vadd.f32 %v4458, %v4467
        %v4471 = vmul.f32 %v2768, 4.0
        %v4472 = vmul.f32 %v2769, 4.0
        %v4473 = vmul.f32 %v2770, 4.0
        %v4474 = vsub.f32 %v4468, %v4471
        %v4475 = vsub.f32 %v4469, %v4472
        %v4476 = vsub.f32 %v4470, %v4473
        %4478 = vset.pattern.permute.xlu0 0
        %4479 = vperm.xlu0 %4478, %v2525
        %v4480 = vpop.permute.xlu0 %4479
        %v4482 = vadd.f32 %v4474, %v4480
        %v4483 = vadd.f32 %v4475, %v4480
        %v4484 = vadd.f32 %v4476, %v4480
        %v4485 = vld [vmem:[#allocation10 + $0x30] sm:$0xff]
        %vm4486 = vcmp.ge.f32.partialorder %v4482, 0.0
        %vm4487 = vcmp.ge.f32.partialorder %v4483, 0.0
        %vm4488 = vcmp.ge.f32.partialorder %v4484, 0.0
        %4490 = vset.pattern.permute.xlu0 0
        %4491 = vperm.xlu0 %4490, %v4485
        %v4492 = vpop.permute.xlu0 %4491
        %v4494 = vmul.f32 %v4482, %v4492
        %v4495 = vmul.f32 %v4483, %v4492
        %v4496 = vmul.f32 %v4484, %v4492
        %v4497 = vsel %vm4486, %v4482, %v4494
        %v4498 = vsel %vm4487, %v4483, %v4495
        %v4499 = vsel %vm4488, %v4484, %v4496
        %v4500 = vsel %vm759, %v4497, 0.0
        %v4501 = vsel %vm760, %v4498, 0.0
        %v4502 = vsel %vm761, %v4499, 0.0
        %v4503 = vld [vmem:[%s10] sm:$0xff]
        %v4504 = vld [vmem:[%s10 + $0x8] sm:$0xff]
        %v4505 = vld [vmem:[%s10 + $0x10] sm:$0xff]
        %v4506 = vld [vmem:[%s10 + $0x18] sm:$0xff]
        %v4507 = vld [vmem:[%s10 + $0x20] sm:$0xff]
        %v4508 = vld [vmem:[%s10 + $0x28] sm:$0xff]
        %v4509 = vld [vmem:[%s10 + $0x30] sm:$0xff]
        %v4510 = vld [vmem:[%s10 + $0x38] sm:$0xff]
        %v4511 = vld [vmem:[%s10 + $0x40] sm:$0xff]
        %v4512 = vld [vmem:[%s10 + $0x48] sm:$0xff]
        %v4513 = vld [vmem:[%s10 + $0x50] sm:$0xff]
        %v4514 = vld [vmem:[#allocation13] sm:$0xff]
        %v4515 = vld [vmem:[#allocation13 + $0x8] sm:$0xff]
        %v4516 = vld [vmem:[#allocation13 + $0x10] sm:$0xff]
        %v4517 = vld [vmem:[#allocation13 + $0x18] sm:$0xff]
        %v4518 = vld [vmem:[#allocation13 + $0x20] sm:$0xff]
        %v4519 = vld [vmem:[#allocation13 + $0x28] sm:$0xff]
        %v4520 = vld [vmem:[#allocation13 + $0x30] sm:$0xff]
        %v4521 = vld [vmem:[#allocation13 + $0x38] sm:$0xff]
        %v4522 = vld [vmem:[#allocation13 + $0x40] sm:$0xff]
        %4524 = vset.pattern.permute.xlu0 0
        %4525 = vperm.xlu0 %4524, %v4503
        %v4526 = vpop.permute.xlu0 %4525
        %4529 = vset.pattern.permute.xlu0 0
        %4530 = vperm.xlu0 %4529, %v4504
        %v4531 = vpop.permute.xlu0 %4530
        %4534 = vset.pattern.permute.xlu0 0
        %4535 = vperm.xlu0 %4534, %v4505
        %v4536 = vpop.permute.xlu0 %4535
        %4539 = vset.pattern.permute.xlu0 0
        %4540 = vperm.xlu0 %4539, %v4506
        %v4541 = vpop.permute.xlu0 %4540
        %4544 = vset.pattern.permute.xlu0 0
        %4545 = vperm.xlu0 %4544, %v4507
        %v4546 = vpop.permute.xlu0 %4545
        %4549 = vset.pattern.permute.xlu0 0
        %4550 = vperm.xlu0 %4549, %v4508
        %v4551 = vpop.permute.xlu0 %4550
        %4554 = vset.pattern.permute.xlu0 0
        %4555 = vperm.xlu0 %4554, %v4509
        %v4556 = vpop.permute.xlu0 %4555
        %4559 = vset.pattern.permute.xlu0 0
        %4560 = vperm.xlu0 %4559, %v4510
        %v4561 = vpop.permute.xlu0 %4560
        %4564 = vset.pattern.permute.xlu0 0
        %4565 = vperm.xlu0 %4564, %v4511
        %v4566 = vpop.permute.xlu0 %4565
        %v4569 = vsel %vm545, %v4514, 0
        %v4572 = vsel %vm545, %v4515, 0
        %v4575 = vsel %vm545, %v4516, 0
        %v4578 = vsel %vm545, %v4517, 0
        %v4581 = vsel %vm545, %v4518, 0
        %v4584 = vsel %vm545, %v4519, 0
        %v4587 = vsel %vm545, %v4520, 0
        %v4590 = vsel %vm545, %v4521, 0
        %v4593 = vsel %vm545, %v4522, 0
        %4595 = vmatprep.subr.mxu0 %v4501
        %4596 = vmatpush1.msra.mxu0 %v4500
        %4597 = vmatprep.subr.mxu0 0.0
        %4598 = vmatpush1.msra.mxu0 0.0
        %4599 = vmatprep.subr.mxu0 0.0
        %4600 = vmatpush1.msra.mxu0 0.0
        %4601 = vmatprep.subr.mxu0 0.0
        %4602 = vmatpush1.msra.mxu0 0.0
        %4603 = vmatprep.subr.mxu0 0.0
        %4604 = vmatpush1.msra.mxu0 0.0
        %4605 = vmatprep.subr.mxu0 0.0
        %4606 = vmatpush1.msra.mxu0 0.0
        %4607 = vmatprep.subr.mxu0 0.0
        %4608 = vmatpush1.msra.mxu0 0.0
        %4609 = vmatprep.subr.mxu0 0.0
        %4610 = vmatpush1.msra.mxu0 0.0
        %4611 = vmatprep.subr.mxu0 0.0
        %4612 = vmatpush1.msra.mxu0 0.0
        %4613 = vmatprep.subr.mxu0 0.0
        %4614 = vmatpush1.msra.mxu0 0.0
        %4615 = vmatprep.subr.mxu0 0.0
        %4616 = vmatpush1.msra.mxu0 0.0
        %4617 = vmatprep.subr.mxu0 0.0
        %4618 = vmatpush1.msra.mxu0 0.0
        %4619 = vmatprep.subr.mxu0 0.0
        %4620 = vmatpush1.msra.mxu0 0.0
        %4621 = vmatprep.subr.mxu0 0.0
        %4622 = vmatpush1.msra.mxu0 0.0
        %4623 = vmatprep.subr.mxu0 0.0
        %4624 = vmatpush1.msra.mxu0 0.0
        %4625 = vmatprep.subr.mxu0 0.0
        %4626 = vmatpush1.msra.mxu0 0.0
        %4627 = vmatprep.subr.mxu0 0.0
        %4628 = vmatpush1.msra.mxu0 0.0
        %4629 = vmatprep.subr.mxu0 0.0
        %4630 = vmatpush1.msra.mxu0 0.0
        %4631 = vmatprep.subr.mxu0 0.0
        %4632 = vmatpush1.msra.mxu0 0.0
        %4633 = vmatprep.subr.mxu0 0.0
        %4634 = vmatpush1.msra.mxu0 0.0
        %4635 = vmatprep.subr.mxu0 0.0
        %4636 = vmatpush1.msra.mxu0 0.0
        %4637 = vmatprep.subr.mxu0 0.0
        %4638 = vmatpush1.msra.mxu0 0.0
        %4639 = vmatprep.subr.mxu0 0.0
        %4640 = vmatpush1.msra.mxu0 0.0
        %4641 = vmatprep.subr.mxu0 0.0
        %4642 = vmatpush1.msra.mxu0 0.0
        %4643 = vmatprep.subr.mxu0 0.0
        %4644 = vmatpush1.msra.mxu0 0.0
        %4645 = vmatprep.subr.mxu0 0.0
        %4646 = vmatpush1.msra.mxu0 0.0
        %4647 = vmatprep.subr.mxu0 0.0
        %4648 = vmatpush1.msra.mxu0 0.0
        %4649 = vmatprep.subr.mxu0 0.0
        %4650 = vmatpush1.msra.mxu0 0.0
        %4651 = vmatprep.subr.mxu0 0.0
        %4652 = vmatpush1.msra.mxu0 0.0
        %4653 = vmatprep.subr.mxu0 0.0
        %4654 = vmatpush1.msra.mxu0 0.0
        %4655 = vmatprep.subr.mxu0 0.0
        %4656 = vmatpush1.msra.mxu0 0.0
        %4657 = vmatprep.subr.mxu0 0.0
        %4658 = vmatpush1.msra.mxu0 0.0
        %4659 = vmatprep.mubr.f32.mxu0 0.0
        %4660 = vmatmul.mubr.f32.gmra.mrb[0].mxu0 %v4569
        %v4661 = vpop.f32.mrb[0].mxu0
        %v4662 = vadd.f32 %v4526, %v4661
        %v4663 = vpop.f32.mrb[0].mxu0
        %v4664 = vadd.f32 %v4526, %v4663
        %4665 = vmatprep.mubr.f32.mxu0 0.0
        %4666 = vmatmul.mubr.f32.gmra.mrb[0].mxu0 %v4572
        %v4667 = vpop.f32.mrb[0].mxu0
        %v4668 = vadd.f32 %v4531, %v4667
        %v4669 = vpop.f32.mrb[0].mxu0
        %v4670 = vadd.f32 %v4531, %v4669
        %4671 = vmatprep.mubr.f32.mxu0 0.0
        %4672 = vmatmul.mubr.f32.gmra.mrb[0].mxu0 %v4575
        %v4673 = vpop.f32.mrb[0].mxu0
        %v4674 = vadd.f32 %v4536, %v4673
        %v4675 = vpop.f32.mrb[0].mxu0
        %v4676 = vadd.f32 %v4536, %v4675
        %4677 = vmatprep.mubr.f32.mxu0 0.0
        %4678 = vmatmul.mubr.f32.gmra.mrb[0].mxu0 %v4578
        %v4679 = vpop.f32.mrb[0].mxu0
        %v4680 = vadd.f32 %v4541, %v4679
        %v4681 = vpop.f32.mrb[0].mxu0
        %v4682 = vadd.f32 %v4541, %v4681
        %4683 = vmatprep.mubr.f32.mxu0 0.0
        %4684 = vmatmul.mubr.f32.gmra.mrb[0].mxu0 %v4581
        %v4685 = vpop.f32.mrb[0].mxu0
        %v4686 = vadd.f32 %v4546, %v4685
        %v4687 = vpop.f32.mrb[0].mxu0
        %v4688 = vadd.f32 %v4546, %v4687
        %4689 = vmatprep.mubr.f32.mxu0 0.0
        %4690 = vmatmul.mubr.f32.gmra.mrb[0].mxu0 %v4584
        %v4691 = vpop.f32.mrb[0].mxu0
        %v4692 = vadd.f32 %v4551, %v4691
        %v4693 = vpop.f32.mrb[0].mxu0
        %v4694 = vadd.f32 %v4551, %v4693
        %4695 = vmatprep.mubr.f32.mxu0 0.0
        %4696 = vmatmul.mubr.f32.gmra.mrb[0].mxu0 %v4587
        %v4697 = vpop.f32.mrb[0].mxu0
        %v4698 = vadd.f32 %v4556, %v4697
        %v4699 = vpop.f32.mrb[0].mxu0
        %v4700 = vadd.f32 %v4556, %v4699
        %4701 = vmatprep.mubr.f32.mxu0 0.0
        %4702 = vmatmul.mubr.f32.gmra.mrb[0].mxu0 %v4590
        %v4703 = vpop.f32.mrb[0].mxu0
        %v4704 = vadd.f32 %v4561, %v4703
        %v4705 = vpop.f32.mrb[0].mxu0
        %v4706 = vadd.f32 %v4561, %v4705
        %4707 = vmatprep.mubr.f32.mxu0 0.0
        %4708 = vmatmul.mubr.f32.gmra.mrb[0].mxu0 %v4593
        %v4709 = vpop.f32.mrb[0].mxu0
        %v4710 = vadd.f32 %v4566, %v4709
        %v4711 = vpop.f32.mrb[0].mxu0
        %v4712 = vadd.f32 %v4566, %v4711
        %4713 = vdwg.mxu0
        %4714 = vmatprep.subr.mxu0 0.0
        %4715 = vmatpush1.msra.mxu0 %v4502
        %4716 = vmatprep.subr.mxu0 0.0
        %4717 = vmatpush1.msra.mxu0 0.0
        %4718 = vmatprep.subr.mxu0 0.0
        %4719 = vmatpush1.msra.mxu0 0.0
        %4720 = vmatprep.subr.mxu0 0.0
        %4721 = vmatpush1.msra.mxu0 0.0
        %4722 = vmatprep.subr.mxu0 0.0
        %4723 = vmatpush1.msra.mxu0 0.0
        %4724 = vmatprep.subr.mxu0 0.0
        %4725 = vmatpush1.msra.mxu0 0.0
        %4726 = vmatprep.subr.mxu0 0.0
        %4727 = vmatpush1.msra.mxu0 0.0
        %4728 = vmatprep.subr.mxu0 0.0
        %4729 = vmatpush1.msra.mxu0 0.0
        %4730 = vmatprep.subr.mxu0 0.0
        %4731 = vmatpush1.msra.mxu0 0.0
        %4732 = vmatprep.subr.mxu0 0.0
        %4733 = vmatpush1.msra.mxu0 0.0
        %4734 = vmatprep.subr.mxu0 0.0
        %4735 = vmatpush1.msra.mxu0 0.0
        %4736 = vmatprep.subr.mxu0 0.0
        %4737 = vmatpush1.msra.mxu0 0.0
        %4738 = vmatprep.subr.mxu0 0.0
        %4739 = vmatpush1.msra.mxu0 0.0
        %4740 = vmatprep.subr.mxu0 0.0
        %4741 = vmatpush1.msra.mxu0 0.0
        %4742 = vmatprep.subr.mxu0 0.0
        %4743 = vmatpush1.msra.mxu0 0.0
        %4744 = vmatprep.subr.mxu0 0.0
        %4745 = vmatpush1.msra.mxu0 0.0
        %4746 = vmatprep.subr.mxu0 0.0
        %4747 = vmatpush1.msra.mxu0 0.0
        %4748 = vmatprep.subr.mxu0 0.0
        %4749 = vmatpush1.msra.mxu0 0.0
        %4750 = vmatprep.subr.mxu0 0.0
        %4751 = vmatpush1.msra.mxu0 0.0
        %4752 = vmatprep.subr.mxu0 0.0
        %4753 = vmatpush1.msra.mxu0 0.0
        %4754 = vmatprep.subr.mxu0 0.0
        %4755 = vmatpush1.msra.mxu0 0.0
        %4756 = vmatprep.subr.mxu0 0.0
        %4757 = vmatpush1.msra.mxu0 0.0
        %4758 = vmatprep.subr.mxu0 0.0
        %4759 = vmatpush1.msra.mxu0 0.0
        %4760 = vmatprep.subr.mxu0 0.0
        %4761 = vmatpush1.msra.mxu0 0.0
        %4762 = vmatprep.subr.mxu0 0.0
        %4763 = vmatpush1.msra.mxu0 0.0
        %4764 = vmatprep.subr.mxu0 0.0
        %4765 = vmatpush1.msra.mxu0 0.0
        %4766 = vmatprep.subr.mxu0 0.0
        %4767 = vmatpush1.msra.mxu0 0.0
        %4768 = vmatprep.subr.mxu0 0.0
        %4769 = vmatpush1.msra.mxu0 0.0
        %4770 = vmatprep.subr.mxu0 0.0
        %4771 = vmatpush1.msra.mxu0 0.0
        %4772 = vmatprep.subr.mxu0 0.0
        %4773 = vmatpush1.msra.mxu0 0.0
        %4774 = vmatprep.subr.mxu0 0.0
        %4775 = vmatpush1.msra.mxu0 0.0
        %4776 = vmatprep.subr.mxu0 0.0
        %4777 = vmatpush1.msra.mxu0 0.0
        %4778 = vmatprep.mubr.f32.mxu0 0.0
        %4779 = vmatmul.mubr.f32.gmra.mrb[0].mxu0 %v4569
        %v4780 = vpop.f32.mrb[0].mxu0
        %v4781 = vadd.f32 %v4526, %v4780
        %v4782 = vpop.f32.mrb[0].mxu0
        %4783 = vmatprep.mubr.f32.mxu0 0.0
        %4784 = vmatmul.mubr.f32.gmra.mrb[0].mxu0 %v4572
        %v4785 = vpop.f32.mrb[0].mxu0
        %v4786 = vadd.f32 %v4531, %v4785
        %v4787 = vpop.f32.mrb[0].mxu0
        %4788 = vmatprep.mubr.f32.mxu0 0.0
        %4789 = vmatmul.mubr.f32.gmra.mrb[0].mxu0 %v4575
        %v4790 = vpop.f32.mrb[0].mxu0
        %v4791 = vadd.f32 %v4536, %v4790
        %v4792 = vpop.f32.mrb[0].mxu0
        %4793 = vmatprep.mubr.f32.mxu0 0.0
        %4794 = vmatmul.mubr.f32.gmra.mrb[0].mxu0 %v4578
        %v4795 = vpop.f32.mrb[0].mxu0
        %v4796 = vadd.f32 %v4541, %v4795
        %v4797 = vpop.f32.mrb[0].mxu0
        %4798 = vmatprep.mubr.f32.mxu0 0.0
        %4799 = vmatmul.mubr.f32.gmra.mrb[0].mxu0 %v4581
        %v4800 = vpop.f32.mrb[0].mxu0
        %v4801 = vadd.f32 %v4546, %v4800
        %v4802 = vpop.f32.mrb[0].mxu0
        %4803 = vmatprep.mubr.f32.mxu0 0.0
        %4804 = vmatmul.mubr.f32.gmra.mrb[0].mxu0 %v4584
        %v4805 = vpop.f32.mrb[0].mxu0
        %v4806 = vadd.f32 %v4551, %v4805
        %v4807 = vpop.f32.mrb[0].mxu0
        %4808 = vmatprep.mubr.f32.mxu0 0.0
        %4809 = vmatmul.mubr.f32.gmra.mrb[0].mxu0 %v4587
        %v4810 = vpop.f32.mrb[0].mxu0
        %v4811 = vadd.f32 %v4556, %v4810
        %v4812 = vpop.f32.mrb[0].mxu0
        %4813 = vmatprep.mubr.f32.mxu0 0.0
        %4814 = vmatmul.mubr.f32.gmra.mrb[0].mxu0 %v4590
        %v4815 = vpop.f32.mrb[0].mxu0
        %v4816 = vadd.f32 %v4561, %v4815
        %v4817 = vpop.f32.mrb[0].mxu0
        %4818 = vmatprep.mubr.f32.mxu0 0.0
        %4819 = vmatmul.mubr.f32.gmra.mrb[0].mxu0 %v4593
        %v4820 = vpop.f32.mrb[0].mxu0
        %v4821 = vadd.f32 %v4566, %v4820
        %v4822 = vpop.f32.mrb[0].mxu0
        %4823 = vdwg.mxu0
        %v4824 = vsel %vm759, %v4662, 0.0
        %v4825 = vsel %vm760, %v4664, 0.0
        %v4826 = vsel %vm761, %v4781, 0.0
        %v4827 = vsel %vm759, %v4668, 0.0
        %v4828 = vsel %vm760, %v4670, 0.0
        %v4829 = vsel %vm761, %v4786, 0.0
        %v4830 = vsel %vm759, %v4674, 0.0
        %v4831 = vsel %vm760, %v4676, 0.0
        %v4832 = vsel %vm761, %v4791, 0.0
        %v4833 = vsel %vm759, %v4680, 0.0
        %v4834 = vsel %vm760, %v4682, 0.0
        %v4835 = vsel %vm761, %v4796, 0.0
        %v4836 = vsel %vm759, %v4686, 0.0
        %v4837 = vsel %vm760, %v4688, 0.0
        %v4838 = vsel %vm761, %v4801, 0.0
        %v4839 = vsel %vm759, %v4692, 0.0
        %v4840 = vsel %vm760, %v4694, 0.0
        %v4841 = vsel %vm761, %v4806, 0.0
        %v4842 = vsel %vm759, %v4698, 0.0
        %v4843 = vsel %vm760, %v4700, 0.0
        %v4844 = vsel %vm761, %v4811, 0.0
        %v4845 = vsel %vm759, %v4704, 0.0
        %v4846 = vsel %vm760, %v4706, 0.0
        %v4847 = vsel %vm761, %v4816, 0.0
        %v4848 = vsel %vm759, %v4710, 0.0
        %v4849 = vsel %vm760, %v4712, 0.0
        %v4850 = vsel %vm761, %v4821, 0.0
        %v4851 = vld [vmem:[#allocation12] sm:$0xff]
        %v4852 = vld [vmem:[#allocation12 + $0x8] sm:$0xff]
        %4853 = vrot.lane.b32.xlu0 %v4500, 19
        %v4854 = vpop.permute.xlu0 %4853
        %4855 = vrot.lane.b32.xlu0 %v4824, 19
        %v4856 = vpop.permute.xlu0 %4855
        %4857 = vrot.lane.b32.xlu0 %v4827, 19
        %v4858 = vpop.permute.xlu0 %4857
        %4859 = vrot.lane.b32.xlu0 %v4830, 19
        %v4860 = vpop.permute.xlu0 %4859
        %4861 = vrot.lane.b32.xlu0 %v4501, 19
        %v4862 = vpop.permute.xlu0 %4861
        %4863 = vrot.lane.b32.xlu0 %v4825, 19
        %v4864 = vpop.permute.xlu0 %4863
        %4865 = vrot.lane.b32.xlu0 %v4828, 19
        %v4866 = vpop.permute.xlu0 %4865
        %4867 = vrot.lane.b32.xlu0 %v4831, 19
        %v4868 = vpop.permute.xlu0 %4867
        %4869 = vrot.lane.b32.xlu0 %v4502, 19
        %v4870 = vpop.permute.xlu0 %4869
        %4871 = vrot.lane.b32.xlu0 %v4826, 19
        %v4872 = vpop.permute.xlu0 %4871
        %4873 = vrot.lane.b32.xlu0 %v4829, 19
        %v4874 = vpop.permute.xlu0 %4873
        %4875 = vrot.lane.b32.xlu0 %v4832, 19
        %v4876 = vpop.permute.xlu0 %4875
        %v4877 = vsel %vm798, %v4862, %v4870
        %v4878 = vsel %vm798, %v4864, %v4872
        %v4879 = vsel %vm798, %v4866, %v4874
        %v4880 = vsel %vm798, %v4868, %v4876
        %v4881 = vsel %vm798, %v4854, %v4862
        %v4882 = vsel %vm798, %v4856, %v4864
        %v4883 = vsel %vm798, %v4858, %v4866
        %v4884 = vsel %vm798, %v4860, %v4868
        %v4885 = vsel %vm798, %v4870, %v4854
        %v4886 = vsel %vm798, %v4872, %v4856
        %v4887 = vsel %vm798, %v4874, %v4858
        %v4888 = vsel %vm798, %v4876, %v4860
        %s4889 = scalar_lea.vmem [#allocation12], 16
        %v4890 = vld [vmem:[%s4889] sm:$0xff]
        %v4891 = vld [vmem:[%s4889 + $0x8] sm:$0xff]
        %4892 = vrot.lane.b32.xlu0 %v4500, 18
        %v4893 = vpop.permute.xlu0 %4892
        %4894 = vrot.lane.b32.xlu0 %v4824, 18
        %v4895 = vpop.permute.xlu0 %4894
        %4896 = vrot.lane.b32.xlu0 %v4827, 18
        %v4897 = vpop.permute.xlu0 %4896
        %4898 = vrot.lane.b32.xlu0 %v4830, 18
        %v4899 = vpop.permute.xlu0 %4898
        %4900 = vrot.lane.b32.xlu0 %v4501, 18
        %v4901 = vpop.permute.xlu0 %4900
        %4902 = vrot.lane.b32.xlu0 %v4825, 18
        %v4903 = vpop.permute.xlu0 %4902
        %4904 = vrot.lane.b32.xlu0 %v4828, 18
        %v4905 = vpop.permute.xlu0 %4904
        %4906 = vrot.lane.b32.xlu0 %v4831, 18
        %v4907 = vpop.permute.xlu0 %4906
        %4908 = vrot.lane.b32.xlu0 %v4502, 18
        %v4909 = vpop.permute.xlu0 %4908
        %4910 = vrot.lane.b32.xlu0 %v4826, 18
        %v4911 = vpop.permute.xlu0 %4910
        %4912 = vrot.lane.b32.xlu0 %v4829, 18
        %v4913 = vpop.permute.xlu0 %4912
        %4914 = vrot.lane.b32.xlu0 %v4832, 18
        %v4915 = vpop.permute.xlu0 %4914
        %v4916 = vsel %vm828, %v4901, %v4909
        %v4917 = vsel %vm828, %v4903, %v4911
        %v4918 = vsel %vm828, %v4905, %v4913
        %v4919 = vsel %vm828, %v4907, %v4915
        %v4920 = vsel %vm828, %v4893, %v4901
        %v4921 = vsel %vm828, %v4895, %v4903
        %v4922 = vsel %vm828, %v4897, %v4905
        %v4923 = vsel %vm828, %v4899, %v4907
        %v4924 = vsel %vm828, %v4909, %v4893
        %v4925 = vsel %vm828, %v4911, %v4895
        %v4926 = vsel %vm828, %v4913, %v4897
        %v4927 = vsel %vm828, %v4915, %v4899
        %vm4928 = vcmask 261120
        %v4930 = vsel %vm4928, %v4890, 0
        %v4933 = vsel %vm4928, %v4891, 0
        %4935 = vmatprep.subr.mxu0 %v4920
        %4936 = vmatpush1.msra.mxu0 %v4924
        %4937 = vmatprep.subr.mxu0 %v4921
        %4938 = vmatpush1.msra.mxu0 %v4925
        %4939 = vmatprep.subr.mxu0 %v4922
        %4940 = vmatpush1.msra.mxu0 %v4926
        %4941 = vmatprep.subr.mxu0 %v4923
        %4942 = vmatpush1.msra.mxu0 %v4927
        %4943 = vmatprep.subr.mxu0 0.0
        %4944 = vmatpush1.msra.mxu0 0.0
        %4945 = vmatprep.subr.mxu0 0.0
        %4946 = vmatpush1.msra.mxu0 0.0
        %4947 = vmatprep.subr.mxu0 0.0
        %4948 = vmatpush1.msra.mxu0 0.0
        %4949 = vmatprep.subr.mxu0 0.0
        %4950 = vmatpush1.msra.mxu0 0.0
        %4951 = vmatprep.subr.mxu0 0.0
        %4952 = vmatpush1.msra.mxu0 0.0
        %4953 = vmatprep.subr.mxu0 0.0
        %4954 = vmatpush1.msra.mxu0 0.0
        %4955 = vmatprep.subr.mxu0 0.0
        %4956 = vmatpush1.msra.mxu0 0.0
        %4957 = vmatprep.subr.mxu0 0.0
        %4958 = vmatpush1.msra.mxu0 0.0
        %4959 = vmatprep.subr.mxu0 0.0
        %4960 = vmatpush1.msra.mxu0 0.0
        %4961 = vmatprep.subr.mxu0 0.0
        %4962 = vmatpush1.msra.mxu0 0.0
        %4963 = vmatprep.subr.mxu0 0.0
        %4964 = vmatpush1.msra.mxu0 0.0
        %4965 = vmatprep.subr.mxu0 0.0
        %4966 = vmatpush1.msra.mxu0 0.0
        %4967 = vmatprep.subr.mxu0 0.0
        %4968 = vmatpush1.msra.mxu0 0.0
        %4969 = vmatprep.subr.mxu0 0.0
        %4970 = vmatpush1.msra.mxu0 0.0
        %4971 = vmatprep.subr.mxu0 0.0
        %4972 = vmatpush1.msra.mxu0 0.0
        %4973 = vmatprep.subr.mxu0 0.0
        %4974 = vmatpush1.msra.mxu0 0.0
        %4975 = vmatprep.subr.mxu0 0.0
        %4976 = vmatpush1.msra.mxu0 0.0
        %4977 = vmatprep.subr.mxu0 0.0
        %4978 = vmatpush1.msra.mxu0 0.0
        %4979 = vmatprep.subr.mxu0 0.0
        %4980 = vmatpush1.msra.mxu0 0.0
        %4981 = vmatprep.subr.mxu0 0.0
        %4982 = vmatpush1.msra.mxu0 0.0
        %4983 = vmatprep.subr.mxu0 0.0
        %4984 = vmatpush1.msra.mxu0 0.0
        %4985 = vmatprep.subr.mxu0 0.0
        %4986 = vmatpush1.msra.mxu0 0.0
        %4987 = vmatprep.subr.mxu0 0.0
        %4988 = vmatpush1.msra.mxu0 0.0
        %4989 = vmatprep.subr.mxu0 0.0
        %4990 = vmatpush1.msra.mxu0 0.0
        %4991 = vmatprep.subr.mxu0 0.0
        %4992 = vmatpush1.msra.mxu0 0.0
        %4993 = vmatprep.subr.mxu0 0.0
        %4994 = vmatpush1.msra.mxu0 0.0
        %4995 = vmatprep.subr.mxu0 0.0
        %4996 = vmatpush1.msra.mxu0 0.0
        %4997 = vmatprep.subr.mxu0 0.0
        %4998 = vmatpush1.msra.mxu0 0.0
        %4999 = vmatprep.mubr.f32.mxu0 0.0
        %5000 = vmatmul.mubr.f32.gmra.mrb[0].mxu0 %v4930
        %v5001 = vpop.f32.mrb[0].mxu0
        %v5002 = vadd.f32 0.0, %v5001
        %v5003 = vpop.f32.mrb[0].mxu0
        %v5004 = vadd.f32 0.0, %v5003
        %5005 = vmatprep.mubr.f32.mxu0 0.0
        %5006 = vmatmul.mubr.f32.gmra.mrb[0].mxu0 %v4933
        %v5007 = vpop.f32.mrb[0].mxu0
        %v5008 = vadd.f32 0.0, %v5007
        %v5009 = vpop.f32.mrb[0].mxu0
        %v5010 = vadd.f32 0.0, %v5009
        %5011 = vdwg.mxu0
        %5012 = vmatprep.subr.mxu0 0.0
        %5013 = vmatpush1.msra.mxu0 %v4916
        %5014 = vmatprep.subr.mxu0 0.0
        %5015 = vmatpush1.msra.mxu0 %v4917
        %5016 = vmatprep.subr.mxu0 0.0
        %5017 = vmatpush1.msra.mxu0 %v4918
        %5018 = vmatprep.subr.mxu0 0.0
        %5019 = vmatpush1.msra.mxu0 %v4919
        %5020 = vmatprep.subr.mxu0 0.0
        %5021 = vmatpush1.msra.mxu0 0.0
        %5022 = vmatprep.subr.mxu0 0.0
        %5023 = vmatpush1.msra.mxu0 0.0
        %5024 = vmatprep.subr.mxu0 0.0
        %5025 = vmatpush1.msra.mxu0 0.0
        %5026 = vmatprep.subr.mxu0 0.0
        %5027 = vmatpush1.msra.mxu0 0.0
        %5028 = vmatprep.subr.mxu0 0.0
        %5029 = vmatpush1.msra.mxu0 0.0
        %5030 = vmatprep.subr.mxu0 0.0
        %5031 = vmatpush1.msra.mxu0 0.0
        %5032 = vmatprep.subr.mxu0 0.0
        %5033 = vmatpush1.msra.mxu0 0.0
        %5034 = vmatprep.subr.mxu0 0.0
        %5035 = vmatpush1.msra.mxu0 0.0
        %5036 = vmatprep.subr.mxu0 0.0
        %5037 = vmatpush1.msra.mxu0 0.0
        %5038 = vmatprep.subr.mxu0 0.0
        %5039 = vmatpush1.msra.mxu0 0.0
        %5040 = vmatprep.subr.mxu0 0.0
        %5041 = vmatpush1.msra.mxu0 0.0
        %5042 = vmatprep.subr.mxu0 0.0
        %5043 = vmatpush1.msra.mxu0 0.0
        %5044 = vmatprep.subr.mxu0 0.0
        %5045 = vmatpush1.msra.mxu0 0.0
        %5046 = vmatprep.subr.mxu0 0.0
        %5047 = vmatpush1.msra.mxu0 0.0
        %5048 = vmatprep.subr.mxu0 0.0
        %5049 = vmatpush1.msra.mxu0 0.0
        %5050 = vmatprep.subr.mxu0 0.0
        %5051 = vmatpush1.msra.mxu0 0.0
        %5052 = vmatprep.subr.mxu0 0.0
        %5053 = vmatpush1.msra.mxu0 0.0
        %5054 = vmatprep.subr.mxu0 0.0
        %5055 = vmatpush1.msra.mxu0 0.0
        %5056 = vmatprep.subr.mxu0 0.0
        %5057 = vmatpush1.msra.mxu0 0.0
        %5058 = vmatprep.subr.mxu0 0.0
        %5059 = vmatpush1.msra.mxu0 0.0
        %5060 = vmatprep.subr.mxu0 0.0
        %5061 = vmatpush1.msra.mxu0 0.0
        %5062 = vmatprep.subr.mxu0 0.0
        %5063 = vmatpush1.msra.mxu0 0.0
        %5064 = vmatprep.subr.mxu0 0.0
        %5065 = vmatpush1.msra.mxu0 0.0
        %5066 = vmatprep.subr.mxu0 0.0
        %5067 = vmatpush1.msra.mxu0 0.0
        %5068 = vmatprep.subr.mxu0 0.0
        %5069 = vmatpush1.msra.mxu0 0.0
        %5070 = vmatprep.subr.mxu0 0.0
        %5071 = vmatpush1.msra.mxu0 0.0
        %5072 = vmatprep.subr.mxu0 0.0
        %5073 = vmatpush1.msra.mxu0 0.0
        %5074 = vmatprep.subr.mxu0 0.0
        %5075 = vmatpush1.msra.mxu0 0.0
        %5076 = vmatprep.mubr.f32.mxu0 0.0
        %5077 = vmatmul.mubr.f32.gmra.mrb[0].mxu0 %v4930
        %v5078 = vpop.f32.mrb[0].mxu0
        %v5079 = vadd.f32 0.0, %v5078
        %v5080 = vpop.f32.mrb[0].mxu0
        %5081 = vmatprep.mubr.f32.mxu0 0.0
        %5082 = vmatmul.mubr.f32.gmra.mrb[0].mxu0 %v4933
        %v5083 = vpop.f32.mrb[0].mxu0
        %v5084 = vadd.f32 0.0, %v5083
        %v5085 = vpop.f32.mrb[0].mxu0
        %5086 = vdwg.mxu0
        %v5088 = vsel %vm4928, %v4851, 0
        %v5091 = vsel %vm4928, %v4852, 0
        %5093 = vmatprep.subr.mxu0 %v4881
        %5094 = vmatpush1.msra.mxu0 %v4885
        %5095 = vmatprep.subr.mxu0 %v4882
        %5096 = vmatpush1.msra.mxu0 %v4886
        %5097 = vmatprep.subr.mxu0 %v4883
        %5098 = vmatpush1.msra.mxu0 %v4887
        %5099 = vmatprep.subr.mxu0 %v4884
        %5100 = vmatpush1.msra.mxu0 %v4888
        %5101 = vmatprep.subr.mxu0 0.0
        %5102 = vmatpush1.msra.mxu0 0.0
        %5103 = vmatprep.subr.mxu0 0.0
        %5104 = vmatpush1.msra.mxu0 0.0
        %5105 = vmatprep.subr.mxu0 0.0
        %5106 = vmatpush1.msra.mxu0 0.0
        %5107 = vmatprep.subr.mxu0 0.0
        %5108 = vmatpush1.msra.mxu0 0.0
        %5109 = vmatprep.subr.mxu0 0.0
        %5110 = vmatpush1.msra.mxu0 0.0
        %5111 = vmatprep.subr.mxu0 0.0
        %5112 = vmatpush1.msra.mxu0 0.0
        %5113 = vmatprep.subr.mxu0 0.0
        %5114 = vmatpush1.msra.mxu0 0.0
        %5115 = vmatprep.subr.mxu0 0.0
        %5116 = vmatpush1.msra.mxu0 0.0
        %5117 = vmatprep.subr.mxu0 0.0
        %5118 = vmatpush1.msra.mxu0 0.0
        %5119 = vmatprep.subr.mxu0 0.0
        %5120 = vmatpush1.msra.mxu0 0.0
        %5121 = vmatprep.subr.mxu0 0.0
        %5122 = vmatpush1.msra.mxu0 0.0
        %5123 = vmatprep.subr.mxu0 0.0
        %5124 = vmatpush1.msra.mxu0 0.0
        %5125 = vmatprep.subr.mxu0 0.0
        %5126 = vmatpush1.msra.mxu0 0.0
        %5127 = vmatprep.subr.mxu0 0.0
        %5128 = vmatpush1.msra.mxu0 0.0
        %5129 = vmatprep.subr.mxu0 0.0
        %5130 = vmatpush1.msra.mxu0 0.0
        %5131 = vmatprep.subr.mxu0 0.0
        %5132 = vmatpush1.msra.mxu0 0.0
        %5133 = vmatprep.subr.mxu0 0.0
        %5134 = vmatpush1.msra.mxu0 0.0
        %5135 = vmatprep.subr.mxu0 0.0
        %5136 = vmatpush1.msra.mxu0 0.0
        %5137 = vmatprep.subr.mxu0 0.0
        %5138 = vmatpush1.msra.mxu0 0.0
        %5139 = vmatprep.subr.mxu0 0.0
        %5140 = vmatpush1.msra.mxu0 0.0
        %5141 = vmatprep.subr.mxu0 0.0
        %5142 = vmatpush1.msra.mxu0 0.0
        %5143 = vmatprep.subr.mxu0 0.0
        %5144 = vmatpush1.msra.mxu0 0.0
        %5145 = vmatprep.subr.mxu0 0.0
        %5146 = vmatpush1.msra.mxu0 0.0
        %5147 = vmatprep.subr.mxu0 0.0
        %5148 = vmatpush1.msra.mxu0 0.0
        %5149 = vmatprep.subr.mxu0 0.0
        %5150 = vmatpush1.msra.mxu0 0.0
        %5151 = vmatprep.subr.mxu0 0.0
        %5152 = vmatpush1.msra.mxu0 0.0
        %5153 = vmatprep.subr.mxu0 0.0
        %5154 = vmatpush1.msra.mxu0 0.0
        %5155 = vmatprep.subr.mxu0 0.0
        %5156 = vmatpush1.msra.mxu0 0.0
        %5157 = vmatprep.mubr.f32.mxu0 0.0
        %5158 = vmatmul.mubr.f32.gmra.mrb[0].mxu0 %v5088
        %v5159 = vpop.f32.mrb[0].mxu0
        %v5160 = vadd.f32 %v5002, %v5159
        %v5161 = vpop.f32.mrb[0].mxu0
        %v5162 = vadd.f32 %v5004, %v5161
        %5163 = vmatprep.mubr.f32.mxu0 0.0
        %5164 = vmatmul.mubr.f32.gmra.mrb[0].mxu0 %v5091
        %v5165 = vpop.f32.mrb[0].mxu0
        %v5166 = vadd.f32 %v5008, %v5165
        %v5167 = vpop.f32.mrb[0].mxu0
        %v5168 = vadd.f32 %v5010, %v5167
        %5169 = vdwg.mxu0
        %5170 = vmatprep.subr.mxu0 0.0
        %5171 = vmatpush1.msra.mxu0 %v4877
        %5172 = vmatprep.subr.mxu0 0.0
        %5173 = vmatpush1.msra.mxu0 %v4878
        %5174 = vmatprep.subr.mxu0 0.0
        %5175 = vmatpush1.msra.mxu0 %v4879
        %5176 = vmatprep.subr.mxu0 0.0
        %5177 = vmatpush1.msra.mxu0 %v4880
        %5178 = vmatprep.subr.mxu0 0.0
        %5179 = vmatpush1.msra.mxu0 0.0
        %5180 = vmatprep.subr.mxu0 0.0
        %5181 = vmatpush1.msra.mxu0 0.0
        %5182 = vmatprep.subr.mxu0 0.0
        %5183 = vmatpush1.msra.mxu0 0.0
        %5184 = vmatprep.subr.mxu0 0.0
        %5185 = vmatpush1.msra.mxu0 0.0
        %5186 = vmatprep.subr.mxu0 0.0
        %5187 = vmatpush1.msra.mxu0 0.0
        %5188 = vmatprep.subr.mxu0 0.0
        %5189 = vmatpush1.msra.mxu0 0.0
        %5190 = vmatprep.subr.mxu0 0.0
        %5191 = vmatpush1.msra.mxu0 0.0
        %5192 = vmatprep.subr.mxu0 0.0
        %5193 = vmatpush1.msra.mxu0 0.0
        %5194 = vmatprep.subr.mxu0 0.0
        %5195 = vmatpush1.msra.mxu0 0.0
        %5196 = vmatprep.subr.mxu0 0.0
        %5197 = vmatpush1.msra.mxu0 0.0
        %5198 = vmatprep.subr.mxu0 0.0
        %5199 = vmatpush1.msra.mxu0 0.0
        %5200 = vmatprep.subr.mxu0 0.0
        %5201 = vmatpush1.msra.mxu0 0.0
        %5202 = vmatprep.subr.mxu0 0.0
        %5203 = vmatpush1.msra.mxu0 0.0
        %5204 = vmatprep.subr.mxu0 0.0
        %5205 = vmatpush1.msra.mxu0 0.0
        %5206 = vmatprep.subr.mxu0 0.0
        %5207 = vmatpush1.msra.mxu0 0.0
        %5208 = vmatprep.subr.mxu0 0.0
        %5209 = vmatpush1.msra.mxu0 0.0
        %5210 = vmatprep.subr.mxu0 0.0
        %5211 = vmatpush1.msra.mxu0 0.0
        %5212 = vmatprep.subr.mxu0 0.0
        %5213 = vmatpush1.msra.mxu0 0.0
        %5214 = vmatprep.subr.mxu0 0.0
        %5215 = vmatpush1.msra.mxu0 0.0
        %5216 = vmatprep.subr.mxu0 0.0
        %5217 = vmatpush1.msra.mxu0 0.0
        %5218 = vmatprep.subr.mxu0 0.0
        %5219 = vmatpush1.msra.mxu0 0.0
        %5220 = vmatprep.subr.mxu0 0.0
        %5221 = vmatpush1.msra.mxu0 0.0
        %5222 = vmatprep.subr.mxu0 0.0
        %5223 = vmatpush1.msra.mxu0 0.0
        %5224 = vmatprep.subr.mxu0 0.0
        %5225 = vmatpush1.msra.mxu0 0.0
        %5226 = vmatprep.subr.mxu0 0.0
        %5227 = vmatpush1.msra.mxu0 0.0
        %5228 = vmatprep.subr.mxu0 0.0
        %5229 = vmatpush1.msra.mxu0 0.0
        %5230 = vmatprep.subr.mxu0 0.0
        %5231 = vmatpush1.msra.mxu0 0.0
        %5232 = vmatprep.subr.mxu0 0.0
        %5233 = vmatpush1.msra.mxu0 0.0
        %5234 = vmatprep.mubr.f32.mxu0 0.0
        %5235 = vmatmul.mubr.f32.gmra.mrb[0].mxu0 %v5088
        %v5236 = vpop.f32.mrb[0].mxu0
        %v5237 = vadd.f32 %v5079, %v5236
        %v5238 = vpop.f32.mrb[0].mxu0
        %5239 = vmatprep.mubr.f32.mxu0 0.0
        %5240 = vmatmul.mubr.f32.gmra.mrb[0].mxu0 %v5091
        %v5241 = vpop.f32.mrb[0].mxu0
        %v5242 = vadd.f32 %v5084, %v5241
        %v5243 = vpop.f32.mrb[0].mxu0
        %5244 = vdwg.mxu0
        %s5245 = scalar_lea.vmem [#allocation12], 32
        %v5246 = vld [vmem:[%s5245] sm:$0xff]
        %v5247 = vld [vmem:[%s5245 + $0x8] sm:$0xff]
        %5248 = vrot.lane.b32.xlu0 %v4500, 17
        %v5249 = vpop.permute.xlu0 %5248
        %5250 = vrot.lane.b32.xlu0 %v4824, 17
        %v5251 = vpop.permute.xlu0 %5250
        %5252 = vrot.lane.b32.xlu0 %v4827, 17
        %v5253 = vpop.permute.xlu0 %5252
        %5254 = vrot.lane.b32.xlu0 %v4830, 17
        %v5255 = vpop.permute.xlu0 %5254
        %5256 = vrot.lane.b32.xlu0 %v4501, 17
        %v5257 = vpop.permute.xlu0 %5256
        %5258 = vrot.lane.b32.xlu0 %v4825, 17
        %v5259 = vpop.permute.xlu0 %5258
        %5260 = vrot.lane.b32.xlu0 %v4828, 17
        %v5261 = vpop.permute.xlu0 %5260
        %5262 = vrot.lane.b32.xlu0 %v4831, 17
        %v5263 = vpop.permute.xlu0 %5262
        %5264 = vrot.lane.b32.xlu0 %v4502, 17
        %v5265 = vpop.permute.xlu0 %5264
        %5266 = vrot.lane.b32.xlu0 %v4826, 17
        %v5267 = vpop.permute.xlu0 %5266
        %5268 = vrot.lane.b32.xlu0 %v4829, 17
        %v5269 = vpop.permute.xlu0 %5268
        %5270 = vrot.lane.b32.xlu0 %v4832, 17
        %v5271 = vpop.permute.xlu0 %5270
        %v5272 = vsel %vm1147, %v5257, %v5265
        %v5273 = vsel %vm1147, %v5259, %v5267
        %v5274 = vsel %vm1147, %v5261, %v5269
        %v5275 = vsel %vm1147, %v5263, %v5271
        %v5276 = vsel %vm1147, %v5249, %v5257
        %v5277 = vsel %vm1147, %v5251, %v5259
        %v5278 = vsel %vm1147, %v5253, %v5261
        %v5279 = vsel %vm1147, %v5255, %v5263
        %v5280 = vsel %vm1147, %v5265, %v5249
        %v5281 = vsel %vm1147, %v5267, %v5251
        %v5282 = vsel %vm1147, %v5269, %v5253
        %v5283 = vsel %vm1147, %v5271, %v5255
        %v5285 = vsel %vm4928, %v5246, 0
        %v5288 = vsel %vm4928, %v5247, 0
        %5290 = vmatprep.subr.mxu0 %v5276
        %5291 = vmatpush1.msra.mxu0 %v5280
        %5292 = vmatprep.subr.mxu0 %v5277
        %5293 = vmatpush1.msra.mxu0 %v5281
        %5294 = vmatprep.subr.mxu0 %v5278
        %5295 = vmatpush1.msra.mxu0 %v5282
        %5296 = vmatprep.subr.mxu0 %v5279
        %5297 = vmatpush1.msra.mxu0 %v5283
        %5298 = vmatprep.subr.mxu0 0.0
        %5299 = vmatpush1.msra.mxu0 0.0
        %5300 = vmatprep.subr.mxu0 0.0
        %5301 = vmatpush1.msra.mxu0 0.0
        %5302 = vmatprep.subr.mxu0 0.0
        %5303 = vmatpush1.msra.mxu0 0.0
        %5304 = vmatprep.subr.mxu0 0.0
        %5305 = vmatpush1.msra.mxu0 0.0
        %5306 = vmatprep.subr.mxu0 0.0
        %5307 = vmatpush1.msra.mxu0 0.0
        %5308 = vmatprep.subr.mxu0 0.0
        %5309 = vmatpush1.msra.mxu0 0.0
        %5310 = vmatprep.subr.mxu0 0.0
        %5311 = vmatpush1.msra.mxu0 0.0
        %5312 = vmatprep.subr.mxu0 0.0
        %5313 = vmatpush1.msra.mxu0 0.0
        %5314 = vmatprep.subr.mxu0 0.0
        %5315 = vmatpush1.msra.mxu0 0.0
        %5316 = vmatprep.subr.mxu0 0.0
        %5317 = vmatpush1.msra.mxu0 0.0
        %5318 = vmatprep.subr.mxu0 0.0
        %5319 = vmatpush1.msra.mxu0 0.0
        %5320 = vmatprep.subr.mxu0 0.0
        %5321 = vmatpush1.msra.mxu0 0.0
        %5322 = vmatprep.subr.mxu0 0.0
        %5323 = vmatpush1.msra.mxu0 0.0
        %5324 = vmatprep.subr.mxu0 0.0
        %5325 = vmatpush1.msra.mxu0 0.0
        %5326 = vmatprep.subr.mxu0 0.0
        %5327 = vmatpush1.msra.mxu0 0.0
        %5328 = vmatprep.subr.mxu0 0.0
        %5329 = vmatpush1.msra.mxu0 0.0
        %5330 = vmatprep.subr.mxu0 0.0
        %5331 = vmatpush1.msra.mxu0 0.0
        %5332 = vmatprep.subr.mxu0 0.0
        %5333 = vmatpush1.msra.mxu0 0.0
        %5334 = vmatprep.subr.mxu0 0.0
        %5335 = vmatpush1.msra.mxu0 0.0
        %5336 = vmatprep.subr.mxu0 0.0
        %5337 = vmatpush1.msra.mxu0 0.0
        %5338 = vmatprep.subr.mxu0 0.0
        %5339 = vmatpush1.msra.mxu0 0.0
        %5340 = vmatprep.subr.mxu0 0.0
        %5341 = vmatpush1.msra.mxu0 0.0
        %5342 = vmatprep.subr.mxu0 0.0
        %5343 = vmatpush1.msra.mxu0 0.0
        %5344 = vmatprep.subr.mxu0 0.0
        %5345 = vmatpush1.msra.mxu0 0.0
        %5346 = vmatprep.subr.mxu0 0.0
        %5347 = vmatpush1.msra.mxu0 0.0
        %5348 = vmatprep.subr.mxu0 0.0
        %5349 = vmatpush1.msra.mxu0 0.0
        %5350 = vmatprep.subr.mxu0 0.0
        %5351 = vmatpush1.msra.mxu0 0.0
        %5352 = vmatprep.subr.mxu0 0.0
        %5353 = vmatpush1.msra.mxu0 0.0
        %5354 = vmatprep.mubr.f32.mxu0 0.0
        %5355 = vmatmul.mubr.f32.gmra.mrb[0].mxu0 %v5285
        %v5356 = vpop.f32.mrb[0].mxu0
        %v5357 = vadd.f32 0.0, %v5356
        %v5358 = vpop.f32.mrb[0].mxu0
        %v5359 = vadd.f32 0.0, %v5358
        %5360 = vmatprep.mubr.f32.mxu0 0.0
        %5361 = vmatmul.mubr.f32.gmra.mrb[0].mxu0 %v5288
        %v5362 = vpop.f32.mrb[0].mxu0
        %v5363 = vadd.f32 0.0, %v5362
        %v5364 = vpop.f32.mrb[0].mxu0
        %v5365 = vadd.f32 0.0, %v5364
        %5366 = vdwg.mxu0
        %5367 = vmatprep.subr.mxu0 0.0
        %5368 = vmatpush1.msra.mxu0 %v5272
        %5369 = vmatprep.subr.mxu0 0.0
        %5370 = vmatpush1.msra.mxu0 %v5273
        %5371 = vmatprep.subr.mxu0 0.0
        %5372 = vmatpush1.msra.mxu0 %v5274
        %5373 = vmatprep.subr.mxu0 0.0
        %5374 = vmatpush1.msra.mxu0 %v5275
        %5375 = vmatprep.subr.mxu0 0.0
        %5376 = vmatpush1.msra.mxu0 0.0
        %5377 = vmatprep.subr.mxu0 0.0
        %5378 = vmatpush1.msra.mxu0 0.0
        %5379 = vmatprep.subr.mxu0 0.0
        %5380 = vmatpush1.msra.mxu0 0.0
        %5381 = vmatprep.subr.mxu0 0.0
        %5382 = vmatpush1.msra.mxu0 0.0
        %5383 = vmatprep.subr.mxu0 0.0
        %5384 = vmatpush1.msra.mxu0 0.0
        %5385 = vmatprep.subr.mxu0 0.0
        %5386 = vmatpush1.msra.mxu0 0.0
        %5387 = vmatprep.subr.mxu0 0.0
        %5388 = vmatpush1.msra.mxu0 0.0
        %5389 = vmatprep.subr.mxu0 0.0
        %5390 = vmatpush1.msra.mxu0 0.0
        %5391 = vmatprep.subr.mxu0 0.0
        %5392 = vmatpush1.msra.mxu0 0.0
        %5393 = vmatprep.subr.mxu0 0.0
        %5394 = vmatpush1.msra.mxu0 0.0
        %5395 = vmatprep.subr.mxu0 0.0
        %5396 = vmatpush1.msra.mxu0 0.0
        %5397 = vmatprep.subr.mxu0 0.0
        %5398 = vmatpush1.msra.mxu0 0.0
        %5399 = vmatprep.subr.mxu0 0.0
        %5400 = vmatpush1.msra.mxu0 0.0
        %5401 = vmatprep.subr.mxu0 0.0
        %5402 = vmatpush1.msra.mxu0 0.0
        %5403 = vmatprep.subr.mxu0 0.0
        %5404 = vmatpush1.msra.mxu0 0.0
        %5405 = vmatprep.subr.mxu0 0.0
        %5406 = vmatpush1.msra.mxu0 0.0
        %5407 = vmatprep.subr.mxu0 0.0
        %5408 = vmatpush1.msra.mxu0 0.0
        %5409 = vmatprep.subr.mxu0 0.0
        %5410 = vmatpush1.msra.mxu0 0.0
        %5411 = vmatprep.subr.mxu0 0.0
        %5412 = vmatpush1.msra.mxu0 0.0
        %5413 = vmatprep.subr.mxu0 0.0
        %5414 = vmatpush1.msra.mxu0 0.0
        %5415 = vmatprep.subr.mxu0 0.0
        %5416 = vmatpush1.msra.mxu0 0.0
        %5417 = vmatprep.subr.mxu0 0.0
        %5418 = vmatpush1.msra.mxu0 0.0
        %5419 = vmatprep.subr.mxu0 0.0
        %5420 = vmatpush1.msra.mxu0 0.0
        %5421 = vmatprep.subr.mxu0 0.0
        %5422 = vmatpush1.msra.mxu0 0.0
        %5423 = vmatprep.subr.mxu0 0.0
        %5424 = vmatpush1.msra.mxu0 0.0
        %5425 = vmatprep.subr.mxu0 0.0
        %5426 = vmatpush1.msra.mxu0 0.0
        %5427 = vmatprep.subr.mxu0 0.0
        %5428 = vmatpush1.msra.mxu0 0.0
        %5429 = vmatprep.subr.mxu0 0.0
        %5430 = vmatpush1.msra.mxu0 0.0
        %5431 = vmatprep.mubr.f32.mxu0 0.0
        %5432 = vmatmul.mubr.f32.gmra.mrb[0].mxu0 %v5285
        %v5433 = vpop.f32.mrb[0].mxu0
        %v5434 = vadd.f32 0.0, %v5433
        %v5435 = vpop.f32.mrb[0].mxu0
        %5436 = vmatprep.mubr.f32.mxu0 0.0
        %5437 = vmatmul.mubr.f32.gmra.mrb[0].mxu0 %v5288
        %v5438 = vpop.f32.mrb[0].mxu0
        %v5439 = vadd.f32 0.0, %v5438
        %v5440 = vpop.f32.mrb[0].mxu0
        %5441 = vdwg.mxu0
        %v5442 = vadd.f32 %v5160, %v5357
        %v5443 = vadd.f32 %v5162, %v5359
        %v5444 = vadd.f32 %v5237, %v5434
        %v5445 = vadd.f32 %v5166, %v5363
        %v5446 = vadd.f32 %v5168, %v5365
        %v5447 = vadd.f32 %v5242, %v5439
        %s5448 = scalar_lea.vmem [#allocation12], 48
        %v5449 = vld [vmem:[%s5448] sm:$0xff]
        %v5450 = vld [vmem:[%s5448 + $0x8] sm:$0xff]
        %5451 = vrot.lane.b32.xlu0 %v4500, 1
        %v5452 = vpop.permute.xlu0 %5451
        %5453 = vrot.lane.b32.xlu0 %v4824, 1
        %v5454 = vpop.permute.xlu0 %5453
        %5455 = vrot.lane.b32.xlu0 %v4827, 1
        %v5456 = vpop.permute.xlu0 %5455
        %5457 = vrot.lane.b32.xlu0 %v4830, 1
        %v5458 = vpop.permute.xlu0 %5457
        %5459 = vrot.lane.b32.xlu0 %v4501, 1
        %v5460 = vpop.permute.xlu0 %5459
        %5461 = vrot.lane.b32.xlu0 %v4825, 1
        %v5462 = vpop.permute.xlu0 %5461
        %5463 = vrot.lane.b32.xlu0 %v4828, 1
        %v5464 = vpop.permute.xlu0 %5463
        %5465 = vrot.lane.b32.xlu0 %v4831, 1
        %v5466 = vpop.permute.xlu0 %5465
        %5467 = vrot.lane.b32.xlu0 %v4502, 1
        %v5468 = vpop.permute.xlu0 %5467
        %5469 = vrot.lane.b32.xlu0 %v4826, 1
        %v5470 = vpop.permute.xlu0 %5469
        %5471 = vrot.lane.b32.xlu0 %v4829, 1
        %v5472 = vpop.permute.xlu0 %5471
        %5473 = vrot.lane.b32.xlu0 %v4832, 1
        %v5474 = vpop.permute.xlu0 %5473
        %v5475 = vsel %vm1324, %v5460, %v5468
        %v5476 = vsel %vm1324, %v5462, %v5470
        %v5477 = vsel %vm1324, %v5464, %v5472
        %v5478 = vsel %vm1324, %v5466, %v5474
        %v5479 = vsel %vm1324, %v5452, %v5460
        %v5480 = vsel %vm1324, %v5454, %v5462
        %v5481 = vsel %vm1324, %v5456, %v5464
        %v5482 = vsel %vm1324, %v5458, %v5466
        %v5483 = vsel %vm1324, %v5468, %v5452
        %v5484 = vsel %vm1324, %v5470, %v5454
        %v5485 = vsel %vm1324, %v5472, %v5456
        %v5486 = vsel %vm1324, %v5474, %v5458
        %v5488 = vsel %vm4928, %v5449, 0
        %v5491 = vsel %vm4928, %v5450, 0
        %5493 = vmatprep.subr.mxu0 %v5479
        %5494 = vmatpush1.msra.mxu0 %v5483
        %5495 = vmatprep.subr.mxu0 %v5480
        %5496 = vmatpush1.msra.mxu0 %v5484
        %5497 = vmatprep.subr.mxu0 %v5481
        %5498 = vmatpush1.msra.mxu0 %v5485
        %5499 = vmatprep.subr.mxu0 %v5482
        %5500 = vmatpush1.msra.mxu0 %v5486
        %5501 = vmatprep.subr.mxu0 0.0
        %5502 = vmatpush1.msra.mxu0 0.0
        %5503 = vmatprep.subr.mxu0 0.0
        %5504 = vmatpush1.msra.mxu0 0.0
        %5505 = vmatprep.subr.mxu0 0.0
        %5506 = vmatpush1.msra.mxu0 0.0
        %5507 = vmatprep.subr.mxu0 0.0
        %5508 = vmatpush1.msra.mxu0 0.0
        %5509 = vmatprep.subr.mxu0 0.0
        %5510 = vmatpush1.msra.mxu0 0.0
        %5511 = vmatprep.subr.mxu0 0.0
        %5512 = vmatpush1.msra.mxu0 0.0
        %5513 = vmatprep.subr.mxu0 0.0
        %5514 = vmatpush1.msra.mxu0 0.0
        %5515 = vmatprep.subr.mxu0 0.0
        %5516 = vmatpush1.msra.mxu0 0.0
        %5517 = vmatprep.subr.mxu0 0.0
        %5518 = vmatpush1.msra.mxu0 0.0
        %5519 = vmatprep.subr.mxu0 0.0
        %5520 = vmatpush1.msra.mxu0 0.0
        %5521 = vmatprep.subr.mxu0 0.0
        %5522 = vmatpush1.msra.mxu0 0.0
        %5523 = vmatprep.subr.mxu0 0.0
        %5524 = vmatpush1.msra.mxu0 0.0
        %5525 = vmatprep.subr.mxu0 0.0
        %5526 = vmatpush1.msra.mxu0 0.0
        %5527 = vmatprep.subr.mxu0 0.0
        %5528 = vmatpush1.msra.mxu0 0.0
        %5529 = vmatprep.subr.mxu0 0.0
        %5530 = vmatpush1.msra.mxu0 0.0
        %5531 = vmatprep.subr.mxu0 0.0
        %5532 = vmatpush1.msra.mxu0 0.0
        %5533 = vmatprep.subr.mxu0 0.0
        %5534 = vmatpush1.msra.mxu0 0.0
        %5535 = vmatprep.subr.mxu0 0.0
        %5536 = vmatpush1.msra.mxu0 0.0
        %5537 = vmatprep.subr.mxu0 0.0
        %5538 = vmatpush1.msra.mxu0 0.0
        %5539 = vmatprep.subr.mxu0 0.0
        %5540 = vmatpush1.msra.mxu0 0.0
        %5541 = vmatprep.subr.mxu0 0.0
        %5542 = vmatpush1.msra.mxu0 0.0
        %5543 = vmatprep.subr.mxu0 0.0
        %5544 = vmatpush1.msra.mxu0 0.0
        %5545 = vmatprep.subr.mxu0 0.0
        %5546 = vmatpush1.msra.mxu0 0.0
        %5547 = vmatprep.subr.mxu0 0.0
        %5548 = vmatpush1.msra.mxu0 0.0
        %5549 = vmatprep.subr.mxu0 0.0
        %5550 = vmatpush1.msra.mxu0 0.0
        %5551 = vmatprep.subr.mxu0 0.0
        %5552 = vmatpush1.msra.mxu0 0.0
        %5553 = vmatprep.subr.mxu0 0.0
        %5554 = vmatpush1.msra.mxu0 0.0
        %5555 = vmatprep.subr.mxu0 0.0
        %5556 = vmatpush1.msra.mxu0 0.0
        %5557 = vmatprep.mubr.f32.mxu0 0.0
        %5558 = vmatmul.mubr.f32.gmra.mrb[0].mxu0 %v5488
        %v5559 = vpop.f32.mrb[0].mxu0
        %v5560 = vadd.f32 0.0, %v5559
        %v5561 = vpop.f32.mrb[0].mxu0
        %v5562 = vadd.f32 0.0, %v5561
        %5563 = vmatprep.mubr.f32.mxu0 0.0
        %5564 = vmatmul.mubr.f32.gmra.mrb[0].mxu0 %v5491
        %v5565 = vpop.f32.mrb[0].mxu0
        %v5566 = vadd.f32 0.0, %v5565
        %v5567 = vpop.f32.mrb[0].mxu0
        %v5568 = vadd.f32 0.0, %v5567
        %5569 = vdwg.mxu0
        %5570 = vmatprep.subr.mxu0 0.0
        %5571 = vmatpush1.msra.mxu0 %v5475
        %5572 = vmatprep.subr.mxu0 0.0
        %5573 = vmatpush1.msra.mxu0 %v5476
        %5574 = vmatprep.subr.mxu0 0.0
        %5575 = vmatpush1.msra.mxu0 %v5477
        %5576 = vmatprep.subr.mxu0 0.0
        %5577 = vmatpush1.msra.mxu0 %v5478
        %5578 = vmatprep.subr.mxu0 0.0
        %5579 = vmatpush1.msra.mxu0 0.0
        %5580 = vmatprep.subr.mxu0 0.0
        %5581 = vmatpush1.msra.mxu0 0.0
        %5582 = vmatprep.subr.mxu0 0.0
        %5583 = vmatpush1.msra.mxu0 0.0
        %5584 = vmatprep.subr.mxu0 0.0
        %5585 = vmatpush1.msra.mxu0 0.0
        %5586 = vmatprep.subr.mxu0 0.0
        %5587 = vmatpush1.msra.mxu0 0.0
        %5588 = vmatprep.subr.mxu0 0.0
        %5589 = vmatpush1.msra.mxu0 0.0
        %5590 = vmatprep.subr.mxu0 0.0
        %5591 = vmatpush1.msra.mxu0 0.0
        %5592 = vmatprep.subr.mxu0 0.0
        %5593 = vmatpush1.msra.mxu0 0.0
        %5594 = vmatprep.subr.mxu0 0.0
        %5595 = vmatpush1.msra.mxu0 0.0
        %5596 = vmatprep.subr.mxu0 0.0
        %5597 = vmatpush1.msra.mxu0 0.0
        %5598 = vmatprep.subr.mxu0 0.0
        %5599 = vmatpush1.msra.mxu0 0.0
        %5600 = vmatprep.subr.mxu0 0.0
        %5601 = vmatpush1.msra.mxu0 0.0
        %5602 = vmatprep.subr.mxu0 0.0
        %5603 = vmatpush1.msra.mxu0 0.0
        %5604 = vmatprep.subr.mxu0 0.0
        %5605 = vmatpush1.msra.mxu0 0.0
        %5606 = vmatprep.subr.mxu0 0.0
        %5607 = vmatpush1.msra.mxu0 0.0
        %5608 = vmatprep.subr.mxu0 0.0
        %5609 = vmatpush1.msra.mxu0 0.0
        %5610 = vmatprep.subr.mxu0 0.0
        %5611 = vmatpush1.msra.mxu0 0.0
        %5612 = vmatprep.subr.mxu0 0.0
        %5613 = vmatpush1.msra.mxu0 0.0
        %5614 = vmatprep.subr.mxu0 0.0
        %5615 = vmatpush1.msra.mxu0 0.0
        %5616 = vmatprep.subr.mxu0 0.0
        %5617 = vmatpush1.msra.mxu0 0.0
        %5618 = vmatprep.subr.mxu0 0.0
        %5619 = vmatpush1.msra.mxu0 0.0
        %5620 = vmatprep.subr.mxu0 0.0
        %5621 = vmatpush1.msra.mxu0 0.0
        %5622 = vmatprep.subr.mxu0 0.0
        %5623 = vmatpush1.msra.mxu0 0.0
        %5624 = vmatprep.subr.mxu0 0.0
        %5625 = vmatpush1.msra.mxu0 0.0
        %5626 = vmatprep.subr.mxu0 0.0
        %5627 = vmatpush1.msra.mxu0 0.0
        %5628 = vmatprep.subr.mxu0 0.0
        %5629 = vmatpush1.msra.mxu0 0.0
        %5630 = vmatprep.subr.mxu0 0.0
        %5631 = vmatpush1.msra.mxu0 0.0
        %5632 = vmatprep.subr.mxu0 0.0
        %5633 = vmatpush1.msra.mxu0 0.0
        %5634 = vmatprep.mubr.f32.mxu0 0.0
        %5635 = vmatmul.mubr.f32.gmra.mrb[0].mxu0 %v5488
        %v5636 = vpop.f32.mrb[0].mxu0
        %v5637 = vadd.f32 0.0, %v5636
        %v5638 = vpop.f32.mrb[0].mxu0
        %5639 = vmatprep.mubr.f32.mxu0 0.0
        %5640 = vmatmul.mubr.f32.gmra.mrb[0].mxu0 %v5491
        %v5641 = vpop.f32.mrb[0].mxu0
        %v5642 = vadd.f32 0.0, %v5641
        %v5643 = vpop.f32.mrb[0].mxu0
        %5644 = vdwg.mxu0
        %v5645 = vadd.f32 %v5442, %v5560
        %v5646 = vadd.f32 %v5443, %v5562
        %v5647 = vadd.f32 %v5444, %v5637
        %v5648 = vadd.f32 %v5445, %v5566
        %v5649 = vadd.f32 %v5446, %v5568
        %v5650 = vadd.f32 %v5447, %v5642
        %s5651 = scalar_lea.vmem [#allocation12], 64
        %v5652 = vld [vmem:[%s5651] sm:$0xff]
        %v5653 = vld [vmem:[%s5651 + $0x8] sm:$0xff]
        %v5655 = vsel %vm4928, %v5652, 0
        %v5658 = vsel %vm4928, %v5653, 0
        %5660 = vmatprep.subr.mxu0 %v4501
        %5661 = vmatpush1.msra.mxu0 %v4500
        %5662 = vmatprep.subr.mxu0 %v4825
        %5663 = vmatpush1.msra.mxu0 %v4824
        %5664 = vmatprep.subr.mxu0 %v4828
        %5665 = vmatpush1.msra.mxu0 %v4827
        %5666 = vmatprep.subr.mxu0 %v4831
        %5667 = vmatpush1.msra.mxu0 %v4830
        %5668 = vmatprep.subr.mxu0 0.0
        %5669 = vmatpush1.msra.mxu0 0.0
        %5670 = vmatprep.subr.mxu0 0.0
        %5671 = vmatpush1.msra.mxu0 0.0
        %5672 = vmatprep.subr.mxu0 0.0
        %5673 = vmatpush1.msra.mxu0 0.0
        %5674 = vmatprep.subr.mxu0 0.0
        %5675 = vmatpush1.msra.mxu0 0.0
        %5676 = vmatprep.subr.mxu0 0.0
        %5677 = vmatpush1.msra.mxu0 0.0
        %5678 = vmatprep.subr.mxu0 0.0
        %5679 = vmatpush1.msra.mxu0 0.0
        %5680 = vmatprep.subr.mxu0 0.0
        %5681 = vmatpush1.msra.mxu0 0.0
        %5682 = vmatprep.subr.mxu0 0.0
        %5683 = vmatpush1.msra.mxu0 0.0
        %5684 = vmatprep.subr.mxu0 0.0
        %5685 = vmatpush1.msra.mxu0 0.0
        %5686 = vmatprep.subr.mxu0 0.0
        %5687 = vmatpush1.msra.mxu0 0.0
        %5688 = vmatprep.subr.mxu0 0.0
        %5689 = vmatpush1.msra.mxu0 0.0
        %5690 = vmatprep.subr.mxu0 0.0
        %5691 = vmatpush1.msra.mxu0 0.0
        %5692 = vmatprep.subr.mxu0 0.0
        %5693 = vmatpush1.msra.mxu0 0.0
        %5694 = vmatprep.subr.mxu0 0.0
        %5695 = vmatpush1.msra.mxu0 0.0
        %5696 = vmatprep.subr.mxu0 0.0
        %5697 = vmatpush1.msra.mxu0 0.0
        %5698 = vmatprep.subr.mxu0 0.0
        %5699 = vmatpush1.msra.mxu0 0.0
        %5700 = vmatprep.subr.mxu0 0.0
        %5701 = vmatpush1.msra.mxu0 0.0
        %5702 = vmatprep.subr.mxu0 0.0
        %5703 = vmatpush1.msra.mxu0 0.0
        %5704 = vmatprep.subr.mxu0 0.0
        %5705 = vmatpush1.msra.mxu0 0.0
        %5706 = vmatprep.subr.mxu0 0.0
        %5707 = vmatpush1.msra.mxu0 0.0
        %5708 = vmatprep.subr.mxu0 0.0
        %5709 = vmatpush1.msra.mxu0 0.0
        %5710 = vmatprep.subr.mxu0 0.0
        %5711 = vmatpush1.msra.mxu0 0.0
        %5712 = vmatprep.subr.mxu0 0.0
        %5713 = vmatpush1.msra.mxu0 0.0
        %5714 = vmatprep.subr.mxu0 0.0
        %5715 = vmatpush1.msra.mxu0 0.0
        %5716 = vmatprep.subr.mxu0 0.0
        %5717 = vmatpush1.msra.mxu0 0.0
        %5718 = vmatprep.subr.mxu0 0.0
        %5719 = vmatpush1.msra.mxu0 0.0
        %5720 = vmatprep.subr.mxu0 0.0
        %5721 = vmatpush1.msra.mxu0 0.0
        %5722 = vmatprep.subr.mxu0 0.0
        %5723 = vmatpush1.msra.mxu0 0.0
        %5724 = vmatprep.mubr.f32.mxu0 0.0
        %5725 = vmatmul.mubr.f32.gmra.mrb[0].mxu0 %v5655
        %v5726 = vpop.f32.mrb[0].mxu0
        %v5727 = vadd.f32 0.0, %v5726
        %v5728 = vpop.f32.mrb[0].mxu0
        %v5729 = vadd.f32 0.0, %v5728
        %5730 = vmatprep.mubr.f32.mxu0 0.0
        %5731 = vmatmul.mubr.f32.gmra.mrb[0].mxu0 %v5658
        %v5732 = vpop.f32.mrb[0].mxu0
        %v5733 = vadd.f32 0.0, %v5732
        %v5734 = vpop.f32.mrb[0].mxu0
        %v5735 = vadd.f32 0.0, %v5734
        %5736 = vdwg.mxu0
        %5737 = vmatprep.subr.mxu0 0.0
        %5738 = vmatpush1.msra.mxu0 %v4502
        %5739 = vmatprep.subr.mxu0 0.0
        %5740 = vmatpush1.msra.mxu0 %v4826
        %5741 = vmatprep.subr.mxu0 0.0
        %5742 = vmatpush1.msra.mxu0 %v4829
        %5743 = vmatprep.subr.mxu0 0.0
        %5744 = vmatpush1.msra.mxu0 %v4832
        %5745 = vmatprep.subr.mxu0 0.0
        %5746 = vmatpush1.msra.mxu0 0.0
        %5747 = vmatprep.subr.mxu0 0.0
        %5748 = vmatpush1.msra.mxu0 0.0
        %5749 = vmatprep.subr.mxu0 0.0
        %5750 = vmatpush1.msra.mxu0 0.0
        %5751 = vmatprep.subr.mxu0 0.0
        %5752 = vmatpush1.msra.mxu0 0.0
        %5753 = vmatprep.subr.mxu0 0.0
        %5754 = vmatpush1.msra.mxu0 0.0
        %5755 = vmatprep.subr.mxu0 0.0
        %5756 = vmatpush1.msra.mxu0 0.0
        %5757 = vmatprep.subr.mxu0 0.0
        %5758 = vmatpush1.msra.mxu0 0.0
        %5759 = vmatprep.subr.mxu0 0.0
        %5760 = vmatpush1.msra.mxu0 0.0
        %5761 = vmatprep.subr.mxu0 0.0
        %5762 = vmatpush1.msra.mxu0 0.0
        %5763 = vmatprep.subr.mxu0 0.0
        %5764 = vmatpush1.msra.mxu0 0.0
        %5765 = vmatprep.subr.mxu0 0.0
        %5766 = vmatpush1.msra.mxu0 0.0
        %5767 = vmatprep.subr.mxu0 0.0
        %5768 = vmatpush1.msra.mxu0 0.0
        %5769 = vmatprep.subr.mxu0 0.0
        %5770 = vmatpush1.msra.mxu0 0.0
        %5771 = vmatprep.subr.mxu0 0.0
        %5772 = vmatpush1.msra.mxu0 0.0
        %5773 = vmatprep.subr.mxu0 0.0
        %5774 = vmatpush1.msra.mxu0 0.0
        %5775 = vmatprep.subr.mxu0 0.0
        %5776 = vmatpush1.msra.mxu0 0.0
        %5777 = vmatprep.subr.mxu0 0.0
        %5778 = vmatpush1.msra.mxu0 0.0
        %5779 = vmatprep.subr.mxu0 0.0
        %5780 = vmatpush1.msra.mxu0 0.0
        %5781 = vmatprep.subr.mxu0 0.0
        %5782 = vmatpush1.msra.mxu0 0.0
        %5783 = vmatprep.subr.mxu0 0.0
        %5784 = vmatpush1.msra.mxu0 0.0
        %5785 = vmatprep.subr.mxu0 0.0
        %5786 = vmatpush1.msra.mxu0 0.0
        %5787 = vmatprep.subr.mxu0 0.0
        %5788 = vmatpush1.msra.mxu0 0.0
        %5789 = vmatprep.subr.mxu0 0.0
        %5790 = vmatpush1.msra.mxu0 0.0
        %5791 = vmatprep.subr.mxu0 0.0
        %5792 = vmatpush1.msra.mxu0 0.0
        %5793 = vmatprep.subr.mxu0 0.0
        %5794 = vmatpush1.msra.mxu0 0.0
        %5795 = vmatprep.subr.mxu0 0.0
        %5796 = vmatpush1.msra.mxu0 0.0
        %5797 = vmatprep.subr.mxu0 0.0
        %5798 = vmatpush1.msra.mxu0 0.0
        %5799 = vmatprep.subr.mxu0 0.0
        %5800 = vmatpush1.msra.mxu0 0.0
        %5801 = vmatprep.mubr.f32.mxu0 0.0
        %5802 = vmatmul.mubr.f32.gmra.mrb[0].mxu0 %v5655
        %v5803 = vpop.f32.mrb[0].mxu0
        %v5804 = vadd.f32 0.0, %v5803
        %v5805 = vpop.f32.mrb[0].mxu0
        %5806 = vmatprep.mubr.f32.mxu0 0.0
        %5807 = vmatmul.mubr.f32.gmra.mrb[0].mxu0 %v5658
        %v5808 = vpop.f32.mrb[0].mxu0
        %v5809 = vadd.f32 0.0, %v5808
        %v5810 = vpop.f32.mrb[0].mxu0
        %5811 = vdwg.mxu0
        %v5812 = vadd.f32 %v5645, %v5727
        %v5813 = vadd.f32 %v5646, %v5729
        %v5814 = vadd.f32 %v5647, %v5804
        %v5815 = vadd.f32 %v5648, %v5733
        %v5816 = vadd.f32 %v5649, %v5735
        %v5817 = vadd.f32 %v5650, %v5809
        %s5818 = scalar_lea.vmem [#allocation12], 80
        %v5819 = vld [vmem:[%s5818] sm:$0xff]
        %v5820 = vld [vmem:[%s5818 + $0x8] sm:$0xff]
        %5821 = vrot.lane.b32.xlu0 %v4500, 127
        %v5822 = vpop.permute.xlu0 %5821
        %5823 = vrot.lane.b32.xlu0 %v4824, 127
        %v5824 = vpop.permute.xlu0 %5823
        %5825 = vrot.lane.b32.xlu0 %v4827, 127
        %v5826 = vpop.permute.xlu0 %5825
        %5827 = vrot.lane.b32.xlu0 %v4830, 127
        %v5828 = vpop.permute.xlu0 %5827
        %5829 = vrot.lane.b32.xlu0 %v4501, 127
        %v5830 = vpop.permute.xlu0 %5829
        %5831 = vrot.lane.b32.xlu0 %v4825, 127
        %v5832 = vpop.permute.xlu0 %5831
        %5833 = vrot.lane.b32.xlu0 %v4828, 127
        %v5834 = vpop.permute.xlu0 %5833
        %5835 = vrot.lane.b32.xlu0 %v4831, 127
        %v5836 = vpop.permute.xlu0 %5835
        %5837 = vrot.lane.b32.xlu0 %v4502, 127
        %v5838 = vpop.permute.xlu0 %5837
        %5839 = vrot.lane.b32.xlu0 %v4826, 127
        %v5840 = vpop.permute.xlu0 %5839
        %5841 = vrot.lane.b32.xlu0 %v4829, 127
        %v5842 = vpop.permute.xlu0 %5841
        %5843 = vrot.lane.b32.xlu0 %v4832, 127
        %v5844 = vpop.permute.xlu0 %5843
        %v5845 = vsel %vm1650, %v5830, %v5838
        %v5846 = vsel %vm1650, %v5832, %v5840
        %v5847 = vsel %vm1650, %v5834, %v5842
        %v5848 = vsel %vm1650, %v5836, %v5844
        %v5849 = vsel %vm1650, %v5822, %v5830
        %v5850 = vsel %vm1650, %v5824, %v5832
        %v5851 = vsel %vm1650, %v5826, %v5834
        %v5852 = vsel %vm1650, %v5828, %v5836
        %v5853 = vsel %vm1650, %v5838, %v5822
        %v5854 = vsel %vm1650, %v5840, %v5824
        %v5855 = vsel %vm1650, %v5842, %v5826
        %v5856 = vsel %vm1650, %v5844, %v5828
        %v5858 = vsel %vm4928, %v5819, 0
        %v5861 = vsel %vm4928, %v5820, 0
        %5863 = vmatprep.subr.mxu0 %v5845
        %5864 = vmatpush1.msra.mxu0 %v5849
        %5865 = vmatprep.subr.mxu0 %v5846
        %5866 = vmatpush1.msra.mxu0 %v5850
        %5867 = vmatprep.subr.mxu0 %v5847
        %5868 = vmatpush1.msra.mxu0 %v5851
        %5869 = vmatprep.subr.mxu0 %v5848
        %5870 = vmatpush1.msra.mxu0 %v5852
        %5871 = vmatprep.subr.mxu0 0.0
        %5872 = vmatpush1.msra.mxu0 0.0
        %5873 = vmatprep.subr.mxu0 0.0
        %5874 = vmatpush1.msra.mxu0 0.0
        %5875 = vmatprep.subr.mxu0 0.0
        %5876 = vmatpush1.msra.mxu0 0.0
        %5877 = vmatprep.subr.mxu0 0.0
        %5878 = vmatpush1.msra.mxu0 0.0
        %5879 = vmatprep.subr.mxu0 0.0
        %5880 = vmatpush1.msra.mxu0 0.0
        %5881 = vmatprep.subr.mxu0 0.0
        %5882 = vmatpush1.msra.mxu0 0.0
        %5883 = vmatprep.subr.mxu0 0.0
        %5884 = vmatpush1.msra.mxu0 0.0
        %5885 = vmatprep.subr.mxu0 0.0
        %5886 = vmatpush1.msra.mxu0 0.0
        %5887 = vmatprep.subr.mxu0 0.0
        %5888 = vmatpush1.msra.mxu0 0.0
        %5889 = vmatprep.subr.mxu0 0.0
        %5890 = vmatpush1.msra.mxu0 0.0
        %5891 = vmatprep.subr.mxu0 0.0
        %5892 = vmatpush1.msra.mxu0 0.0
        %5893 = vmatprep.subr.mxu0 0.0
        %5894 = vmatpush1.msra.mxu0 0.0
        %5895 = vmatprep.subr.mxu0 0.0
        %5896 = vmatpush1.msra.mxu0 0.0
        %5897 = vmatprep.subr.mxu0 0.0
        %5898 = vmatpush1.msra.mxu0 0.0
        %5899 = vmatprep.subr.mxu0 0.0
        %5900 = vmatpush1.msra.mxu0 0.0
        %5901 = vmatprep.subr.mxu0 0.0
        %5902 = vmatpush1.msra.mxu0 0.0
        %5903 = vmatprep.subr.mxu0 0.0
        %5904 = vmatpush1.msra.mxu0 0.0
        %5905 = vmatprep.subr.mxu0 0.0
        %5906 = vmatpush1.msra.mxu0 0.0
        %5907 = vmatprep.subr.mxu0 0.0
        %5908 = vmatpush1.msra.mxu0 0.0
        %5909 = vmatprep.subr.mxu0 0.0
        %5910 = vmatpush1.msra.mxu0 0.0
        %5911 = vmatprep.subr.mxu0 0.0
        %5912 = vmatpush1.msra.mxu0 0.0
        %5913 = vmatprep.subr.mxu0 0.0
        %5914 = vmatpush1.msra.mxu0 0.0
        %5915 = vmatprep.subr.mxu0 0.0
        %5916 = vmatpush1.msra.mxu0 0.0
        %5917 = vmatprep.subr.mxu0 0.0
        %5918 = vmatpush1.msra.mxu0 0.0
        %5919 = vmatprep.subr.mxu0 0.0
        %5920 = vmatpush1.msra.mxu0 0.0
        %5921 = vmatprep.subr.mxu0 0.0
        %5922 = vmatpush1.msra.mxu0 0.0
        %5923 = vmatprep.subr.mxu0 0.0
        %5924 = vmatpush1.msra.mxu0 0.0
        %5925 = vmatprep.subr.mxu0 0.0
        %5926 = vmatpush1.msra.mxu0 0.0
        %5927 = vmatprep.mubr.f32.mxu0 0.0
        %5928 = vmatmul.mubr.f32.gmra.mrb[0].mxu0 %v5858
        %v5929 = vpop.f32.mrb[0].mxu0
        %v5930 = vadd.f32 0.0, %v5929
        %v5931 = vpop.f32.mrb[0].mxu0
        %v5932 = vadd.f32 0.0, %v5931
        %5933 = vmatprep.mubr.f32.mxu0 0.0
        %5934 = vmatmul.mubr.f32.gmra.mrb[0].mxu0 %v5861
        %v5935 = vpop.f32.mrb[0].mxu0
        %v5936 = vadd.f32 0.0, %v5935
        %v5937 = vpop.f32.mrb[0].mxu0
        %v5938 = vadd.f32 0.0, %v5937
        %5939 = vdwg.mxu0
        %5940 = vmatprep.subr.mxu0 0.0
        %5941 = vmatpush1.msra.mxu0 %v5853
        %5942 = vmatprep.subr.mxu0 0.0
        %5943 = vmatpush1.msra.mxu0 %v5854
        %5944 = vmatprep.subr.mxu0 0.0
        %5945 = vmatpush1.msra.mxu0 %v5855
        %5946 = vmatprep.subr.mxu0 0.0
        %5947 = vmatpush1.msra.mxu0 %v5856
        %5948 = vmatprep.subr.mxu0 0.0
        %5949 = vmatpush1.msra.mxu0 0.0
        %5950 = vmatprep.subr.mxu0 0.0
        %5951 = vmatpush1.msra.mxu0 0.0
        %5952 = vmatprep.subr.mxu0 0.0
        %5953 = vmatpush1.msra.mxu0 0.0
        %5954 = vmatprep.subr.mxu0 0.0
        %5955 = vmatpush1.msra.mxu0 0.0
        %5956 = vmatprep.subr.mxu0 0.0
        %5957 = vmatpush1.msra.mxu0 0.0
        %5958 = vmatprep.subr.mxu0 0.0
        %5959 = vmatpush1.msra.mxu0 0.0
        %5960 = vmatprep.subr.mxu0 0.0
        %5961 = vmatpush1.msra.mxu0 0.0
        %5962 = vmatprep.subr.mxu0 0.0
        %5963 = vmatpush1.msra.mxu0 0.0
        %5964 = vmatprep.subr.mxu0 0.0
        %5965 = vmatpush1.msra.mxu0 0.0
        %5966 = vmatprep.subr.mxu0 0.0
        %5967 = vmatpush1.msra.mxu0 0.0
        %5968 = vmatprep.subr.mxu0 0.0
        %5969 = vmatpush1.msra.mxu0 0.0
        %5970 = vmatprep.subr.mxu0 0.0
        %5971 = vmatpush1.msra.mxu0 0.0
        %5972 = vmatprep.subr.mxu0 0.0
        %5973 = vmatpush1.msra.mxu0 0.0
        %5974 = vmatprep.subr.mxu0 0.0
        %5975 = vmatpush1.msra.mxu0 0.0
        %5976 = vmatprep.subr.mxu0 0.0
        %5977 = vmatpush1.msra.mxu0 0.0
        %5978 = vmatprep.subr.mxu0 0.0
        %5979 = vmatpush1.msra.mxu0 0.0
        %5980 = vmatprep.subr.mxu0 0.0
        %5981 = vmatpush1.msra.mxu0 0.0
        %5982 = vmatprep.subr.mxu0 0.0
        %5983 = vmatpush1.msra.mxu0 0.0
        %5984 = vmatprep.subr.mxu0 0.0
        %5985 = vmatpush1.msra.mxu0 0.0
        %5986 = vmatprep.subr.mxu0 0.0
        %5987 = vmatpush1.msra.mxu0 0.0
        %5988 = vmatprep.subr.mxu0 0.0
        %5989 = vmatpush1.msra.mxu0 0.0
        %5990 = vmatprep.subr.mxu0 0.0
        %5991 = vmatpush1.msra.mxu0 0.0
        %5992 = vmatprep.subr.mxu0 0.0
        %5993 = vmatpush1.msra.mxu0 0.0
        %5994 = vmatprep.subr.mxu0 0.0
        %5995 = vmatpush1.msra.mxu0 0.0
        %5996 = vmatprep.subr.mxu0 0.0
        %5997 = vmatpush1.msra.mxu0 0.0
        %5998 = vmatprep.subr.mxu0 0.0
        %5999 = vmatpush1.msra.mxu0 0.0
        %6000 = vmatprep.subr.mxu0 0.0
        %6001 = vmatpush1.msra.mxu0 0.0
        %6002 = vmatprep.subr.mxu0 0.0
        %6003 = vmatpush1.msra.mxu0 0.0
        %6004 = vmatprep.mubr.f32.mxu0 0.0
        %6005 = vmatmul.mubr.f32.gmra.mrb[0].mxu0 %v5858
        %v6006 = vpop.f32.mrb[0].mxu0
        %v6007 = vadd.f32 0.0, %v6006
        %v6008 = vpop.f32.mrb[0].mxu0
        %6009 = vmatprep.mubr.f32.mxu0 0.0
        %6010 = vmatmul.mubr.f32.gmra.mrb[0].mxu0 %v5861
        %v6011 = vpop.f32.mrb[0].mxu0
        %v6012 = vadd.f32 0.0, %v6011
        %v6013 = vpop.f32.mrb[0].mxu0
        %6014 = vdwg.mxu0
        %v6015 = vadd.f32 %v5812, %v5930
        %v6016 = vadd.f32 %v5813, %v5932
        %v6017 = vadd.f32 %v5814, %v6007
        %v6018 = vadd.f32 %v5815, %v5936
        %v6019 = vadd.f32 %v5816, %v5938
        %v6020 = vadd.f32 %v5817, %v6012
        %s6021 = scalar_lea.vmem [#allocation12], 96
        %v6022 = vld [vmem:[%s6021] sm:$0xff]
        %v6023 = vld [vmem:[%s6021 + $0x8] sm:$0xff]
        %6024 = vrot.lane.b32.xlu0 %v4500, 111
        %v6025 = vpop.permute.xlu0 %6024
        %6026 = vrot.lane.b32.xlu0 %v4824, 111
        %v6027 = vpop.permute.xlu0 %6026
        %6028 = vrot.lane.b32.xlu0 %v4827, 111
        %v6029 = vpop.permute.xlu0 %6028
        %6030 = vrot.lane.b32.xlu0 %v4830, 111
        %v6031 = vpop.permute.xlu0 %6030
        %6032 = vrot.lane.b32.xlu0 %v4501, 111
        %v6033 = vpop.permute.xlu0 %6032
        %6034 = vrot.lane.b32.xlu0 %v4825, 111
        %v6035 = vpop.permute.xlu0 %6034
        %6036 = vrot.lane.b32.xlu0 %v4828, 111
        %v6037 = vpop.permute.xlu0 %6036
        %6038 = vrot.lane.b32.xlu0 %v4831, 111
        %v6039 = vpop.permute.xlu0 %6038
        %6040 = vrot.lane.b32.xlu0 %v4502, 111
        %v6041 = vpop.permute.xlu0 %6040
        %6042 = vrot.lane.b32.xlu0 %v4826, 111
        %v6043 = vpop.permute.xlu0 %6042
        %6044 = vrot.lane.b32.xlu0 %v4829, 111
        %v6045 = vpop.permute.xlu0 %6044
        %6046 = vrot.lane.b32.xlu0 %v4832, 111
        %v6047 = vpop.permute.xlu0 %6046
        %v6048 = vsel %vm1827, %v6033, %v6041
        %v6049 = vsel %vm1827, %v6035, %v6043
        %v6050 = vsel %vm1827, %v6037, %v6045
        %v6051 = vsel %vm1827, %v6039, %v6047
        %v6052 = vsel %vm1827, %v6025, %v6033
        %v6053 = vsel %vm1827, %v6027, %v6035
        %v6054 = vsel %vm1827, %v6029, %v6037
        %v6055 = vsel %vm1827, %v6031, %v6039
        %v6056 = vsel %vm1827, %v6041, %v6025
        %v6057 = vsel %vm1827, %v6043, %v6027
        %v6058 = vsel %vm1827, %v6045, %v6029
        %v6059 = vsel %vm1827, %v6047, %v6031
        %v6061 = vsel %vm4928, %v6022, 0
        %v6064 = vsel %vm4928, %v6023, 0
        %6066 = vmatprep.subr.mxu0 %v6048
        %6067 = vmatpush1.msra.mxu0 %v6052
        %6068 = vmatprep.subr.mxu0 %v6049
        %6069 = vmatpush1.msra.mxu0 %v6053
        %6070 = vmatprep.subr.mxu0 %v6050
        %6071 = vmatpush1.msra.mxu0 %v6054
        %6072 = vmatprep.subr.mxu0 %v6051
        %6073 = vmatpush1.msra.mxu0 %v6055
        %6074 = vmatprep.subr.mxu0 0.0
        %6075 = vmatpush1.msra.mxu0 0.0
        %6076 = vmatprep.subr.mxu0 0.0
        %6077 = vmatpush1.msra.mxu0 0.0
        %6078 = vmatprep.subr.mxu0 0.0
        %6079 = vmatpush1.msra.mxu0 0.0
        %6080 = vmatprep.subr.mxu0 0.0
        %6081 = vmatpush1.msra.mxu0 0.0
        %6082 = vmatprep.subr.mxu0 0.0
        %6083 = vmatpush1.msra.mxu0 0.0
        %6084 = vmatprep.subr.mxu0 0.0
        %6085 = vmatpush1.msra.mxu0 0.0
        %6086 = vmatprep.subr.mxu0 0.0
        %6087 = vmatpush1.msra.mxu0 0.0
        %6088 = vmatprep.subr.mxu0 0.0
        %6089 = vmatpush1.msra.mxu0 0.0
        %6090 = vmatprep.subr.mxu0 0.0
        %6091 = vmatpush1.msra.mxu0 0.0
        %6092 = vmatprep.subr.mxu0 0.0
        %6093 = vmatpush1.msra.mxu0 0.0
        %6094 = vmatprep.subr.mxu0 0.0
        %6095 = vmatpush1.msra.mxu0 0.0
        %6096 = vmatprep.subr.mxu0 0.0
        %6097 = vmatpush1.msra.mxu0 0.0
        %6098 = vmatprep.subr.mxu0 0.0
        %6099 = vmatpush1.msra.mxu0 0.0
        %6100 = vmatprep.subr.mxu0 0.0
        %6101 = vmatpush1.msra.mxu0 0.0
        %6102 = vmatprep.subr.mxu0 0.0
        %6103 = vmatpush1.msra.mxu0 0.0
        %6104 = vmatprep.subr.mxu0 0.0
        %6105 = vmatpush1.msra.mxu0 0.0
        %6106 = vmatprep.subr.mxu0 0.0
        %6107 = vmatpush1.msra.mxu0 0.0
        %6108 = vmatprep.subr.mxu0 0.0
        %6109 = vmatpush1.msra.mxu0 0.0
        %6110 = vmatprep.subr.mxu0 0.0
        %6111 = vmatpush1.msra.mxu0 0.0
        %6112 = vmatprep.subr.mxu0 0.0
        %6113 = vmatpush1.msra.mxu0 0.0
        %6114 = vmatprep.subr.mxu0 0.0
        %6115 = vmatpush1.msra.mxu0 0.0
        %6116 = vmatprep.subr.mxu0 0.0
        %6117 = vmatpush1.msra.mxu0 0.0
        %6118 = vmatprep.subr.mxu0 0.0
        %6119 = vmatpush1.msra.mxu0 0.0
        %6120 = vmatprep.subr.mxu0 0.0
        %6121 = vmatpush1.msra.mxu0 0.0
        %6122 = vmatprep.subr.mxu0 0.0
        %6123 = vmatpush1.msra.mxu0 0.0
        %6124 = vmatprep.subr.mxu0 0.0
        %6125 = vmatpush1.msra.mxu0 0.0
        %6126 = vmatprep.subr.mxu0 0.0
        %6127 = vmatpush1.msra.mxu0 0.0
        %6128 = vmatprep.subr.mxu0 0.0
        %6129 = vmatpush1.msra.mxu0 0.0
        %6130 = vmatprep.mubr.f32.mxu0 0.0
        %6131 = vmatmul.mubr.f32.gmra.mrb[0].mxu0 %v6061
        %v6132 = vpop.f32.mrb[0].mxu0
        %v6133 = vadd.f32 0.0, %v6132
        %v6134 = vpop.f32.mrb[0].mxu0
        %v6135 = vadd.f32 0.0, %v6134
        %6136 = vmatprep.mubr.f32.mxu0 0.0
        %6137 = vmatmul.mubr.f32.gmra.mrb[0].mxu0 %v6064
        %v6138 = vpop.f32.mrb[0].mxu0
        %v6139 = vadd.f32 0.0, %v6138
        %v6140 = vpop.f32.mrb[0].mxu0
        %v6141 = vadd.f32 0.0, %v6140
        %6142 = vdwg.mxu0
        %6143 = vmatprep.subr.mxu0 0.0
        %6144 = vmatpush1.msra.mxu0 %v6056
        %6145 = vmatprep.subr.mxu0 0.0
        %6146 = vmatpush1.msra.mxu0 %v6057
        %6147 = vmatprep.subr.mxu0 0.0
        %6148 = vmatpush1.msra.mxu0 %v6058
        %6149 = vmatprep.subr.mxu0 0.0
        %6150 = vmatpush1.msra.mxu0 %v6059
        %6151 = vmatprep.subr.mxu0 0.0
        %6152 = vmatpush1.msra.mxu0 0.0
        %6153 = vmatprep.subr.mxu0 0.0
        %6154 = vmatpush1.msra.mxu0 0.0
        %6155 = vmatprep.subr.mxu0 0.0
        %6156 = vmatpush1.msra.mxu0 0.0
        %6157 = vmatprep.subr.mxu0 0.0
        %6158 = vmatpush1.msra.mxu0 0.0
        %6159 = vmatprep.subr.mxu0 0.0
        %6160 = vmatpush1.msra.mxu0 0.0
        %6161 = vmatprep.subr.mxu0 0.0
        %6162 = vmatpush1.msra.mxu0 0.0
        %6163 = vmatprep.subr.mxu0 0.0
        %6164 = vmatpush1.msra.mxu0 0.0
        %6165 = vmatprep.subr.mxu0 0.0
        %6166 = vmatpush1.msra.mxu0 0.0
        %6167 = vmatprep.subr.mxu0 0.0
        %6168 = vmatpush1.msra.mxu0 0.0
        %6169 = vmatprep.subr.mxu0 0.0
        %6170 = vmatpush1.msra.mxu0 0.0
        %6171 = vmatprep.subr.mxu0 0.0
        %6172 = vmatpush1.msra.mxu0 0.0
        %6173 = vmatprep.subr.mxu0 0.0
        %6174 = vmatpush1.msra.mxu0 0.0
        %6175 = vmatprep.subr.mxu0 0.0
        %6176 = vmatpush1.msra.mxu0 0.0
        %6177 = vmatprep.subr.mxu0 0.0
        %6178 = vmatpush1.msra.mxu0 0.0
        %6179 = vmatprep.subr.mxu0 0.0
        %6180 = vmatpush1.msra.mxu0 0.0
        %6181 = vmatprep.subr.mxu0 0.0
        %6182 = vmatpush1.msra.mxu0 0.0
        %6183 = vmatprep.subr.mxu0 0.0
        %6184 = vmatpush1.msra.mxu0 0.0
        %6185 = vmatprep.subr.mxu0 0.0
        %6186 = vmatpush1.msra.mxu0 0.0
        %6187 = vmatprep.subr.mxu0 0.0
        %6188 = vmatpush1.msra.mxu0 0.0
        %6189 = vmatprep.subr.mxu0 0.0
        %6190 = vmatpush1.msra.mxu0 0.0
        %6191 = vmatprep.subr.mxu0 0.0
        %6192 = vmatpush1.msra.mxu0 0.0
        %6193 = vmatprep.subr.mxu0 0.0
        %6194 = vmatpush1.msra.mxu0 0.0
        %6195 = vmatprep.subr.mxu0 0.0
        %6196 = vmatpush1.msra.mxu0 0.0
        %6197 = vmatprep.subr.mxu0 0.0
        %6198 = vmatpush1.msra.mxu0 0.0
        %6199 = vmatprep.subr.mxu0 0.0
        %6200 = vmatpush1.msra.mxu0 0.0
        %6201 = vmatprep.subr.mxu0 0.0
        %6202 = vmatpush1.msra.mxu0 0.0
        %6203 = vmatprep.subr.mxu0 0.0
        %6204 = vmatpush1.msra.mxu0 0.0
        %6205 = vmatprep.subr.mxu0 0.0
        %6206 = vmatpush1.msra.mxu0 0.0
        %6207 = vmatprep.mubr.f32.mxu0 0.0
        %6208 = vmatmul.mubr.f32.gmra.mrb[0].mxu0 %v6061
        %v6209 = vpop.f32.mrb[0].mxu0
        %v6210 = vadd.f32 0.0, %v6209
        %v6211 = vpop.f32.mrb[0].mxu0
        %6212 = vmatprep.mubr.f32.mxu0 0.0
        %6213 = vmatmul.mubr.f32.gmra.mrb[0].mxu0 %v6064
        %v6214 = vpop.f32.mrb[0].mxu0
        %v6215 = vadd.f32 0.0, %v6214
        %v6216 = vpop.f32.mrb[0].mxu0
        %6217 = vdwg.mxu0
        %v6218 = vadd.f32 %v6015, %v6133
        %v6219 = vadd.f32 %v6016, %v6135
        %v6220 = vadd.f32 %v6017, %v6210
        %v6221 = vadd.f32 %v6018, %v6139
        %v6222 = vadd.f32 %v6019, %v6141
        %v6223 = vadd.f32 %v6020, %v6215
        %s6224 = scalar_lea.vmem [#allocation12], 112
        %v6225 = vld [vmem:[%s6224] sm:$0xff]
        %v6226 = vld [vmem:[%s6224 + $0x8] sm:$0xff]
        %6227 = vrot.lane.b32.xlu0 %v4500, 110
        %v6228 = vpop.permute.xlu0 %6227
        %6229 = vrot.lane.b32.xlu0 %v4824, 110
        %v6230 = vpop.permute.xlu0 %6229
        %6231 = vrot.lane.b32.xlu0 %v4827, 110
        %v6232 = vpop.permute.xlu0 %6231
        %6233 = vrot.lane.b32.xlu0 %v4830, 110
        %v6234 = vpop.permute.xlu0 %6233
        %6235 = vrot.lane.b32.xlu0 %v4501, 110
        %v6236 = vpop.permute.xlu0 %6235
        %6237 = vrot.lane.b32.xlu0 %v4825, 110
        %v6238 = vpop.permute.xlu0 %6237
        %6239 = vrot.lane.b32.xlu0 %v4828, 110
        %v6240 = vpop.permute.xlu0 %6239
        %6241 = vrot.lane.b32.xlu0 %v4831, 110
        %v6242 = vpop.permute.xlu0 %6241
        %6243 = vrot.lane.b32.xlu0 %v4502, 110
        %v6244 = vpop.permute.xlu0 %6243
        %6245 = vrot.lane.b32.xlu0 %v4826, 110
        %v6246 = vpop.permute.xlu0 %6245
        %6247 = vrot.lane.b32.xlu0 %v4829, 110
        %v6248 = vpop.permute.xlu0 %6247
        %6249 = vrot.lane.b32.xlu0 %v4832, 110
        %v6250 = vpop.permute.xlu0 %6249
        %v6251 = vsel %vm2004, %v6236, %v6244
        %v6252 = vsel %vm2004, %v6238, %v6246
        %v6253 = vsel %vm2004, %v6240, %v6248
        %v6254 = vsel %vm2004, %v6242, %v6250
        %v6255 = vsel %vm2004, %v6228, %v6236
        %v6256 = vsel %vm2004, %v6230, %v6238
        %v6257 = vsel %vm2004, %v6232, %v6240
        %v6258 = vsel %vm2004, %v6234, %v6242
        %v6259 = vsel %vm2004, %v6244, %v6228
        %v6260 = vsel %vm2004, %v6246, %v6230
        %v6261 = vsel %vm2004, %v6248, %v6232
        %v6262 = vsel %vm2004, %v6250, %v6234
        %v6264 = vsel %vm4928, %v6225, 0
        %v6267 = vsel %vm4928, %v6226, 0
        %6269 = vmatprep.subr.mxu0 %v6251
        %6270 = vmatpush1.msra.mxu0 %v6255
        %6271 = vmatprep.subr.mxu0 %v6252
        %6272 = vmatpush1.msra.mxu0 %v6256
        %6273 = vmatprep.subr.mxu0 %v6253
        %6274 = vmatpush1.msra.mxu0 %v6257
        %6275 = vmatprep.subr.mxu0 %v6254
        %6276 = vmatpush1.msra.mxu0 %v6258
        %6277 = vmatprep.subr.mxu0 0.0
        %6278 = vmatpush1.msra.mxu0 0.0
        %6279 = vmatprep.subr.mxu0 0.0
        %6280 = vmatpush1.msra.mxu0 0.0
        %6281 = vmatprep.subr.mxu0 0.0
        %6282 = vmatpush1.msra.mxu0 0.0
        %6283 = vmatprep.subr.mxu0 0.0
        %6284 = vmatpush1.msra.mxu0 0.0
        %6285 = vmatprep.subr.mxu0 0.0
        %6286 = vmatpush1.msra.mxu0 0.0
        %6287 = vmatprep.subr.mxu0 0.0
        %6288 = vmatpush1.msra.mxu0 0.0
        %6289 = vmatprep.subr.mxu0 0.0
        %6290 = vmatpush1.msra.mxu0 0.0
        %6291 = vmatprep.subr.mxu0 0.0
        %6292 = vmatpush1.msra.mxu0 0.0
        %6293 = vmatprep.subr.mxu0 0.0
        %6294 = vmatpush1.msra.mxu0 0.0
        %6295 = vmatprep.subr.mxu0 0.0
        %6296 = vmatpush1.msra.mxu0 0.0
        %6297 = vmatprep.subr.mxu0 0.0
        %6298 = vmatpush1.msra.mxu0 0.0
        %6299 = vmatprep.subr.mxu0 0.0
        %6300 = vmatpush1.msra.mxu0 0.0
        %6301 = vmatprep.subr.mxu0 0.0
        %6302 = vmatpush1.msra.mxu0 0.0
        %6303 = vmatprep.subr.mxu0 0.0
        %6304 = vmatpush1.msra.mxu0 0.0
        %6305 = vmatprep.subr.mxu0 0.0
        %6306 = vmatpush1.msra.mxu0 0.0
        %6307 = vmatprep.subr.mxu0 0.0
        %6308 = vmatpush1.msra.mxu0 0.0
        %6309 = vmatprep.subr.mxu0 0.0
        %6310 = vmatpush1.msra.mxu0 0.0
        %6311 = vmatprep.subr.mxu0 0.0
        %6312 = vmatpush1.msra.mxu0 0.0
        %6313 = vmatprep.subr.mxu0 0.0
        %6314 = vmatpush1.msra.mxu0 0.0
        %6315 = vmatprep.subr.mxu0 0.0
        %6316 = vmatpush1.msra.mxu0 0.0
        %6317 = vmatprep.subr.mxu0 0.0
        %6318 = vmatpush1.msra.mxu0 0.0
        %6319 = vmatprep.subr.mxu0 0.0
        %6320 = vmatpush1.msra.mxu0 0.0
        %6321 = vmatprep.subr.mxu0 0.0
        %6322 = vmatpush1.msra.mxu0 0.0
        %6323 = vmatprep.subr.mxu0 0.0
        %6324 = vmatpush1.msra.mxu0 0.0
        %6325 = vmatprep.subr.mxu0 0.0
        %6326 = vmatpush1.msra.mxu0 0.0
        %6327 = vmatprep.subr.mxu0 0.0
        %6328 = vmatpush1.msra.mxu0 0.0
        %6329 = vmatprep.subr.mxu0 0.0
        %6330 = vmatpush1.msra.mxu0 0.0
        %6331 = vmatprep.subr.mxu0 0.0
        %6332 = vmatpush1.msra.mxu0 0.0
        %6333 = vmatprep.mubr.f32.mxu0 0.0
        %6334 = vmatmul.mubr.f32.gmra.mrb[0].mxu0 %v6264
        %v6335 = vpop.f32.mrb[0].mxu0
        %v6336 = vadd.f32 0.0, %v6335
        %v6337 = vpop.f32.mrb[0].mxu0
        %v6338 = vadd.f32 0.0, %v6337
        %6339 = vmatprep.mubr.f32.mxu0 0.0
        %6340 = vmatmul.mubr.f32.gmra.mrb[0].mxu0 %v6267
        %v6341 = vpop.f32.mrb[0].mxu0
        %v6342 = vadd.f32 0.0, %v6341
        %v6343 = vpop.f32.mrb[0].mxu0
        %v6344 = vadd.f32 0.0, %v6343
        %6345 = vdwg.mxu0
        %6346 = vmatprep.subr.mxu0 0.0
        %6347 = vmatpush1.msra.mxu0 %v6259
        %6348 = vmatprep.subr.mxu0 0.0
        %6349 = vmatpush1.msra.mxu0 %v6260
        %6350 = vmatprep.subr.mxu0 0.0
        %6351 = vmatpush1.msra.mxu0 %v6261
        %6352 = vmatprep.subr.mxu0 0.0
        %6353 = vmatpush1.msra.mxu0 %v6262
        %6354 = vmatprep.subr.mxu0 0.0
        %6355 = vmatpush1.msra.mxu0 0.0
        %6356 = vmatprep.subr.mxu0 0.0
        %6357 = vmatpush1.msra.mxu0 0.0
        %6358 = vmatprep.subr.mxu0 0.0
        %6359 = vmatpush1.msra.mxu0 0.0
        %6360 = vmatprep.subr.mxu0 0.0
        %6361 = vmatpush1.msra.mxu0 0.0
        %6362 = vmatprep.subr.mxu0 0.0
        %6363 = vmatpush1.msra.mxu0 0.0
        %6364 = vmatprep.subr.mxu0 0.0
        %6365 = vmatpush1.msra.mxu0 0.0
        %6366 = vmatprep.subr.mxu0 0.0
        %6367 = vmatpush1.msra.mxu0 0.0
        %6368 = vmatprep.subr.mxu0 0.0
        %6369 = vmatpush1.msra.mxu0 0.0
        %6370 = vmatprep.subr.mxu0 0.0
        %6371 = vmatpush1.msra.mxu0 0.0
        %6372 = vmatprep.subr.mxu0 0.0
        %6373 = vmatpush1.msra.mxu0 0.0
        %6374 = vmatprep.subr.mxu0 0.0
        %6375 = vmatpush1.msra.mxu0 0.0
        %6376 = vmatprep.subr.mxu0 0.0
        %6377 = vmatpush1.msra.mxu0 0.0
        %6378 = vmatprep.subr.mxu0 0.0
        %6379 = vmatpush1.msra.mxu0 0.0
        %6380 = vmatprep.subr.mxu0 0.0
        %6381 = vmatpush1.msra.mxu0 0.0
        %6382 = vmatprep.subr.mxu0 0.0
        %6383 = vmatpush1.msra.mxu0 0.0
        %6384 = vmatprep.subr.mxu0 0.0
        %6385 = vmatpush1.msra.mxu0 0.0
        %6386 = vmatprep.subr.mxu0 0.0
        %6387 = vmatpush1.msra.mxu0 0.0
        %6388 = vmatprep.subr.mxu0 0.0
        %6389 = vmatpush1.msra.mxu0 0.0
        %6390 = vmatprep.subr.mxu0 0.0
        %6391 = vmatpush1.msra.mxu0 0.0
        %6392 = vmatprep.subr.mxu0 0.0
        %6393 = vmatpush1.msra.mxu0 0.0
        %6394 = vmatprep.subr.mxu0 0.0
        %6395 = vmatpush1.msra.mxu0 0.0
        %6396 = vmatprep.subr.mxu0 0.0
        %6397 = vmatpush1.msra.mxu0 0.0
        %6398 = vmatprep.subr.mxu0 0.0
        %6399 = vmatpush1.msra.mxu0 0.0
        %6400 = vmatprep.subr.mxu0 0.0
        %6401 = vmatpush1.msra.mxu0 0.0
        %6402 = vmatprep.subr.mxu0 0.0
        %6403 = vmatpush1.msra.mxu0 0.0
        %6404 = vmatprep.subr.mxu0 0.0
        %6405 = vmatpush1.msra.mxu0 0.0
        %6406 = vmatprep.subr.mxu0 0.0
        %6407 = vmatpush1.msra.mxu0 0.0
        %6408 = vmatprep.subr.mxu0 0.0
        %6409 = vmatpush1.msra.mxu0 0.0
        %6410 = vmatprep.mubr.f32.mxu0 0.0
        %6411 = vmatmul.mubr.f32.gmra.mrb[0].mxu0 %v6264
        %v6412 = vpop.f32.mrb[0].mxu0
        %v6413 = vadd.f32 0.0, %v6412
        %v6414 = vpop.f32.mrb[0].mxu0
        %6415 = vmatprep.mubr.f32.mxu0 0.0
        %6416 = vmatmul.mubr.f32.gmra.mrb[0].mxu0 %v6267
        %v6417 = vpop.f32.mrb[0].mxu0
        %v6418 = vadd.f32 0.0, %v6417
        %v6419 = vpop.f32.mrb[0].mxu0
        %6420 = vdwg.mxu0
        %v6421 = vadd.f32 %v6218, %v6336
        %v6422 = vadd.f32 %v6219, %v6338
        %v6423 = vadd.f32 %v6220, %v6413
        %v6424 = vadd.f32 %v6221, %v6342
        %v6425 = vadd.f32 %v6222, %v6344
        %v6426 = vadd.f32 %v6223, %v6418
        %s6427 = scalar_lea.vmem [#allocation12], 128
        %v6428 = vld [vmem:[%s6427] sm:$0xff]
        %v6429 = vld [vmem:[%s6427 + $0x8] sm:$0xff]
        %6430 = vrot.lane.b32.xlu0 %v4500, 109
        %v6431 = vpop.permute.xlu0 %6430
        %6432 = vrot.lane.b32.xlu0 %v4824, 109
        %v6433 = vpop.permute.xlu0 %6432
        %6434 = vrot.lane.b32.xlu0 %v4827, 109
        %v6435 = vpop.permute.xlu0 %6434
        %6436 = vrot.lane.b32.xlu0 %v4830, 109
        %v6437 = vpop.permute.xlu0 %6436
        %6438 = vrot.lane.b32.xlu0 %v4501, 109
        %v6439 = vpop.permute.xlu0 %6438
        %6440 = vrot.lane.b32.xlu0 %v4825, 109
        %v6441 = vpop.permute.xlu0 %6440
        %6442 = vrot.lane.b32.xlu0 %v4828, 109
        %v6443 = vpop.permute.xlu0 %6442
        %6444 = vrot.lane.b32.xlu0 %v4831, 109
        %v6445 = vpop.permute.xlu0 %6444
        %6446 = vrot.lane.b32.xlu0 %v4502, 109
        %v6447 = vpop.permute.xlu0 %6446
        %6448 = vrot.lane.b32.xlu0 %v4826, 109
        %v6449 = vpop.permute.xlu0 %6448
        %6450 = vrot.lane.b32.xlu0 %v4829, 109
        %v6451 = vpop.permute.xlu0 %6450
        %6452 = vrot.lane.b32.xlu0 %v4832, 109
        %v6453 = vpop.permute.xlu0 %6452
        %v6454 = vsel %vm2181, %v6439, %v6447
        %v6455 = vsel %vm2181, %v6441, %v6449
        %v6456 = vsel %vm2181, %v6443, %v6451
        %v6457 = vsel %vm2181, %v6445, %v6453
        %v6458 = vsel %vm2181, %v6431, %v6439
        %v6459 = vsel %vm2181, %v6433, %v6441
        %v6460 = vsel %vm2181, %v6435, %v6443
        %v6461 = vsel %vm2181, %v6437, %v6445
        %v6462 = vsel %vm2181, %v6447, %v6431
        %v6463 = vsel %vm2181, %v6449, %v6433
        %v6464 = vsel %vm2181, %v6451, %v6435
        %v6465 = vsel %vm2181, %v6453, %v6437
        %v6467 = vsel %vm4928, %v6428, 0
        %v6470 = vsel %vm4928, %v6429, 0
        %6472 = vmatprep.subr.mxu0 %v6454
        %6473 = vmatpush1.msra.mxu0 %v6458
        %6474 = vmatprep.subr.mxu0 %v6455
        %6475 = vmatpush1.msra.mxu0 %v6459
        %6476 = vmatprep.subr.mxu0 %v6456
        %6477 = vmatpush1.msra.mxu0 %v6460
        %6478 = vmatprep.subr.mxu0 %v6457
        %6479 = vmatpush1.msra.mxu0 %v6461
        %6480 = vmatprep.subr.mxu0 0.0
        %6481 = vmatpush1.msra.mxu0 0.0
        %6482 = vmatprep.subr.mxu0 0.0
        %6483 = vmatpush1.msra.mxu0 0.0
        %6484 = vmatprep.subr.mxu0 0.0
        %6485 = vmatpush1.msra.mxu0 0.0
        %6486 = vmatprep.subr.mxu0 0.0
        %6487 = vmatpush1.msra.mxu0 0.0
        %6488 = vmatprep.subr.mxu0 0.0
        %6489 = vmatpush1.msra.mxu0 0.0
        %6490 = vmatprep.subr.mxu0 0.0
        %6491 = vmatpush1.msra.mxu0 0.0
        %6492 = vmatprep.subr.mxu0 0.0
        %6493 = vmatpush1.msra.mxu0 0.0
        %6494 = vmatprep.subr.mxu0 0.0
        %6495 = vmatpush1.msra.mxu0 0.0
        %6496 = vmatprep.subr.mxu0 0.0
        %6497 = vmatpush1.msra.mxu0 0.0
        %6498 = vmatprep.subr.mxu0 0.0
        %6499 = vmatpush1.msra.mxu0 0.0
        %6500 = vmatprep.subr.mxu0 0.0
        %6501 = vmatpush1.msra.mxu0 0.0
        %6502 = vmatprep.subr.mxu0 0.0
        %6503 = vmatpush1.msra.mxu0 0.0
        %6504 = vmatprep.subr.mxu0 0.0
        %6505 = vmatpush1.msra.mxu0 0.0
        %6506 = vmatprep.subr.mxu0 0.0
        %6507 = vmatpush1.msra.mxu0 0.0
        %6508 = vmatprep.subr.mxu0 0.0
        %6509 = vmatpush1.msra.mxu0 0.0
        %6510 = vmatprep.subr.mxu0 0.0
        %6511 = vmatpush1.msra.mxu0 0.0
        %6512 = vmatprep.subr.mxu0 0.0
        %6513 = vmatpush1.msra.mxu0 0.0
        %6514 = vmatprep.subr.mxu0 0.0
        %6515 = vmatpush1.msra.mxu0 0.0
        %6516 = vmatprep.subr.mxu0 0.0
        %6517 = vmatpush1.msra.mxu0 0.0
        %6518 = vmatprep.subr.mxu0 0.0
        %6519 = vmatpush1.msra.mxu0 0.0
        %6520 = vmatprep.subr.mxu0 0.0
        %6521 = vmatpush1.msra.mxu0 0.0
        %6522 = vmatprep.subr.mxu0 0.0
        %6523 = vmatpush1.msra.mxu0 0.0
        %6524 = vmatprep.subr.mxu0 0.0
        %6525 = vmatpush1.msra.mxu0 0.0
        %6526 = vmatprep.subr.mxu0 0.0
        %6527 = vmatpush1.msra.mxu0 0.0
        %6528 = vmatprep.subr.mxu0 0.0
        %6529 = vmatpush1.msra.mxu0 0.0
        %6530 = vmatprep.subr.mxu0 0.0
        %6531 = vmatpush1.msra.mxu0 0.0
        %6532 = vmatprep.subr.mxu0 0.0
        %6533 = vmatpush1.msra.mxu0 0.0
        %6534 = vmatprep.subr.mxu0 0.0
        %6535 = vmatpush1.msra.mxu0 0.0
        %6536 = vmatprep.mubr.f32.mxu0 0.0
        %6537 = vmatmul.mubr.f32.gmra.mrb[0].mxu0 %v6467
        %v6538 = vpop.f32.mrb[0].mxu0
        %v6539 = vadd.f32 0.0, %v6538
        %v6540 = vpop.f32.mrb[0].mxu0
        %v6541 = vadd.f32 0.0, %v6540
        %6542 = vmatprep.mubr.f32.mxu0 0.0
        %6543 = vmatmul.mubr.f32.gmra.mrb[0].mxu0 %v6470
        %v6544 = vpop.f32.mrb[0].mxu0
        %v6545 = vadd.f32 0.0, %v6544
        %v6546 = vpop.f32.mrb[0].mxu0
        %v6547 = vadd.f32 0.0, %v6546
        %6548 = vdwg.mxu0
        %6549 = vmatprep.subr.mxu0 0.0
        %6550 = vmatpush1.msra.mxu0 %v6462
        %6551 = vmatprep.subr.mxu0 0.0
        %6552 = vmatpush1.msra.mxu0 %v6463
        %6553 = vmatprep.subr.mxu0 0.0
        %6554 = vmatpush1.msra.mxu0 %v6464
        %6555 = vmatprep.subr.mxu0 0.0
        %6556 = vmatpush1.msra.mxu0 %v6465
        %6557 = vmatprep.subr.mxu0 0.0
        %6558 = vmatpush1.msra.mxu0 0.0
        %6559 = vmatprep.subr.mxu0 0.0
        %6560 = vmatpush1.msra.mxu0 0.0
        %6561 = vmatprep.subr.mxu0 0.0
        %6562 = vmatpush1.msra.mxu0 0.0
        %6563 = vmatprep.subr.mxu0 0.0
        %6564 = vmatpush1.msra.mxu0 0.0
        %6565 = vmatprep.subr.mxu0 0.0
        %6566 = vmatpush1.msra.mxu0 0.0
        %6567 = vmatprep.subr.mxu0 0.0
        %6568 = vmatpush1.msra.mxu0 0.0
        %6569 = vmatprep.subr.mxu0 0.0
        %6570 = vmatpush1.msra.mxu0 0.0
        %6571 = vmatprep.subr.mxu0 0.0
        %6572 = vmatpush1.msra.mxu0 0.0
        %6573 = vmatprep.subr.mxu0 0.0
        %6574 = vmatpush1.msra.mxu0 0.0
        %6575 = vmatprep.subr.mxu0 0.0
        %6576 = vmatpush1.msra.mxu0 0.0
        %6577 = vmatprep.subr.mxu0 0.0
        %6578 = vmatpush1.msra.mxu0 0.0
        %6579 = vmatprep.subr.mxu0 0.0
        %6580 = vmatpush1.msra.mxu0 0.0
        %6581 = vmatprep.subr.mxu0 0.0
        %6582 = vmatpush1.msra.mxu0 0.0
        %6583 = vmatprep.subr.mxu0 0.0
        %6584 = vmatpush1.msra.mxu0 0.0
        %6585 = vmatprep.subr.mxu0 0.0
        %6586 = vmatpush1.msra.mxu0 0.0
        %6587 = vmatprep.subr.mxu0 0.0
        %6588 = vmatpush1.msra.mxu0 0.0
        %6589 = vmatprep.subr.mxu0 0.0
        %6590 = vmatpush1.msra.mxu0 0.0
        %6591 = vmatprep.subr.mxu0 0.0
        %6592 = vmatpush1.msra.mxu0 0.0
        %6593 = vmatprep.subr.mxu0 0.0
        %6594 = vmatpush1.msra.mxu0 0.0
        %6595 = vmatprep.subr.mxu0 0.0
        %6596 = vmatpush1.msra.mxu0 0.0
        %6597 = vmatprep.subr.mxu0 0.0
        %6598 = vmatpush1.msra.mxu0 0.0
        %6599 = vmatprep.subr.mxu0 0.0
        %6600 = vmatpush1.msra.mxu0 0.0
        %6601 = vmatprep.subr.mxu0 0.0
        %6602 = vmatpush1.msra.mxu0 0.0
        %6603 = vmatprep.subr.mxu0 0.0
        %6604 = vmatpush1.msra.mxu0 0.0
        %6605 = vmatprep.subr.mxu0 0.0
        %6606 = vmatpush1.msra.mxu0 0.0
        %6607 = vmatprep.subr.mxu0 0.0
        %6608 = vmatpush1.msra.mxu0 0.0
        %6609 = vmatprep.subr.mxu0 0.0
        %6610 = vmatpush1.msra.mxu0 0.0
        %6611 = vmatprep.subr.mxu0 0.0
        %6612 = vmatpush1.msra.mxu0 0.0
        %6613 = vmatprep.mubr.f32.mxu0 0.0
        %6614 = vmatmul.mubr.f32.gmra.mrb[0].mxu0 %v6467
        %v6615 = vpop.f32.mrb[0].mxu0
        %v6616 = vadd.f32 0.0, %v6615
        %v6617 = vpop.f32.mrb[0].mxu0
        %6618 = vmatprep.mubr.f32.mxu0 0.0
        %6619 = vmatmul.mubr.f32.gmra.mrb[0].mxu0 %v6470
        %v6620 = vpop.f32.mrb[0].mxu0
        %v6621 = vadd.f32 0.0, %v6620
        %v6622 = vpop.f32.mrb[0].mxu0
        %6623 = vdwg.mxu0
        %v6624 = vadd.f32 %v6421, %v6539
        %v6625 = vadd.f32 %v6422, %v6541
        %v6626 = vadd.f32 %v6423, %v6616
        %v6627 = vadd.f32 %v6424, %v6545
        %v6628 = vadd.f32 %v6425, %v6547
        %v6629 = vadd.f32 %v6426, %v6621
        %6630 = vrot.lane.b32.xlu0 %v4833, 1
        %v6631 = vpop.permute.xlu0 %6630
        %6632 = vrot.lane.b32.xlu0 %v4836, 1
        %v6633 = vpop.permute.xlu0 %6632
        %6634 = vrot.lane.b32.xlu0 %v4839, 1
        %v6635 = vpop.permute.xlu0 %6634
        %6636 = vrot.lane.b32.xlu0 %v4842, 1
        %v6637 = vpop.permute.xlu0 %6636
        %6638 = vrot.lane.b32.xlu0 %v4845, 1
        %v6639 = vpop.permute.xlu0 %6638
        %6640 = vrot.lane.b32.xlu0 %v4848, 1
        %v6641 = vpop.permute.xlu0 %6640
        %6642 = vrot.lane.b32.xlu0 %v4834, 1
        %v6643 = vpop.permute.xlu0 %6642
        %6644 = vrot.lane.b32.xlu0 %v4837, 1
        %v6645 = vpop.permute.xlu0 %6644
        %6646 = vrot.lane.b32.xlu0 %v4840, 1
        %v6647 = vpop.permute.xlu0 %6646
        %6648 = vrot.lane.b32.xlu0 %v4843, 1
        %v6649 = vpop.permute.xlu0 %6648
        %6650 = vrot.lane.b32.xlu0 %v4846, 1
        %v6651 = vpop.permute.xlu0 %6650
        %6652 = vrot.lane.b32.xlu0 %v4849, 1
        %v6653 = vpop.permute.xlu0 %6652
        %6654 = vrot.lane.b32.xlu0 %v4835, 1
        %v6655 = vpop.permute.xlu0 %6654
        %6656 = vrot.lane.b32.xlu0 %v4838, 1
        %v6657 = vpop.permute.xlu0 %6656
        %6658 = vrot.lane.b32.xlu0 %v4841, 1
        %v6659 = vpop.permute.xlu0 %6658
        %6660 = vrot.lane.b32.xlu0 %v4844, 1
        %v6661 = vpop.permute.xlu0 %6660
        %6662 = vrot.lane.b32.xlu0 %v4847, 1
        %v6663 = vpop.permute.xlu0 %6662
        %6664 = vrot.lane.b32.xlu0 %v4850, 1
        %v6665 = vpop.permute.xlu0 %6664
        %v6666 = vsel %vm1324, %v6643, %v6655
        %v6667 = vsel %vm1324, %v6645, %v6657
        %v6668 = vsel %vm1324, %v6647, %v6659
        %v6669 = vsel %vm1324, %v6649, %v6661
        %v6670 = vsel %vm1324, %v6651, %v6663
        %v6671 = vsel %vm1324, %v6653, %v6665
        %v6672 = vsel %vm1324, %v6631, %v6643
        %v6673 = vsel %vm1324, %v6633, %v6645
        %v6674 = vsel %vm1324, %v6635, %v6647
        %v6675 = vsel %vm1324, %v6637, %v6649
        %v6676 = vsel %vm1324, %v6639, %v6651
        %v6677 = vsel %vm1324, %v6641, %v6653
        %v6678 = vsel %vm1324, %v6655, %v6631
        %v6679 = vsel %vm1324, %v6657, %v6633
        %v6680 = vsel %vm1324, %v6659, %v6635
        %v6681 = vsel %vm1324, %v6661, %v6637
        %v6682 = vsel %vm1324, %v6663, %v6639
        %v6683 = vsel %vm1324, %v6665, %v6641
        %6684 = vrot.lane.b32.xlu0 %v4833, 127
        %v6685 = vpop.permute.xlu0 %6684
        %6686 = vrot.lane.b32.xlu0 %v4836, 127
        %v6687 = vpop.permute.xlu0 %6686
        %6688 = vrot.lane.b32.xlu0 %v4839, 127
        %v6689 = vpop.permute.xlu0 %6688
        %6690 = vrot.lane.b32.xlu0 %v4842, 127
        %v6691 = vpop.permute.xlu0 %6690
        %6692 = vrot.lane.b32.xlu0 %v4845, 127
        %v6693 = vpop.permute.xlu0 %6692
        %6694 = vrot.lane.b32.xlu0 %v4848, 127
        %v6695 = vpop.permute.xlu0 %6694
        %6696 = vrot.lane.b32.xlu0 %v4834, 127
        %v6697 = vpop.permute.xlu0 %6696
        %6698 = vrot.lane.b32.xlu0 %v4837, 127
        %v6699 = vpop.permute.xlu0 %6698
        %6700 = vrot.lane.b32.xlu0 %v4840, 127
        %v6701 = vpop.permute.xlu0 %6700
        %6702 = vrot.lane.b32.xlu0 %v4843, 127
        %v6703 = vpop.permute.xlu0 %6702
        %6704 = vrot.lane.b32.xlu0 %v4846, 127
        %v6705 = vpop.permute.xlu0 %6704
        %6706 = vrot.lane.b32.xlu0 %v4849, 127
        %v6707 = vpop.permute.xlu0 %6706
        %6708 = vrot.lane.b32.xlu0 %v4835, 127
        %v6709 = vpop.permute.xlu0 %6708
        %6710 = vrot.lane.b32.xlu0 %v4838, 127
        %v6711 = vpop.permute.xlu0 %6710
        %6712 = vrot.lane.b32.xlu0 %v4841, 127
        %v6713 = vpop.permute.xlu0 %6712
        %6714 = vrot.lane.b32.xlu0 %v4844, 127
        %v6715 = vpop.permute.xlu0 %6714
        %6716 = vrot.lane.b32.xlu0 %v4847, 127
        %v6717 = vpop.permute.xlu0 %6716
        %6718 = vrot.lane.b32.xlu0 %v4850, 127
        %v6719 = vpop.permute.xlu0 %6718
        %v6720 = vsel %vm1650, %v6697, %v6709
        %v6721 = vsel %vm1650, %v6699, %v6711
        %v6722 = vsel %vm1650, %v6701, %v6713
        %v6723 = vsel %vm1650, %v6703, %v6715
        %v6724 = vsel %vm1650, %v6705, %v6717
        %v6725 = vsel %vm1650, %v6707, %v6719
        %v6726 = vsel %vm1650, %v6685, %v6697
        %v6727 = vsel %vm1650, %v6687, %v6699
        %v6728 = vsel %vm1650, %v6689, %v6701
        %v6729 = vsel %vm1650, %v6691, %v6703
        %v6730 = vsel %vm1650, %v6693, %v6705
        %v6731 = vsel %vm1650, %v6695, %v6707
        %v6732 = vsel %vm1650, %v6709, %v6685
        %v6733 = vsel %vm1650, %v6711, %v6687
        %v6734 = vsel %vm1650, %v6713, %v6689
        %v6735 = vsel %vm1650, %v6715, %v6691
        %v6736 = vsel %vm1650, %v6717, %v6693
        %v6737 = vsel %vm1650, %v6719, %v6695
        %v6738 = vsub.f32 %v6678, %v6726
        %v6739 = vsub.f32 %v6672, %v6720
        %v6740 = vsub.f32 %v6666, %v6732
        %v6741 = vsub.f32 %v6679, %v6727
        %v6742 = vsub.f32 %v6673, %v6721
        %v6743 = vsub.f32 %v6667, %v6733
        %6744 = vrot.lane.b32.xlu0 %v6738, 18
        %v6745 = vpop.permute.xlu0 %6744
        %6746 = vrot.lane.b32.xlu0 %v6741, 18
        %v6747 = vpop.permute.xlu0 %6746
        %6748 = vrot.lane.b32.xlu0 %v6739, 18
        %v6749 = vpop.permute.xlu0 %6748
        %6750 = vrot.lane.b32.xlu0 %v6742, 18
        %v6751 = vpop.permute.xlu0 %6750
        %6752 = vrot.lane.b32.xlu0 %v6740, 18
        %v6753 = vpop.permute.xlu0 %6752
        %6754 = vrot.lane.b32.xlu0 %v6743, 18
        %v6755 = vpop.permute.xlu0 %6754
        %v6756 = vsel %vm828, %v6749, %v6753
        %v6757 = vsel %vm828, %v6751, %v6755
        %v6758 = vsel %vm828, %v6745, %v6749
        %v6759 = vsel %vm828, %v6747, %v6751
        %v6760 = vsel %vm828, %v6753, %v6745
        %v6761 = vsel %vm828, %v6755, %v6747
        %v6762 = vadd.f32 %v6624, %v6760
        %v6763 = vadd.f32 %v6625, %v6758
        %v6764 = vadd.f32 %v6626, %v6756
        %v6765 = vadd.f32 %v6627, %v6761
        %v6766 = vadd.f32 %v6628, %v6759
        %v6767 = vadd.f32 %v6629, %v6757
        %v6768 = vmul.f32 %v6738, 2.0
        %v6769 = vmul.f32 %v6739, 2.0
        %v6770 = vmul.f32 %v6740, 2.0
        %v6771 = vmul.f32 %v6741, 2.0
        %v6772 = vmul.f32 %v6742, 2.0
        %v6773 = vmul.f32 %v6743, 2.0
        %v6774 = vadd.f32 %v6762, %v6768
        %v6775 = vadd.f32 %v6763, %v6769
        %v6776 = vadd.f32 %v6764, %v6770
        %v6777 = vadd.f32 %v6765, %v6771
        %v6778 = vadd.f32 %v6766, %v6772
        %v6779 = vadd.f32 %v6767, %v6773
        %6780 = vrot.lane.b32.xlu0 %v6738, 110
        %v6781 = vpop.permute.xlu0 %6780
        %6782 = vrot.lane.b32.xlu0 %v6741, 110
        %v6783 = vpop.permute.xlu0 %6782
        %6784 = vrot.lane.b32.xlu0 %v6739, 110
        %v6785 = vpop.permute.xlu0 %6784
        %6786 = vrot.lane.b32.xlu0 %v6742, 110
        %v6787 = vpop.permute.xlu0 %6786
        %6788 = vrot.lane.b32.xlu0 %v6740, 110
        %v6789 = vpop.permute.xlu0 %6788
        %6790 = vrot.lane.b32.xlu0 %v6743, 110
        %v6791 = vpop.permute.xlu0 %6790
        %v6792 = vsel %vm2004, %v6785, %v6789
        %v6793 = vsel %vm2004, %v6787, %v6791
        %v6794 = vsel %vm2004, %v6781, %v6785
        %v6795 = vsel %vm2004, %v6783, %v6787
        %v6796 = vsel %vm2004, %v6789, %v6781
        %v6797 = vsel %vm2004, %v6791, %v6783
        %v6798 = vadd.f32 %v6774, %v6794
        %v6799 = vadd.f32 %v6775, %v6792
        %v6800 = vadd.f32 %v6776, %v6796
        %v6801 = vadd.f32 %v6777, %v6795
        %v6802 = vadd.f32 %v6778, %v6793
        %v6803 = vadd.f32 %v6779, %v6797
        %v6804 = vmul.f32 %v4839, 2.0
        %v6805 = vmul.f32 %v4840, 2.0
        %v6806 = vmul.f32 %v4841, 2.0
        %v6807 = vmul.f32 %v4842, 2.0
        %v6808 = vmul.f32 %v4843, 2.0
        %v6809 = vmul.f32 %v4844, 2.0
        %v6810 = vadd.f32 %v6680, %v6804
        %v6811 = vadd.f32 %v6674, %v6805
        %v6812 = vadd.f32 %v6668, %v6806
        %v6813 = vadd.f32 %v6681, %v6807
        %v6814 = vadd.f32 %v6675, %v6808
        %v6815 = vadd.f32 %v6669, %v6809
        %v6816 = vadd.f32 %v6810, %v6728
        %v6817 = vadd.f32 %v6811, %v6722
        %v6818 = vadd.f32 %v6812, %v6734
        %v6819 = vadd.f32 %v6813, %v6729
        %v6820 = vadd.f32 %v6814, %v6723
        %v6821 = vadd.f32 %v6815, %v6735
        %6822 = vrot.lane.b32.xlu0 %v6816, 18
        %v6823 = vpop.permute.xlu0 %6822
        %6824 = vrot.lane.b32.xlu0 %v6819, 18
        %v6825 = vpop.permute.xlu0 %6824
        %6826 = vrot.lane.b32.xlu0 %v6817, 18
        %v6827 = vpop.permute.xlu0 %6826
        %6828 = vrot.lane.b32.xlu0 %v6820, 18
        %v6829 = vpop.permute.xlu0 %6828
        %6830 = vrot.lane.b32.xlu0 %v6818, 18
        %v6831 = vpop.permute.xlu0 %6830
        %6832 = vrot.lane.b32.xlu0 %v6821, 18
        %v6833 = vpop.permute.xlu0 %6832
        %v6834 = vsel %vm828, %v6827, %v6831
        %v6835 = vsel %vm828, %v6829, %v6833
        %v6836 = vsel %vm828, %v6823, %v6827
        %v6837 = vsel %vm828, %v6825, %v6829
        %v6838 = vsel %vm828, %v6831, %v6823
        %v6839 = vsel %vm828, %v6833, %v6825
        %v6840 = vadd.f32 %v6798, %v6838
        %v6841 = vadd.f32 %v6799, %v6836
        %v6842 = vadd.f32 %v6800, %v6834
        %v6843 = vadd.f32 %v6801, %v6839
        %v6844 = vadd.f32 %v6802, %v6837
        %v6845 = vadd.f32 %v6803, %v6835
        %6846 = vrot.lane.b32.xlu0 %v6816, 110
        %v6847 = vpop.permute.xlu0 %6846
        %6848 = vrot.lane.b32.xlu0 %v6819, 110
        %v6849 = vpop.permute.xlu0 %6848
        %6850 = vrot.lane.b32.xlu0 %v6817, 110
        %v6851 = vpop.permute.xlu0 %6850
        %6852 = vrot.lane.b32.xlu0 %v6820, 110
        %v6853 = vpop.permute.xlu0 %6852
        %6854 = vrot.lane.b32.xlu0 %v6818, 110
        %v6855 = vpop.permute.xlu0 %6854
        %6856 = vrot.lane.b32.xlu0 %v6821, 110
        %v6857 = vpop.permute.xlu0 %6856
        %v6858 = vsel %vm2004, %v6851, %v6855
        %v6859 = vsel %vm2004, %v6853, %v6857
        %v6860 = vsel %vm2004, %v6847, %v6851
        %v6861 = vsel %vm2004, %v6849, %v6853
        %v6862 = vsel %vm2004, %v6855, %v6847
        %v6863 = vsel %vm2004, %v6857, %v6849
        %v6864 = vsub.f32 %v6840, %v6860
        %v6865 = vsub.f32 %v6841, %v6858
        %v6866 = vsub.f32 %v6842, %v6862
        %v6867 = vsub.f32 %v6843, %v6861
        %v6868 = vsub.f32 %v6844, %v6859
        %v6869 = vsub.f32 %v6845, %v6863
        %v6870 = vadd.f32 %v6864, %v6682
        %v6871 = vadd.f32 %v6865, %v6676
        %v6872 = vadd.f32 %v6866, %v6670
        %v6873 = vadd.f32 %v6867, %v6683
        %v6874 = vadd.f32 %v6868, %v6677
        %v6875 = vadd.f32 %v6869, %v6671
        %v6876 = vadd.f32 %v6870, %v6730
        %v6877 = vadd.f32 %v6871, %v6724
        %v6878 = vadd.f32 %v6872, %v6736
        %v6879 = vadd.f32 %v6873, %v6731
        %v6880 = vadd.f32 %v6874, %v6725
        %v6881 = vadd.f32 %v6875, %v6737
        %6882 = vrot.lane.b32.xlu0 %v4845, 18
        %v6883 = vpop.permute.xlu0 %6882
        %6884 = vrot.lane.b32.xlu0 %v4848, 18
        %v6885 = vpop.permute.xlu0 %6884
        %6886 = vrot.lane.b32.xlu0 %v4846, 18
        %v6887 = vpop.permute.xlu0 %6886
        %6888 = vrot.lane.b32.xlu0 %v4849, 18
        %v6889 = vpop.permute.xlu0 %6888
        %6890 = vrot.lane.b32.xlu0 %v4847, 18
        %v6891 = vpop.permute.xlu0 %6890
        %6892 = vrot.lane.b32.xlu0 %v4850, 18
        %v6893 = vpop.permute.xlu0 %6892
        %v6894 = vsel %vm828, %v6887, %v6891
        %v6895 = vsel %vm828, %v6889, %v6893
        %v6896 = vsel %vm828, %v6883, %v6887
        %v6897 = vsel %vm828, %v6885, %v6889
        %v6898 = vsel %vm828, %v6891, %v6883
        %v6899 = vsel %vm828, %v6893, %v6885
        %v6900 = vadd.f32 %v6876, %v6898
        %v6901 = vadd.f32 %v6877, %v6896
        %v6902 = vadd.f32 %v6878, %v6894
        %v6903 = vadd.f32 %v6879, %v6899
        %v6904 = vadd.f32 %v6880, %v6897
        %v6905 = vadd.f32 %v6881, %v6895
        %6906 = vrot.lane.b32.xlu0 %v4845, 110
        %v6907 = vpop.permute.xlu0 %6906
        %6908 = vrot.lane.b32.xlu0 %v4848, 110
        %v6909 = vpop.permute.xlu0 %6908
        %6910 = vrot.lane.b32.xlu0 %v4846, 110
        %v6911 = vpop.permute.xlu0 %6910
        %6912 = vrot.lane.b32.xlu0 %v4849, 110
        %v6913 = vpop.permute.xlu0 %6912
        %6914 = vrot.lane.b32.xlu0 %v4847, 110
        %v6915 = vpop.permute.xlu0 %6914
        %6916 = vrot.lane.b32.xlu0 %v4850, 110
        %v6917 = vpop.permute.xlu0 %6916
        %v6918 = vsel %vm2004, %v6911, %v6915
        %v6919 = vsel %vm2004, %v6913, %v6917
        %v6920 = vsel %vm2004, %v6907, %v6911
        %v6921 = vsel %vm2004, %v6909, %v6913
        %v6922 = vsel %vm2004, %v6915, %v6907
        %v6923 = vsel %vm2004, %v6917, %v6909
        %v6924 = vadd.f32 %v6900, %v6920
        %v6925 = vadd.f32 %v6901, %v6918
        %v6926 = vadd.f32 %v6902, %v6922
        %v6927 = vadd.f32 %v6903, %v6921
        %v6928 = vadd.f32 %v6904, %v6919
        %v6929 = vadd.f32 %v6905, %v6923
        %v6930 = vmul.f32 %v4845, 4.0
        %v6931 = vmul.f32 %v4846, 4.0
        %v6932 = vmul.f32 %v4847, 4.0
        %v6933 = vmul.f32 %v4848, 4.0
        %v6934 = vmul.f32 %v4849, 4.0
        %v6935 = vmul.f32 %v4850, 4.0
        %v6936 = vsub.f32 %v6924, %v6930
        %v6937 = vsub.f32 %v6925, %v6931
        %v6938 = vsub.f32 %v6926, %v6932
        %v6939 = vsub.f32 %v6927, %v6933
        %v6940 = vsub.f32 %v6928, %v6934
        %v6941 = vsub.f32 %v6929, %v6935
        %6943 = vset.pattern.permute.xlu0 0
        %6944 = vperm.xlu0 %6943, %v4512
        %v6945 = vpop.permute.xlu0 %6944
        %6948 = vset.pattern.permute.xlu0 0
        %6949 = vperm.xlu0 %6948, %v4513
        %v6950 = vpop.permute.xlu0 %6949
        %v6952 = vadd.f32 %v6936, %v6945
        %v6953 = vadd.f32 %v6937, %v6945
        %v6954 = vadd.f32 %v6938, %v6945
        %v6955 = vadd.f32 %v6939, %v6950
        %v6956 = vadd.f32 %v6940, %v6950
        %v6957 = vadd.f32 %v6941, %v6950
        %v6958 = vsel %vm759, %v6952, 0.0
        %v6959 = vsel %vm760, %v6953, 0.0
        %v6960 = vsel %vm761, %v6954, 0.0
        %v6961 = vsel %vm759, %v6955, 0.0
        %v6962 = vsel %vm760, %v6956, 0.0
        %v6963 = vsel %vm761, %v6957, 0.0
        %6964 = vst [vmem:[%s503] sm:$0xff] %v6958
        %6965 = vst [vmem:[%s503 + $0x8] sm:$0xff] %v6959
        %6966 = vst [vmem:[%s503 + $0x10] sm:$0xff] %v6960
        %6967 = vst [vmem:[%s503 + $0x18] sm:$0xff] %v6961
        %6968 = vst [vmem:[%s503 + $0x20] sm:$0xff] %v6962
        %6969 = vst [vmem:[%s503 + $0x28] sm:$0xff] %v6963
        %p6970 = scmp.lt.s32.totalorder %s27, 1
        %s6971 = scalar_select %p6970, %s27, 1
        %s6972 = smul.addr %s6971, 6
        %s6973 = smul.addr %s6972, 8
        %s6974 = scalar_lea.vmem %s11, %s6973
        // Predicated region
        $region97: #{_lambda_.1} parent=63 // pred_check
          %p6975 = pneg %p281
        $region98: #{_lambda_.1} parent=63 // pred_check_branch
          %6977 = sbr.rel (%p6975) target = $region100
        $region99: #{_lambda_.1} parent=63 // pred_region
          _
        $region100: #{_lambda_.1} parent=63 // pred_fallthru
          _
      $region64: #{_lambda_.1} parent=5 // pred_fallthru
        _
      %p6978 = scmp.le.s32.totalorder 2, %s22
      // Predicated region
      $region101: #{_lambda_.1} parent=5 // pred_check
        %p6979 = pneg %p6978
      $region102: #{_lambda_.1} parent=5 // pred_check_branch
        %6981 = sbr.rel (%p6979) target = $region104
      $region103: #{_lambda_.1} parent=5 // pred_region
        %s6982 = ssub.s32 %s22, 2
        // Predicated region
        $region105: #{_lambda_.1} parent=103 // pred_check
          %p6983 = pneg %p287
        $region106: #{_lambda_.1} parent=103 // pred_check_branch
          %6985 = sbr.rel (%p6983) target = $region108
        $region107: #{_lambda_.1} parent=103 // pred_region
          %p6986 = scmp.lt.s32.totalorder %s28, 1
          %s6987 = scalar_select %p6986, %s28, 1
          %s6988 = smul.addr %s6987, 6
          %s6989 = smul.addr %s6988, 8
          %s6990 = scalar_lea.vmem %s11, %s6989
        $region108: #{_lambda_.1} parent=103 // pred_fallthru
          _
      $region104: #{_lambda_.1} parent=5 // pred_fallthru
        _
    $region6: #{_lambda_.1} parent=1 // loop_footer
      %s26 = sadd.s32 1, %s22
    $region7: #{_lambda_.1} parent=1 // loop_footer_branch
      %21 = sbr.rel target = $region3
    $region8: #{_lambda_.1} parent=1 // loop_exit
      _
    %6991 = vsyncpa [#allocation3], 1
    %s6992 = scalar_lea.sflag [#allocation3], 1
    %6993 = vsyncpa %s6992, 1
    %6994 = vsyncpa [#allocation5], 1
    %6995 = vsyncpa [#allocation8], 1
    %6996 = vsyncpa [#allocation11], 1
    %6997 = vsyncpa [#allocation14], 1

</llo_original>
